<compile_context>
chip_gen: v7x
topology: tpu7x:2x2x1
jax: 0.10.0
libtpu: 0.0.40
codegen_flags: <defaults>
</compile_context>

<pallas_src>
import functools
import numpy as np
import jax
import jax.numpy as jnp
from jax.experimental import pallas as pl
from jax.experimental.pallas import tpu as pltpu


# ----------------------------- config -----------------------------
class Cfg:
    vocab_size = 128
    d_model = 32
    d_kv = 8
    num_heads = 4
    d_ff = 64
    num_layers = 2            # encoder layers
    num_decoder_layers = 2    # decoder layers
    relative_attention_num_buckets = 32
    relative_attention_max_distance = 128
    layer_norm_epsilon = 1e-6
    dropout_rate = 0.1        # identity at inference
    decoder_start_token_id = 0
    eos_token_id = 1


# Large finite mask value: exp(score + MASK_NEG - max) underflows to exactly 0
# for any realistic score magnitude -> same softmax output as finfo.min, but no
# (-inf) - (-inf) NaN risk.
MASK_NEG = -1e9


# -------------------- in-kernel helper functions --------------------
def _rmsnorm(x, w, eps):
    """T5LayerNorm: RMS norm (no mean subtraction, no bias). x:(R,D) w:(1,D)."""
    var = jnp.mean(x * x, axis=-1, keepdims=True)
    return w * x * jax.lax.rsqrt(var + eps)


def _bf16_dot(x, w):
    """MXU matmul: bf16 inputs, f32 accumulation. w is already bf16."""
    return jnp.dot(x.astype(jnp.bfloat16), w,
                   preferred_element_type=jnp.float32)


def _mha(q3, k3, v3, bias_all, B, H, dk):
    """Head-batched attention (no 1/sqrt(dk) scaling — T5 convention).

    q3: (B, Lq, H*dk), k3/v3: (B, Lk, H*dk), bias_all: (H*B, Lq, Lk) in
    h-major order. Heads are packed into the leading (batch) dim of a 3-D
    einsum via lane slices + axis-0 concat, so each layer does exactly one
    Q.K^T matmul, one softmax and one P.V matmul. Returns (B, Lq, H*dk).
    """
    def split_heads(x):
        return jnp.concatenate(
            [x[:, :, h * dk:(h + 1) * dk] for h in range(H)], axis=0)

    q_all = split_heads(q3).astype(jnp.bfloat16)      # (H*B, Lq, dk)
    k_all = split_heads(k3).astype(jnp.bfloat16)      # (H*B, Lk, dk)
    v_all = split_heads(v3).astype(jnp.bfloat16)      # (H*B, Lk, dk)

    s = jnp.einsum('bqd,bkd->bqk', q_all, k_all,
                   preferred_element_type=jnp.float32) + bias_all
    m = jnp.max(s, axis=-1, keepdims=True)
    e = jnp.exp(s - m)
    p = e * pl.reciprocal(jnp.sum(e, axis=-1, keepdims=True), approx=True)
    ctx = jnp.einsum('bqk,bkd->bqd', p.astype(jnp.bfloat16), v_all,
                     preferred_element_type=jnp.float32)   # (H*B, Lq, dk)
    # merge heads back to (B, Lq, H*dk)
    return jnp.concatenate([ctx[h * B:(h + 1) * B] for h in range(H)], axis=-1)


# --------------------------- fused kernel ---------------------------
def _t5_fused_kernel(
        ids_ref,       # (B*Le, 1) int32
        mask_ref,      # (B, Le)   f32
        embed_ref,     # (V, D)    bf16
        pos_bias_ref,  # (H, Le, Le) f32   encoder relative-position bias
        enc_ln1_ref,   # (Ne, 1, D)        f32
        enc_qkv_ref,   # (Ne, D, 3*inner)  bf16
        enc_o_ref,     # (Ne, inner, D)    bf16
        enc_ln2_ref,   # (Ne, 1, D)        f32
        enc_wi_ref,    # (Ne, D, Dff)      bf16
        enc_wo_ref,    # (Ne, Dff, D)      bf16
        enc_fln_ref,   # (1, D)            f32
        dec_ln1_ref,   # (Nd, 1, D)        f32
        dec_sa_ref,    # (Nd, D, D)        bf16   pre-fused self-attn V @ O
        dec_lnc_ref,   # (Nd, 1, D)        f32
        dec_caq_ref,   # (Nd, D, inner)    bf16   cross-attn Q proj
        dec_cakv_ref,  # (D, Nd*2*inner)   bf16   ALL layers' cross K|V proj
        dec_cao_ref,   # (Nd, inner, D)    bf16   cross-attn O proj
        dec_ln2_ref,   # (Nd, 1, D)        f32
        dec_wi_ref,    # (Nd, D, Dff)      bf16
        dec_wo_ref,    # (Nd, Dff, D)      bf16
        dec_fln_ref,   # (1, D)            f32
        lm_head_ref,   # (D, V)            bf16
        out_ref,       # (B, V)            f32   (decoder length is 1)
        *, B, Le, H, dk, D, n_enc, n_dec, V, eps, start_id):
    inner = H * dk

    # ---- encoder embedding: one-hot gather (bf16, lane-dense V=128) ----
    ids = ids_ref[...]                                          # (B*Le, 1)
    lane = jax.lax.broadcasted_iota(jnp.int32, (B * Le, V), 1)
    onehot = (ids == lane).astype(jnp.bfloat16)                 # (B*Le, V)
    h = jnp.dot(onehot, embed_ref[...],
                preferred_element_type=jnp.float32)             # (B*Le, D)

    # ---- hoisted attention biases (computed once, reused by all layers) ----
    neg_mask = (1.0 - mask_ref[...]) * MASK_NEG                 # (B, Le)
    enc_bias = (pos_bias_ref[...][:, None, :, :]
                + neg_mask[None, :, None, :]).reshape(H * B, Le, Le)
    x_bias = jnp.broadcast_to(neg_mask[None, :, None, :],
                              (H, B, 1, Le)).reshape(H * B, 1, Le)

    # ------------------------- encoder blocks -------------------------
    for l in range(n_enc):
        # self-attention sub-layer (pre-LN, residual)
        normed = _rmsnorm(h, enc_ln1_ref[l], eps)
        qkv = _bf16_dot(normed, enc_qkv_ref[l])                 # (B*Le, 3*inner)
        q3 = qkv[:, :inner].reshape(B, Le, inner)
        k3 = qkv[:, inner:2 * inner].reshape(B, Le, inner)
        v3 = qkv[:, 2 * inner:].reshape(B, Le, inner)
        ctx = _mha(q3, k3, v3, enc_bias, B, H, dk)              # (B, Le, inner)
        h = h + _bf16_dot(ctx.reshape(B * Le, inner), enc_o_ref[l])
        # feed-forward sub-layer (DenseReluDense)
        normed = _rmsnorm(h, enc_ln2_ref[l], eps)
        ff = jnp.maximum(_bf16_dot(normed, enc_wi_ref[l]), 0.0)
        h = h + _bf16_dot(ff, enc_wo_ref[l])

    # encoder final RMSNorm (T5StackFFPipe)
    enc_out = _rmsnorm(h, enc_fln_ref[...], eps)                # (B*Le, D)

    # -------------------- decoder (single start token) --------------------
    d = jnp.broadcast_to(
        embed_ref[start_id:start_id + 1, :].astype(jnp.float32), (B, D))

    # layer-invariant: every layer's cross-attn K/V in one lane-dense matmul
    kv_all = _bf16_dot(enc_out, dec_cakv_ref[...])              # (B*Le, Nd*2*inner)

    for l in range(n_dec):
        # self-attention: Lq = Lk = 1 -> softmax == 1 -> context == V proj;
        # V and O projections pre-fused into a single (D, D) weight.
        normed = _rmsnorm(d, dec_ln1_ref[l], eps)
        d = d + _bf16_dot(normed, dec_sa_ref[l])
        # cross-attention over final encoder hidden states
        normed = _rmsnorm(d, dec_lnc_ref[l], eps)
        q = _bf16_dot(normed, dec_caq_ref[l])                   # (B, inner)
        kv = kv_all[:, l * 2 * inner:(l + 1) * 2 * inner]       # (B*Le, 2*inner)
        k3 = kv[:, :inner].reshape(B, Le, inner)
        v3 = kv[:, inner:].reshape(B, Le, inner)
        ctx = _mha(q.reshape(B, 1, inner), k3, v3, x_bias, B, H, dk)
        d = d + _bf16_dot(ctx.reshape(B, inner), dec_cao_ref[l])
        # feed-forward sub-layer
        normed = _rmsnorm(d, dec_ln2_ref[l], eps)
        ff = jnp.maximum(_bf16_dot(normed, dec_wi_ref[l]), 0.0)
        d = d + _bf16_dot(ff, dec_wo_ref[l])

    # decoder final RMSNorm + LM head (lane-dense V=128 output)
    d = _rmsnorm(d, dec_fln_ref[...], eps)
    out_ref[...] = _bf16_dot(d, lm_head_ref[...])


# ----------------------- parameter construction -----------------------
def init_params(cfg, key):
    # init_all(..., normal_, mean=0, std=1) -> every parameter ~ N(0, 1)
    keys = iter(jax.random.split(key, 128))

    def nrm(shape):
        return jax.random.normal(next(keys), shape, jnp.float32)

    inner = cfg.num_heads * cfg.d_kv
    p = {'shared_embed': nrm((cfg.vocab_size, cfg.d_model))}

    def block_params(is_decoder, has_rel_bias):
        bp = {
            'sa_ln': nrm((cfg.d_model,)),
            'sa_q': nrm((cfg.d_model, inner)),
            'sa_k': nrm((cfg.d_model, inner)),
            'sa_v': nrm((cfg.d_model, inner)),
            'sa_o': nrm((inner, cfg.d_model)),
            'ff_ln': nrm((cfg.d_model,)),
            'ff_wi': nrm((cfg.d_model, cfg.d_ff)),
            'ff_wo': nrm((cfg.d_ff, cfg.d_model)),
        }
        if has_rel_bias:
            # decoder block-0 rel_bias is created for parameter parity but has
            # no effect for a single decoder token (softmax over one key == 1)
            bp['rel_bias'] = nrm((cfg.relative_attention_num_buckets,
                                  cfg.num_heads))
        if is_decoder:
            bp.update({
                'ca_ln': nrm((cfg.d_model,)),
                'ca_q': nrm((cfg.d_model, inner)),
                'ca_k': nrm((cfg.d_model, inner)),
                'ca_v': nrm((cfg.d_model, inner)),
                'ca_o': nrm((inner, cfg.d_model)),
            })
        return bp

    p['enc_blocks'] = [block_params(False, i == 0)
                       for i in range(cfg.num_layers)]
    p['enc_final_ln'] = nrm((cfg.d_model,))
    p['dec_blocks'] = [block_params(True, i == 0)
                       for i in range(cfg.num_decoder_layers)]
    p['dec_final_ln'] = nrm((cfg.d_model,))
    p['lm_head'] = nrm((cfg.d_model, cfg.vocab_size))
    return p


# ----------------------- T5 relative position bias -----------------------
def _relative_position_bucket(rel_pos, bidirectional, num_buckets, max_distance):
    rel_buckets = np.zeros_like(rel_pos)
    if bidirectional:
        num_buckets //= 2
        rel_buckets += (rel_pos > 0).astype(np.int64) * num_buckets
        rel_pos = np.abs(rel_pos)
    else:
        rel_pos = -np.minimum(rel_pos, 0)
    max_exact = num_buckets // 2
    is_small = rel_pos < max_exact
    rel_pos_safe = np.maximum(rel_pos, 1).astype(np.float64)
    rel_if_large = max_exact + (
        np.log(rel_pos_safe / max_exact) / np.log(max_distance / max_exact)
        * (num_buckets - max_exact)
    ).astype(np.int64)
    rel_if_large = np.minimum(rel_if_large, num_buckets - 1)
    rel_buckets = rel_buckets + np.where(is_small, rel_pos, rel_if_large)
    return rel_buckets


def compute_position_bias(rel_table, q_len, k_len, bidirectional, cfg):
    context = np.arange(q_len, dtype=np.int64)[:, None]
    memory = np.arange(k_len, dtype=np.int64)[None, :]
    rel_pos = memory - context
    buckets = _relative_position_bucket(
        rel_pos, bidirectional,
        cfg.relative_attention_num_buckets, cfg.relative_attention_max_distance)
    values = jnp.take(rel_table, jnp.asarray(buckets, jnp.int32), axis=0)  # (q,k,H)
    return jnp.transpose(values, (2, 0, 1)).astype(jnp.float32)            # (H,q,k)


# ----------------- pack params into fused, VMEM-friendly form -----------------
def prepare_fused(params, cfg, Le):
    bf16 = jnp.bfloat16
    enc = params['enc_blocks']
    dec = params['dec_blocks']

    def ln_stack(blocks, name):
        return jnp.stack([b[name].reshape(1, -1) for b in blocks]).astype(jnp.float32)

    fused = {
        'embed': params['shared_embed'].astype(bf16),
        'pos_bias': compute_position_bias(enc[0]['rel_bias'], Le, Le, True, cfg),
        'enc_ln1': ln_stack(enc, 'sa_ln'),
        'enc_qkv': jnp.stack([jnp.concatenate([b['sa_q'], b['sa_k'], b['sa_v']],
                                              axis=1) for b in enc]).astype(bf16),
        'enc_o': jnp.stack([b['sa_o'] for b in enc]).astype(bf16),
        'enc_ln2': ln_stack(enc, 'ff_ln'),
        'enc_wi': jnp.stack([b['ff_wi'] for b in enc]).astype(bf16),
        'enc_wo': jnp.stack([b['ff_wo'] for b in enc]).astype(bf16),
        'enc_fln': params['enc_final_ln'].reshape(1, -1).astype(jnp.float32),
        'dec_ln1': ln_stack(dec, 'sa_ln'),
        # Ld == 1 -> self-attn softmax == 1 -> context == V-proj; pre-fuse V.O
        # in f32 and cast once to bf16.
        'dec_sa': jnp.stack([jnp.dot(b['sa_v'], b['sa_o'])
                             for b in dec]).astype(bf16),
        'dec_lnc': ln_stack(dec, 'ca_ln'),
        'dec_caq': jnp.stack([b['ca_q'] for b in dec]).astype(bf16),
        # all layers' cross-attn K|V stacked along lanes -> (D, n_dec*2*inner)
        'dec_cakv': jnp.concatenate(
            [jnp.concatenate([b['ca_k'], b['ca_v']], axis=1) for b in dec],
            axis=1).astype(bf16),
        'dec_cao': jnp.stack([b['ca_o'] for b in dec]).astype(bf16),
        'dec_ln2': ln_stack(dec, 'ff_ln'),
        'dec_wi': jnp.stack([b['ff_wi'] for b in dec]).astype(bf16),
        'dec_wo': jnp.stack([b['ff_wo'] for b in dec]).astype(bf16),
        'dec_fln': params['dec_final_ln'].reshape(1, -1).astype(jnp.float32),
        'lm_head': params['lm_head'].astype(bf16),
    }
    return fused


_WEIGHT_ORDER = ['embed', 'pos_bias', 'enc_ln1', 'enc_qkv', 'enc_o', 'enc_ln2',
                 'enc_wi', 'enc_wo', 'enc_fln', 'dec_ln1', 'dec_sa', 'dec_lnc',
                 'dec_caq', 'dec_cakv', 'dec_cao', 'dec_ln2', 'dec_wi',
                 'dec_wo', 'dec_fln', 'lm_head']


def build_t5_forward(fused, cfg, B, Le):
    D, H, dk, V = cfg.d_model, cfg.num_heads, cfg.d_kv, cfg.vocab_size
    weights = [fused[k] for k in _WEIGHT_ORDER]

    def full_spec(x):
        n = x.ndim
        return pl.BlockSpec(x.shape, lambda i, n=n: (0,) * n)

    kern = functools.partial(
        _t5_fused_kernel, B=B, Le=Le, H=H, dk=dk, D=D,
        n_enc=cfg.num_layers, n_dec=cfg.num_decoder_layers, V=V,
        eps=cfg.layer_norm_epsilon, start_id=cfg.decoder_start_token_id)

    @jax.jit
    def forward(encoder_input_ids, encoder_attention_mask):
        ids2d = encoder_input_ids.reshape(B * Le, 1).astype(jnp.int32)
        mask = encoder_attention_mask.astype(jnp.float32)
        ins = [ids2d, mask] + weights
        logits = pl.pallas_call(
            kern,
            out_shape=jax.ShapeDtypeStruct((B, V), jnp.float32),
            grid=(1,),
            in_specs=[full_spec(x) for x in ins],
            out_specs=pl.BlockSpec((B, V), lambda i: (0, 0)),
            compiler_params=pltpu.CompilerParams(
                dimension_semantics=("arbitrary",)),
        )(*ins)
        return logits.reshape(B, 1, V)

    return forward


# ------------------------------- main -------------------------------
if __name__ == "__main__":
    cfg = Cfg()
    key = jax.random.PRNGKey(0)
    pkey, ikey = jax.random.split(key)
    params = init_params(cfg, pkey)

    B, Le = 2, 8
    encoder_input_ids = jax.random.randint(ikey, (B, Le), 0, cfg.vocab_size,
                                           dtype=jnp.int32)
    mask_np = np.ones((B, Le), dtype=np.float32)
    mask_np[1, 6:] = 0.0                      # padded tail on second sequence
    encoder_attention_mask = jnp.asarray(mask_np)

    fused = prepare_fused(params, cfg, Le)
    t5_forward = build_t5_forward(fused, cfg, B, Le)

    logits = t5_forward(encoder_input_ids, encoder_attention_mask)
    logits = jax.block_until_ready(logits)

    assert logits.shape == (B, 1, cfg.vocab_size), logits.shape
    assert bool(jnp.all(jnp.isfinite(logits)))
    print("KERNEL_OK")
</pallas_src>

<mosaic_0001>
module attributes {stable_mosaic.version = 11 : i64} {
  func.func @_t5_fused_kernel(%arg0: i32, %arg1: memref<16x1xi32, #tpu.memory_space<vmem>>, %arg2: memref<2x8xf32, #tpu.memory_space<vmem>>, %arg3: memref<128x32xbf16, #tpu.memory_space<vmem>>, %arg4: memref<4x8x8xf32, #tpu.memory_space<vmem>>, %arg5: memref<2x1x32xf32, #tpu.memory_space<vmem>>, %arg6: memref<2x32x96xbf16, #tpu.memory_space<vmem>>, %arg7: memref<2x32x32xbf16, #tpu.memory_space<vmem>>, %arg8: memref<2x1x32xf32, #tpu.memory_space<vmem>>, %arg9: memref<2x32x64xbf16, #tpu.memory_space<vmem>>, %arg10: memref<2x64x32xbf16, #tpu.memory_space<vmem>>, %arg11: memref<1x32xf32, #tpu.memory_space<vmem>>, %arg12: memref<2x1x32xf32, #tpu.memory_space<vmem>>, %arg13: memref<2x32x32xbf16, #tpu.memory_space<vmem>>, %arg14: memref<2x1x32xf32, #tpu.memory_space<vmem>>, %arg15: memref<2x32x32xbf16, #tpu.memory_space<vmem>>, %arg16: memref<32x128xbf16, #tpu.memory_space<vmem>>, %arg17: memref<2x32x32xbf16, #tpu.memory_space<vmem>>, %arg18: memref<2x1x32xf32, #tpu.memory_space<vmem>>, %arg19: memref<2x32x64xbf16, #tpu.memory_space<vmem>>, %arg20: memref<2x64x32xbf16, #tpu.memory_space<vmem>>, %arg21: memref<1x32xf32, #tpu.memory_space<vmem>>, %arg22: memref<32x128xbf16, #tpu.memory_space<vmem>>, %arg23: memref<2x128xf32, #tpu.memory_space<vmem>>) attributes {dimension_semantics = [#tpu.dimension_semantics<arbitrary>], iteration_bounds = array<i64: 1>, scalar_prefetch = 0 : i64, scratch_operands = 0 : i64, tpu.core_type = #tpu.core_type<tc>, window_params = [{pipeline_mode = #tpu.pipeline_mode<synchronous>, transform_indices = @transform_0, window_bounds = array<i64: 16, 1>}, {pipeline_mode = #tpu.pipeline_mode<synchronous>, transform_indices = @transform_1, window_bounds = array<i64: 2, 8>}, {pipeline_mode = #tpu.pipeline_mode<synchronous>, transform_indices = @transform_2, window_bounds = array<i64: 128, 32>}, {pipeline_mode = #tpu.pipeline_mode<synchronous>, transform_indices = @transform_3, window_bounds = array<i64: 4, 8, 8>}, {pipeline_mode = #tpu.pipeline_mode<synchronous>, transform_indices = @transform_4, window_bounds = array<i64: 2, 1, 32>}, {pipeline_mode = #tpu.pipeline_mode<synchronous>, transform_indices = @transform_5, window_bounds = array<i64: 2, 32, 96>}, {pipeline_mode = #tpu.pipeline_mode<synchronous>, transform_indices = @transform_6, window_bounds = array<i64: 2, 32, 32>}, {pipeline_mode = #tpu.pipeline_mode<synchronous>, transform_indices = @transform_7, window_bounds = array<i64: 2, 1, 32>}, {pipeline_mode = #tpu.pipeline_mode<synchronous>, transform_indices = @transform_8, window_bounds = array<i64: 2, 32, 64>}, {pipeline_mode = #tpu.pipeline_mode<synchronous>, transform_indices = @transform_9, window_bounds = array<i64: 2, 64, 32>}, {pipeline_mode = #tpu.pipeline_mode<synchronous>, transform_indices = @transform_10, window_bounds = array<i64: 1, 32>}, {pipeline_mode = #tpu.pipeline_mode<synchronous>, transform_indices = @transform_11, window_bounds = array<i64: 2, 1, 32>}, {pipeline_mode = #tpu.pipeline_mode<synchronous>, transform_indices = @transform_12, window_bounds = array<i64: 2, 32, 32>}, {pipeline_mode = #tpu.pipeline_mode<synchronous>, transform_indices = @transform_13, window_bounds = array<i64: 2, 1, 32>}, {pipeline_mode = #tpu.pipeline_mode<synchronous>, transform_indices = @transform_14, window_bounds = array<i64: 2, 32, 32>}, {pipeline_mode = #tpu.pipeline_mode<synchronous>, transform_indices = @transform_15, window_bounds = array<i64: 32, 128>}, {pipeline_mode = #tpu.pipeline_mode<synchronous>, transform_indices = @transform_16, window_bounds = array<i64: 2, 32, 32>}, {pipeline_mode = #tpu.pipeline_mode<synchronous>, transform_indices = @transform_17, window_bounds = array<i64: 2, 1, 32>}, {pipeline_mode = #tpu.pipeline_mode<synchronous>, transform_indices = @transform_18, window_bounds = array<i64: 2, 32, 64>}, {pipeline_mode = #tpu.pipeline_mode<synchronous>, transform_indices = @transform_19, window_bounds = array<i64: 2, 64, 32>}, {pipeline_mode = #tpu.pipeline_mode<synchronous>, transform_indices = @transform_20, window_bounds = array<i64: 1, 32>}, {pipeline_mode = #tpu.pipeline_mode<synchronous>, transform_indices = @transform_21, window_bounds = array<i64: 32, 128>}, {pipeline_mode = #tpu.pipeline_mode<synchronous>, transform_indices = @transform_22, window_bounds = array<i64: 2, 128>}]} {
    %c0 = arith.constant 0 : index
    %c0_0 = arith.constant 0 : index
    %0 = vector.load %arg1[%c0, %c0_0] : memref<16x1xi32, #tpu.memory_space<vmem>>, vector<16x1xi32>
    %1 = tpu.iota {dimensions = array<i32: 1>} : vector<16x128xi32>
    %2 = vector.broadcast %0 : vector<16x1xi32> to vector<16x128xi32>
    %3 = arith.cmpi eq, %2, %1 : vector<16x128xi32>
    %4 = arith.extui %3 : vector<16x128xi1> to vector<16x128xi32>
    %5 = arith.sitofp %4 : vector<16x128xi32> to vector<16x128xf32>
    %6 = arith.truncf %5 : vector<16x128xf32> to vector<16x128xbf16>
    %c0_1 = arith.constant 0 : index
    %c0_2 = arith.constant 0 : index
    %7 = vector.load %arg3[%c0_1, %c0_2] : memref<128x32xbf16, #tpu.memory_space<vmem>>, vector<128x32xbf16>
    %cst = arith.constant dense<0.000000e+00> : vector<16x32xf32>
    %8 = tpu.matmul %6, %7, %cst {dimension_numbers = #tpu.dot_dimension_numbers<[1], [0], [0], [1], [0, 0, 1, 1], [], []>} : vector<16x128xbf16>, vector<128x32xbf16>, vector<16x32xf32> -> vector<16x32xf32>
    %c0_3 = arith.constant 0 : index
    %c0_4 = arith.constant 0 : index
    %9 = vector.load %arg2[%c0_3, %c0_4] : memref<2x8xf32, #tpu.memory_space<vmem>>, vector<2x8xf32>
    %cst_5 = arith.constant 1.000000e+00 : f32
    %10 = vector.broadcast %cst_5 : f32 to vector<2x8xf32>
    %11 = arith.subf %10, %9 : vector<2x8xf32>
    %cst_6 = arith.constant -1.000000e+09 : f32
    %12 = vector.broadcast %cst_6 : f32 to vector<2x8xf32>
    %13 = arith.mulf %11, %12 : vector<2x8xf32>
    %c0_7 = arith.constant 0 : index
    %c0_8 = arith.constant 0 : index
    %c0_9 = arith.constant 0 : index
    %14 = vector.load %arg4[%c0_7, %c0_8, %c0_9] : memref<4x8x8xf32, #tpu.memory_space<vmem>>, vector<4x8x8xf32>
    %15 = vector.shape_cast %14 : vector<4x8x8xf32> to vector<4x1x8x8xf32>
    %16 = vector.shape_cast %13 : vector<2x8xf32> to vector<1x2x1x8xf32>
    %17 = vector.broadcast %15 : vector<4x1x8x8xf32> to vector<4x2x8x8xf32>
    %18 = vector.broadcast %16 : vector<1x2x1x8xf32> to vector<4x2x8x8xf32>
    %19 = arith.addf %17, %18 : vector<4x2x8x8xf32>
    %20 = vector.shape_cast %19 : vector<4x2x8x8xf32> to vector<8x8x8xf32>
    %21 = vector.shape_cast %13 : vector<2x8xf32> to vector<1x2x1x8xf32>
    %22 = vector.shape_cast %21 : vector<1x2x1x8xf32> to vector<1x2x1x8xf32>
    %23 = vector.broadcast %22 : vector<1x2x1x8xf32> to vector<4x2x1x8xf32>
    %24 = vector.shape_cast %23 : vector<4x2x1x8xf32> to vector<8x1x8xf32>
    %c0_10 = arith.constant 0 : index
    %c0_11 = arith.constant 0 : index
    %c0_12 = arith.constant 0 : index
    %25 = vector.load %arg5[%c0_10, %c0_11, %c0_12] : memref<2x1x32xf32, #tpu.memory_space<vmem>>, vector<1x1x32xf32>
    %26 = vector.shape_cast %25 : vector<1x1x32xf32> to vector<1x32xf32>
    %27 = arith.mulf %8, %8 : vector<16x32xf32>
    %cst_13 = arith.constant dense<0.000000e+00> : vector<16xf32>
    %28 = vector.multi_reduction <add>, %27, %cst_13 [1] : vector<16x32xf32> to vector<16xf32>
    %29 = vector.shape_cast %28 : vector<16xf32> to vector<16x1xf32>
    %cst_14 = arith.constant 3.200000e+01 : f32
    %30 = vector.broadcast %cst_14 : f32 to vector<16x1xf32>
    %31 = arith.divf %29, %30 : vector<16x1xf32>
    %32 = vector.broadcast %26 : vector<1x32xf32> to vector<16x32xf32>
    %33 = arith.mulf %32, %8 : vector<16x32xf32>
    %cst_15 = arith.constant 9.99999997E-7 : f32
    %34 = vector.broadcast %cst_15 : f32 to vector<16x1xf32>
    %35 = arith.addf %31, %34 : vector<16x1xf32>
    %36 = math.rsqrt %35 : vector<16x1xf32>
    %37 = vector.broadcast %36 : vector<16x1xf32> to vector<16x32xf32>
    %38 = arith.mulf %33, %37 : vector<16x32xf32>
    %c0_16 = arith.constant 0 : index
    %c0_17 = arith.constant 0 : index
    %c0_18 = arith.constant 0 : index
    %39 = vector.load %arg6[%c0_16, %c0_17, %c0_18] : memref<2x32x96xbf16, #tpu.memory_space<vmem>>, vector<1x32x96xbf16>
    %40 = vector.shape_cast %39 : vector<1x32x96xbf16> to vector<32x96xbf16>
    %41 = arith.truncf %38 : vector<16x32xf32> to vector<16x32xbf16>
    %cst_19 = arith.constant dense<0.000000e+00> : vector<16x96xf32>
    %42 = tpu.matmul %41, %40, %cst_19 {dimension_numbers = #tpu.dot_dimension_numbers<[1], [0], [0], [1], [0, 0, 1, 1], [], []>} : vector<16x32xbf16>, vector<32x96xbf16>, vector<16x96xf32> -> vector<16x96xf32>
    %43 = vector.extract_strided_slice %42 {offsets = [0, 0], sizes = [16, 32], strides = [1, 1]} : vector<16x96xf32> to vector<16x32xf32>
    %44 = vector.shape_cast %43 : vector<16x32xf32> to vector<2x8x32xf32>
    %45 = vector.extract_strided_slice %42 {offsets = [0, 32], sizes = [16, 32], strides = [1, 1]} : vector<16x96xf32> to vector<16x32xf32>
    %46 = vector.shape_cast %45 : vector<16x32xf32> to vector<2x8x32xf32>
    %47 = vector.extract_strided_slice %42 {offsets = [0, 64], sizes = [16, 32], strides = [1, 1]} : vector<16x96xf32> to vector<16x32xf32>
    %48 = vector.shape_cast %47 : vector<16x32xf32> to vector<2x8x32xf32>
    %49 = vector.extract_strided_slice %44 {offsets = [0, 0, 0], sizes = [2, 8, 8], strides = [1, 1, 1]} : vector<2x8x32xf32> to vector<2x8x8xf32>
    %50 = vector.extract_strided_slice %44 {offsets = [0, 0, 8], sizes = [2, 8, 8], strides = [1, 1, 1]} : vector<2x8x32xf32> to vector<2x8x8xf32>
    %51 = vector.extract_strided_slice %44 {offsets = [0, 0, 16], sizes = [2, 8, 8], strides = [1, 1, 1]} : vector<2x8x32xf32> to vector<2x8x8xf32>
    %52 = vector.extract_strided_slice %44 {offsets = [0, 0, 24], sizes = [2, 8, 8], strides = [1, 1, 1]} : vector<2x8x32xf32> to vector<2x8x8xf32>
    %53 = tpu.concatenate %49, %50, %51, %52 in 0 : vector<2x8x8xf32>, vector<2x8x8xf32>, vector<2x8x8xf32>, vector<2x8x8xf32> -> vector<8x8x8xf32>
    %54 = arith.truncf %53 : vector<8x8x8xf32> to vector<8x8x8xbf16>
    %55 = vector.extract_strided_slice %46 {offsets = [0, 0, 0], sizes = [2, 8, 8], strides = [1, 1, 1]} : vector<2x8x32xf32> to vector<2x8x8xf32>
    %56 = vector.extract_strided_slice %46 {offsets = [0, 0, 8], sizes = [2, 8, 8], strides = [1, 1, 1]} : vector<2x8x32xf32> to vector<2x8x8xf32>
    %57 = vector.extract_strided_slice %46 {offsets = [0, 0, 16], sizes = [2, 8, 8], strides = [1, 1, 1]} : vector<2x8x32xf32> to vector<2x8x8xf32>
    %58 = vector.extract_strided_slice %46 {offsets = [0, 0, 24], sizes = [2, 8, 8], strides = [1, 1, 1]} : vector<2x8x32xf32> to vector<2x8x8xf32>
    %59 = tpu.concatenate %55, %56, %57, %58 in 0 : vector<2x8x8xf32>, vector<2x8x8xf32>, vector<2x8x8xf32>, vector<2x8x8xf32> -> vector<8x8x8xf32>
    %60 = arith.truncf %59 : vector<8x8x8xf32> to vector<8x8x8xbf16>
    %61 = vector.extract_strided_slice %48 {offsets = [0, 0, 0], sizes = [2, 8, 8], strides = [1, 1, 1]} : vector<2x8x32xf32> to vector<2x8x8xf32>
    %62 = vector.extract_strided_slice %48 {offsets = [0, 0, 8], sizes = [2, 8, 8], strides = [1, 1, 1]} : vector<2x8x32xf32> to vector<2x8x8xf32>
    %63 = vector.extract_strided_slice %48 {offsets = [0, 0, 16], sizes = [2, 8, 8], strides = [1, 1, 1]} : vector<2x8x32xf32> to vector<2x8x8xf32>
    %64 = vector.extract_strided_slice %48 {offsets = [0, 0, 24], sizes = [2, 8, 8], strides = [1, 1, 1]} : vector<2x8x32xf32> to vector<2x8x8xf32>
    %65 = tpu.concatenate %61, %62, %63, %64 in 0 : vector<2x8x8xf32>, vector<2x8x8xf32>, vector<2x8x8xf32>, vector<2x8x8xf32> -> vector<8x8x8xf32>
    %66 = arith.truncf %65 : vector<8x8x8xf32> to vector<8x8x8xbf16>
    "tpu.trace_start"() <{level = 10 : i32, message = "bqd,bkd->bqk"}> : () -> ()
    %cst_20 = arith.constant dense<0.000000e+00> : vector<8x8x8xf32>
    %67 = tpu.matmul %54, %60, %cst_20 {dimension_numbers = #tpu.dot_dimension_numbers<[2], [2], [1], [1], [0, 0, 0, 1, 1, 1], [0], [0]>} : vector<8x8x8xbf16>, vector<8x8x8xbf16>, vector<8x8x8xf32> -> vector<8x8x8xf32>
    "tpu.trace_stop"() : () -> ()
    %68 = arith.addf %67, %20 : vector<8x8x8xf32>
    %cst_21 = arith.constant dense<0xFF800000> : vector<8x8xf32>
    %69 = vector.multi_reduction <maximumf>, %68, %cst_21 [2] : vector<8x8x8xf32> to vector<8x8xf32>
    %70 = vector.shape_cast %69 : vector<8x8xf32> to vector<8x8x1xf32>
    %71 = vector.broadcast %70 : vector<8x8x1xf32> to vector<8x8x8xf32>
    %72 = arith.subf %68, %71 : vector<8x8x8xf32>
    %73 = math.exp %72 : vector<8x8x8xf32>
    %cst_22 = arith.constant dense<0.000000e+00> : vector<8x8xf32>
    %74 = vector.multi_reduction <add>, %73, %cst_22 [2] : vector<8x8x8xf32> to vector<8x8xf32>
    %75 = vector.shape_cast %74 : vector<8x8xf32> to vector<8x8x1xf32>
    %76 = tpu.reciprocal %75 {approx = true} : vector<8x8x1xf32> -> vector<8x8x1xf32>
    %77 = vector.broadcast %76 : vector<8x8x1xf32> to vector<8x8x8xf32>
    %78 = arith.mulf %73, %77 : vector<8x8x8xf32>
    %79 = arith.truncf %78 : vector<8x8x8xf32> to vector<8x8x8xbf16>
    "tpu.trace_start"() <{level = 10 : i32, message = "bqk,bkd->bqd"}> : () -> ()
    %cst_23 = arith.constant dense<0.000000e+00> : vector<8x8x8xf32>
    %80 = tpu.matmul %79, %66, %cst_23 {dimension_numbers = #tpu.dot_dimension_numbers<[2], [1], [1], [2], [0, 0, 0, 1, 1, 2], [0], [0]>} : vector<8x8x8xbf16>, vector<8x8x8xbf16>, vector<8x8x8xf32> -> vector<8x8x8xf32>
    "tpu.trace_stop"() : () -> ()
    %81 = vector.extract_strided_slice %80 {offsets = [0, 0, 0], sizes = [2, 8, 8], strides = [1, 1, 1]} : vector<8x8x8xf32> to vector<2x8x8xf32>
    %82 = vector.extract_strided_slice %80 {offsets = [2, 0, 0], sizes = [2, 8, 8], strides = [1, 1, 1]} : vector<8x8x8xf32> to vector<2x8x8xf32>
    %83 = vector.extract_strided_slice %80 {offsets = [4, 0, 0], sizes = [2, 8, 8], strides = [1, 1, 1]} : vector<8x8x8xf32> to vector<2x8x8xf32>
    %84 = vector.extract_strided_slice %80 {offsets = [6, 0, 0], sizes = [2, 8, 8], strides = [1, 1, 1]} : vector<8x8x8xf32> to vector<2x8x8xf32>
    %85 = tpu.concatenate %81, %82, %83, %84 in 2 : vector<2x8x8xf32>, vector<2x8x8xf32>, vector<2x8x8xf32>, vector<2x8x8xf32> -> vector<2x8x32xf32>
    %86 = vector.shape_cast %85 : vector<2x8x32xf32> to vector<16x32xf32>
    %c0_24 = arith.constant 0 : index
    %c0_25 = arith.constant 0 : index
    %c0_26 = arith.constant 0 : index
    %87 = vector.load %arg7[%c0_24, %c0_25, %c0_26] : memref<2x32x32xbf16, #tpu.memory_space<vmem>>, vector<1x32x32xbf16>
    %88 = vector.shape_cast %87 : vector<1x32x32xbf16> to vector<32x32xbf16>
    %89 = arith.truncf %86 : vector<16x32xf32> to vector<16x32xbf16>
    %cst_27 = arith.constant dense<0.000000e+00> : vector<16x32xf32>
    %90 = tpu.matmul %89, %88, %cst_27 {dimension_numbers = #tpu.dot_dimension_numbers<[1], [0], [0], [1], [0, 0, 1, 1], [], []>} : vector<16x32xbf16>, vector<32x32xbf16>, vector<16x32xf32> -> vector<16x32xf32>
    %91 = arith.addf %8, %90 : vector<16x32xf32>
    %c0_28 = arith.constant 0 : index
    %c0_29 = arith.constant 0 : index
    %c0_30 = arith.constant 0 : index
    %92 = vector.load %arg8[%c0_28, %c0_29, %c0_30] : memref<2x1x32xf32, #tpu.memory_space<vmem>>, vector<1x1x32xf32>
    %93 = vector.shape_cast %92 : vector<1x1x32xf32> to vector<1x32xf32>
    %94 = arith.mulf %91, %91 : vector<16x32xf32>
    %cst_31 = arith.constant dense<0.000000e+00> : vector<16xf32>
    %95 = vector.multi_reduction <add>, %94, %cst_31 [1] : vector<16x32xf32> to vector<16xf32>
    %96 = vector.shape_cast %95 : vector<16xf32> to vector<16x1xf32>
    %cst_32 = arith.constant 3.200000e+01 : f32
    %97 = vector.broadcast %cst_32 : f32 to vector<16x1xf32>
    %98 = arith.divf %96, %97 : vector<16x1xf32>
    %99 = vector.broadcast %93 : vector<1x32xf32> to vector<16x32xf32>
    %100 = arith.mulf %99, %91 : vector<16x32xf32>
    %cst_33 = arith.constant 9.99999997E-7 : f32
    %101 = vector.broadcast %cst_33 : f32 to vector<16x1xf32>
    %102 = arith.addf %98, %101 : vector<16x1xf32>
    %103 = math.rsqrt %102 : vector<16x1xf32>
    %104 = vector.broadcast %103 : vector<16x1xf32> to vector<16x32xf32>
    %105 = arith.mulf %100, %104 : vector<16x32xf32>
    %c0_34 = arith.constant 0 : index
    %c0_35 = arith.constant 0 : index
    %c0_36 = arith.constant 0 : index
    %106 = vector.load %arg9[%c0_34, %c0_35, %c0_36] : memref<2x32x64xbf16, #tpu.memory_space<vmem>>, vector<1x32x64xbf16>
    %107 = vector.shape_cast %106 : vector<1x32x64xbf16> to vector<32x64xbf16>
    %108 = arith.truncf %105 : vector<16x32xf32> to vector<16x32xbf16>
    %cst_37 = arith.constant dense<0.000000e+00> : vector<16x64xf32>
    %109 = tpu.matmul %108, %107, %cst_37 {dimension_numbers = #tpu.dot_dimension_numbers<[1], [0], [0], [1], [0, 0, 1, 1], [], []>} : vector<16x32xbf16>, vector<32x64xbf16>, vector<16x64xf32> -> vector<16x64xf32>
    %cst_38 = arith.constant 0.000000e+00 : f32
    %110 = vector.broadcast %cst_38 : f32 to vector<16x64xf32>
    %111 = arith.maximumf %109, %110 : vector<16x64xf32>
    %c0_39 = arith.constant 0 : index
    %c0_40 = arith.constant 0 : index
    %c0_41 = arith.constant 0 : index
    %112 = vector.load %arg10[%c0_39, %c0_40, %c0_41] : memref<2x64x32xbf16, #tpu.memory_space<vmem>>, vector<1x64x32xbf16>
    %113 = vector.shape_cast %112 : vector<1x64x32xbf16> to vector<64x32xbf16>
    %114 = arith.truncf %111 : vector<16x64xf32> to vector<16x64xbf16>
    %cst_42 = arith.constant dense<0.000000e+00> : vector<16x32xf32>
    %115 = tpu.matmul %114, %113, %cst_42 {dimension_numbers = #tpu.dot_dimension_numbers<[1], [0], [0], [1], [0, 0, 1, 1], [], []>} : vector<16x64xbf16>, vector<64x32xbf16>, vector<16x32xf32> -> vector<16x32xf32>
    %116 = arith.addf %91, %115 : vector<16x32xf32>
    %c1 = arith.constant 1 : index
    %c0_43 = arith.constant 0 : index
    %c0_44 = arith.constant 0 : index
    %117 = vector.load %arg5[%c1, %c0_43, %c0_44] : memref<2x1x32xf32, #tpu.memory_space<vmem>>, vector<1x1x32xf32>
    %118 = vector.shape_cast %117 : vector<1x1x32xf32> to vector<1x32xf32>
    %119 = arith.mulf %116, %116 : vector<16x32xf32>
    %cst_45 = arith.constant dense<0.000000e+00> : vector<16xf32>
    %120 = vector.multi_reduction <add>, %119, %cst_45 [1] : vector<16x32xf32> to vector<16xf32>
    %121 = vector.shape_cast %120 : vector<16xf32> to vector<16x1xf32>
    %cst_46 = arith.constant 3.200000e+01 : f32
    %122 = vector.broadcast %cst_46 : f32 to vector<16x1xf32>
    %123 = arith.divf %121, %122 : vector<16x1xf32>
    %124 = vector.broadcast %118 : vector<1x32xf32> to vector<16x32xf32>
    %125 = arith.mulf %124, %116 : vector<16x32xf32>
    %cst_47 = arith.constant 9.99999997E-7 : f32
    %126 = vector.broadcast %cst_47 : f32 to vector<16x1xf32>
    %127 = arith.addf %123, %126 : vector<16x1xf32>
    %128 = math.rsqrt %127 : vector<16x1xf32>
    %129 = vector.broadcast %128 : vector<16x1xf32> to vector<16x32xf32>
    %130 = arith.mulf %125, %129 : vector<16x32xf32>
    %c1_48 = arith.constant 1 : index
    %c0_49 = arith.constant 0 : index
    %c0_50 = arith.constant 0 : index
    %131 = vector.load %arg6[%c1_48, %c0_49, %c0_50] : memref<2x32x96xbf16, #tpu.memory_space<vmem>>, vector<1x32x96xbf16>
    %132 = vector.shape_cast %131 : vector<1x32x96xbf16> to vector<32x96xbf16>
    %133 = arith.truncf %130 : vector<16x32xf32> to vector<16x32xbf16>
    %cst_51 = arith.constant dense<0.000000e+00> : vector<16x96xf32>
    %134 = tpu.matmul %133, %132, %cst_51 {dimension_numbers = #tpu.dot_dimension_numbers<[1], [0], [0], [1], [0, 0, 1, 1], [], []>} : vector<16x32xbf16>, vector<32x96xbf16>, vector<16x96xf32> -> vector<16x96xf32>
    %135 = vector.extract_strided_slice %134 {offsets = [0, 0], sizes = [16, 32], strides = [1, 1]} : vector<16x96xf32> to vector<16x32xf32>
    %136 = vector.shape_cast %135 : vector<16x32xf32> to vector<2x8x32xf32>
    %137 = vector.extract_strided_slice %134 {offsets = [0, 32], sizes = [16, 32], strides = [1, 1]} : vector<16x96xf32> to vector<16x32xf32>
    %138 = vector.shape_cast %137 : vector<16x32xf32> to vector<2x8x32xf32>
    %139 = vector.extract_strided_slice %134 {offsets = [0, 64], sizes = [16, 32], strides = [1, 1]} : vector<16x96xf32> to vector<16x32xf32>
    %140 = vector.shape_cast %139 : vector<16x32xf32> to vector<2x8x32xf32>
    %141 = vector.extract_strided_slice %136 {offsets = [0, 0, 0], sizes = [2, 8, 8], strides = [1, 1, 1]} : vector<2x8x32xf32> to vector<2x8x8xf32>
    %142 = vector.extract_strided_slice %136 {offsets = [0, 0, 8], sizes = [2, 8, 8], strides = [1, 1, 1]} : vector<2x8x32xf32> to vector<2x8x8xf32>
    %143 = vector.extract_strided_slice %136 {offsets = [0, 0, 16], sizes = [2, 8, 8], strides = [1, 1, 1]} : vector<2x8x32xf32> to vector<2x8x8xf32>
    %144 = vector.extract_strided_slice %136 {offsets = [0, 0, 24], sizes = [2, 8, 8], strides = [1, 1, 1]} : vector<2x8x32xf32> to vector<2x8x8xf32>
    %145 = tpu.concatenate %141, %142, %143, %144 in 0 : vector<2x8x8xf32>, vector<2x8x8xf32>, vector<2x8x8xf32>, vector<2x8x8xf32> -> vector<8x8x8xf32>
    %146 = arith.truncf %145 : vector<8x8x8xf32> to vector<8x8x8xbf16>
    %147 = vector.extract_strided_slice %138 {offsets = [0, 0, 0], sizes = [2, 8, 8], strides = [1, 1, 1]} : vector<2x8x32xf32> to vector<2x8x8xf32>
    %148 = vector.extract_strided_slice %138 {offsets = [0, 0, 8], sizes = [2, 8, 8], strides = [1, 1, 1]} : vector<2x8x32xf32> to vector<2x8x8xf32>
    %149 = vector.extract_strided_slice %138 {offsets = [0, 0, 16], sizes = [2, 8, 8], strides = [1, 1, 1]} : vector<2x8x32xf32> to vector<2x8x8xf32>
    %150 = vector.extract_strided_slice %138 {offsets = [0, 0, 24], sizes = [2, 8, 8], strides = [1, 1, 1]} : vector<2x8x32xf32> to vector<2x8x8xf32>
    %151 = tpu.concatenate %147, %148, %149, %150 in 0 : vector<2x8x8xf32>, vector<2x8x8xf32>, vector<2x8x8xf32>, vector<2x8x8xf32> -> vector<8x8x8xf32>
    %152 = arith.truncf %151 : vector<8x8x8xf32> to vector<8x8x8xbf16>
    %153 = vector.extract_strided_slice %140 {offsets = [0, 0, 0], sizes = [2, 8, 8], strides = [1, 1, 1]} : vector<2x8x32xf32> to vector<2x8x8xf32>
    %154 = vector.extract_strided_slice %140 {offsets = [0, 0, 8], sizes = [2, 8, 8], strides = [1, 1, 1]} : vector<2x8x32xf32> to vector<2x8x8xf32>
    %155 = vector.extract_strided_slice %140 {offsets = [0, 0, 16], sizes = [2, 8, 8], strides = [1, 1, 1]} : vector<2x8x32xf32> to vector<2x8x8xf32>
    %156 = vector.extract_strided_slice %140 {offsets = [0, 0, 24], sizes = [2, 8, 8], strides = [1, 1, 1]} : vector<2x8x32xf32> to vector<2x8x8xf32>
    %157 = tpu.concatenate %153, %154, %155, %156 in 0 : vector<2x8x8xf32>, vector<2x8x8xf32>, vector<2x8x8xf32>, vector<2x8x8xf32> -> vector<8x8x8xf32>
    %158 = arith.truncf %157 : vector<8x8x8xf32> to vector<8x8x8xbf16>
    "tpu.trace_start"() <{level = 10 : i32, message = "bqd,bkd->bqk"}> : () -> ()
    %cst_52 = arith.constant dense<0.000000e+00> : vector<8x8x8xf32>
    %159 = tpu.matmul %146, %152, %cst_52 {dimension_numbers = #tpu.dot_dimension_numbers<[2], [2], [1], [1], [0, 0, 0, 1, 1, 1], [0], [0]>} : vector<8x8x8xbf16>, vector<8x8x8xbf16>, vector<8x8x8xf32> -> vector<8x8x8xf32>
    "tpu.trace_stop"() : () -> ()
    %160 = arith.addf %159, %20 : vector<8x8x8xf32>
    %cst_53 = arith.constant dense<0xFF800000> : vector<8x8xf32>
    %161 = vector.multi_reduction <maximumf>, %160, %cst_53 [2] : vector<8x8x8xf32> to vector<8x8xf32>
    %162 = vector.shape_cast %161 : vector<8x8xf32> to vector<8x8x1xf32>
    %163 = vector.broadcast %162 : vector<8x8x1xf32> to vector<8x8x8xf32>
    %164 = arith.subf %160, %163 : vector<8x8x8xf32>
    %165 = math.exp %164 : vector<8x8x8xf32>
    %cst_54 = arith.constant dense<0.000000e+00> : vector<8x8xf32>
    %166 = vector.multi_reduction <add>, %165, %cst_54 [2] : vector<8x8x8xf32> to vector<8x8xf32>
    %167 = vector.shape_cast %166 : vector<8x8xf32> to vector<8x8x1xf32>
    %168 = tpu.reciprocal %167 {approx = true} : vector<8x8x1xf32> -> vector<8x8x1xf32>
    %169 = vector.broadcast %168 : vector<8x8x1xf32> to vector<8x8x8xf32>
    %170 = arith.mulf %165, %169 : vector<8x8x8xf32>
    %171 = arith.truncf %170 : vector<8x8x8xf32> to vector<8x8x8xbf16>
    "tpu.trace_start"() <{level = 10 : i32, message = "bqk,bkd->bqd"}> : () -> ()
    %cst_55 = arith.constant dense<0.000000e+00> : vector<8x8x8xf32>
    %172 = tpu.matmul %171, %158, %cst_55 {dimension_numbers = #tpu.dot_dimension_numbers<[2], [1], [1], [2], [0, 0, 0, 1, 1, 2], [0], [0]>} : vector<8x8x8xbf16>, vector<8x8x8xbf16>, vector<8x8x8xf32> -> vector<8x8x8xf32>
    "tpu.trace_stop"() : () -> ()
    %173 = vector.extract_strided_slice %172 {offsets = [0, 0, 0], sizes = [2, 8, 8], strides = [1, 1, 1]} : vector<8x8x8xf32> to vector<2x8x8xf32>
    %174 = vector.extract_strided_slice %172 {offsets = [2, 0, 0], sizes = [2, 8, 8], strides = [1, 1, 1]} : vector<8x8x8xf32> to vector<2x8x8xf32>
    %175 = vector.extract_strided_slice %172 {offsets = [4, 0, 0], sizes = [2, 8, 8], strides = [1, 1, 1]} : vector<8x8x8xf32> to vector<2x8x8xf32>
    %176 = vector.extract_strided_slice %172 {offsets = [6, 0, 0], sizes = [2, 8, 8], strides = [1, 1, 1]} : vector<8x8x8xf32> to vector<2x8x8xf32>
    %177 = tpu.concatenate %173, %174, %175, %176 in 2 : vector<2x8x8xf32>, vector<2x8x8xf32>, vector<2x8x8xf32>, vector<2x8x8xf32> -> vector<2x8x32xf32>
    %178 = vector.shape_cast %177 : vector<2x8x32xf32> to vector<16x32xf32>
    %c1_56 = arith.constant 1 : index
    %c0_57 = arith.constant 0 : index
    %c0_58 = arith.constant 0 : index
    %179 = vector.load %arg7[%c1_56, %c0_57, %c0_58] : memref<2x32x32xbf16, #tpu.memory_space<vmem>>, vector<1x32x32xbf16>
    %180 = vector.shape_cast %179 : vector<1x32x32xbf16> to vector<32x32xbf16>
    %181 = arith.truncf %178 : vector<16x32xf32> to vector<16x32xbf16>
    %cst_59 = arith.constant dense<0.000000e+00> : vector<16x32xf32>
    %182 = tpu.matmul %181, %180, %cst_59 {dimension_numbers = #tpu.dot_dimension_numbers<[1], [0], [0], [1], [0, 0, 1, 1], [], []>} : vector<16x32xbf16>, vector<32x32xbf16>, vector<16x32xf32> -> vector<16x32xf32>
    %183 = arith.addf %116, %182 : vector<16x32xf32>
    %c1_60 = arith.constant 1 : index
    %c0_61 = arith.constant 0 : index
    %c0_62 = arith.constant 0 : index
    %184 = vector.load %arg8[%c1_60, %c0_61, %c0_62] : memref<2x1x32xf32, #tpu.memory_space<vmem>>, vector<1x1x32xf32>
    %185 = vector.shape_cast %184 : vector<1x1x32xf32> to vector<1x32xf32>
    %186 = arith.mulf %183, %183 : vector<16x32xf32>
    %cst_63 = arith.constant dense<0.000000e+00> : vector<16xf32>
    %187 = vector.multi_reduction <add>, %186, %cst_63 [1] : vector<16x32xf32> to vector<16xf32>
    %188 = vector.shape_cast %187 : vector<16xf32> to vector<16x1xf32>
    %cst_64 = arith.constant 3.200000e+01 : f32
    %189 = vector.broadcast %cst_64 : f32 to vector<16x1xf32>
    %190 = arith.divf %188, %189 : vector<16x1xf32>
    %191 = vector.broadcast %185 : vector<1x32xf32> to vector<16x32xf32>
    %192 = arith.mulf %191, %183 : vector<16x32xf32>
    %cst_65 = arith.constant 9.99999997E-7 : f32
    %193 = vector.broadcast %cst_65 : f32 to vector<16x1xf32>
    %194 = arith.addf %190, %193 : vector<16x1xf32>
    %195 = math.rsqrt %194 : vector<16x1xf32>
    %196 = vector.broadcast %195 : vector<16x1xf32> to vector<16x32xf32>
    %197 = arith.mulf %192, %196 : vector<16x32xf32>
    %c1_66 = arith.constant 1 : index
    %c0_67 = arith.constant 0 : index
    %c0_68 = arith.constant 0 : index
    %198 = vector.load %arg9[%c1_66, %c0_67, %c0_68] : memref<2x32x64xbf16, #tpu.memory_space<vmem>>, vector<1x32x64xbf16>
    %199 = vector.shape_cast %198 : vector<1x32x64xbf16> to vector<32x64xbf16>
    %200 = arith.truncf %197 : vector<16x32xf32> to vector<16x32xbf16>
    %cst_69 = arith.constant dense<0.000000e+00> : vector<16x64xf32>
    %201 = tpu.matmul %200, %199, %cst_69 {dimension_numbers = #tpu.dot_dimension_numbers<[1], [0], [0], [1], [0, 0, 1, 1], [], []>} : vector<16x32xbf16>, vector<32x64xbf16>, vector<16x64xf32> -> vector<16x64xf32>
    %cst_70 = arith.constant 0.000000e+00 : f32
    %202 = vector.broadcast %cst_70 : f32 to vector<16x64xf32>
    %203 = arith.maximumf %201, %202 : vector<16x64xf32>
    %c1_71 = arith.constant 1 : index
    %c0_72 = arith.constant 0 : index
    %c0_73 = arith.constant 0 : index
    %204 = vector.load %arg10[%c1_71, %c0_72, %c0_73] : memref<2x64x32xbf16, #tpu.memory_space<vmem>>, vector<1x64x32xbf16>
    %205 = vector.shape_cast %204 : vector<1x64x32xbf16> to vector<64x32xbf16>
    %206 = arith.truncf %203 : vector<16x64xf32> to vector<16x64xbf16>
    %cst_74 = arith.constant dense<0.000000e+00> : vector<16x32xf32>
    %207 = tpu.matmul %206, %205, %cst_74 {dimension_numbers = #tpu.dot_dimension_numbers<[1], [0], [0], [1], [0, 0, 1, 1], [], []>} : vector<16x64xbf16>, vector<64x32xbf16>, vector<16x32xf32> -> vector<16x32xf32>
    %208 = arith.addf %183, %207 : vector<16x32xf32>
    %c0_75 = arith.constant 0 : index
    %c0_76 = arith.constant 0 : index
    %209 = vector.load %arg11[%c0_75, %c0_76] : memref<1x32xf32, #tpu.memory_space<vmem>>, vector<1x32xf32>
    %210 = arith.mulf %208, %208 : vector<16x32xf32>
    %cst_77 = arith.constant dense<0.000000e+00> : vector<16xf32>
    %211 = vector.multi_reduction <add>, %210, %cst_77 [1] : vector<16x32xf32> to vector<16xf32>
    %212 = vector.shape_cast %211 : vector<16xf32> to vector<16x1xf32>
    %cst_78 = arith.constant 3.200000e+01 : f32
    %213 = vector.broadcast %cst_78 : f32 to vector<16x1xf32>
    %214 = arith.divf %212, %213 : vector<16x1xf32>
    %215 = vector.broadcast %209 : vector<1x32xf32> to vector<16x32xf32>
    %216 = arith.mulf %215, %208 : vector<16x32xf32>
    %cst_79 = arith.constant 9.99999997E-7 : f32
    %217 = vector.broadcast %cst_79 : f32 to vector<16x1xf32>
    %218 = arith.addf %214, %217 : vector<16x1xf32>
    %219 = math.rsqrt %218 : vector<16x1xf32>
    %220 = vector.broadcast %219 : vector<16x1xf32> to vector<16x32xf32>
    %221 = arith.mulf %216, %220 : vector<16x32xf32>
    %c0_80 = arith.constant 0 : index
    %c0_81 = arith.constant 0 : index
    %222 = vector.load %arg3[%c0_80, %c0_81] : memref<128x32xbf16, #tpu.memory_space<vmem>>, vector<1x32xbf16>
    %223 = arith.extf %222 : vector<1x32xbf16> to vector<1x32xf32>
    %224 = vector.shape_cast %223 : vector<1x32xf32> to vector<1x32xf32>
    %225 = vector.broadcast %224 : vector<1x32xf32> to vector<2x32xf32>
    %c0_82 = arith.constant 0 : index
    %c0_83 = arith.constant 0 : index
    %226 = vector.load %arg16[%c0_82, %c0_83] : memref<32x128xbf16, #tpu.memory_space<vmem>>, vector<32x128xbf16>
    %227 = arith.truncf %221 : vector<16x32xf32> to vector<16x32xbf16>
    %cst_84 = arith.constant dense<0.000000e+00> : vector<16x128xf32>
    %228 = tpu.matmul %227, %226, %cst_84 {dimension_numbers = #tpu.dot_dimension_numbers<[1], [0], [0], [1], [0, 0, 1, 1], [], []>} : vector<16x32xbf16>, vector<32x128xbf16>, vector<16x128xf32> -> vector<16x128xf32>
    %c0_85 = arith.constant 0 : index
    %c0_86 = arith.constant 0 : index
    %c0_87 = arith.constant 0 : index
    %229 = vector.load %arg12[%c0_85, %c0_86, %c0_87] : memref<2x1x32xf32, #tpu.memory_space<vmem>>, vector<1x1x32xf32>
    %230 = vector.shape_cast %229 : vector<1x1x32xf32> to vector<1x32xf32>
    %231 = arith.mulf %225, %225 : vector<2x32xf32>
    %cst_88 = arith.constant dense<0.000000e+00> : vector<2xf32>
    %232 = vector.multi_reduction <add>, %231, %cst_88 [1] : vector<2x32xf32> to vector<2xf32>
    %233 = vector.shape_cast %232 : vector<2xf32> to vector<2x1xf32>
    %cst_89 = arith.constant 3.200000e+01 : f32
    %234 = vector.broadcast %cst_89 : f32 to vector<2x1xf32>
    %235 = arith.divf %233, %234 : vector<2x1xf32>
    %236 = vector.broadcast %230 : vector<1x32xf32> to vector<2x32xf32>
    %237 = arith.mulf %236, %225 : vector<2x32xf32>
    %cst_90 = arith.constant 9.99999997E-7 : f32
    %238 = vector.broadcast %cst_90 : f32 to vector<2x1xf32>
    %239 = arith.addf %235, %238 : vector<2x1xf32>
    %240 = math.rsqrt %239 : vector<2x1xf32>
    %241 = vector.broadcast %240 : vector<2x1xf32> to vector<2x32xf32>
    %242 = arith.mulf %237, %241 : vector<2x32xf32>
    %c0_91 = arith.constant 0 : index
    %c0_92 = arith.constant 0 : index
    %c0_93 = arith.constant 0 : index
    %243 = vector.load %arg13[%c0_91, %c0_92, %c0_93] : memref<2x32x32xbf16, #tpu.memory_space<vmem>>, vector<1x32x32xbf16>
    %244 = vector.shape_cast %243 : vector<1x32x32xbf16> to vector<32x32xbf16>
    %245 = arith.truncf %242 : vector<2x32xf32> to vector<2x32xbf16>
    %cst_94 = arith.constant dense<0.000000e+00> : vector<2x32xf32>
    %246 = tpu.matmul %245, %244, %cst_94 {dimension_numbers = #tpu.dot_dimension_numbers<[1], [0], [0], [1], [0, 0, 1, 1], [], []>} : vector<2x32xbf16>, vector<32x32xbf16>, vector<2x32xf32> -> vector<2x32xf32>
    %247 = arith.addf %225, %246 : vector<2x32xf32>
    %c0_95 = arith.constant 0 : index
    %c0_96 = arith.constant 0 : index
    %c0_97 = arith.constant 0 : index
    %248 = vector.load %arg14[%c0_95, %c0_96, %c0_97] : memref<2x1x32xf32, #tpu.memory_space<vmem>>, vector<1x1x32xf32>
    %249 = vector.shape_cast %248 : vector<1x1x32xf32> to vector<1x32xf32>
    %250 = arith.mulf %247, %247 : vector<2x32xf32>
    %cst_98 = arith.constant dense<0.000000e+00> : vector<2xf32>
    %251 = vector.multi_reduction <add>, %250, %cst_98 [1] : vector<2x32xf32> to vector<2xf32>
    %252 = vector.shape_cast %251 : vector<2xf32> to vector<2x1xf32>
    %cst_99 = arith.constant 3.200000e+01 : f32
    %253 = vector.broadcast %cst_99 : f32 to vector<2x1xf32>
    %254 = arith.divf %252, %253 : vector<2x1xf32>
    %255 = vector.broadcast %249 : vector<1x32xf32> to vector<2x32xf32>
    %256 = arith.mulf %255, %247 : vector<2x32xf32>
    %cst_100 = arith.constant 9.99999997E-7 : f32
    %257 = vector.broadcast %cst_100 : f32 to vector<2x1xf32>
    %258 = arith.addf %254, %257 : vector<2x1xf32>
    %259 = math.rsqrt %258 : vector<2x1xf32>
    %260 = vector.broadcast %259 : vector<2x1xf32> to vector<2x32xf32>
    %261 = arith.mulf %256, %260 : vector<2x32xf32>
    %c0_101 = arith.constant 0 : index
    %c0_102 = arith.constant 0 : index
    %c0_103 = arith.constant 0 : index
    %262 = vector.load %arg15[%c0_101, %c0_102, %c0_103] : memref<2x32x32xbf16, #tpu.memory_space<vmem>>, vector<1x32x32xbf16>
    %263 = vector.shape_cast %262 : vector<1x32x32xbf16> to vector<32x32xbf16>
    %264 = arith.truncf %261 : vector<2x32xf32> to vector<2x32xbf16>
    %cst_104 = arith.constant dense<0.000000e+00> : vector<2x32xf32>
    %265 = tpu.matmul %264, %263, %cst_104 {dimension_numbers = #tpu.dot_dimension_numbers<[1], [0], [0], [1], [0, 0, 1, 1], [], []>} : vector<2x32xbf16>, vector<32x32xbf16>, vector<2x32xf32> -> vector<2x32xf32>
    %266 = vector.extract_strided_slice %228 {offsets = [0, 0], sizes = [16, 64], strides = [1, 1]} : vector<16x128xf32> to vector<16x64xf32>
    %267 = vector.extract_strided_slice %266 {offsets = [0, 0], sizes = [16, 32], strides = [1, 1]} : vector<16x64xf32> to vector<16x32xf32>
    %268 = vector.shape_cast %267 : vector<16x32xf32> to vector<2x8x32xf32>
    %269 = vector.extract_strided_slice %266 {offsets = [0, 32], sizes = [16, 32], strides = [1, 1]} : vector<16x64xf32> to vector<16x32xf32>
    %270 = vector.shape_cast %269 : vector<16x32xf32> to vector<2x8x32xf32>
    %271 = vector.shape_cast %265 : vector<2x32xf32> to vector<2x1x32xf32>
    %272 = vector.extract_strided_slice %271 {offsets = [0, 0, 0], sizes = [2, 1, 8], strides = [1, 1, 1]} : vector<2x1x32xf32> to vector<2x1x8xf32>
    %273 = vector.extract_strided_slice %271 {offsets = [0, 0, 8], sizes = [2, 1, 8], strides = [1, 1, 1]} : vector<2x1x32xf32> to vector<2x1x8xf32>
    %274 = vector.extract_strided_slice %271 {offsets = [0, 0, 16], sizes = [2, 1, 8], strides = [1, 1, 1]} : vector<2x1x32xf32> to vector<2x1x8xf32>
    %275 = vector.extract_strided_slice %271 {offsets = [0, 0, 24], sizes = [2, 1, 8], strides = [1, 1, 1]} : vector<2x1x32xf32> to vector<2x1x8xf32>
    %276 = tpu.concatenate %272, %273, %274, %275 in 0 : vector<2x1x8xf32>, vector<2x1x8xf32>, vector<2x1x8xf32>, vector<2x1x8xf32> -> vector<8x1x8xf32>
    %277 = arith.truncf %276 : vector<8x1x8xf32> to vector<8x1x8xbf16>
    %278 = vector.extract_strided_slice %268 {offsets = [0, 0, 0], sizes = [2, 8, 8], strides = [1, 1, 1]} : vector<2x8x32xf32> to vector<2x8x8xf32>
    %279 = vector.extract_strided_slice %268 {offsets = [0, 0, 8], sizes = [2, 8, 8], strides = [1, 1, 1]} : vector<2x8x32xf32> to vector<2x8x8xf32>
    %280 = vector.extract_strided_slice %268 {offsets = [0, 0, 16], sizes = [2, 8, 8], strides = [1, 1, 1]} : vector<2x8x32xf32> to vector<2x8x8xf32>
    %281 = vector.extract_strided_slice %268 {offsets = [0, 0, 24], sizes = [2, 8, 8], strides = [1, 1, 1]} : vector<2x8x32xf32> to vector<2x8x8xf32>
    %282 = tpu.concatenate %278, %279, %280, %281 in 0 : vector<2x8x8xf32>, vector<2x8x8xf32>, vector<2x8x8xf32>, vector<2x8x8xf32> -> vector<8x8x8xf32>
    %283 = arith.truncf %282 : vector<8x8x8xf32> to vector<8x8x8xbf16>
    %284 = vector.extract_strided_slice %270 {offsets = [0, 0, 0], sizes = [2, 8, 8], strides = [1, 1, 1]} : vector<2x8x32xf32> to vector<2x8x8xf32>
    %285 = vector.extract_strided_slice %270 {offsets = [0, 0, 8], sizes = [2, 8, 8], strides = [1, 1, 1]} : vector<2x8x32xf32> to vector<2x8x8xf32>
    %286 = vector.extract_strided_slice %270 {offsets = [0, 0, 16], sizes = [2, 8, 8], strides = [1, 1, 1]} : vector<2x8x32xf32> to vector<2x8x8xf32>
    %287 = vector.extract_strided_slice %270 {offsets = [0, 0, 24], sizes = [2, 8, 8], strides = [1, 1, 1]} : vector<2x8x32xf32> to vector<2x8x8xf32>
    %288 = tpu.concatenate %284, %285, %286, %287 in 0 : vector<2x8x8xf32>, vector<2x8x8xf32>, vector<2x8x8xf32>, vector<2x8x8xf32> -> vector<8x8x8xf32>
    %289 = arith.truncf %288 : vector<8x8x8xf32> to vector<8x8x8xbf16>
    "tpu.trace_start"() <{level = 10 : i32, message = "bqd,bkd->bqk"}> : () -> ()
    %cst_105 = arith.constant dense<0.000000e+00> : vector<8x1x8xf32>
    %290 = tpu.matmul %277, %283, %cst_105 {dimension_numbers = #tpu.dot_dimension_numbers<[2], [2], [1], [1], [0, 0, 0, 1, 1, 1], [0], [0]>} : vector<8x1x8xbf16>, vector<8x8x8xbf16>, vector<8x1x8xf32> -> vector<8x1x8xf32>
    "tpu.trace_stop"() : () -> ()
    %291 = arith.addf %290, %24 : vector<8x1x8xf32>
    %cst_106 = arith.constant dense<0xFF800000> : vector<8x1xf32>
    %292 = vector.multi_reduction <maximumf>, %291, %cst_106 [2] : vector<8x1x8xf32> to vector<8x1xf32>
    %293 = vector.shape_cast %292 : vector<8x1xf32> to vector<8x1x1xf32>
    %294 = vector.broadcast %293 : vector<8x1x1xf32> to vector<8x1x8xf32>
    %295 = arith.subf %291, %294 : vector<8x1x8xf32>
    %296 = math.exp %295 : vector<8x1x8xf32>
    %cst_107 = arith.constant dense<0.000000e+00> : vector<8x1xf32>
    %297 = vector.multi_reduction <add>, %296, %cst_107 [2] : vector<8x1x8xf32> to vector<8x1xf32>
    %298 = vector.shape_cast %297 : vector<8x1xf32> to vector<8x1x1xf32>
    %299 = tpu.reciprocal %298 {approx = true} : vector<8x1x1xf32> -> vector<8x1x1xf32>
    %300 = vector.broadcast %299 : vector<8x1x1xf32> to vector<8x1x8xf32>
    %301 = arith.mulf %296, %300 : vector<8x1x8xf32>
    %302 = arith.truncf %301 : vector<8x1x8xf32> to vector<8x1x8xbf16>
    "tpu.trace_start"() <{level = 10 : i32, message = "bqk,bkd->bqd"}> : () -> ()
    %cst_108 = arith.constant dense<0.000000e+00> : vector<8x1x8xf32>
    %303 = tpu.matmul %302, %289, %cst_108 {dimension_numbers = #tpu.dot_dimension_numbers<[2], [1], [1], [2], [0, 0, 0, 1, 1, 2], [0], [0]>} : vector<8x1x8xbf16>, vector<8x8x8xbf16>, vector<8x1x8xf32> -> vector<8x1x8xf32>
    "tpu.trace_stop"() : () -> ()
    %304 = vector.extract_strided_slice %303 {offsets = [0, 0, 0], sizes = [2, 1, 8], strides = [1, 1, 1]} : vector<8x1x8xf32> to vector<2x1x8xf32>
    %305 = vector.extract_strided_slice %303 {offsets = [2, 0, 0], sizes = [2, 1, 8], strides = [1, 1, 1]} : vector<8x1x8xf32> to vector<2x1x8xf32>
    %306 = vector.extract_strided_slice %303 {offsets = [4, 0, 0], sizes = [2, 1, 8], strides = [1, 1, 1]} : vector<8x1x8xf32> to vector<2x1x8xf32>
    %307 = vector.extract_strided_slice %303 {offsets = [6, 0, 0], sizes = [2, 1, 8], strides = [1, 1, 1]} : vector<8x1x8xf32> to vector<2x1x8xf32>
    %308 = tpu.concatenate %304, %305, %306, %307 in 2 : vector<2x1x8xf32>, vector<2x1x8xf32>, vector<2x1x8xf32>, vector<2x1x8xf32> -> vector<2x1x32xf32>
    %309 = vector.shape_cast %308 : vector<2x1x32xf32> to vector<2x32xf32>
    %c0_109 = arith.constant 0 : index
    %c0_110 = arith.constant 0 : index
    %c0_111 = arith.constant 0 : index
    %310 = vector.load %arg17[%c0_109, %c0_110, %c0_111] : memref<2x32x32xbf16, #tpu.memory_space<vmem>>, vector<1x32x32xbf16>
    %311 = vector.shape_cast %310 : vector<1x32x32xbf16> to vector<32x32xbf16>
    %312 = arith.truncf %309 : vector<2x32xf32> to vector<2x32xbf16>
    %cst_112 = arith.constant dense<0.000000e+00> : vector<2x32xf32>
    %313 = tpu.matmul %312, %311, %cst_112 {dimension_numbers = #tpu.dot_dimension_numbers<[1], [0], [0], [1], [0, 0, 1, 1], [], []>} : vector<2x32xbf16>, vector<32x32xbf16>, vector<2x32xf32> -> vector<2x32xf32>
    %314 = arith.addf %247, %313 : vector<2x32xf32>
    %c0_113 = arith.constant 0 : index
    %c0_114 = arith.constant 0 : index
    %c0_115 = arith.constant 0 : index
    %315 = vector.load %arg18[%c0_113, %c0_114, %c0_115] : memref<2x1x32xf32, #tpu.memory_space<vmem>>, vector<1x1x32xf32>
    %316 = vector.shape_cast %315 : vector<1x1x32xf32> to vector<1x32xf32>
    %317 = arith.mulf %314, %314 : vector<2x32xf32>
    %cst_116 = arith.constant dense<0.000000e+00> : vector<2xf32>
    %318 = vector.multi_reduction <add>, %317, %cst_116 [1] : vector<2x32xf32> to vector<2xf32>
    %319 = vector.shape_cast %318 : vector<2xf32> to vector<2x1xf32>
    %cst_117 = arith.constant 3.200000e+01 : f32
    %320 = vector.broadcast %cst_117 : f32 to vector<2x1xf32>
    %321 = arith.divf %319, %320 : vector<2x1xf32>
    %322 = vector.broadcast %316 : vector<1x32xf32> to vector<2x32xf32>
    %323 = arith.mulf %322, %314 : vector<2x32xf32>
    %cst_118 = arith.constant 9.99999997E-7 : f32
    %324 = vector.broadcast %cst_118 : f32 to vector<2x1xf32>
    %325 = arith.addf %321, %324 : vector<2x1xf32>
    %326 = math.rsqrt %325 : vector<2x1xf32>
    %327 = vector.broadcast %326 : vector<2x1xf32> to vector<2x32xf32>
    %328 = arith.mulf %323, %327 : vector<2x32xf32>
    %c0_119 = arith.constant 0 : index
    %c0_120 = arith.constant 0 : index
    %c0_121 = arith.constant 0 : index
    %329 = vector.load %arg19[%c0_119, %c0_120, %c0_121] : memref<2x32x64xbf16, #tpu.memory_space<vmem>>, vector<1x32x64xbf16>
    %330 = vector.shape_cast %329 : vector<1x32x64xbf16> to vector<32x64xbf16>
    %331 = arith.truncf %328 : vector<2x32xf32> to vector<2x32xbf16>
    %cst_122 = arith.constant dense<0.000000e+00> : vector<2x64xf32>
    %332 = tpu.matmul %331, %330, %cst_122 {dimension_numbers = #tpu.dot_dimension_numbers<[1], [0], [0], [1], [0, 0, 1, 1], [], []>} : vector<2x32xbf16>, vector<32x64xbf16>, vector<2x64xf32> -> vector<2x64xf32>
    %cst_123 = arith.constant 0.000000e+00 : f32
    %333 = vector.broadcast %cst_123 : f32 to vector<2x64xf32>
    %334 = arith.maximumf %332, %333 : vector<2x64xf32>
    %c0_124 = arith.constant 0 : index
    %c0_125 = arith.constant 0 : index
    %c0_126 = arith.constant 0 : index
    %335 = vector.load %arg20[%c0_124, %c0_125, %c0_126] : memref<2x64x32xbf16, #tpu.memory_space<vmem>>, vector<1x64x32xbf16>
    %336 = vector.shape_cast %335 : vector<1x64x32xbf16> to vector<64x32xbf16>
    %337 = arith.truncf %334 : vector<2x64xf32> to vector<2x64xbf16>
    %cst_127 = arith.constant dense<0.000000e+00> : vector<2x32xf32>
    %338 = tpu.matmul %337, %336, %cst_127 {dimension_numbers = #tpu.dot_dimension_numbers<[1], [0], [0], [1], [0, 0, 1, 1], [], []>} : vector<2x64xbf16>, vector<64x32xbf16>, vector<2x32xf32> -> vector<2x32xf32>
    %339 = arith.addf %314, %338 : vector<2x32xf32>
    %c1_128 = arith.constant 1 : index
    %c0_129 = arith.constant 0 : index
    %c0_130 = arith.constant 0 : index
    %340 = vector.load %arg12[%c1_128, %c0_129, %c0_130] : memref<2x1x32xf32, #tpu.memory_space<vmem>>, vector<1x1x32xf32>
    %341 = vector.shape_cast %340 : vector<1x1x32xf32> to vector<1x32xf32>
    %342 = arith.mulf %339, %339 : vector<2x32xf32>
    %cst_131 = arith.constant dense<0.000000e+00> : vector<2xf32>
    %343 = vector.multi_reduction <add>, %342, %cst_131 [1] : vector<2x32xf32> to vector<2xf32>
    %344 = vector.shape_cast %343 : vector<2xf32> to vector<2x1xf32>
    %cst_132 = arith.constant 3.200000e+01 : f32
    %345 = vector.broadcast %cst_132 : f32 to vector<2x1xf32>
    %346 = arith.divf %344, %345 : vector<2x1xf32>
    %347 = vector.broadcast %341 : vector<1x32xf32> to vector<2x32xf32>
    %348 = arith.mulf %347, %339 : vector<2x32xf32>
    %cst_133 = arith.constant 9.99999997E-7 : f32
    %349 = vector.broadcast %cst_133 : f32 to vector<2x1xf32>
    %350 = arith.addf %346, %349 : vector<2x1xf32>
    %351 = math.rsqrt %350 : vector<2x1xf32>
    %352 = vector.broadcast %351 : vector<2x1xf32> to vector<2x32xf32>
    %353 = arith.mulf %348, %352 : vector<2x32xf32>
    %c1_134 = arith.constant 1 : index
    %c0_135 = arith.constant 0 : index
    %c0_136 = arith.constant 0 : index
    %354 = vector.load %arg13[%c1_134, %c0_135, %c0_136] : memref<2x32x32xbf16, #tpu.memory_space<vmem>>, vector<1x32x32xbf16>
    %355 = vector.shape_cast %354 : vector<1x32x32xbf16> to vector<32x32xbf16>
    %356 = arith.truncf %353 : vector<2x32xf32> to vector<2x32xbf16>
    %cst_137 = arith.constant dense<0.000000e+00> : vector<2x32xf32>
    %357 = tpu.matmul %356, %355, %cst_137 {dimension_numbers = #tpu.dot_dimension_numbers<[1], [0], [0], [1], [0, 0, 1, 1], [], []>} : vector<2x32xbf16>, vector<32x32xbf16>, vector<2x32xf32> -> vector<2x32xf32>
    %358 = arith.addf %339, %357 : vector<2x32xf32>
    %c1_138 = arith.constant 1 : index
    %c0_139 = arith.constant 0 : index
    %c0_140 = arith.constant 0 : index
    %359 = vector.load %arg14[%c1_138, %c0_139, %c0_140] : memref<2x1x32xf32, #tpu.memory_space<vmem>>, vector<1x1x32xf32>
    %360 = vector.shape_cast %359 : vector<1x1x32xf32> to vector<1x32xf32>
    %361 = arith.mulf %358, %358 : vector<2x32xf32>
    %cst_141 = arith.constant dense<0.000000e+00> : vector<2xf32>
    %362 = vector.multi_reduction <add>, %361, %cst_141 [1] : vector<2x32xf32> to vector<2xf32>
    %363 = vector.shape_cast %362 : vector<2xf32> to vector<2x1xf32>
    %cst_142 = arith.constant 3.200000e+01 : f32
    %364 = vector.broadcast %cst_142 : f32 to vector<2x1xf32>
    %365 = arith.divf %363, %364 : vector<2x1xf32>
    %366 = vector.broadcast %360 : vector<1x32xf32> to vector<2x32xf32>
    %367 = arith.mulf %366, %358 : vector<2x32xf32>
    %cst_143 = arith.constant 9.99999997E-7 : f32
    %368 = vector.broadcast %cst_143 : f32 to vector<2x1xf32>
    %369 = arith.addf %365, %368 : vector<2x1xf32>
    %370 = math.rsqrt %369 : vector<2x1xf32>
    %371 = vector.broadcast %370 : vector<2x1xf32> to vector<2x32xf32>
    %372 = arith.mulf %367, %371 : vector<2x32xf32>
    %c1_144 = arith.constant 1 : index
    %c0_145 = arith.constant 0 : index
    %c0_146 = arith.constant 0 : index
    %373 = vector.load %arg15[%c1_144, %c0_145, %c0_146] : memref<2x32x32xbf16, #tpu.memory_space<vmem>>, vector<1x32x32xbf16>
    %374 = vector.shape_cast %373 : vector<1x32x32xbf16> to vector<32x32xbf16>
    %375 = arith.truncf %372 : vector<2x32xf32> to vector<2x32xbf16>
    %cst_147 = arith.constant dense<0.000000e+00> : vector<2x32xf32>
    %376 = tpu.matmul %375, %374, %cst_147 {dimension_numbers = #tpu.dot_dimension_numbers<[1], [0], [0], [1], [0, 0, 1, 1], [], []>} : vector<2x32xbf16>, vector<32x32xbf16>, vector<2x32xf32> -> vector<2x32xf32>
    %377 = vector.extract_strided_slice %228 {offsets = [0, 64], sizes = [16, 64], strides = [1, 1]} : vector<16x128xf32> to vector<16x64xf32>
    %378 = vector.extract_strided_slice %377 {offsets = [0, 0], sizes = [16, 32], strides = [1, 1]} : vector<16x64xf32> to vector<16x32xf32>
    %379 = vector.shape_cast %378 : vector<16x32xf32> to vector<2x8x32xf32>
    %380 = vector.extract_strided_slice %377 {offsets = [0, 32], sizes = [16, 32], strides = [1, 1]} : vector<16x64xf32> to vector<16x32xf32>
    %381 = vector.shape_cast %380 : vector<16x32xf32> to vector<2x8x32xf32>
    %382 = vector.shape_cast %376 : vector<2x32xf32> to vector<2x1x32xf32>
    %383 = vector.extract_strided_slice %382 {offsets = [0, 0, 0], sizes = [2, 1, 8], strides = [1, 1, 1]} : vector<2x1x32xf32> to vector<2x1x8xf32>
    %384 = vector.extract_strided_slice %382 {offsets = [0, 0, 8], sizes = [2, 1, 8], strides = [1, 1, 1]} : vector<2x1x32xf32> to vector<2x1x8xf32>
    %385 = vector.extract_strided_slice %382 {offsets = [0, 0, 16], sizes = [2, 1, 8], strides = [1, 1, 1]} : vector<2x1x32xf32> to vector<2x1x8xf32>
    %386 = vector.extract_strided_slice %382 {offsets = [0, 0, 24], sizes = [2, 1, 8], strides = [1, 1, 1]} : vector<2x1x32xf32> to vector<2x1x8xf32>
    %387 = tpu.concatenate %383, %384, %385, %386 in 0 : vector<2x1x8xf32>, vector<2x1x8xf32>, vector<2x1x8xf32>, vector<2x1x8xf32> -> vector<8x1x8xf32>
    %388 = arith.truncf %387 : vector<8x1x8xf32> to vector<8x1x8xbf16>
    %389 = vector.extract_strided_slice %379 {offsets = [0, 0, 0], sizes = [2, 8, 8], strides = [1, 1, 1]} : vector<2x8x32xf32> to vector<2x8x8xf32>
    %390 = vector.extract_strided_slice %379 {offsets = [0, 0, 8], sizes = [2, 8, 8], strides = [1, 1, 1]} : vector<2x8x32xf32> to vector<2x8x8xf32>
    %391 = vector.extract_strided_slice %379 {offsets = [0, 0, 16], sizes = [2, 8, 8], strides = [1, 1, 1]} : vector<2x8x32xf32> to vector<2x8x8xf32>
    %392 = vector.extract_strided_slice %379 {offsets = [0, 0, 24], sizes = [2, 8, 8], strides = [1, 1, 1]} : vector<2x8x32xf32> to vector<2x8x8xf32>
    %393 = tpu.concatenate %389, %390, %391, %392 in 0 : vector<2x8x8xf32>, vector<2x8x8xf32>, vector<2x8x8xf32>, vector<2x8x8xf32> -> vector<8x8x8xf32>
    %394 = arith.truncf %393 : vector<8x8x8xf32> to vector<8x8x8xbf16>
    %395 = vector.extract_strided_slice %381 {offsets = [0, 0, 0], sizes = [2, 8, 8], strides = [1, 1, 1]} : vector<2x8x32xf32> to vector<2x8x8xf32>
    %396 = vector.extract_strided_slice %381 {offsets = [0, 0, 8], sizes = [2, 8, 8], strides = [1, 1, 1]} : vector<2x8x32xf32> to vector<2x8x8xf32>
    %397 = vector.extract_strided_slice %381 {offsets = [0, 0, 16], sizes = [2, 8, 8], strides = [1, 1, 1]} : vector<2x8x32xf32> to vector<2x8x8xf32>
    %398 = vector.extract_strided_slice %381 {offsets = [0, 0, 24], sizes = [2, 8, 8], strides = [1, 1, 1]} : vector<2x8x32xf32> to vector<2x8x8xf32>
    %399 = tpu.concatenate %395, %396, %397, %398 in 0 : vector<2x8x8xf32>, vector<2x8x8xf32>, vector<2x8x8xf32>, vector<2x8x8xf32> -> vector<8x8x8xf32>
    %400 = arith.truncf %399 : vector<8x8x8xf32> to vector<8x8x8xbf16>
    "tpu.trace_start"() <{level = 10 : i32, message = "bqd,bkd->bqk"}> : () -> ()
    %cst_148 = arith.constant dense<0.000000e+00> : vector<8x1x8xf32>
    %401 = tpu.matmul %388, %394, %cst_148 {dimension_numbers = #tpu.dot_dimension_numbers<[2], [2], [1], [1], [0, 0, 0, 1, 1, 1], [0], [0]>} : vector<8x1x8xbf16>, vector<8x8x8xbf16>, vector<8x1x8xf32> -> vector<8x1x8xf32>
    "tpu.trace_stop"() : () -> ()
    %402 = arith.addf %401, %24 : vector<8x1x8xf32>
    %cst_149 = arith.constant dense<0xFF800000> : vector<8x1xf32>
    %403 = vector.multi_reduction <maximumf>, %402, %cst_149 [2] : vector<8x1x8xf32> to vector<8x1xf32>
    %404 = vector.shape_cast %403 : vector<8x1xf32> to vector<8x1x1xf32>
    %405 = vector.broadcast %404 : vector<8x1x1xf32> to vector<8x1x8xf32>
    %406 = arith.subf %402, %405 : vector<8x1x8xf32>
    %407 = math.exp %406 : vector<8x1x8xf32>
    %cst_150 = arith.constant dense<0.000000e+00> : vector<8x1xf32>
    %408 = vector.multi_reduction <add>, %407, %cst_150 [2] : vector<8x1x8xf32> to vector<8x1xf32>
    %409 = vector.shape_cast %408 : vector<8x1xf32> to vector<8x1x1xf32>
    %410 = tpu.reciprocal %409 {approx = true} : vector<8x1x1xf32> -> vector<8x1x1xf32>
    %411 = vector.broadcast %410 : vector<8x1x1xf32> to vector<8x1x8xf32>
    %412 = arith.mulf %407, %411 : vector<8x1x8xf32>
    %413 = arith.truncf %412 : vector<8x1x8xf32> to vector<8x1x8xbf16>
    "tpu.trace_start"() <{level = 10 : i32, message = "bqk,bkd->bqd"}> : () -> ()
    %cst_151 = arith.constant dense<0.000000e+00> : vector<8x1x8xf32>
    %414 = tpu.matmul %413, %400, %cst_151 {dimension_numbers = #tpu.dot_dimension_numbers<[2], [1], [1], [2], [0, 0, 0, 1, 1, 2], [0], [0]>} : vector<8x1x8xbf16>, vector<8x8x8xbf16>, vector<8x1x8xf32> -> vector<8x1x8xf32>
    "tpu.trace_stop"() : () -> ()
    %415 = vector.extract_strided_slice %414 {offsets = [0, 0, 0], sizes = [2, 1, 8], strides = [1, 1, 1]} : vector<8x1x8xf32> to vector<2x1x8xf32>
    %416 = vector.extract_strided_slice %414 {offsets = [2, 0, 0], sizes = [2, 1, 8], strides = [1, 1, 1]} : vector<8x1x8xf32> to vector<2x1x8xf32>
    %417 = vector.extract_strided_slice %414 {offsets = [4, 0, 0], sizes = [2, 1, 8], strides = [1, 1, 1]} : vector<8x1x8xf32> to vector<2x1x8xf32>
    %418 = vector.extract_strided_slice %414 {offsets = [6, 0, 0], sizes = [2, 1, 8], strides = [1, 1, 1]} : vector<8x1x8xf32> to vector<2x1x8xf32>
    %419 = tpu.concatenate %415, %416, %417, %418 in 2 : vector<2x1x8xf32>, vector<2x1x8xf32>, vector<2x1x8xf32>, vector<2x1x8xf32> -> vector<2x1x32xf32>
    %420 = vector.shape_cast %419 : vector<2x1x32xf32> to vector<2x32xf32>
    %c1_152 = arith.constant 1 : index
    %c0_153 = arith.constant 0 : index
    %c0_154 = arith.constant 0 : index
    %421 = vector.load %arg17[%c1_152, %c0_153, %c0_154] : memref<2x32x32xbf16, #tpu.memory_space<vmem>>, vector<1x32x32xbf16>
    %422 = vector.shape_cast %421 : vector<1x32x32xbf16> to vector<32x32xbf16>
    %423 = arith.truncf %420 : vector<2x32xf32> to vector<2x32xbf16>
    %cst_155 = arith.constant dense<0.000000e+00> : vector<2x32xf32>
    %424 = tpu.matmul %423, %422, %cst_155 {dimension_numbers = #tpu.dot_dimension_numbers<[1], [0], [0], [1], [0, 0, 1, 1], [], []>} : vector<2x32xbf16>, vector<32x32xbf16>, vector<2x32xf32> -> vector<2x32xf32>
    %425 = arith.addf %358, %424 : vector<2x32xf32>
    %c1_156 = arith.constant 1 : index
    %c0_157 = arith.constant 0 : index
    %c0_158 = arith.constant 0 : index
    %426 = vector.load %arg18[%c1_156, %c0_157, %c0_158] : memref<2x1x32xf32, #tpu.memory_space<vmem>>, vector<1x1x32xf32>
    %427 = vector.shape_cast %426 : vector<1x1x32xf32> to vector<1x32xf32>
    %428 = arith.mulf %425, %425 : vector<2x32xf32>
    %cst_159 = arith.constant dense<0.000000e+00> : vector<2xf32>
    %429 = vector.multi_reduction <add>, %428, %cst_159 [1] : vector<2x32xf32> to vector<2xf32>
    %430 = vector.shape_cast %429 : vector<2xf32> to vector<2x1xf32>
    %cst_160 = arith.constant 3.200000e+01 : f32
    %431 = vector.broadcast %cst_160 : f32 to vector<2x1xf32>
    %432 = arith.divf %430, %431 : vector<2x1xf32>
    %433 = vector.broadcast %427 : vector<1x32xf32> to vector<2x32xf32>
    %434 = arith.mulf %433, %425 : vector<2x32xf32>
    %cst_161 = arith.constant 9.99999997E-7 : f32
    %435 = vector.broadcast %cst_161 : f32 to vector<2x1xf32>
    %436 = arith.addf %432, %435 : vector<2x1xf32>
    %437 = math.rsqrt %436 : vector<2x1xf32>
    %438 = vector.broadcast %437 : vector<2x1xf32> to vector<2x32xf32>
    %439 = arith.mulf %434, %438 : vector<2x32xf32>
    %c1_162 = arith.constant 1 : index
    %c0_163 = arith.constant 0 : index
    %c0_164 = arith.constant 0 : index
    %440 = vector.load %arg19[%c1_162, %c0_163, %c0_164] : memref<2x32x64xbf16, #tpu.memory_space<vmem>>, vector<1x32x64xbf16>
    %441 = vector.shape_cast %440 : vector<1x32x64xbf16> to vector<32x64xbf16>
    %442 = arith.truncf %439 : vector<2x32xf32> to vector<2x32xbf16>
    %cst_165 = arith.constant dense<0.000000e+00> : vector<2x64xf32>
    %443 = tpu.matmul %442, %441, %cst_165 {dimension_numbers = #tpu.dot_dimension_numbers<[1], [0], [0], [1], [0, 0, 1, 1], [], []>} : vector<2x32xbf16>, vector<32x64xbf16>, vector<2x64xf32> -> vector<2x64xf32>
    %cst_166 = arith.constant 0.000000e+00 : f32
    %444 = vector.broadcast %cst_166 : f32 to vector<2x64xf32>
    %445 = arith.maximumf %443, %444 : vector<2x64xf32>
    %c1_167 = arith.constant 1 : index
    %c0_168 = arith.constant 0 : index
    %c0_169 = arith.constant 0 : index
    %446 = vector.load %arg20[%c1_167, %c0_168, %c0_169] : memref<2x64x32xbf16, #tpu.memory_space<vmem>>, vector<1x64x32xbf16>
    %447 = vector.shape_cast %446 : vector<1x64x32xbf16> to vector<64x32xbf16>
    %448 = arith.truncf %445 : vector<2x64xf32> to vector<2x64xbf16>
    %cst_170 = arith.constant dense<0.000000e+00> : vector<2x32xf32>
    %449 = tpu.matmul %448, %447, %cst_170 {dimension_numbers = #tpu.dot_dimension_numbers<[1], [0], [0], [1], [0, 0, 1, 1], [], []>} : vector<2x64xbf16>, vector<64x32xbf16>, vector<2x32xf32> -> vector<2x32xf32>
    %450 = arith.addf %425, %449 : vector<2x32xf32>
    %c0_171 = arith.constant 0 : index
    %c0_172 = arith.constant 0 : index
    %451 = vector.load %arg21[%c0_171, %c0_172] : memref<1x32xf32, #tpu.memory_space<vmem>>, vector<1x32xf32>
    %452 = arith.mulf %450, %450 : vector<2x32xf32>
    %cst_173 = arith.constant dense<0.000000e+00> : vector<2xf32>
    %453 = vector.multi_reduction <add>, %452, %cst_173 [1] : vector<2x32xf32> to vector<2xf32>
    %454 = vector.shape_cast %453 : vector<2xf32> to vector<2x1xf32>
    %cst_174 = arith.constant 3.200000e+01 : f32
    %455 = vector.broadcast %cst_174 : f32 to vector<2x1xf32>
    %456 = arith.divf %454, %455 : vector<2x1xf32>
    %457 = vector.broadcast %451 : vector<1x32xf32> to vector<2x32xf32>
    %458 = arith.mulf %457, %450 : vector<2x32xf32>
    %cst_175 = arith.constant 9.99999997E-7 : f32
    %459 = vector.broadcast %cst_175 : f32 to vector<2x1xf32>
    %460 = arith.addf %456, %459 : vector<2x1xf32>
    %461 = math.rsqrt %460 : vector<2x1xf32>
    %462 = vector.broadcast %461 : vector<2x1xf32> to vector<2x32xf32>
    %463 = arith.mulf %458, %462 : vector<2x32xf32>
    %c0_176 = arith.constant 0 : index
    %c0_177 = arith.constant 0 : index
    %464 = vector.load %arg22[%c0_176, %c0_177] : memref<32x128xbf16, #tpu.memory_space<vmem>>, vector<32x128xbf16>
    %465 = arith.truncf %463 : vector<2x32xf32> to vector<2x32xbf16>
    %cst_178 = arith.constant dense<0.000000e+00> : vector<2x128xf32>
    %466 = tpu.matmul %465, %464, %cst_178 {dimension_numbers = #tpu.dot_dimension_numbers<[1], [0], [0], [1], [0, 0, 1, 1], [], []>} : vector<2x32xbf16>, vector<32x128xbf16>, vector<2x128xf32> -> vector<2x128xf32>
    %c0_179 = arith.constant 0 : index
    %c0_180 = arith.constant 0 : index
    %467 = vector.load %arg23[%c0_179, %c0_180] : memref<2x128xf32, #tpu.memory_space<vmem>>, vector<2x128xf32>
    tpu.vector_store %arg23[%c0_179, %c0_180], %466 {strides = array<i32>} : memref<2x128xf32, #tpu.memory_space<vmem>>, vector<2x128xf32>,
    return
  }
  func.func @transform_0(%arg0: i32) -> (i32, i32) {
    %c0_i32 = arith.constant 0 : i32
    %c0_i32_0 = arith.constant 0 : i32
    %c0_i32_1 = arith.constant 0 : i32
    return %c0_i32, %c0_i32_0 : i32, i32
  }
  func.func @transform_1(%arg0: i32) -> (i32, i32) {
    %c0_i32 = arith.constant 0 : i32
    %c0_i32_0 = arith.constant 0 : i32
    %c0_i32_1 = arith.constant 0 : i32
    return %c0_i32, %c0_i32_0 : i32, i32
  }
  func.func @transform_2(%arg0: i32) -> (i32, i32) {
    %c0_i32 = arith.constant 0 : i32
    %c0_i32_0 = arith.constant 0 : i32
    %c0_i32_1 = arith.constant 0 : i32
    return %c0_i32, %c0_i32_0 : i32, i32
  }
  func.func @transform_3(%arg0: i32) -> (i32, i32, i32) {
    %c0_i32 = arith.constant 0 : i32
    %c0_i32_0 = arith.constant 0 : i32
    %c0_i32_1 = arith.constant 0 : i32
    %c0_i32_2 = arith.constant 0 : i32
    return %c0_i32, %c0_i32_0, %c0_i32_1 : i32, i32, i32
  }
  func.func @transform_4(%arg0: i32) -> (i32, i32, i32) {
    %c0_i32 = arith.constant 0 : i32
    %c0_i32_0 = arith.constant 0 : i32
    %c0_i32_1 = arith.constant 0 : i32
    %c0_i32_2 = arith.constant 0 : i32
    return %c0_i32, %c0_i32_0, %c0_i32_1 : i32, i32, i32
  }
  func.func @transform_5(%arg0: i32) -> (i32, i32, i32) {
    %c0_i32 = arith.constant 0 : i32
    %c0_i32_0 = arith.constant 0 : i32
    %c0_i32_1 = arith.constant 0 : i32
    %c0_i32_2 = arith.constant 0 : i32
    return %c0_i32, %c0_i32_0, %c0_i32_1 : i32, i32, i32
  }
  func.func @transform_6(%arg0: i32) -> (i32, i32, i32) {
    %c0_i32 = arith.constant 0 : i32
    %c0_i32_0 = arith.constant 0 : i32
    %c0_i32_1 = arith.constant 0 : i32
    %c0_i32_2 = arith.constant 0 : i32
    return %c0_i32, %c0_i32_0, %c0_i32_1 : i32, i32, i32
  }
  func.func @transform_7(%arg0: i32) -> (i32, i32, i32) {
    %c0_i32 = arith.constant 0 : i32
    %c0_i32_0 = arith.constant 0 : i32
    %c0_i32_1 = arith.constant 0 : i32
    %c0_i32_2 = arith.constant 0 : i32
    return %c0_i32, %c0_i32_0, %c0_i32_1 : i32, i32, i32
  }
  func.func @transform_8(%arg0: i32) -> (i32, i32, i32) {
    %c0_i32 = arith.constant 0 : i32
    %c0_i32_0 = arith.constant 0 : i32
    %c0_i32_1 = arith.constant 0 : i32
    %c0_i32_2 = arith.constant 0 : i32
    return %c0_i32, %c0_i32_0, %c0_i32_1 : i32, i32, i32
  }
  func.func @transform_9(%arg0: i32) -> (i32, i32, i32) {
    %c0_i32 = arith.constant 0 : i32
    %c0_i32_0 = arith.constant 0 : i32
    %c0_i32_1 = arith.constant 0 : i32
    %c0_i32_2 = arith.constant 0 : i32
    return %c0_i32, %c0_i32_0, %c0_i32_1 : i32, i32, i32
  }
  func.func @transform_10(%arg0: i32) -> (i32, i32) {
    %c0_i32 = arith.constant 0 : i32
    %c0_i32_0 = arith.constant 0 : i32
    %c0_i32_1 = arith.constant 0 : i32
    return %c0_i32, %c0_i32_0 : i32, i32
  }
  func.func @transform_11(%arg0: i32) -> (i32, i32, i32) {
    %c0_i32 = arith.constant 0 : i32
    %c0_i32_0 = arith.constant 0 : i32
    %c0_i32_1 = arith.constant 0 : i32
    %c0_i32_2 = arith.constant 0 : i32
    return %c0_i32, %c0_i32_0, %c0_i32_1 : i32, i32, i32
  }
  func.func @transform_12(%arg0: i32) -> (i32, i32, i32) {
    %c0_i32 = arith.constant 0 : i32
    %c0_i32_0 = arith.constant 0 : i32
    %c0_i32_1 = arith.constant 0 : i32
    %c0_i32_2 = arith.constant 0 : i32
    return %c0_i32, %c0_i32_0, %c0_i32_1 : i32, i32, i32
  }
  func.func @transform_13(%arg0: i32) -> (i32, i32, i32) {
    %c0_i32 = arith.constant 0 : i32
    %c0_i32_0 = arith.constant 0 : i32
    %c0_i32_1 = arith.constant 0 : i32
    %c0_i32_2 = arith.constant 0 : i32
    return %c0_i32, %c0_i32_0, %c0_i32_1 : i32, i32, i32
  }
  func.func @transform_14(%arg0: i32) -> (i32, i32, i32) {
    %c0_i32 = arith.constant 0 : i32
    %c0_i32_0 = arith.constant 0 : i32
    %c0_i32_1 = arith.constant 0 : i32
    %c0_i32_2 = arith.constant 0 : i32
    return %c0_i32, %c0_i32_0, %c0_i32_1 : i32, i32, i32
  }
  func.func @transform_15(%arg0: i32) -> (i32, i32) {
    %c0_i32 = arith.constant 0 : i32
    %c0_i32_0 = arith.constant 0 : i32
    %c0_i32_1 = arith.constant 0 : i32
    return %c0_i32, %c0_i32_0 : i32, i32
  }
  func.func @transform_16(%arg0: i32) -> (i32, i32, i32) {
    %c0_i32 = arith.constant 0 : i32
    %c0_i32_0 = arith.constant 0 : i32
    %c0_i32_1 = arith.constant 0 : i32
    %c0_i32_2 = arith.constant 0 : i32
    return %c0_i32, %c0_i32_0, %c0_i32_1 : i32, i32, i32
  }
  func.func @transform_17(%arg0: i32) -> (i32, i32, i32) {
    %c0_i32 = arith.constant 0 : i32
    %c0_i32_0 = arith.constant 0 : i32
    %c0_i32_1 = arith.constant 0 : i32
    %c0_i32_2 = arith.constant 0 : i32
    return %c0_i32, %c0_i32_0, %c0_i32_1 : i32, i32, i32
  }
  func.func @transform_18(%arg0: i32) -> (i32, i32, i32) {
    %c0_i32 = arith.constant 0 : i32
    %c0_i32_0 = arith.constant 0 : i32
    %c0_i32_1 = arith.constant 0 : i32
    %c0_i32_2 = arith.constant 0 : i32
    return %c0_i32, %c0_i32_0, %c0_i32_1 : i32, i32, i32
  }
  func.func @transform_19(%arg0: i32) -> (i32, i32, i32) {
    %c0_i32 = arith.constant 0 : i32
    %c0_i32_0 = arith.constant 0 : i32
    %c0_i32_1 = arith.constant 0 : i32
    %c0_i32_2 = arith.constant 0 : i32
    return %c0_i32, %c0_i32_0, %c0_i32_1 : i32, i32, i32
  }
  func.func @transform_20(%arg0: i32) -> (i32, i32) {
    %c0_i32 = arith.constant 0 : i32
    %c0_i32_0 = arith.constant 0 : i32
    %c0_i32_1 = arith.constant 0 : i32
    return %c0_i32, %c0_i32_0 : i32, i32
  }
  func.func @transform_21(%arg0: i32) -> (i32, i32) {
    %c0_i32 = arith.constant 0 : i32
    %c0_i32_0 = arith.constant 0 : i32
    %c0_i32_1 = arith.constant 0 : i32
    return %c0_i32, %c0_i32_0 : i32, i32
  }
  func.func @transform_22(%arg0: i32) -> (i32, i32) {
    %c0_i32 = arith.constant 0 : i32
    %c0_i32_0 = arith.constant 0 : i32
    %c0_i32_1 = arith.constant 0 : i32
    return %c0_i32, %c0_i32_0 : i32, i32
  }
}

</mosaic_0001>

<llo_original>
// kernel: forward.1
$region0: #{forward.1}
  #allocation0 [shape = 'u32[]', space=smem, size = 0x4, offset = 0x4, fixed_abs, tag = 'smem constant byte address 0x4 - core index']
  #allocation1 [shape = 'u32[144,128]{1,0:T(1,128)}', space=vmem, size = 0x12000, scoped, tag = 'internal scratch']
  %s0 = inlined_call_operand.vmem [shape: s32[16,1], index: 0, kind: input, shape index: {}]
  %s1 = inlined_call_operand.vmem [shape: f32[2,8], index: 1, kind: input, shape index: {}]
  %s2 = inlined_call_operand.hbm [shape: bf16[128,32], index: 2, kind: input, shape index: {}]
  %s3 = inlined_call_operand.hbm [shape: f32[4,8,8], index: 3, kind: input, shape index: {}]
  %s4 = inlined_call_operand.hbm [shape: f32[2,1,32], index: 4, kind: input, shape index: {}]
  %s5 = inlined_call_operand.hbm [shape: bf16[2,32,96], index: 5, kind: input, shape index: {}]
  %s6 = inlined_call_operand.hbm [shape: bf16[2,32,32], index: 6, kind: input, shape index: {}]
  %s7 = inlined_call_operand.hbm [shape: f32[2,1,32], index: 7, kind: input, shape index: {}]
  %s8 = inlined_call_operand.hbm [shape: bf16[2,32,64], index: 8, kind: input, shape index: {}]
  %s9 = inlined_call_operand.hbm [shape: bf16[2,64,32], index: 9, kind: input, shape index: {}]
  %s10 = inlined_call_operand.hbm [shape: f32[1,32], index: 10, kind: input, shape index: {}]
  %s11 = inlined_call_operand.hbm [shape: f32[2,1,32], index: 11, kind: input, shape index: {}]
  %s12 = inlined_call_operand.hbm [shape: bf16[2,32,32], index: 12, kind: input, shape index: {}]
  %s13 = inlined_call_operand.hbm [shape: f32[2,1,32], index: 13, kind: input, shape index: {}]
  %s14 = inlined_call_operand.hbm [shape: bf16[2,32,32], index: 14, kind: input, shape index: {}]
  %s15 = inlined_call_operand.hbm [shape: bf16[32,128], index: 15, kind: input, shape index: {}]
  %s16 = inlined_call_operand.vmem [shape: bf16[2,32,32], index: 16, kind: input, shape index: {}]
  %s17 = inlined_call_operand.hbm [shape: f32[2,1,32], index: 17, kind: input, shape index: {}]
  %s18 = inlined_call_operand.vmem [shape: bf16[2,32,64], index: 18, kind: input, shape index: {}]
  %s19 = inlined_call_operand.vmem [shape: bf16[2,64,32], index: 19, kind: input, shape index: {}]
  %s20 = inlined_call_operand.vmem [shape: f32[1,32], index: 20, kind: input, shape index: {}]
  %s21 = inlined_call_operand.hbm [shape: bf16[32,128], index: 21, kind: input, shape index: {}]
  %s22 = inlined_call_operand.hbm [shape: f32[2,128], index: 22, kind: output, shape index: {}]
  %s23 = sld [smem:[#allocation0]]
  $region162: #{forward.1} parent=0
    _
  %s25 = ssub.s32 1, %s23
  %s26 = scalar_select 0, %s25, %s23
  $region1: #{forward.1} parent=0
    #allocation2 [shape = 'u8[32768]{0}', space=vmem, size = 0x8000, scoped, tag = 'input window, operand 2, single buffered']
    #allocation3 [shape = 's32[1]{0}', space=sflag, size = 0x4, scoped, tag = 'scoped memory for forward.1']
    #allocation4 [shape = 's32[1]{0}', space=sflag, size = 0x4, scoped, tag = 'scoped memory for forward.1']
    #allocation5 [shape = 'u8[16384]{0}', space=vmem, size = 0x4000, scoped, tag = 'input window, operand 3, single buffered']
    #allocation6 [shape = 's32[1]{0}', space=sflag, size = 0x4, scoped, tag = 'scoped memory for forward.1']
    #allocation7 [shape = 'u8[1024]{0}', space=vmem, size = 0x400, scoped, tag = 'input window, operand 4, single buffered']
    #allocation8 [shape = 'u8[16384]{0}', space=vmem, size = 0x4000, scoped, tag = 'input window, operand 5, single buffered']
    #allocation9 [shape = 's32[1]{0}', space=sflag, size = 0x4, scoped, tag = 'scoped memory for forward.1']
    #allocation10 [shape = 'u8[16384]{0}', space=vmem, size = 0x4000, scoped, tag = 'input window, operand 6, single buffered']
    #allocation11 [shape = 'u8[1024]{0}', space=vmem, size = 0x400, scoped, tag = 'input window, operand 7, single buffered']
    #allocation12 [shape = 's32[1]{0}', space=sflag, size = 0x4, scoped, tag = 'scoped memory for forward.1']
    #allocation13 [shape = 'u8[16384]{0}', space=vmem, size = 0x4000, scoped, tag = 'input window, operand 8, single buffered']
    #allocation14 [shape = 'u8[32768]{0}', space=vmem, size = 0x8000, scoped, tag = 'input window, operand 9, single buffered']
    #allocation15 [shape = 's32[1]{0}', space=sflag, size = 0x4, scoped, tag = 'scoped memory for forward.1']
    #allocation16 [shape = 'u8[512]{0}', space=vmem, size = 0x400, scoped, tag = 'input window, operand 10, single buffered']
    #allocation17 [shape = 'u8[1024]{0}', space=vmem, size = 0x400, scoped, tag = 'input window, operand 11, single buffered']
    #allocation18 [shape = 's32[1]{0}', space=sflag, size = 0x4, scoped, tag = 'scoped memory for forward.1']
    #allocation19 [shape = 'u8[16384]{0}', space=vmem, size = 0x4000, scoped, tag = 'input window, operand 12, single buffered']
    #allocation20 [shape = 'u8[1024]{0}', space=vmem, size = 0x400, scoped, tag = 'input window, operand 13, single buffered']
    #allocation21 [shape = 's32[1]{0}', space=sflag, size = 0x4, scoped, tag = 'scoped memory for forward.1']
    #allocation22 [shape = 'u8[16384]{0}', space=vmem, size = 0x4000, scoped, tag = 'input window, operand 14, single buffered']
    #allocation23 [shape = 'u8[8192]{0}', space=vmem, size = 0x2000, scoped, tag = 'input window, operand 15, single buffered']
    #allocation24 [shape = 's32[1]{0}', space=sflag, size = 0x4, scoped, tag = 'scoped memory for forward.1']
    #allocation25 [shape = 'u8[1024]{0}', space=vmem, size = 0x400, scoped, tag = 'input window, operand 17, single buffered']
    #allocation26 [shape = 'u8[8192]{0}', space=vmem, size = 0x2000, scoped, tag = 'input window, operand 21, single buffered']
    #allocation27 [shape = 's32[1]{0}', space=sflag, size = 0x4, scoped, tag = 'scoped memory for forward.1']
    #allocation28 [shape = 'u8[1024]{0}', space=vmem, size = 0x400, scoped, tag = 'output window, operand 0, single buffered']
    %27 = vsyncpa [#allocation3], 0
    %28 = vsyncpa [#allocation6], 0
    %29 = vsyncpa [#allocation9], 0
    %30 = vsyncpa [#allocation12], 0
    %31 = vsyncpa [#allocation15], 0
    %32 = vsyncpa [#allocation18], 0
    %33 = vsyncpa [#allocation21], 0
    %34 = vsyncpa [#allocation24], 0
    %35 = vsyncpa [#allocation27], 0
    %36 = vsyncpa [#allocation4], 0
    // Predicated region
    $region2: #{forward.1} parent=1 // pred_check
      _
    $region3: #{forward.1} parent=1 // pred_check_branch
      %38 = sbr.rel (0) target = $region5
    $region4: #{forward.1} parent=1 // pred_region
      _
    $region5: #{forward.1} parent=1 // pred_fallthru
      _
    // Predicated region
    $region6: #{forward.1} parent=1 // pred_check
      _
    $region7: #{forward.1} parent=1 // pred_check_branch
      %40 = sbr.rel (0) target = $region9
    $region8: #{forward.1} parent=1 // pred_region
      _
    $region9: #{forward.1} parent=1 // pred_fallthru
      _
    // Predicated region
    $region10: #{forward.1} parent=1 // pred_check
      _
    $region11: #{forward.1} parent=1 // pred_check_branch
      %42 = sbr.rel (0) target = $region13
    $region12: #{forward.1} parent=1 // pred_region
      %s44 = ssub.s32 1024, 1024
      %45 = vsyncadd [#allocation3], %s44
      %s46 = sshll.u32 [#allocation2], 4
      %s47 = int_to_ptr.vmem [resolvable:$true] %s46
      %52 = dma.hbm_to_vmem [thread:$0]  %s2, 1024, %s47, [#allocation3], 64, 64, 4
    $region13: #{forward.1} parent=1 // pred_fallthru
      _
    // Predicated region
    $region14: #{forward.1} parent=1 // pred_check
      _
    $region15: #{forward.1} parent=1 // pred_check_branch
      %54 = sbr.rel (0) target = $region17
    $region16: #{forward.1} parent=1 // pred_region
      %s56 = ssub.s32 512, 512
      %57 = vsyncadd [#allocation6], %s56
      %s58 = sshll.u32 [#allocation5], 4
      %s59 = int_to_ptr.vmem [resolvable:$true] %s58
      %64 = dma.hbm_to_vmem [thread:$0]  %s3, 512, %s59, [#allocation6], 128, 128, 8
    $region17: #{forward.1} parent=1 // pred_fallthru
      _
    // Predicated region
    $region18: #{forward.1} parent=1 // pred_check
      _
    $region19: #{forward.1} parent=1 // pred_check_branch
      %66 = sbr.rel (0) target = $region21
    $region20: #{forward.1} parent=1 // pred_region
      %s68 = ssub.s32 32, 32
      %69 = vsyncadd [#allocation6], %s68
      %s70 = sshll.u32 [#allocation7], 4
      %s71 = int_to_ptr.vmem [resolvable:$true] %s70
      %76 = dma.hbm_to_vmem [thread:$0]  %s4, 32, %s71, [#allocation6], 16, 16, 1
    $region21: #{forward.1} parent=1 // pred_fallthru
      _
    // Predicated region
    $region22: #{forward.1} parent=1 // pred_check
      _
    $region23: #{forward.1} parent=1 // pred_check_branch
      %78 = sbr.rel (0) target = $region25
    $region24: #{forward.1} parent=1 // pred_region
      %s80 = ssub.s32 512, 512
      %81 = vsyncadd [#allocation9], %s80
      %s82 = sshll.u32 [#allocation8], 4
      %s83 = int_to_ptr.vmem [resolvable:$true] %s82
      %88 = dma.hbm_to_vmem [thread:$0]  %s5, 512, %s83, [#allocation9], 64, 64, 4
    $region25: #{forward.1} parent=1 // pred_fallthru
      _
    // Predicated region
    $region26: #{forward.1} parent=1 // pred_check
      _
    $region27: #{forward.1} parent=1 // pred_check_branch
      %90 = sbr.rel (0) target = $region29
    $region28: #{forward.1} parent=1 // pred_region
      %s92 = ssub.s32 512, 512
      %93 = vsyncadd [#allocation9], %s92
      %s94 = sshll.u32 [#allocation10], 4
      %s95 = int_to_ptr.vmem [resolvable:$true] %s94
      %100 = dma.hbm_to_vmem [thread:$0]  %s6, 512, %s95, [#allocation9], 64, 64, 4
    $region29: #{forward.1} parent=1 // pred_fallthru
      _
    // Predicated region
    $region30: #{forward.1} parent=1 // pred_check
      _
    $region31: #{forward.1} parent=1 // pred_check_branch
      %102 = sbr.rel (0) target = $region33
    $region32: #{forward.1} parent=1 // pred_region
      %s104 = ssub.s32 32, 32
      %105 = vsyncadd [#allocation12], %s104
      %s106 = sshll.u32 [#allocation11], 4
      %s107 = int_to_ptr.vmem [resolvable:$true] %s106
      %112 = dma.hbm_to_vmem [thread:$0]  %s7, 32, %s107, [#allocation12], 16, 16, 1
    $region33: #{forward.1} parent=1 // pred_fallthru
      _
    // Predicated region
    $region34: #{forward.1} parent=1 // pred_check
      _
    $region35: #{forward.1} parent=1 // pred_check_branch
      %114 = sbr.rel (0) target = $region37
    $region36: #{forward.1} parent=1 // pred_region
      %s116 = ssub.s32 512, 512
      %117 = vsyncadd [#allocation12], %s116
      %s118 = sshll.u32 [#allocation13], 4
      %s119 = int_to_ptr.vmem [resolvable:$true] %s118
      %124 = dma.hbm_to_vmem [thread:$0]  %s8, 512, %s119, [#allocation12], 64, 64, 4
    $region37: #{forward.1} parent=1 // pred_fallthru
      _
    // Predicated region
    $region38: #{forward.1} parent=1 // pred_check
      _
    $region39: #{forward.1} parent=1 // pred_check_branch
      %126 = sbr.rel (0) target = $region41
    $region40: #{forward.1} parent=1 // pred_region
      %s128 = ssub.s32 1024, 1024
      %129 = vsyncadd [#allocation15], %s128
      %s130 = sshll.u32 [#allocation14], 4
      %s131 = int_to_ptr.vmem [resolvable:$true] %s130
      %136 = dma.hbm_to_vmem [thread:$0]  %s9, 1024, %s131, [#allocation15], 64, 64, 4
    $region41: #{forward.1} parent=1 // pred_fallthru
      _
    // Predicated region
    $region42: #{forward.1} parent=1 // pred_check
      _
    $region43: #{forward.1} parent=1 // pred_check_branch
      %138 = sbr.rel (0) target = $region45
    $region44: #{forward.1} parent=1 // pred_region
      %s140 = ssub.s32 16, 16
      %141 = vsyncadd [#allocation15], %s140
      %s143 = sshll.u32 [#allocation16], 4
      %s144 = int_to_ptr.vmem [resolvable:$true] %s143
      %146 = dma.hbm_to_vmem [thread:$0]  %s10, 16, %s144, [#allocation15]
    $region45: #{forward.1} parent=1 // pred_fallthru
      _
    // Predicated region
    $region46: #{forward.1} parent=1 // pred_check
      _
    $region47: #{forward.1} parent=1 // pred_check_branch
      %148 = sbr.rel (0) target = $region49
    $region48: #{forward.1} parent=1 // pred_region
      %s150 = ssub.s32 32, 32
      %151 = vsyncadd [#allocation18], %s150
      %s152 = sshll.u32 [#allocation17], 4
      %s153 = int_to_ptr.vmem [resolvable:$true] %s152
      %158 = dma.hbm_to_vmem [thread:$0]  %s11, 32, %s153, [#allocation18], 16, 16, 1
    $region49: #{forward.1} parent=1 // pred_fallthru
      _
    // Predicated region
    $region50: #{forward.1} parent=1 // pred_check
      _
    $region51: #{forward.1} parent=1 // pred_check_branch
      %160 = sbr.rel (0) target = $region53
    $region52: #{forward.1} parent=1 // pred_region
      %s162 = ssub.s32 512, 512
      %163 = vsyncadd [#allocation18], %s162
      %s164 = sshll.u32 [#allocation19], 4
      %s165 = int_to_ptr.vmem [resolvable:$true] %s164
      %170 = dma.hbm_to_vmem [thread:$0]  %s12, 512, %s165, [#allocation18], 64, 64, 4
    $region53: #{forward.1} parent=1 // pred_fallthru
      _
    // Predicated region
    $region54: #{forward.1} parent=1 // pred_check
      _
    $region55: #{forward.1} parent=1 // pred_check_branch
      %172 = sbr.rel (0) target = $region57
    $region56: #{forward.1} parent=1 // pred_region
      %s174 = ssub.s32 32, 32
      %175 = vsyncadd [#allocation21], %s174
      %s176 = sshll.u32 [#allocation20], 4
      %s177 = int_to_ptr.vmem [resolvable:$true] %s176
      %182 = dma.hbm_to_vmem [thread:$0]  %s13, 32, %s177, [#allocation21], 16, 16, 1
    $region57: #{forward.1} parent=1 // pred_fallthru
      _
    // Predicated region
    $region58: #{forward.1} parent=1 // pred_check
      _
    $region59: #{forward.1} parent=1 // pred_check_branch
      %184 = sbr.rel (0) target = $region61
    $region60: #{forward.1} parent=1 // pred_region
      %s186 = ssub.s32 512, 512
      %187 = vsyncadd [#allocation21], %s186
      %s188 = sshll.u32 [#allocation22], 4
      %s189 = int_to_ptr.vmem [resolvable:$true] %s188
      %194 = dma.hbm_to_vmem [thread:$0]  %s14, 512, %s189, [#allocation21], 64, 64, 4
    $region61: #{forward.1} parent=1 // pred_fallthru
      _
    // Predicated region
    $region62: #{forward.1} parent=1 // pred_check
      _
    $region63: #{forward.1} parent=1 // pred_check_branch
      %196 = sbr.rel (0) target = $region65
    $region64: #{forward.1} parent=1 // pred_region
      %s198 = ssub.s32 256, 256
      %199 = vsyncadd [#allocation24], %s198
      %s200 = sshll.u32 [#allocation23], 4
      %s201 = int_to_ptr.vmem [resolvable:$true] %s200
      %206 = dma.hbm_to_vmem [thread:$0]  %s15, 256, %s201, [#allocation24], 64, 64, 4
    $region65: #{forward.1} parent=1 // pred_fallthru
      _
    // Predicated region
    $region66: #{forward.1} parent=1 // pred_check
      _
    $region67: #{forward.1} parent=1 // pred_check_branch
      %208 = sbr.rel (0) target = $region69
    $region68: #{forward.1} parent=1 // pred_region
      _
    $region69: #{forward.1} parent=1 // pred_fallthru
      _
    // Predicated region
    $region70: #{forward.1} parent=1 // pred_check
      _
    $region71: #{forward.1} parent=1 // pred_check_branch
      %210 = sbr.rel (0) target = $region73
    $region72: #{forward.1} parent=1 // pred_region
      %s212 = ssub.s32 32, 32
      %213 = vsyncadd [#allocation24], %s212
      %s214 = sshll.u32 [#allocation25], 4
      %s215 = int_to_ptr.vmem [resolvable:$true] %s214
      %220 = dma.hbm_to_vmem [thread:$0]  %s17, 32, %s215, [#allocation24], 16, 16, 1
    $region73: #{forward.1} parent=1 // pred_fallthru
      _
    // Predicated region
    $region74: #{forward.1} parent=1 // pred_check
      _
    $region75: #{forward.1} parent=1 // pred_check_branch
      %222 = sbr.rel (0) target = $region77
    $region76: #{forward.1} parent=1 // pred_region
      _
    $region77: #{forward.1} parent=1 // pred_fallthru
      _
    // Predicated region
    $region78: #{forward.1} parent=1 // pred_check
      _
    $region79: #{forward.1} parent=1 // pred_check_branch
      %224 = sbr.rel (0) target = $region81
    $region80: #{forward.1} parent=1 // pred_region
      _
    $region81: #{forward.1} parent=1 // pred_fallthru
      _
    // Predicated region
    $region82: #{forward.1} parent=1 // pred_check
      _
    $region83: #{forward.1} parent=1 // pred_check_branch
      %226 = sbr.rel (0) target = $region85
    $region84: #{forward.1} parent=1 // pred_region
      _
    $region85: #{forward.1} parent=1 // pred_fallthru
      _
    // Predicated region
    $region86: #{forward.1} parent=1 // pred_check
      _
    $region87: #{forward.1} parent=1 // pred_check_branch
      %228 = sbr.rel (0) target = $region89
    $region88: #{forward.1} parent=1 // pred_region
      %s230 = ssub.s32 256, 256
      %231 = vsyncadd [#allocation27], %s230
      %s232 = sshll.u32 [#allocation26], 4
      %s233 = int_to_ptr.vmem [resolvable:$true] %s232
      %238 = dma.hbm_to_vmem [thread:$0]  %s21, 256, %s233, [#allocation27], 64, 64, 4
    $region89: #{forward.1} parent=1 // pred_fallthru
      _
    // Predicated region
    $region90: #{forward.1} parent=1 // pred_check
      _
    $region91: #{forward.1} parent=1 // pred_check_branch
      %240 = sbr.rel (0) target = $region93
    $region92: #{forward.1} parent=1 // pred_region
      %241 = dma.done [#allocation3], 1024
    $region93: #{forward.1} parent=1 // pred_fallthru
      _
    // Predicated region
    $region94: #{forward.1} parent=1 // pred_check
      _
    $region95: #{forward.1} parent=1 // pred_check_branch
      %243 = sbr.rel (0) target = $region97
    $region96: #{forward.1} parent=1 // pred_region
      %244 = dma.done [#allocation6], 512
    $region97: #{forward.1} parent=1 // pred_fallthru
      _
    // Predicated region
    $region98: #{forward.1} parent=1 // pred_check
      _
    $region99: #{forward.1} parent=1 // pred_check_branch
      %246 = sbr.rel (0) target = $region101
    $region100: #{forward.1} parent=1 // pred_region
      %247 = dma.done [#allocation6], 32
    $region101: #{forward.1} parent=1 // pred_fallthru
      _
    // Predicated region
    $region102: #{forward.1} parent=1 // pred_check
      _
    $region103: #{forward.1} parent=1 // pred_check_branch
      %249 = sbr.rel (0) target = $region105
    $region104: #{forward.1} parent=1 // pred_region
      %250 = dma.done [#allocation9], 512
    $region105: #{forward.1} parent=1 // pred_fallthru
      _
    // Predicated region
    $region106: #{forward.1} parent=1 // pred_check
      _
    $region107: #{forward.1} parent=1 // pred_check_branch
      %252 = sbr.rel (0) target = $region109
    $region108: #{forward.1} parent=1 // pred_region
      %253 = dma.done [#allocation9], 512
    $region109: #{forward.1} parent=1 // pred_fallthru
      _
    // Predicated region
    $region110: #{forward.1} parent=1 // pred_check
      _
    $region111: #{forward.1} parent=1 // pred_check_branch
      %255 = sbr.rel (0) target = $region113
    $region112: #{forward.1} parent=1 // pred_region
      %256 = dma.done [#allocation12], 32
    $region113: #{forward.1} parent=1 // pred_fallthru
      _
    // Predicated region
    $region114: #{forward.1} parent=1 // pred_check
      _
    $region115: #{forward.1} parent=1 // pred_check_branch
      %258 = sbr.rel (0) target = $region117
    $region116: #{forward.1} parent=1 // pred_region
      %259 = dma.done [#allocation12], 512
    $region117: #{forward.1} parent=1 // pred_fallthru
      _
    // Predicated region
    $region118: #{forward.1} parent=1 // pred_check
      _
    $region119: #{forward.1} parent=1 // pred_check_branch
      %261 = sbr.rel (0) target = $region121
    $region120: #{forward.1} parent=1 // pred_region
      %262 = dma.done [#allocation15], 1024
    $region121: #{forward.1} parent=1 // pred_fallthru
      _
    // Predicated region
    $region122: #{forward.1} parent=1 // pred_check
      _
    $region123: #{forward.1} parent=1 // pred_check_branch
      %264 = sbr.rel (0) target = $region125
    $region124: #{forward.1} parent=1 // pred_region
      %265 = dma.done [#allocation15], 16
    $region125: #{forward.1} parent=1 // pred_fallthru
      _
    // Predicated region
    $region126: #{forward.1} parent=1 // pred_check
      _
    $region127: #{forward.1} parent=1 // pred_check_branch
      %267 = sbr.rel (0) target = $region129
    $region128: #{forward.1} parent=1 // pred_region
      %268 = dma.done [#allocation18], 32
    $region129: #{forward.1} parent=1 // pred_fallthru
      _
    // Predicated region
    $region130: #{forward.1} parent=1 // pred_check
      _
    $region131: #{forward.1} parent=1 // pred_check_branch
      %270 = sbr.rel (0) target = $region133
    $region132: #{forward.1} parent=1 // pred_region
      %271 = dma.done [#allocation18], 512
    $region133: #{forward.1} parent=1 // pred_fallthru
      _
    // Predicated region
    $region134: #{forward.1} parent=1 // pred_check
      _
    $region135: #{forward.1} parent=1 // pred_check_branch
      %273 = sbr.rel (0) target = $region137
    $region136: #{forward.1} parent=1 // pred_region
      %274 = dma.done [#allocation21], 32
    $region137: #{forward.1} parent=1 // pred_fallthru
      _
    // Predicated region
    $region138: #{forward.1} parent=1 // pred_check
      _
    $region139: #{forward.1} parent=1 // pred_check_branch
      %276 = sbr.rel (0) target = $region141
    $region140: #{forward.1} parent=1 // pred_region
      %277 = dma.done [#allocation21], 512
    $region141: #{forward.1} parent=1 // pred_fallthru
      _
    // Predicated region
    $region142: #{forward.1} parent=1 // pred_check
      _
    $region143: #{forward.1} parent=1 // pred_check_branch
      %279 = sbr.rel (0) target = $region145
    $region144: #{forward.1} parent=1 // pred_region
      %280 = dma.done [#allocation24], 256
    $region145: #{forward.1} parent=1 // pred_fallthru
      _
    // Predicated region
    $region146: #{forward.1} parent=1 // pred_check
      _
    $region147: #{forward.1} parent=1 // pred_check_branch
      %282 = sbr.rel (0) target = $region149
    $region148: #{forward.1} parent=1 // pred_region
      %283 = dma.done [#allocation24], 32
    $region149: #{forward.1} parent=1 // pred_fallthru
      _
    // Predicated region
    $region150: #{forward.1} parent=1 // pred_check
      _
    $region151: #{forward.1} parent=1 // pred_check_branch
      %285 = sbr.rel (0) target = $region153
    $region152: #{forward.1} parent=1 // pred_region
      %286 = dma.done [#allocation27], 256
    $region153: #{forward.1} parent=1 // pred_fallthru
      _
    %v288 = vld [vmem:[%s0] sm:$0xff]
    %v289 = vld [vmem:[%s0 + $0x8] sm:$0xff]
    %v290 = vlaneseq
    %v291 = vand.u32 %v290, 127
    %292 = vset.pattern.permute.xlu0 0
    %293 = vperm.xlu0 %292, %v288
    %v294 = vpop.permute.xlu0 %293
    %295 = vset.pattern.permute.xlu0 0
    %296 = vperm.xlu0 %295, %v289
    %v297 = vpop.permute.xlu0 %296
    %vm298 = vcmp.eq.s32.totalorder %v294, %v291
    %vm299 = vcmp.eq.s32.totalorder %v297, %v291
    %v300 = vsel %vm298, 1, 0
    %v301 = vsel %vm299, 1, 0
    %v302 = vcvt.s32.f32 %v300
    %v303 = vcvt.s32.f32 %v301
    %v304 = vpack.c.bf16 %v303, %v302
    %v305 = vld [vmem:[#allocation2] sm:$0xf]
    %v306 = vld [vmem:[#allocation2 + $0x4] sm:$0xf]
    %v307 = vld [vmem:[#allocation2 + $0x8] sm:$0xf]
    %v308 = vld [vmem:[#allocation2 + $0xc] sm:$0xf]
    %v309 = vld [vmem:[#allocation2 + $0x10] sm:$0xf]
    %v310 = vld [vmem:[#allocation2 + $0x14] sm:$0xf]
    %v311 = vld [vmem:[#allocation2 + $0x18] sm:$0xf]
    %v312 = vld [vmem:[#allocation2 + $0x1c] sm:$0xf]
    %v313 = vld [vmem:[#allocation2 + $0x20] sm:$0xf]
    %v314 = vld [vmem:[#allocation2 + $0x24] sm:$0xf]
    %v315 = vld [vmem:[#allocation2 + $0x28] sm:$0xf]
    %v316 = vld [vmem:[#allocation2 + $0x2c] sm:$0xf]
    %v317 = vld [vmem:[#allocation2 + $0x30] sm:$0xf]
    %v318 = vld [vmem:[#allocation2 + $0x34] sm:$0xf]
    %v319 = vld [vmem:[#allocation2 + $0x38] sm:$0xf]
    %v320 = vld [vmem:[#allocation2 + $0x3c] sm:$0xf]
    %v337 = vunpack.c.l.b16 %v305
    %v338 = vunpack.c.l.b16 %v306
    %v339 = vunpack.c.l.b16 %v307
    %v340 = vunpack.c.l.b16 %v308
    %v341 = vunpack.c.l.b16 %v309
    %v342 = vunpack.c.l.b16 %v310
    %v343 = vunpack.c.l.b16 %v311
    %v344 = vunpack.c.l.b16 %v312
    %v345 = vunpack.c.l.b16 %v313
    %v346 = vunpack.c.l.b16 %v314
    %v347 = vunpack.c.l.b16 %v315
    %v348 = vunpack.c.l.b16 %v316
    %v349 = vunpack.c.l.b16 %v317
    %v350 = vunpack.c.l.b16 %v318
    %v351 = vunpack.c.l.b16 %v319
    %v352 = vunpack.c.l.b16 %v320
    %v353 = vpack.c.b16 %v338, %v337
    %v354 = vpack.c.b16 %v340, %v339
    %v355 = vpack.c.b16 %v342, %v341
    %v356 = vpack.c.b16 %v344, %v343
    %v357 = vpack.c.b16 %v346, %v345
    %v358 = vpack.c.b16 %v348, %v347
    %v359 = vpack.c.b16 %v350, %v349
    %v360 = vpack.c.b16 %v352, %v351
    %369 = vmatprep.subr.bf16.mxu0 0
    %370 = vmatpush1.bf16.msra.mxu0 %v353
    %371 = vmatprep.subr.bf16.mxu0 0
    %372 = vmatpush1.bf16.msra.mxu0 %v354
    %373 = vmatprep.subr.bf16.mxu0 0
    %374 = vmatpush1.bf16.msra.mxu0 %v355
    %375 = vmatprep.subr.bf16.mxu0 0
    %376 = vmatpush1.bf16.msra.mxu0 %v356
    %377 = vmatprep.subr.bf16.mxu0 0
    %378 = vmatpush1.bf16.msra.mxu0 %v357
    %379 = vmatprep.subr.bf16.mxu0 0
    %380 = vmatpush1.bf16.msra.mxu0 %v358
    %381 = vmatprep.subr.bf16.mxu0 0
    %382 = vmatpush1.bf16.msra.mxu0 %v359
    %383 = vmatprep.subr.bf16.mxu0 0
    %384 = vmatpush1.bf16.msra.mxu0 %v360
    %385 = vmatprep.subr.bf16.mxu0 0
    %386 = vmatpush1.bf16.msra.mxu0 0
    %387 = vmatprep.subr.bf16.mxu0 0
    %388 = vmatpush1.bf16.msra.mxu0 0
    %389 = vmatprep.subr.bf16.mxu0 0
    %390 = vmatpush1.bf16.msra.mxu0 0
    %391 = vmatprep.subr.bf16.mxu0 0
    %392 = vmatpush1.bf16.msra.mxu0 0
    %393 = vmatprep.subr.bf16.mxu0 0
    %394 = vmatpush1.bf16.msra.mxu0 0
    %395 = vmatprep.subr.bf16.mxu0 0
    %396 = vmatpush1.bf16.msra.mxu0 0
    %397 = vmatprep.subr.bf16.mxu0 0
    %398 = vmatpush1.bf16.msra.mxu0 0
    %399 = vmatprep.subr.bf16.mxu0 0
    %400 = vmatpush1.bf16.msra.mxu0 0
    %401 = vmatprep.mubr.bf16.mxu0 0
    %402 = vmatmul.mubr.bf16.gmra.mrb[0].mxu0 %v304
    %v403 = vpop.f32.mrb[0].mxu0
    %v404 = vadd.f32 0.0, %v403
    %v405 = vpop.f32.mrb[0].mxu0
    %v406 = vpop.f32.mrb[0].mxu0
    %v407 = vadd.f32 0.0, %v406
    %v408 = vpop.f32.mrb[0].mxu0
    %409 = vdwg.mxu0
    %v410 = vld [vmem:[%s1] sm:$0x3]
    %v411 = vsub.f32 1.0, %v410
    %v412 = vmul.f32 %v411, -1e+09
    %v413 = vld [vmem:[#allocation5] sm:$0xff]
    %v414 = vld [vmem:[#allocation5 + $0x8] sm:$0xff]
    %v415 = vld [vmem:[#allocation5 + $0x10] sm:$0xff]
    %v416 = vld [vmem:[#allocation5 + $0x18] sm:$0xff]
    %v419 = vunpack.c.l.s4 1966171168
    %v420 = vunpack.c.0.s8 %v419
    %v421 = vlaneseq
    %v422 = vshrl.u32 %v421, 7
    %v423 = vsub.s32 %v420, %v422
    %v424 = vrot.slane %v412, %v423
    %v425 = vcombine.high %v424, %v424
    %v427 = vunpack.c.l.s4 1966171168
    %v428 = vunpack.c.0.s8 %v427
    %v429 = vlaneseq
    %v430 = vshrl.u32 %v429, 7
    %v431 = vsub.s32 %v428, %v430
    %v432 = vrot.slane %v424, %v431
    %v434 = vunpack.c.l.s4 1966171168
    %v435 = vunpack.c.0.s8 %v434
    %v436 = vlaneseq
    %v437 = vshrl.u32 %v436, 7
    %v438 = vsub.s32 %v435, %v437
    %v439 = vrot.slane %v425, %v438
    %v442 = vlaneseq
    %v443 = vshrl.u32 %v442, 7
    %v444 = vsub.s32 0, %v443
    %v445 = vrot.slane %v432, %v444
    %v446 = vlaneseq
    %v447 = vshrl.u32 %v446, 7
    %v448 = vsub.s32 0, %v447
    %v449 = vrot.slane %v439, %v448
    %v452 = vadd.f32 %v413, %v445
    %v453 = vadd.f32 %v413, %v449
    %v454 = vadd.f32 %v414, %v445
    %v455 = vadd.f32 %v414, %v449
    %v456 = vadd.f32 %v415, %v445
    %v457 = vadd.f32 %v415, %v449
    %v458 = vadd.f32 %v416, %v445
    %v459 = vadd.f32 %v416, %v449
    %v460 = vld [vmem:[#allocation7] sm:$0x1]
    %v461 = vmul.f32 %v404, %v404
    %v462 = vmul.f32 %v407, %v407
    %vm463 = vcmask 261120
    %v464 = vsel %vm463, %v461, 0.0
    %465 = vadd.xlane.f32.xlu0 %v464
    %v466 = vpop.xlane.xlu0 %465
    %v467 = vsel %vm463, %v462, 0.0
    %468 = vadd.xlane.f32.xlu0 %v467
    %v469 = vpop.xlane.xlu0 %468
    %v470 = vrcp.pop 32.0
    %v471 = vmul.f32 %v466, %v470
    %v472 = vmul.f32 %v469, %v470
    %v474 = vlaneseq
    %v475 = vshrl.u32 %v474, 7
    %v476 = vsub.s32 0, %v475
    %v477 = vrot.slane %v460, %v476
    %v479 = vmul.f32 %v477, %v404
    %v480 = vmul.f32 %v477, %v407
    %v481 = vadd.f32 %v471, 1e-06
    %v482 = vadd.f32 %v472, 1e-06
    %v483 = vrsqrt.pop %v481
    %v484 = vrsqrt.pop %v482
    %v485 = vmul.f32 %v479, %v483
    %v486 = vmul.f32 %v480, %v484
    %v487 = vld [vmem:[#allocation8] sm:$0xf]
    %v488 = vld [vmem:[#allocation8 + $0x4] sm:$0xf]
    %v489 = vld [vmem:[#allocation8 + $0x8] sm:$0xf]
    %v490 = vld [vmem:[#allocation8 + $0xc] sm:$0xf]
    %v491 = vpack.c.bf16 %v486, %v485
    %v496 = vunpack.c.l.b16 %v487
    %v497 = vunpack.c.l.b16 %v488
    %v498 = vunpack.c.l.b16 %v489
    %v499 = vunpack.c.l.b16 %v490
    %v500 = vpack.c.b16 %v497, %v496
    %v501 = vpack.c.b16 %v499, %v498
    %v505 = vsel %vm463, %v491, 0
    %507 = vmatprep.subr.bf16.mxu0 0
    %508 = vmatpush1.bf16.msra.mxu0 %v500
    %509 = vmatprep.subr.bf16.mxu0 0
    %510 = vmatpush1.bf16.msra.mxu0 %v501
    %511 = vmatprep.subr.bf16.mxu0 0
    %512 = vmatpush1.bf16.msra.mxu0 0
    %513 = vmatprep.subr.bf16.mxu0 0
    %514 = vmatpush1.bf16.msra.mxu0 0
    %515 = vmatprep.subr.bf16.mxu0 0
    %516 = vmatpush1.bf16.msra.mxu0 0
    %517 = vmatprep.subr.bf16.mxu0 0
    %518 = vmatpush1.bf16.msra.mxu0 0
    %519 = vmatprep.subr.bf16.mxu0 0
    %520 = vmatpush1.bf16.msra.mxu0 0
    %521 = vmatprep.subr.bf16.mxu0 0
    %522 = vmatpush1.bf16.msra.mxu0 0
    %523 = vmatprep.subr.bf16.mxu0 0
    %524 = vmatpush1.bf16.msra.mxu0 0
    %525 = vmatprep.subr.bf16.mxu0 0
    %526 = vmatpush1.bf16.msra.mxu0 0
    %527 = vmatprep.subr.bf16.mxu0 0
    %528 = vmatpush1.bf16.msra.mxu0 0
    %529 = vmatprep.subr.bf16.mxu0 0
    %530 = vmatpush1.bf16.msra.mxu0 0
    %531 = vmatprep.subr.bf16.mxu0 0
    %532 = vmatpush1.bf16.msra.mxu0 0
    %533 = vmatprep.subr.bf16.mxu0 0
    %534 = vmatpush1.bf16.msra.mxu0 0
    %535 = vmatprep.subr.bf16.mxu0 0
    %536 = vmatpush1.bf16.msra.mxu0 0
    %537 = vmatprep.subr.bf16.mxu0 0
    %538 = vmatpush1.bf16.msra.mxu0 0
    %539 = vmatprep.mubr.bf16.mxu0 0
    %540 = vmatmul.mubr.bf16.gmra.mrb[0].mxu0 %v505
    %v541 = vpop.f32.mrb[0].mxu0
    %v542 = vadd.f32 0.0, %v541
    %v543 = vpop.f32.mrb[0].mxu0
    %v544 = vpop.f32.mrb[0].mxu0
    %v545 = vadd.f32 0.0, %v544
    %v546 = vpop.f32.mrb[0].mxu0
    %547 = vdwg.mxu0
    %550 = vrot.lane.b32.xlu0 %v542, 120
    %v551 = vpop.permute.xlu0 %550
    %552 = vrot.lane.b32.xlu0 %v545, 120
    %v553 = vpop.permute.xlu0 %552
    %556 = vrot.lane.b32.xlu0 %v542, 112
    %v557 = vpop.permute.xlu0 %556
    %558 = vrot.lane.b32.xlu0 %v545, 112
    %v559 = vpop.permute.xlu0 %558
    %562 = vrot.lane.b32.xlu0 %v542, 104
    %v563 = vpop.permute.xlu0 %562
    %564 = vrot.lane.b32.xlu0 %v545, 104
    %v565 = vpop.permute.xlu0 %564
    %v568 = vpack.c.bf16 %v542, %v542
    %v569 = vpack.c.bf16 %v545, %v545
    %v570 = vpack.c.bf16 %v551, %v551
    %v571 = vpack.c.bf16 %v553, %v553
    %v572 = vpack.c.bf16 %v557, %v557
    %v573 = vpack.c.bf16 %v559, %v559
    %v574 = vpack.c.bf16 %v563, %v563
    %v575 = vpack.c.bf16 %v565, %v565
    %577 = vrot.lane.b32.xlu0 %v568, 96
    %v578 = vpop.permute.xlu0 %577
    %vm579 = vcmask 64512
    %v581 = vsel %vm579, %v568, 0
    %v584 = vsel %vm579, %v578, 0
    %586 = vmatprep.subr.bf16.mxu0 0
    %587 = vmatpush1.bf16.xpose.msra.mxu0 %v584
    %588 = vmatprep.subr.bf16.mxu0 0
    %589 = vmatpush1.bf16.xpose.msra.mxu0 0
    %590 = vmatprep.subr.bf16.mxu0 0
    %591 = vmatpush1.bf16.xpose.msra.mxu0 0
    %592 = vmatprep.subr.bf16.mxu0 0
    %593 = vmatpush1.bf16.xpose.msra.mxu0 0
    %594 = vmatprep.subr.bf16.mxu0 0
    %595 = vmatpush1.bf16.xpose.msra.mxu0 0
    %596 = vmatprep.subr.bf16.mxu0 0
    %597 = vmatpush1.bf16.xpose.msra.mxu0 0
    %598 = vmatprep.subr.bf16.mxu0 0
    %599 = vmatpush1.bf16.xpose.msra.mxu0 0
    %600 = vmatprep.subr.bf16.mxu0 0
    %601 = vmatpush1.bf16.xpose.msra.mxu0 0
    %602 = vmatprep.subr.bf16.mxu0 0
    %603 = vmatpush1.bf16.xpose.msra.mxu0 0
    %604 = vmatprep.subr.bf16.mxu0 0
    %605 = vmatpush1.bf16.xpose.msra.mxu0 0
    %606 = vmatprep.subr.bf16.mxu0 0
    %607 = vmatpush1.bf16.xpose.msra.mxu0 0
    %608 = vmatprep.subr.bf16.mxu0 0
    %609 = vmatpush1.bf16.xpose.msra.mxu0 0
    %610 = vmatprep.subr.bf16.mxu0 0
    %611 = vmatpush1.bf16.xpose.msra.mxu0 0
    %612 = vmatprep.subr.bf16.mxu0 0
    %613 = vmatpush1.bf16.xpose.msra.mxu0 0
    %614 = vmatprep.subr.bf16.mxu0 0
    %615 = vmatpush1.bf16.xpose.msra.mxu0 0
    %616 = vmatprep.subr.bf16.mxu0 0
    %617 = vmatpush1.bf16.xpose.msra.mxu0 0
    %618 = vmatprep.mubr.bf16.mxu0 0
    %619 = vmatmul.mubr.bf16.gmra.mrb[0].mxu0 %v581
    %v620 = vpop.f32.mrb[0].mxu0
    %v621 = vadd.f32 %v452, %v620
    %v622 = vpop.f32.mrb[0].mxu0
    %v623 = vpop.f32.mrb[0].mxu0
    %v624 = vpop.f32.mrb[0].mxu0
    %625 = vdwg.mxu0
    %627 = vrot.lane.b32.xlu0 %v569, 96
    %v628 = vpop.permute.xlu0 %627
    %v630 = vsel %vm579, %v569, 0
    %v633 = vsel %vm579, %v628, 0
    %635 = vmatprep.subr.bf16.mxu0 0
    %636 = vmatpush1.bf16.xpose.msra.mxu0 %v633
    %637 = vmatprep.subr.bf16.mxu0 0
    %638 = vmatpush1.bf16.xpose.msra.mxu0 0
    %639 = vmatprep.subr.bf16.mxu0 0
    %640 = vmatpush1.bf16.xpose.msra.mxu0 0
    %641 = vmatprep.subr.bf16.mxu0 0
    %642 = vmatpush1.bf16.xpose.msra.mxu0 0
    %643 = vmatprep.subr.bf16.mxu0 0
    %644 = vmatpush1.bf16.xpose.msra.mxu0 0
    %645 = vmatprep.subr.bf16.mxu0 0
    %646 = vmatpush1.bf16.xpose.msra.mxu0 0
    %647 = vmatprep.subr.bf16.mxu0 0
    %648 = vmatpush1.bf16.xpose.msra.mxu0 0
    %649 = vmatprep.subr.bf16.mxu0 0
    %650 = vmatpush1.bf16.xpose.msra.mxu0 0
    %651 = vmatprep.subr.bf16.mxu0 0
    %652 = vmatpush1.bf16.xpose.msra.mxu0 0
    %653 = vmatprep.subr.bf16.mxu0 0
    %654 = vmatpush1.bf16.xpose.msra.mxu0 0
    %655 = vmatprep.subr.bf16.mxu0 0
    %656 = vmatpush1.bf16.xpose.msra.mxu0 0
    %657 = vmatprep.subr.bf16.mxu0 0
    %658 = vmatpush1.bf16.xpose.msra.mxu0 0
    %659 = vmatprep.subr.bf16.mxu0 0
    %660 = vmatpush1.bf16.xpose.msra.mxu0 0
    %661 = vmatprep.subr.bf16.mxu0 0
    %662 = vmatpush1.bf16.xpose.msra.mxu0 0
    %663 = vmatprep.subr.bf16.mxu0 0
    %664 = vmatpush1.bf16.xpose.msra.mxu0 0
    %665 = vmatprep.subr.bf16.mxu0 0
    %666 = vmatpush1.bf16.xpose.msra.mxu0 0
    %667 = vmatprep.mubr.bf16.mxu0 0
    %668 = vmatmul.mubr.bf16.gmra.mrb[0].mxu0 %v630
    %v669 = vpop.f32.mrb[0].mxu0
    %v670 = vadd.f32 %v453, %v669
    %v671 = vpop.f32.mrb[0].mxu0
    %v672 = vpop.f32.mrb[0].mxu0
    %v673 = vpop.f32.mrb[0].mxu0
    %674 = vdwg.mxu0
    %676 = vrot.lane.b32.xlu0 %v570, 96
    %v677 = vpop.permute.xlu0 %676
    %v679 = vsel %vm579, %v570, 0
    %v682 = vsel %vm579, %v677, 0
    %684 = vmatprep.subr.bf16.mxu0 0
    %685 = vmatpush1.bf16.xpose.msra.mxu0 %v682
    %686 = vmatprep.subr.bf16.mxu0 0
    %687 = vmatpush1.bf16.xpose.msra.mxu0 0
    %688 = vmatprep.subr.bf16.mxu0 0
    %689 = vmatpush1.bf16.xpose.msra.mxu0 0
    %690 = vmatprep.subr.bf16.mxu0 0
    %691 = vmatpush1.bf16.xpose.msra.mxu0 0
    %692 = vmatprep.subr.bf16.mxu0 0
    %693 = vmatpush1.bf16.xpose.msra.mxu0 0
    %694 = vmatprep.subr.bf16.mxu0 0
    %695 = vmatpush1.bf16.xpose.msra.mxu0 0
    %696 = vmatprep.subr.bf16.mxu0 0
    %697 = vmatpush1.bf16.xpose.msra.mxu0 0
    %698 = vmatprep.subr.bf16.mxu0 0
    %699 = vmatpush1.bf16.xpose.msra.mxu0 0
    %700 = vmatprep.subr.bf16.mxu0 0
    %701 = vmatpush1.bf16.xpose.msra.mxu0 0
    %702 = vmatprep.subr.bf16.mxu0 0
    %703 = vmatpush1.bf16.xpose.msra.mxu0 0
    %704 = vmatprep.subr.bf16.mxu0 0
    %705 = vmatpush1.bf16.xpose.msra.mxu0 0
    %706 = vmatprep.subr.bf16.mxu0 0
    %707 = vmatpush1.bf16.xpose.msra.mxu0 0
    %708 = vmatprep.subr.bf16.mxu0 0
    %709 = vmatpush1.bf16.xpose.msra.mxu0 0
    %710 = vmatprep.subr.bf16.mxu0 0
    %711 = vmatpush1.bf16.xpose.msra.mxu0 0
    %712 = vmatprep.subr.bf16.mxu0 0
    %713 = vmatpush1.bf16.xpose.msra.mxu0 0
    %714 = vmatprep.subr.bf16.mxu0 0
    %715 = vmatpush1.bf16.xpose.msra.mxu0 0
    %716 = vmatprep.mubr.bf16.mxu0 0
    %717 = vmatmul.mubr.bf16.gmra.mrb[0].mxu0 %v679
    %v718 = vpop.f32.mrb[0].mxu0
    %v719 = vadd.f32 %v454, %v718
    %v720 = vpop.f32.mrb[0].mxu0
    %v721 = vpop.f32.mrb[0].mxu0
    %v722 = vpop.f32.mrb[0].mxu0
    %723 = vdwg.mxu0
    %725 = vrot.lane.b32.xlu0 %v571, 96
    %v726 = vpop.permute.xlu0 %725
    %v728 = vsel %vm579, %v571, 0
    %v731 = vsel %vm579, %v726, 0
    %733 = vmatprep.subr.bf16.mxu0 0
    %734 = vmatpush1.bf16.xpose.msra.mxu0 %v731
    %735 = vmatprep.subr.bf16.mxu0 0
    %736 = vmatpush1.bf16.xpose.msra.mxu0 0
    %737 = vmatprep.subr.bf16.mxu0 0
    %738 = vmatpush1.bf16.xpose.msra.mxu0 0
    %739 = vmatprep.subr.bf16.mxu0 0
    %740 = vmatpush1.bf16.xpose.msra.mxu0 0
    %741 = vmatprep.subr.bf16.mxu0 0
    %742 = vmatpush1.bf16.xpose.msra.mxu0 0
    %743 = vmatprep.subr.bf16.mxu0 0
    %744 = vmatpush1.bf16.xpose.msra.mxu0 0
    %745 = vmatprep.subr.bf16.mxu0 0
    %746 = vmatpush1.bf16.xpose.msra.mxu0 0
    %747 = vmatprep.subr.bf16.mxu0 0
    %748 = vmatpush1.bf16.xpose.msra.mxu0 0
    %749 = vmatprep.subr.bf16.mxu0 0
    %750 = vmatpush1.bf16.xpose.msra.mxu0 0
    %751 = vmatprep.subr.bf16.mxu0 0
    %752 = vmatpush1.bf16.xpose.msra.mxu0 0
    %753 = vmatprep.subr.bf16.mxu0 0
    %754 = vmatpush1.bf16.xpose.msra.mxu0 0
    %755 = vmatprep.subr.bf16.mxu0 0
    %756 = vmatpush1.bf16.xpose.msra.mxu0 0
    %757 = vmatprep.subr.bf16.mxu0 0
    %758 = vmatpush1.bf16.xpose.msra.mxu0 0
    %759 = vmatprep.subr.bf16.mxu0 0
    %760 = vmatpush1.bf16.xpose.msra.mxu0 0
    %761 = vmatprep.subr.bf16.mxu0 0
    %762 = vmatpush1.bf16.xpose.msra.mxu0 0
    %763 = vmatprep.subr.bf16.mxu0 0
    %764 = vmatpush1.bf16.xpose.msra.mxu0 0
    %765 = vmatprep.mubr.bf16.mxu0 0
    %766 = vmatmul.mubr.bf16.gmra.mrb[0].mxu0 %v728
    %v767 = vpop.f32.mrb[0].mxu0
    %v768 = vadd.f32 %v455, %v767
    %v769 = vpop.f32.mrb[0].mxu0
    %v770 = vpop.f32.mrb[0].mxu0
    %v771 = vpop.f32.mrb[0].mxu0
    %772 = vdwg.mxu0
    %774 = vrot.lane.b32.xlu0 %v572, 96
    %v775 = vpop.permute.xlu0 %774
    %v777 = vsel %vm579, %v572, 0
    %v780 = vsel %vm579, %v775, 0
    %782 = vmatprep.subr.bf16.mxu0 0
    %783 = vmatpush1.bf16.xpose.msra.mxu0 %v780
    %784 = vmatprep.subr.bf16.mxu0 0
    %785 = vmatpush1.bf16.xpose.msra.mxu0 0
    %786 = vmatprep.subr.bf16.mxu0 0
    %787 = vmatpush1.bf16.xpose.msra.mxu0 0
    %788 = vmatprep.subr.bf16.mxu0 0
    %789 = vmatpush1.bf16.xpose.msra.mxu0 0
    %790 = vmatprep.subr.bf16.mxu0 0
    %791 = vmatpush1.bf16.xpose.msra.mxu0 0
    %792 = vmatprep.subr.bf16.mxu0 0
    %793 = vmatpush1.bf16.xpose.msra.mxu0 0
    %794 = vmatprep.subr.bf16.mxu0 0
    %795 = vmatpush1.bf16.xpose.msra.mxu0 0
    %796 = vmatprep.subr.bf16.mxu0 0
    %797 = vmatpush1.bf16.xpose.msra.mxu0 0
    %798 = vmatprep.subr.bf16.mxu0 0
    %799 = vmatpush1.bf16.xpose.msra.mxu0 0
    %800 = vmatprep.subr.bf16.mxu0 0
    %801 = vmatpush1.bf16.xpose.msra.mxu0 0
    %802 = vmatprep.subr.bf16.mxu0 0
    %803 = vmatpush1.bf16.xpose.msra.mxu0 0
    %804 = vmatprep.subr.bf16.mxu0 0
    %805 = vmatpush1.bf16.xpose.msra.mxu0 0
    %806 = vmatprep.subr.bf16.mxu0 0
    %807 = vmatpush1.bf16.xpose.msra.mxu0 0
    %808 = vmatprep.subr.bf16.mxu0 0
    %809 = vmatpush1.bf16.xpose.msra.mxu0 0
    %810 = vmatprep.subr.bf16.mxu0 0
    %811 = vmatpush1.bf16.xpose.msra.mxu0 0
    %812 = vmatprep.subr.bf16.mxu0 0
    %813 = vmatpush1.bf16.xpose.msra.mxu0 0
    %814 = vmatprep.mubr.bf16.mxu0 0
    %815 = vmatmul.mubr.bf16.gmra.mrb[0].mxu0 %v777
    %v816 = vpop.f32.mrb[0].mxu0
    %v817 = vadd.f32 %v456, %v816
    %v818 = vpop.f32.mrb[0].mxu0
    %v819 = vpop.f32.mrb[0].mxu0
    %v820 = vpop.f32.mrb[0].mxu0
    %821 = vdwg.mxu0
    %823 = vrot.lane.b32.xlu0 %v573, 96
    %v824 = vpop.permute.xlu0 %823
    %v826 = vsel %vm579, %v573, 0
    %v829 = vsel %vm579, %v824, 0
    %831 = vmatprep.subr.bf16.mxu0 0
    %832 = vmatpush1.bf16.xpose.msra.mxu0 %v829
    %833 = vmatprep.subr.bf16.mxu0 0
    %834 = vmatpush1.bf16.xpose.msra.mxu0 0
    %835 = vmatprep.subr.bf16.mxu0 0
    %836 = vmatpush1.bf16.xpose.msra.mxu0 0
    %837 = vmatprep.subr.bf16.mxu0 0
    %838 = vmatpush1.bf16.xpose.msra.mxu0 0
    %839 = vmatprep.subr.bf16.mxu0 0
    %840 = vmatpush1.bf16.xpose.msra.mxu0 0
    %841 = vmatprep.subr.bf16.mxu0 0
    %842 = vmatpush1.bf16.xpose.msra.mxu0 0
    %843 = vmatprep.subr.bf16.mxu0 0
    %844 = vmatpush1.bf16.xpose.msra.mxu0 0
    %845 = vmatprep.subr.bf16.mxu0 0
    %846 = vmatpush1.bf16.xpose.msra.mxu0 0
    %847 = vmatprep.subr.bf16.mxu0 0
    %848 = vmatpush1.bf16.xpose.msra.mxu0 0
    %849 = vmatprep.subr.bf16.mxu0 0
    %850 = vmatpush1.bf16.xpose.msra.mxu0 0
    %851 = vmatprep.subr.bf16.mxu0 0
    %852 = vmatpush1.bf16.xpose.msra.mxu0 0
    %853 = vmatprep.subr.bf16.mxu0 0
    %854 = vmatpush1.bf16.xpose.msra.mxu0 0
    %855 = vmatprep.subr.bf16.mxu0 0
    %856 = vmatpush1.bf16.xpose.msra.mxu0 0
    %857 = vmatprep.subr.bf16.mxu0 0
    %858 = vmatpush1.bf16.xpose.msra.mxu0 0
    %859 = vmatprep.subr.bf16.mxu0 0
    %860 = vmatpush1.bf16.xpose.msra.mxu0 0
    %861 = vmatprep.subr.bf16.mxu0 0
    %862 = vmatpush1.bf16.xpose.msra.mxu0 0
    %863 = vmatprep.mubr.bf16.mxu0 0
    %864 = vmatmul.mubr.bf16.gmra.mrb[0].mxu0 %v826
    %v865 = vpop.f32.mrb[0].mxu0
    %v866 = vadd.f32 %v457, %v865
    %v867 = vpop.f32.mrb[0].mxu0
    %v868 = vpop.f32.mrb[0].mxu0
    %v869 = vpop.f32.mrb[0].mxu0
    %870 = vdwg.mxu0
    %872 = vrot.lane.b32.xlu0 %v574, 96
    %v873 = vpop.permute.xlu0 %872
    %v875 = vsel %vm579, %v574, 0
    %v878 = vsel %vm579, %v873, 0
    %880 = vmatprep.subr.bf16.mxu0 0
    %881 = vmatpush1.bf16.xpose.msra.mxu0 %v878
    %882 = vmatprep.subr.bf16.mxu0 0
    %883 = vmatpush1.bf16.xpose.msra.mxu0 0
    %884 = vmatprep.subr.bf16.mxu0 0
    %885 = vmatpush1.bf16.xpose.msra.mxu0 0
    %886 = vmatprep.subr.bf16.mxu0 0
    %887 = vmatpush1.bf16.xpose.msra.mxu0 0
    %888 = vmatprep.subr.bf16.mxu0 0
    %889 = vmatpush1.bf16.xpose.msra.mxu0 0
    %890 = vmatprep.subr.bf16.mxu0 0
    %891 = vmatpush1.bf16.xpose.msra.mxu0 0
    %892 = vmatprep.subr.bf16.mxu0 0
    %893 = vmatpush1.bf16.xpose.msra.mxu0 0
    %894 = vmatprep.subr.bf16.mxu0 0
    %895 = vmatpush1.bf16.xpose.msra.mxu0 0
    %896 = vmatprep.subr.bf16.mxu0 0
    %897 = vmatpush1.bf16.xpose.msra.mxu0 0
    %898 = vmatprep.subr.bf16.mxu0 0
    %899 = vmatpush1.bf16.xpose.msra.mxu0 0
    %900 = vmatprep.subr.bf16.mxu0 0
    %901 = vmatpush1.bf16.xpose.msra.mxu0 0
    %902 = vmatprep.subr.bf16.mxu0 0
    %903 = vmatpush1.bf16.xpose.msra.mxu0 0
    %904 = vmatprep.subr.bf16.mxu0 0
    %905 = vmatpush1.bf16.xpose.msra.mxu0 0
    %906 = vmatprep.subr.bf16.mxu0 0
    %907 = vmatpush1.bf16.xpose.msra.mxu0 0
    %908 = vmatprep.subr.bf16.mxu0 0
    %909 = vmatpush1.bf16.xpose.msra.mxu0 0
    %910 = vmatprep.subr.bf16.mxu0 0
    %911 = vmatpush1.bf16.xpose.msra.mxu0 0
    %912 = vmatprep.mubr.bf16.mxu0 0
    %913 = vmatmul.mubr.bf16.gmra.mrb[0].mxu0 %v875
    %v914 = vpop.f32.mrb[0].mxu0
    %v915 = vadd.f32 %v458, %v914
    %v916 = vpop.f32.mrb[0].mxu0
    %v917 = vpop.f32.mrb[0].mxu0
    %v918 = vpop.f32.mrb[0].mxu0
    %919 = vdwg.mxu0
    %921 = vrot.lane.b32.xlu0 %v575, 96
    %v922 = vpop.permute.xlu0 %921
    %v924 = vsel %vm579, %v575, 0
    %v927 = vsel %vm579, %v922, 0
    %929 = vmatprep.subr.bf16.mxu0 0
    %930 = vmatpush1.bf16.xpose.msra.mxu0 %v927
    %931 = vmatprep.subr.bf16.mxu0 0
    %932 = vmatpush1.bf16.xpose.msra.mxu0 0
    %933 = vmatprep.subr.bf16.mxu0 0
    %934 = vmatpush1.bf16.xpose.msra.mxu0 0
    %935 = vmatprep.subr.bf16.mxu0 0
    %936 = vmatpush1.bf16.xpose.msra.mxu0 0
    %937 = vmatprep.subr.bf16.mxu0 0
    %938 = vmatpush1.bf16.xpose.msra.mxu0 0
    %939 = vmatprep.subr.bf16.mxu0 0
    %940 = vmatpush1.bf16.xpose.msra.mxu0 0
    %941 = vmatprep.subr.bf16.mxu0 0
    %942 = vmatpush1.bf16.xpose.msra.mxu0 0
    %943 = vmatprep.subr.bf16.mxu0 0
    %944 = vmatpush1.bf16.xpose.msra.mxu0 0
    %945 = vmatprep.subr.bf16.mxu0 0
    %946 = vmatpush1.bf16.xpose.msra.mxu0 0
    %947 = vmatprep.subr.bf16.mxu0 0
    %948 = vmatpush1.bf16.xpose.msra.mxu0 0
    %949 = vmatprep.subr.bf16.mxu0 0
    %950 = vmatpush1.bf16.xpose.msra.mxu0 0
    %951 = vmatprep.subr.bf16.mxu0 0
    %952 = vmatpush1.bf16.xpose.msra.mxu0 0
    %953 = vmatprep.subr.bf16.mxu0 0
    %954 = vmatpush1.bf16.xpose.msra.mxu0 0
    %955 = vmatprep.subr.bf16.mxu0 0
    %956 = vmatpush1.bf16.xpose.msra.mxu0 0
    %957 = vmatprep.subr.bf16.mxu0 0
    %958 = vmatpush1.bf16.xpose.msra.mxu0 0
    %959 = vmatprep.subr.bf16.mxu0 0
    %960 = vmatpush1.bf16.xpose.msra.mxu0 0
    %961 = vmatprep.mubr.bf16.mxu0 0
    %962 = vmatmul.mubr.bf16.gmra.mrb[0].mxu0 %v924
    %v963 = vpop.f32.mrb[0].mxu0
    %v964 = vadd.f32 %v459, %v963
    %v965 = vpop.f32.mrb[0].mxu0
    %v966 = vpop.f32.mrb[0].mxu0
    %v967 = vpop.f32.mrb[0].mxu0
    %968 = vdwg.mxu0
    %v969 = vsel %vm579, %v621, -inf
    %970 = vmax.xlane.f32.xlu0 %v969
    %v971 = vpop.xlane.xlu0 %970
    %v972 = vsel %vm579, %v670, -inf
    %973 = vmax.xlane.f32.xlu0 %v972
    %v974 = vpop.xlane.xlu0 %973
    %v975 = vsel %vm579, %v719, -inf
    %976 = vmax.xlane.f32.xlu0 %v975
    %v977 = vpop.xlane.xlu0 %976
    %v978 = vsel %vm579, %v768, -inf
    %979 = vmax.xlane.f32.xlu0 %v978
    %v980 = vpop.xlane.xlu0 %979
    %v981 = vsel %vm579, %v817, -inf
    %982 = vmax.xlane.f32.xlu0 %v981
    %v983 = vpop.xlane.xlu0 %982
    %v984 = vsel %vm579, %v866, -inf
    %985 = vmax.xlane.f32.xlu0 %v984
    %v986 = vpop.xlane.xlu0 %985
    %v987 = vsel %vm579, %v915, -inf
    %988 = vmax.xlane.f32.xlu0 %v987
    %v989 = vpop.xlane.xlu0 %988
    %v990 = vsel %vm579, %v964, -inf
    %991 = vmax.xlane.f32.xlu0 %v990
    %v992 = vpop.xlane.xlu0 %991
    %v993 = vsub.f32 %v621, %v971
    %v994 = vsub.f32 %v670, %v974
    %v995 = vsub.f32 %v719, %v977
    %v996 = vsub.f32 %v768, %v980
    %v997 = vsub.f32 %v817, %v983
    %v998 = vsub.f32 %v866, %v986
    %v999 = vsub.f32 %v915, %v989
    %v1000 = vsub.f32 %v964, %v992
    %v1001 = vmul.f32 %v993, 1.442695
    %v1002 = vpow.pop %v1001
    %v1003 = vmul.f32 %v994, 1.442695
    %v1004 = vpow.pop %v1003
    %v1005 = vmul.f32 %v995, 1.442695
    %v1006 = vpow.pop %v1005
    %v1007 = vmul.f32 %v996, 1.442695
    %v1008 = vpow.pop %v1007
    %v1009 = vmul.f32 %v997, 1.442695
    %v1010 = vpow.pop %v1009
    %v1011 = vmul.f32 %v998, 1.442695
    %v1012 = vpow.pop %v1011
    %v1013 = vmul.f32 %v999, 1.442695
    %v1014 = vpow.pop %v1013
    %v1015 = vmul.f32 %v1000, 1.442695
    %v1016 = vpow.pop %v1015
    %v1017 = vsel %vm579, %v1002, 0.0
    %1018 = vadd.xlane.f32.xlu0 %v1017
    %v1019 = vpop.xlane.xlu0 %1018
    %v1020 = vsel %vm579, %v1004, 0.0
    %1021 = vadd.xlane.f32.xlu0 %v1020
    %v1022 = vpop.xlane.xlu0 %1021
    %v1023 = vsel %vm579, %v1006, 0.0
    %1024 = vadd.xlane.f32.xlu0 %v1023
    %v1025 = vpop.xlane.xlu0 %1024
    %v1026 = vsel %vm579, %v1008, 0.0
    %1027 = vadd.xlane.f32.xlu0 %v1026
    %v1028 = vpop.xlane.xlu0 %1027
    %v1029 = vsel %vm579, %v1010, 0.0
    %1030 = vadd.xlane.f32.xlu0 %v1029
    %v1031 = vpop.xlane.xlu0 %1030
    %v1032 = vsel %vm579, %v1012, 0.0
    %1033 = vadd.xlane.f32.xlu0 %v1032
    %v1034 = vpop.xlane.xlu0 %1033
    %v1035 = vsel %vm579, %v1014, 0.0
    %1036 = vadd.xlane.f32.xlu0 %v1035
    %v1037 = vpop.xlane.xlu0 %1036
    %v1038 = vsel %vm579, %v1016, 0.0
    %1039 = vadd.xlane.f32.xlu0 %v1038
    %v1040 = vpop.xlane.xlu0 %1039
    %v1041 = vrcp.pop %v1019
    %v1042 = vrcp.pop %v1022
    %v1043 = vrcp.pop %v1025
    %v1044 = vrcp.pop %v1028
    %v1045 = vrcp.pop %v1031
    %v1046 = vrcp.pop %v1034
    %v1047 = vrcp.pop %v1037
    %v1048 = vrcp.pop %v1040
    %v1049 = vmul.f32 %v1002, %v1041
    %v1050 = vmul.f32 %v1004, %v1042
    %v1051 = vmul.f32 %v1006, %v1043
    %v1052 = vmul.f32 %v1008, %v1044
    %v1053 = vmul.f32 %v1010, %v1045
    %v1054 = vmul.f32 %v1012, %v1046
    %v1055 = vmul.f32 %v1014, %v1047
    %v1056 = vmul.f32 %v1016, %v1048
    %v1057 = vpack.c.bf16 %v1049, %v1049
    %v1058 = vpack.c.bf16 %v1050, %v1050
    %v1059 = vpack.c.bf16 %v1051, %v1051
    %v1060 = vpack.c.bf16 %v1052, %v1052
    %v1061 = vpack.c.bf16 %v1053, %v1053
    %v1062 = vpack.c.bf16 %v1054, %v1054
    %v1063 = vpack.c.bf16 %v1055, %v1055
    %v1064 = vpack.c.bf16 %v1056, %v1056
    %1065 = vrot.lane.b32.xlu0 %v568, 64
    %v1066 = vpop.permute.xlu0 %1065
    %v1068 = vsel %vm579, %v1057, 0
    %vm1070 = vcmask 1043456
    %v1072 = vsel %vm1070, %v1066, 0
    %1074 = vmatprep.subr.bf16.mxu0 0
    %1075 = vmatpush1.bf16.msra.mxu0 %v1072
    %1076 = vmatprep.subr.bf16.mxu0 0
    %1077 = vmatpush1.bf16.msra.mxu0 0
    %1078 = vmatprep.subr.bf16.mxu0 0
    %1079 = vmatpush1.bf16.msra.mxu0 0
    %1080 = vmatprep.subr.bf16.mxu0 0
    %1081 = vmatpush1.bf16.msra.mxu0 0
    %1082 = vmatprep.subr.bf16.mxu0 0
    %1083 = vmatpush1.bf16.msra.mxu0 0
    %1084 = vmatprep.subr.bf16.mxu0 0
    %1085 = vmatpush1.bf16.msra.mxu0 0
    %1086 = vmatprep.subr.bf16.mxu0 0
    %1087 = vmatpush1.bf16.msra.mxu0 0
    %1088 = vmatprep.subr.bf16.mxu0 0
    %1089 = vmatpush1.bf16.msra.mxu0 0
    %1090 = vmatprep.subr.bf16.mxu0 0
    %1091 = vmatpush1.bf16.msra.mxu0 0
    %1092 = vmatprep.subr.bf16.mxu0 0
    %1093 = vmatpush1.bf16.msra.mxu0 0
    %1094 = vmatprep.subr.bf16.mxu0 0
    %1095 = vmatpush1.bf16.msra.mxu0 0
    %1096 = vmatprep.subr.bf16.mxu0 0
    %1097 = vmatpush1.bf16.msra.mxu0 0
    %1098 = vmatprep.subr.bf16.mxu0 0
    %1099 = vmatpush1.bf16.msra.mxu0 0
    %1100 = vmatprep.subr.bf16.mxu0 0
    %1101 = vmatpush1.bf16.msra.mxu0 0
    %1102 = vmatprep.subr.bf16.mxu0 0
    %1103 = vmatpush1.bf16.msra.mxu0 0
    %1104 = vmatprep.subr.bf16.mxu0 0
    %1105 = vmatpush1.bf16.msra.mxu0 0
    %1106 = vmatprep.mubr.bf16.mxu0 0
    %1107 = vmatmul.mubr.bf16.gmra.mrb[0].mxu0 %v1068
    %v1108 = vpop.f32.mrb[0].mxu0
    %v1109 = vadd.f32 0.0, %v1108
    %v1110 = vpop.f32.mrb[0].mxu0
    %v1111 = vpop.f32.mrb[0].mxu0
    %v1112 = vpop.f32.mrb[0].mxu0
    %1113 = vdwg.mxu0
    %1114 = vrot.lane.b32.xlu0 %v569, 64
    %v1115 = vpop.permute.xlu0 %1114
    %v1117 = vsel %vm579, %v1058, 0
    %v1120 = vsel %vm1070, %v1115, 0
    %1122 = vmatprep.subr.bf16.mxu0 0
    %1123 = vmatpush1.bf16.msra.mxu0 %v1120
    %1124 = vmatprep.subr.bf16.mxu0 0
    %1125 = vmatpush1.bf16.msra.mxu0 0
    %1126 = vmatprep.subr.bf16.mxu0 0
    %1127 = vmatpush1.bf16.msra.mxu0 0
    %1128 = vmatprep.subr.bf16.mxu0 0
    %1129 = vmatpush1.bf16.msra.mxu0 0
    %1130 = vmatprep.subr.bf16.mxu0 0
    %1131 = vmatpush1.bf16.msra.mxu0 0
    %1132 = vmatprep.subr.bf16.mxu0 0
    %1133 = vmatpush1.bf16.msra.mxu0 0
    %1134 = vmatprep.subr.bf16.mxu0 0
    %1135 = vmatpush1.bf16.msra.mxu0 0
    %1136 = vmatprep.subr.bf16.mxu0 0
    %1137 = vmatpush1.bf16.msra.mxu0 0
    %1138 = vmatprep.subr.bf16.mxu0 0
    %1139 = vmatpush1.bf16.msra.mxu0 0
    %1140 = vmatprep.subr.bf16.mxu0 0
    %1141 = vmatpush1.bf16.msra.mxu0 0
    %1142 = vmatprep.subr.bf16.mxu0 0
    %1143 = vmatpush1.bf16.msra.mxu0 0
    %1144 = vmatprep.subr.bf16.mxu0 0
    %1145 = vmatpush1.bf16.msra.mxu0 0
    %1146 = vmatprep.subr.bf16.mxu0 0
    %1147 = vmatpush1.bf16.msra.mxu0 0
    %1148 = vmatprep.subr.bf16.mxu0 0
    %1149 = vmatpush1.bf16.msra.mxu0 0
    %1150 = vmatprep.subr.bf16.mxu0 0
    %1151 = vmatpush1.bf16.msra.mxu0 0
    %1152 = vmatprep.subr.bf16.mxu0 0
    %1153 = vmatpush1.bf16.msra.mxu0 0
    %1154 = vmatprep.mubr.bf16.mxu0 0
    %1155 = vmatmul.mubr.bf16.gmra.mrb[0].mxu0 %v1117
    %v1156 = vpop.f32.mrb[0].mxu0
    %v1157 = vadd.f32 0.0, %v1156
    %v1158 = vpop.f32.mrb[0].mxu0
    %v1159 = vpop.f32.mrb[0].mxu0
    %v1160 = vpop.f32.mrb[0].mxu0
    %1161 = vdwg.mxu0
    %1162 = vrot.lane.b32.xlu0 %v570, 64
    %v1163 = vpop.permute.xlu0 %1162
    %v1165 = vsel %vm579, %v1059, 0
    %v1168 = vsel %vm1070, %v1163, 0
    %1170 = vmatprep.subr.bf16.mxu0 0
    %1171 = vmatpush1.bf16.msra.mxu0 %v1168
    %1172 = vmatprep.subr.bf16.mxu0 0
    %1173 = vmatpush1.bf16.msra.mxu0 0
    %1174 = vmatprep.subr.bf16.mxu0 0
    %1175 = vmatpush1.bf16.msra.mxu0 0
    %1176 = vmatprep.subr.bf16.mxu0 0
    %1177 = vmatpush1.bf16.msra.mxu0 0
    %1178 = vmatprep.subr.bf16.mxu0 0
    %1179 = vmatpush1.bf16.msra.mxu0 0
    %1180 = vmatprep.subr.bf16.mxu0 0
    %1181 = vmatpush1.bf16.msra.mxu0 0
    %1182 = vmatprep.subr.bf16.mxu0 0
    %1183 = vmatpush1.bf16.msra.mxu0 0
    %1184 = vmatprep.subr.bf16.mxu0 0
    %1185 = vmatpush1.bf16.msra.mxu0 0
    %1186 = vmatprep.subr.bf16.mxu0 0
    %1187 = vmatpush1.bf16.msra.mxu0 0
    %1188 = vmatprep.subr.bf16.mxu0 0
    %1189 = vmatpush1.bf16.msra.mxu0 0
    %1190 = vmatprep.subr.bf16.mxu0 0
    %1191 = vmatpush1.bf16.msra.mxu0 0
    %1192 = vmatprep.subr.bf16.mxu0 0
    %1193 = vmatpush1.bf16.msra.mxu0 0
    %1194 = vmatprep.subr.bf16.mxu0 0
    %1195 = vmatpush1.bf16.msra.mxu0 0
    %1196 = vmatprep.subr.bf16.mxu0 0
    %1197 = vmatpush1.bf16.msra.mxu0 0
    %1198 = vmatprep.subr.bf16.mxu0 0
    %1199 = vmatpush1.bf16.msra.mxu0 0
    %1200 = vmatprep.subr.bf16.mxu0 0
    %1201 = vmatpush1.bf16.msra.mxu0 0
    %1202 = vmatprep.mubr.bf16.mxu0 0
    %1203 = vmatmul.mubr.bf16.gmra.mrb[0].mxu0 %v1165
    %v1204 = vpop.f32.mrb[0].mxu0
    %v1205 = vadd.f32 0.0, %v1204
    %v1206 = vpop.f32.mrb[0].mxu0
    %v1207 = vpop.f32.mrb[0].mxu0
    %v1208 = vpop.f32.mrb[0].mxu0
    %1209 = vdwg.mxu0
    %1210 = vrot.lane.b32.xlu0 %v571, 64
    %v1211 = vpop.permute.xlu0 %1210
    %v1213 = vsel %vm579, %v1060, 0
    %v1216 = vsel %vm1070, %v1211, 0
    %1218 = vmatprep.subr.bf16.mxu0 0
    %1219 = vmatpush1.bf16.msra.mxu0 %v1216
    %1220 = vmatprep.subr.bf16.mxu0 0
    %1221 = vmatpush1.bf16.msra.mxu0 0
    %1222 = vmatprep.subr.bf16.mxu0 0
    %1223 = vmatpush1.bf16.msra.mxu0 0
    %1224 = vmatprep.subr.bf16.mxu0 0
    %1225 = vmatpush1.bf16.msra.mxu0 0
    %1226 = vmatprep.subr.bf16.mxu0 0
    %1227 = vmatpush1.bf16.msra.mxu0 0
    %1228 = vmatprep.subr.bf16.mxu0 0
    %1229 = vmatpush1.bf16.msra.mxu0 0
    %1230 = vmatprep.subr.bf16.mxu0 0
    %1231 = vmatpush1.bf16.msra.mxu0 0
    %1232 = vmatprep.subr.bf16.mxu0 0
    %1233 = vmatpush1.bf16.msra.mxu0 0
    %1234 = vmatprep.subr.bf16.mxu0 0
    %1235 = vmatpush1.bf16.msra.mxu0 0
    %1236 = vmatprep.subr.bf16.mxu0 0
    %1237 = vmatpush1.bf16.msra.mxu0 0
    %1238 = vmatprep.subr.bf16.mxu0 0
    %1239 = vmatpush1.bf16.msra.mxu0 0
    %1240 = vmatprep.subr.bf16.mxu0 0
    %1241 = vmatpush1.bf16.msra.mxu0 0
    %1242 = vmatprep.subr.bf16.mxu0 0
    %1243 = vmatpush1.bf16.msra.mxu0 0
    %1244 = vmatprep.subr.bf16.mxu0 0
    %1245 = vmatpush1.bf16.msra.mxu0 0
    %1246 = vmatprep.subr.bf16.mxu0 0
    %1247 = vmatpush1.bf16.msra.mxu0 0
    %1248 = vmatprep.subr.bf16.mxu0 0
    %1249 = vmatpush1.bf16.msra.mxu0 0
    %1250 = vmatprep.mubr.bf16.mxu0 0
    %1251 = vmatmul.mubr.bf16.gmra.mrb[0].mxu0 %v1213
    %v1252 = vpop.f32.mrb[0].mxu0
    %v1253 = vadd.f32 0.0, %v1252
    %v1254 = vpop.f32.mrb[0].mxu0
    %v1255 = vpop.f32.mrb[0].mxu0
    %v1256 = vpop.f32.mrb[0].mxu0
    %1257 = vdwg.mxu0
    %1258 = vrot.lane.b32.xlu0 %v572, 64
    %v1259 = vpop.permute.xlu0 %1258
    %v1261 = vsel %vm579, %v1061, 0
    %v1264 = vsel %vm1070, %v1259, 0
    %1266 = vmatprep.subr.bf16.mxu0 0
    %1267 = vmatpush1.bf16.msra.mxu0 %v1264
    %1268 = vmatprep.subr.bf16.mxu0 0
    %1269 = vmatpush1.bf16.msra.mxu0 0
    %1270 = vmatprep.subr.bf16.mxu0 0
    %1271 = vmatpush1.bf16.msra.mxu0 0
    %1272 = vmatprep.subr.bf16.mxu0 0
    %1273 = vmatpush1.bf16.msra.mxu0 0
    %1274 = vmatprep.subr.bf16.mxu0 0
    %1275 = vmatpush1.bf16.msra.mxu0 0
    %1276 = vmatprep.subr.bf16.mxu0 0
    %1277 = vmatpush1.bf16.msra.mxu0 0
    %1278 = vmatprep.subr.bf16.mxu0 0
    %1279 = vmatpush1.bf16.msra.mxu0 0
    %1280 = vmatprep.subr.bf16.mxu0 0
    %1281 = vmatpush1.bf16.msra.mxu0 0
    %1282 = vmatprep.subr.bf16.mxu0 0
    %1283 = vmatpush1.bf16.msra.mxu0 0
    %1284 = vmatprep.subr.bf16.mxu0 0
    %1285 = vmatpush1.bf16.msra.mxu0 0
    %1286 = vmatprep.subr.bf16.mxu0 0
    %1287 = vmatpush1.bf16.msra.mxu0 0
    %1288 = vmatprep.subr.bf16.mxu0 0
    %1289 = vmatpush1.bf16.msra.mxu0 0
    %1290 = vmatprep.subr.bf16.mxu0 0
    %1291 = vmatpush1.bf16.msra.mxu0 0
    %1292 = vmatprep.subr.bf16.mxu0 0
    %1293 = vmatpush1.bf16.msra.mxu0 0
    %1294 = vmatprep.subr.bf16.mxu0 0
    %1295 = vmatpush1.bf16.msra.mxu0 0
    %1296 = vmatprep.subr.bf16.mxu0 0
    %1297 = vmatpush1.bf16.msra.mxu0 0
    %1298 = vmatprep.mubr.bf16.mxu0 0
    %1299 = vmatmul.mubr.bf16.gmra.mrb[0].mxu0 %v1261
    %v1300 = vpop.f32.mrb[0].mxu0
    %v1301 = vadd.f32 0.0, %v1300
    %v1302 = vpop.f32.mrb[0].mxu0
    %v1303 = vpop.f32.mrb[0].mxu0
    %v1304 = vpop.f32.mrb[0].mxu0
    %1305 = vdwg.mxu0
    %1306 = vrot.lane.b32.xlu0 %v573, 64
    %v1307 = vpop.permute.xlu0 %1306
    %v1309 = vsel %vm579, %v1062, 0
    %v1312 = vsel %vm1070, %v1307, 0
    %1314 = vmatprep.subr.bf16.mxu0 0
    %1315 = vmatpush1.bf16.msra.mxu0 %v1312
    %1316 = vmatprep.subr.bf16.mxu0 0
    %1317 = vmatpush1.bf16.msra.mxu0 0
    %1318 = vmatprep.subr.bf16.mxu0 0
    %1319 = vmatpush1.bf16.msra.mxu0 0
    %1320 = vmatprep.subr.bf16.mxu0 0
    %1321 = vmatpush1.bf16.msra.mxu0 0
    %1322 = vmatprep.subr.bf16.mxu0 0
    %1323 = vmatpush1.bf16.msra.mxu0 0
    %1324 = vmatprep.subr.bf16.mxu0 0
    %1325 = vmatpush1.bf16.msra.mxu0 0
    %1326 = vmatprep.subr.bf16.mxu0 0
    %1327 = vmatpush1.bf16.msra.mxu0 0
    %1328 = vmatprep.subr.bf16.mxu0 0
    %1329 = vmatpush1.bf16.msra.mxu0 0
    %1330 = vmatprep.subr.bf16.mxu0 0
    %1331 = vmatpush1.bf16.msra.mxu0 0
    %1332 = vmatprep.subr.bf16.mxu0 0
    %1333 = vmatpush1.bf16.msra.mxu0 0
    %1334 = vmatprep.subr.bf16.mxu0 0
    %1335 = vmatpush1.bf16.msra.mxu0 0
    %1336 = vmatprep.subr.bf16.mxu0 0
    %1337 = vmatpush1.bf16.msra.mxu0 0
    %1338 = vmatprep.subr.bf16.mxu0 0
    %1339 = vmatpush1.bf16.msra.mxu0 0
    %1340 = vmatprep.subr.bf16.mxu0 0
    %1341 = vmatpush1.bf16.msra.mxu0 0
    %1342 = vmatprep.subr.bf16.mxu0 0
    %1343 = vmatpush1.bf16.msra.mxu0 0
    %1344 = vmatprep.subr.bf16.mxu0 0
    %1345 = vmatpush1.bf16.msra.mxu0 0
    %1346 = vmatprep.mubr.bf16.mxu0 0
    %1347 = vmatmul.mubr.bf16.gmra.mrb[0].mxu0 %v1309
    %v1348 = vpop.f32.mrb[0].mxu0
    %v1349 = vadd.f32 0.0, %v1348
    %v1350 = vpop.f32.mrb[0].mxu0
    %v1351 = vpop.f32.mrb[0].mxu0
    %v1352 = vpop.f32.mrb[0].mxu0
    %1353 = vdwg.mxu0
    %1354 = vrot.lane.b32.xlu0 %v574, 64
    %v1355 = vpop.permute.xlu0 %1354
    %v1357 = vsel %vm579, %v1063, 0
    %v1360 = vsel %vm1070, %v1355, 0
    %1362 = vmatprep.subr.bf16.mxu0 0
    %1363 = vmatpush1.bf16.msra.mxu0 %v1360
    %1364 = vmatprep.subr.bf16.mxu0 0
    %1365 = vmatpush1.bf16.msra.mxu0 0
    %1366 = vmatprep.subr.bf16.mxu0 0
    %1367 = vmatpush1.bf16.msra.mxu0 0
    %1368 = vmatprep.subr.bf16.mxu0 0
    %1369 = vmatpush1.bf16.msra.mxu0 0
    %1370 = vmatprep.subr.bf16.mxu0 0
    %1371 = vmatpush1.bf16.msra.mxu0 0
    %1372 = vmatprep.subr.bf16.mxu0 0
    %1373 = vmatpush1.bf16.msra.mxu0 0
    %1374 = vmatprep.subr.bf16.mxu0 0
    %1375 = vmatpush1.bf16.msra.mxu0 0
    %1376 = vmatprep.subr.bf16.mxu0 0
    %1377 = vmatpush1.bf16.msra.mxu0 0
    %1378 = vmatprep.subr.bf16.mxu0 0
    %1379 = vmatpush1.bf16.msra.mxu0 0
    %1380 = vmatprep.subr.bf16.mxu0 0
    %1381 = vmatpush1.bf16.msra.mxu0 0
    %1382 = vmatprep.subr.bf16.mxu0 0
    %1383 = vmatpush1.bf16.msra.mxu0 0
    %1384 = vmatprep.subr.bf16.mxu0 0
    %1385 = vmatpush1.bf16.msra.mxu0 0
    %1386 = vmatprep.subr.bf16.mxu0 0
    %1387 = vmatpush1.bf16.msra.mxu0 0
    %1388 = vmatprep.subr.bf16.mxu0 0
    %1389 = vmatpush1.bf16.msra.mxu0 0
    %1390 = vmatprep.subr.bf16.mxu0 0
    %1391 = vmatpush1.bf16.msra.mxu0 0
    %1392 = vmatprep.subr.bf16.mxu0 0
    %1393 = vmatpush1.bf16.msra.mxu0 0
    %1394 = vmatprep.mubr.bf16.mxu0 0
    %1395 = vmatmul.mubr.bf16.gmra.mrb[0].mxu0 %v1357
    %v1396 = vpop.f32.mrb[0].mxu0
    %v1397 = vadd.f32 0.0, %v1396
    %v1398 = vpop.f32.mrb[0].mxu0
    %v1399 = vpop.f32.mrb[0].mxu0
    %v1400 = vpop.f32.mrb[0].mxu0
    %1401 = vdwg.mxu0
    %1402 = vrot.lane.b32.xlu0 %v575, 64
    %v1403 = vpop.permute.xlu0 %1402
    %v1405 = vsel %vm579, %v1064, 0
    %v1408 = vsel %vm1070, %v1403, 0
    %1410 = vmatprep.subr.bf16.mxu0 0
    %1411 = vmatpush1.bf16.msra.mxu0 %v1408
    %1412 = vmatprep.subr.bf16.mxu0 0
    %1413 = vmatpush1.bf16.msra.mxu0 0
    %1414 = vmatprep.subr.bf16.mxu0 0
    %1415 = vmatpush1.bf16.msra.mxu0 0
    %1416 = vmatprep.subr.bf16.mxu0 0
    %1417 = vmatpush1.bf16.msra.mxu0 0
    %1418 = vmatprep.subr.bf16.mxu0 0
    %1419 = vmatpush1.bf16.msra.mxu0 0
    %1420 = vmatprep.subr.bf16.mxu0 0
    %1421 = vmatpush1.bf16.msra.mxu0 0
    %1422 = vmatprep.subr.bf16.mxu0 0
    %1423 = vmatpush1.bf16.msra.mxu0 0
    %1424 = vmatprep.subr.bf16.mxu0 0
    %1425 = vmatpush1.bf16.msra.mxu0 0
    %1426 = vmatprep.subr.bf16.mxu0 0
    %1427 = vmatpush1.bf16.msra.mxu0 0
    %1428 = vmatprep.subr.bf16.mxu0 0
    %1429 = vmatpush1.bf16.msra.mxu0 0
    %1430 = vmatprep.subr.bf16.mxu0 0
    %1431 = vmatpush1.bf16.msra.mxu0 0
    %1432 = vmatprep.subr.bf16.mxu0 0
    %1433 = vmatpush1.bf16.msra.mxu0 0
    %1434 = vmatprep.subr.bf16.mxu0 0
    %1435 = vmatpush1.bf16.msra.mxu0 0
    %1436 = vmatprep.subr.bf16.mxu0 0
    %1437 = vmatpush1.bf16.msra.mxu0 0
    %1438 = vmatprep.subr.bf16.mxu0 0
    %1439 = vmatpush1.bf16.msra.mxu0 0
    %1440 = vmatprep.subr.bf16.mxu0 0
    %1441 = vmatpush1.bf16.msra.mxu0 0
    %1442 = vmatprep.mubr.bf16.mxu0 0
    %1443 = vmatmul.mubr.bf16.gmra.mrb[0].mxu0 %v1405
    %v1444 = vpop.f32.mrb[0].mxu0
    %v1445 = vadd.f32 0.0, %v1444
    %v1446 = vpop.f32.mrb[0].mxu0
    %v1447 = vpop.f32.mrb[0].mxu0
    %v1448 = vpop.f32.mrb[0].mxu0
    %1449 = vdwg.mxu0
    %1452 = vrot.lane.b32.xlu0 %v1205, 8
    %v1453 = vpop.permute.xlu0 %1452
    %1454 = vrot.lane.b32.xlu0 %v1253, 8
    %v1455 = vpop.permute.xlu0 %1454
    %1460 = vrot.lane.b32.xlu0 %v1301, 16
    %v1461 = vpop.permute.xlu0 %1460
    %1462 = vrot.lane.b32.xlu0 %v1349, 16
    %v1463 = vpop.permute.xlu0 %1462
    %1468 = vrot.lane.b32.xlu0 %v1397, 24
    %v1469 = vpop.permute.xlu0 %1468
    %1470 = vrot.lane.b32.xlu0 %v1445, 24
    %v1471 = vpop.permute.xlu0 %1470
    %v1474 = vsel %vm579, %v1109, %v1453
    %v1475 = vsel %vm579, %v1157, %v1455
    %vm1476 = vcmask 130048
    %v1477 = vsel %vm1476, %v1474, %v1461
    %v1478 = vsel %vm1476, %v1475, %v1463
    %vm1479 = vcmask 195584
    %v1480 = vsel %vm1479, %v1477, %v1469
    %v1481 = vsel %vm1479, %v1478, %v1471
    %v1482 = vld [vmem:[#allocation10] sm:$0xf]
    %v1483 = vld [vmem:[#allocation10 + $0x4] sm:$0xf]
    %v1484 = vld [vmem:[#allocation10 + $0x8] sm:$0xf]
    %v1485 = vld [vmem:[#allocation10 + $0xc] sm:$0xf]
    %v1486 = vpack.c.bf16 %v1481, %v1480
    %v1491 = vunpack.c.l.b16 %v1482
    %v1492 = vunpack.c.l.b16 %v1483
    %v1493 = vunpack.c.l.b16 %v1484
    %v1494 = vunpack.c.l.b16 %v1485
    %v1495 = vpack.c.b16 %v1492, %v1491
    %v1496 = vpack.c.b16 %v1494, %v1493
    %v1500 = vsel %vm463, %v1486, 0
    %1502 = vmatprep.subr.bf16.mxu0 0
    %1503 = vmatpush1.bf16.msra.mxu0 %v1495
    %1504 = vmatprep.subr.bf16.mxu0 0
    %1505 = vmatpush1.bf16.msra.mxu0 %v1496
    %1506 = vmatprep.subr.bf16.mxu0 0
    %1507 = vmatpush1.bf16.msra.mxu0 0
    %1508 = vmatprep.subr.bf16.mxu0 0
    %1509 = vmatpush1.bf16.msra.mxu0 0
    %1510 = vmatprep.subr.bf16.mxu0 0
    %1511 = vmatpush1.bf16.msra.mxu0 0
    %1512 = vmatprep.subr.bf16.mxu0 0
    %1513 = vmatpush1.bf16.msra.mxu0 0
    %1514 = vmatprep.subr.bf16.mxu0 0
    %1515 = vmatpush1.bf16.msra.mxu0 0
    %1516 = vmatprep.subr.bf16.mxu0 0
    %1517 = vmatpush1.bf16.msra.mxu0 0
    %1518 = vmatprep.subr.bf16.mxu0 0
    %1519 = vmatpush1.bf16.msra.mxu0 0
    %1520 = vmatprep.subr.bf16.mxu0 0
    %1521 = vmatpush1.bf16.msra.mxu0 0
    %1522 = vmatprep.subr.bf16.mxu0 0
    %1523 = vmatpush1.bf16.msra.mxu0 0
    %1524 = vmatprep.subr.bf16.mxu0 0
    %1525 = vmatpush1.bf16.msra.mxu0 0
    %1526 = vmatprep.subr.bf16.mxu0 0
    %1527 = vmatpush1.bf16.msra.mxu0 0
    %1528 = vmatprep.subr.bf16.mxu0 0
    %1529 = vmatpush1.bf16.msra.mxu0 0
    %1530 = vmatprep.subr.bf16.mxu0 0
    %1531 = vmatpush1.bf16.msra.mxu0 0
    %1532 = vmatprep.subr.bf16.mxu0 0
    %1533 = vmatpush1.bf16.msra.mxu0 0
    %1534 = vmatprep.mubr.bf16.mxu0 0
    %1535 = vmatmul.mubr.bf16.gmra.mrb[0].mxu0 %v1500
    %v1536 = vpop.f32.mrb[0].mxu0
    %v1537 = vadd.f32 0.0, %v1536
    %v1538 = vpop.f32.mrb[0].mxu0
    %v1539 = vpop.f32.mrb[0].mxu0
    %v1540 = vadd.f32 0.0, %v1539
    %v1541 = vpop.f32.mrb[0].mxu0
    %1542 = vdwg.mxu0
    %v1543 = vadd.f32 %v404, %v1537
    %v1544 = vadd.f32 %v407, %v1540
    %v1545 = vld [vmem:[#allocation11] sm:$0x1]
    %v1546 = vmul.f32 %v1543, %v1543
    %v1547 = vmul.f32 %v1544, %v1544
    %v1548 = vsel %vm463, %v1546, 0.0
    %1549 = vadd.xlane.f32.xlu0 %v1548
    %v1550 = vpop.xlane.xlu0 %1549
    %v1551 = vsel %vm463, %v1547, 0.0
    %1552 = vadd.xlane.f32.xlu0 %v1551
    %v1553 = vpop.xlane.xlu0 %1552
    %v1554 = vmul.f32 %v1550, %v470
    %v1555 = vmul.f32 %v1553, %v470
    %v1557 = vlaneseq
    %v1558 = vshrl.u32 %v1557, 7
    %v1559 = vsub.s32 0, %v1558
    %v1560 = vrot.slane %v1545, %v1559
    %v1562 = vmul.f32 %v1560, %v1543
    %v1563 = vmul.f32 %v1560, %v1544
    %v1564 = vadd.f32 %v1554, 1e-06
    %v1565 = vadd.f32 %v1555, 1e-06
    %v1566 = vrsqrt.pop %v1564
    %v1567 = vrsqrt.pop %v1565
    %v1568 = vmul.f32 %v1562, %v1566
    %v1569 = vmul.f32 %v1563, %v1567
    %v1570 = vld [vmem:[#allocation13] sm:$0xf]
    %v1571 = vld [vmem:[#allocation13 + $0x4] sm:$0xf]
    %v1572 = vld [vmem:[#allocation13 + $0x8] sm:$0xf]
    %v1573 = vld [vmem:[#allocation13 + $0xc] sm:$0xf]
    %v1574 = vpack.c.bf16 %v1569, %v1568
    %v1579 = vunpack.c.l.b16 %v1570
    %v1580 = vunpack.c.l.b16 %v1571
    %v1581 = vunpack.c.l.b16 %v1572
    %v1582 = vunpack.c.l.b16 %v1573
    %v1583 = vpack.c.b16 %v1580, %v1579
    %v1584 = vpack.c.b16 %v1582, %v1581
    %v1588 = vsel %vm463, %v1574, 0
    %1590 = vmatprep.subr.bf16.mxu0 0
    %1591 = vmatpush1.bf16.msra.mxu0 %v1583
    %1592 = vmatprep.subr.bf16.mxu0 0
    %1593 = vmatpush1.bf16.msra.mxu0 %v1584
    %1594 = vmatprep.subr.bf16.mxu0 0
    %1595 = vmatpush1.bf16.msra.mxu0 0
    %1596 = vmatprep.subr.bf16.mxu0 0
    %1597 = vmatpush1.bf16.msra.mxu0 0
    %1598 = vmatprep.subr.bf16.mxu0 0
    %1599 = vmatpush1.bf16.msra.mxu0 0
    %1600 = vmatprep.subr.bf16.mxu0 0
    %1601 = vmatpush1.bf16.msra.mxu0 0
    %1602 = vmatprep.subr.bf16.mxu0 0
    %1603 = vmatpush1.bf16.msra.mxu0 0
    %1604 = vmatprep.subr.bf16.mxu0 0
    %1605 = vmatpush1.bf16.msra.mxu0 0
    %1606 = vmatprep.subr.bf16.mxu0 0
    %1607 = vmatpush1.bf16.msra.mxu0 0
    %1608 = vmatprep.subr.bf16.mxu0 0
    %1609 = vmatpush1.bf16.msra.mxu0 0
    %1610 = vmatprep.subr.bf16.mxu0 0
    %1611 = vmatpush1.bf16.msra.mxu0 0
    %1612 = vmatprep.subr.bf16.mxu0 0
    %1613 = vmatpush1.bf16.msra.mxu0 0
    %1614 = vmatprep.subr.bf16.mxu0 0
    %1615 = vmatpush1.bf16.msra.mxu0 0
    %1616 = vmatprep.subr.bf16.mxu0 0
    %1617 = vmatpush1.bf16.msra.mxu0 0
    %1618 = vmatprep.subr.bf16.mxu0 0
    %1619 = vmatpush1.bf16.msra.mxu0 0
    %1620 = vmatprep.subr.bf16.mxu0 0
    %1621 = vmatpush1.bf16.msra.mxu0 0
    %1622 = vmatprep.mubr.bf16.mxu0 0
    %1623 = vmatmul.mubr.bf16.gmra.mrb[0].mxu0 %v1588
    %v1624 = vpop.f32.mrb[0].mxu0
    %v1625 = vadd.f32 0.0, %v1624
    %v1626 = vpop.f32.mrb[0].mxu0
    %v1627 = vpop.f32.mrb[0].mxu0
    %v1628 = vadd.f32 0.0, %v1627
    %v1629 = vpop.f32.mrb[0].mxu0
    %1630 = vdwg.mxu0
    %v1631 = vmax.f32 %v1625, 0.0
    %v1632 = vmax.f32 %v1628, 0.0
    %v1633 = vld [vmem:[#allocation14] sm:$0xf]
    %v1634 = vld [vmem:[#allocation14 + $0x4] sm:$0xf]
    %v1635 = vld [vmem:[#allocation14 + $0x8] sm:$0xf]
    %v1636 = vld [vmem:[#allocation14 + $0xc] sm:$0xf]
    %v1637 = vld [vmem:[#allocation14 + $0x10] sm:$0xf]
    %v1638 = vld [vmem:[#allocation14 + $0x14] sm:$0xf]
    %v1639 = vld [vmem:[#allocation14 + $0x18] sm:$0xf]
    %v1640 = vld [vmem:[#allocation14 + $0x1c] sm:$0xf]
    %v1641 = vpack.c.bf16 %v1632, %v1631
    %v1650 = vunpack.c.l.b16 %v1633
    %v1651 = vunpack.c.l.b16 %v1634
    %v1652 = vunpack.c.l.b16 %v1635
    %v1653 = vunpack.c.l.b16 %v1636
    %v1654 = vunpack.c.l.b16 %v1637
    %v1655 = vunpack.c.l.b16 %v1638
    %v1656 = vunpack.c.l.b16 %v1639
    %v1657 = vunpack.c.l.b16 %v1640
    %v1658 = vpack.c.b16 %v1651, %v1650
    %v1659 = vpack.c.b16 %v1653, %v1652
    %v1660 = vpack.c.b16 %v1655, %v1654
    %v1661 = vpack.c.b16 %v1657, %v1656
    %vm1666 = vcmask 523264
    %v1668 = vsel %vm1666, %v1641, 0
    %1670 = vmatprep.subr.bf16.mxu0 0
    %1671 = vmatpush1.bf16.msra.mxu0 %v1658
    %1672 = vmatprep.subr.bf16.mxu0 0
    %1673 = vmatpush1.bf16.msra.mxu0 %v1659
    %1674 = vmatprep.subr.bf16.mxu0 0
    %1675 = vmatpush1.bf16.msra.mxu0 %v1660
    %1676 = vmatprep.subr.bf16.mxu0 0
    %1677 = vmatpush1.bf16.msra.mxu0 %v1661
    %1678 = vmatprep.subr.bf16.mxu0 0
    %1679 = vmatpush1.bf16.msra.mxu0 0
    %1680 = vmatprep.subr.bf16.mxu0 0
    %1681 = vmatpush1.bf16.msra.mxu0 0
    %1682 = vmatprep.subr.bf16.mxu0 0
    %1683 = vmatpush1.bf16.msra.mxu0 0
    %1684 = vmatprep.subr.bf16.mxu0 0
    %1685 = vmatpush1.bf16.msra.mxu0 0
    %1686 = vmatprep.subr.bf16.mxu0 0
    %1687 = vmatpush1.bf16.msra.mxu0 0
    %1688 = vmatprep.subr.bf16.mxu0 0
    %1689 = vmatpush1.bf16.msra.mxu0 0
    %1690 = vmatprep.subr.bf16.mxu0 0
    %1691 = vmatpush1.bf16.msra.mxu0 0
    %1692 = vmatprep.subr.bf16.mxu0 0
    %1693 = vmatpush1.bf16.msra.mxu0 0
    %1694 = vmatprep.subr.bf16.mxu0 0
    %1695 = vmatpush1.bf16.msra.mxu0 0
    %1696 = vmatprep.subr.bf16.mxu0 0
    %1697 = vmatpush1.bf16.msra.mxu0 0
    %1698 = vmatprep.subr.bf16.mxu0 0
    %1699 = vmatpush1.bf16.msra.mxu0 0
    %1700 = vmatprep.subr.bf16.mxu0 0
    %1701 = vmatpush1.bf16.msra.mxu0 0
    %1702 = vmatprep.mubr.bf16.mxu0 0
    %1703 = vmatmul.mubr.bf16.gmra.mrb[0].mxu0 %v1668
    %v1704 = vpop.f32.mrb[0].mxu0
    %v1705 = vadd.f32 0.0, %v1704
    %v1706 = vpop.f32.mrb[0].mxu0
    %v1707 = vpop.f32.mrb[0].mxu0
    %v1708 = vadd.f32 0.0, %v1707
    %v1709 = vpop.f32.mrb[0].mxu0
    %1710 = vdwg.mxu0
    %v1711 = vadd.f32 %v1543, %v1705
    %v1712 = vadd.f32 %v1544, %v1708
    %s1713 = scalar_lea.vmem [#allocation7], 1
    %v1714 = vld [vmem:[%s1713] sm:$0x1]
    %v1715 = vmul.f32 %v1711, %v1711
    %v1716 = vmul.f32 %v1712, %v1712
    %v1717 = vsel %vm463, %v1715, 0.0
    %1718 = vadd.xlane.f32.xlu0 %v1717
    %v1719 = vpop.xlane.xlu0 %1718
    %v1720 = vsel %vm463, %v1716, 0.0
    %1721 = vadd.xlane.f32.xlu0 %v1720
    %v1722 = vpop.xlane.xlu0 %1721
    %v1723 = vmul.f32 %v1719, %v470
    %v1724 = vmul.f32 %v1722, %v470
    %v1726 = vlaneseq
    %v1727 = vshrl.u32 %v1726, 7
    %v1728 = vsub.s32 0, %v1727
    %v1729 = vrot.slane %v1714, %v1728
    %v1731 = vmul.f32 %v1729, %v1711
    %v1732 = vmul.f32 %v1729, %v1712
    %v1733 = vadd.f32 %v1723, 1e-06
    %v1734 = vadd.f32 %v1724, 1e-06
    %v1735 = vrsqrt.pop %v1733
    %v1736 = vrsqrt.pop %v1734
    %v1737 = vmul.f32 %v1731, %v1735
    %v1738 = vmul.f32 %v1732, %v1736
    %s1739 = scalar_lea.vmem [#allocation8], 16
    %v1740 = vld [vmem:[%s1739] sm:$0xf]
    %v1741 = vld [vmem:[%s1739 + $0x4] sm:$0xf]
    %v1742 = vld [vmem:[%s1739 + $0x8] sm:$0xf]
    %v1743 = vld [vmem:[%s1739 + $0xc] sm:$0xf]
    %v1744 = vpack.c.bf16 %v1738, %v1737
    %v1749 = vunpack.c.l.b16 %v1740
    %v1750 = vunpack.c.l.b16 %v1741
    %v1751 = vunpack.c.l.b16 %v1742
    %v1752 = vunpack.c.l.b16 %v1743
    %v1753 = vpack.c.b16 %v1750, %v1749
    %v1754 = vpack.c.b16 %v1752, %v1751
    %v1758 = vsel %vm463, %v1744, 0
    %1760 = vmatprep.subr.bf16.mxu0 0
    %1761 = vmatpush1.bf16.msra.mxu0 %v1753
    %1762 = vmatprep.subr.bf16.mxu0 0
    %1763 = vmatpush1.bf16.msra.mxu0 %v1754
    %1764 = vmatprep.subr.bf16.mxu0 0
    %1765 = vmatpush1.bf16.msra.mxu0 0
    %1766 = vmatprep.subr.bf16.mxu0 0
    %1767 = vmatpush1.bf16.msra.mxu0 0
    %1768 = vmatprep.subr.bf16.mxu0 0
    %1769 = vmatpush1.bf16.msra.mxu0 0
    %1770 = vmatprep.subr.bf16.mxu0 0
    %1771 = vmatpush1.bf16.msra.mxu0 0
    %1772 = vmatprep.subr.bf16.mxu0 0
    %1773 = vmatpush1.bf16.msra.mxu0 0
    %1774 = vmatprep.subr.bf16.mxu0 0
    %1775 = vmatpush1.bf16.msra.mxu0 0
    %1776 = vmatprep.subr.bf16.mxu0 0
    %1777 = vmatpush1.bf16.msra.mxu0 0
    %1778 = vmatprep.subr.bf16.mxu0 0
    %1779 = vmatpush1.bf16.msra.mxu0 0
    %1780 = vmatprep.subr.bf16.mxu0 0
    %1781 = vmatpush1.bf16.msra.mxu0 0
    %1782 = vmatprep.subr.bf16.mxu0 0
    %1783 = vmatpush1.bf16.msra.mxu0 0
    %1784 = vmatprep.subr.bf16.mxu0 0
    %1785 = vmatpush1.bf16.msra.mxu0 0
    %1786 = vmatprep.subr.bf16.mxu0 0
    %1787 = vmatpush1.bf16.msra.mxu0 0
    %1788 = vmatprep.subr.bf16.mxu0 0
    %1789 = vmatpush1.bf16.msra.mxu0 0
    %1790 = vmatprep.subr.bf16.mxu0 0
    %1791 = vmatpush1.bf16.msra.mxu0 0
    %1792 = vmatprep.mubr.bf16.mxu0 0
    %1793 = vmatmul.mubr.bf16.gmra.mrb[0].mxu0 %v1758
    %v1794 = vpop.f32.mrb[0].mxu0
    %v1795 = vadd.f32 0.0, %v1794
    %v1796 = vpop.f32.mrb[0].mxu0
    %v1797 = vpop.f32.mrb[0].mxu0
    %v1798 = vadd.f32 0.0, %v1797
    %v1799 = vpop.f32.mrb[0].mxu0
    %1800 = vdwg.mxu0
    %1803 = vrot.lane.b32.xlu0 %v1795, 120
    %v1804 = vpop.permute.xlu0 %1803
    %1805 = vrot.lane.b32.xlu0 %v1798, 120
    %v1806 = vpop.permute.xlu0 %1805
    %1809 = vrot.lane.b32.xlu0 %v1795, 112
    %v1810 = vpop.permute.xlu0 %1809
    %1811 = vrot.lane.b32.xlu0 %v1798, 112
    %v1812 = vpop.permute.xlu0 %1811
    %1815 = vrot.lane.b32.xlu0 %v1795, 104
    %v1816 = vpop.permute.xlu0 %1815
    %1817 = vrot.lane.b32.xlu0 %v1798, 104
    %v1818 = vpop.permute.xlu0 %1817
    %v1821 = vpack.c.bf16 %v1795, %v1795
    %v1822 = vpack.c.bf16 %v1798, %v1798
    %v1823 = vpack.c.bf16 %v1804, %v1804
    %v1824 = vpack.c.bf16 %v1806, %v1806
    %v1825 = vpack.c.bf16 %v1810, %v1810
    %v1826 = vpack.c.bf16 %v1812, %v1812
    %v1827 = vpack.c.bf16 %v1816, %v1816
    %v1828 = vpack.c.bf16 %v1818, %v1818
    %1830 = vrot.lane.b32.xlu0 %v1821, 96
    %v1831 = vpop.permute.xlu0 %1830
    %v1833 = vsel %vm579, %v1821, 0
    %v1836 = vsel %vm579, %v1831, 0
    %1838 = vmatprep.subr.bf16.mxu0 0
    %1839 = vmatpush1.bf16.xpose.msra.mxu0 %v1836
    %1840 = vmatprep.subr.bf16.mxu0 0
    %1841 = vmatpush1.bf16.xpose.msra.mxu0 0
    %1842 = vmatprep.subr.bf16.mxu0 0
    %1843 = vmatpush1.bf16.xpose.msra.mxu0 0
    %1844 = vmatprep.subr.bf16.mxu0 0
    %1845 = vmatpush1.bf16.xpose.msra.mxu0 0
    %1846 = vmatprep.subr.bf16.mxu0 0
    %1847 = vmatpush1.bf16.xpose.msra.mxu0 0
    %1848 = vmatprep.subr.bf16.mxu0 0
    %1849 = vmatpush1.bf16.xpose.msra.mxu0 0
    %1850 = vmatprep.subr.bf16.mxu0 0
    %1851 = vmatpush1.bf16.xpose.msra.mxu0 0
    %1852 = vmatprep.subr.bf16.mxu0 0
    %1853 = vmatpush1.bf16.xpose.msra.mxu0 0
    %1854 = vmatprep.subr.bf16.mxu0 0
    %1855 = vmatpush1.bf16.xpose.msra.mxu0 0
    %1856 = vmatprep.subr.bf16.mxu0 0
    %1857 = vmatpush1.bf16.xpose.msra.mxu0 0
    %1858 = vmatprep.subr.bf16.mxu0 0
    %1859 = vmatpush1.bf16.xpose.msra.mxu0 0
    %1860 = vmatprep.subr.bf16.mxu0 0
    %1861 = vmatpush1.bf16.xpose.msra.mxu0 0
    %1862 = vmatprep.subr.bf16.mxu0 0
    %1863 = vmatpush1.bf16.xpose.msra.mxu0 0
    %1864 = vmatprep.subr.bf16.mxu0 0
    %1865 = vmatpush1.bf16.xpose.msra.mxu0 0
    %1866 = vmatprep.subr.bf16.mxu0 0
    %1867 = vmatpush1.bf16.xpose.msra.mxu0 0
    %1868 = vmatprep.subr.bf16.mxu0 0
    %1869 = vmatpush1.bf16.xpose.msra.mxu0 0
    %1870 = vmatprep.mubr.bf16.mxu0 0
    %1871 = vmatmul.mubr.bf16.gmra.mrb[0].mxu0 %v1833
    %v1872 = vpop.f32.mrb[0].mxu0
    %v1873 = vadd.f32 %v452, %v1872
    %v1874 = vpop.f32.mrb[0].mxu0
    %v1875 = vpop.f32.mrb[0].mxu0
    %v1876 = vpop.f32.mrb[0].mxu0
    %1877 = vdwg.mxu0
    %1879 = vrot.lane.b32.xlu0 %v1822, 96
    %v1880 = vpop.permute.xlu0 %1879
    %v1882 = vsel %vm579, %v1822, 0
    %v1885 = vsel %vm579, %v1880, 0
    %1887 = vmatprep.subr.bf16.mxu0 0
    %1888 = vmatpush1.bf16.xpose.msra.mxu0 %v1885
    %1889 = vmatprep.subr.bf16.mxu0 0
    %1890 = vmatpush1.bf16.xpose.msra.mxu0 0
    %1891 = vmatprep.subr.bf16.mxu0 0
    %1892 = vmatpush1.bf16.xpose.msra.mxu0 0
    %1893 = vmatprep.subr.bf16.mxu0 0
    %1894 = vmatpush1.bf16.xpose.msra.mxu0 0
    %1895 = vmatprep.subr.bf16.mxu0 0
    %1896 = vmatpush1.bf16.xpose.msra.mxu0 0
    %1897 = vmatprep.subr.bf16.mxu0 0
    %1898 = vmatpush1.bf16.xpose.msra.mxu0 0
    %1899 = vmatprep.subr.bf16.mxu0 0
    %1900 = vmatpush1.bf16.xpose.msra.mxu0 0
    %1901 = vmatprep.subr.bf16.mxu0 0
    %1902 = vmatpush1.bf16.xpose.msra.mxu0 0
    %1903 = vmatprep.subr.bf16.mxu0 0
    %1904 = vmatpush1.bf16.xpose.msra.mxu0 0
    %1905 = vmatprep.subr.bf16.mxu0 0
    %1906 = vmatpush1.bf16.xpose.msra.mxu0 0
    %1907 = vmatprep.subr.bf16.mxu0 0
    %1908 = vmatpush1.bf16.xpose.msra.mxu0 0
    %1909 = vmatprep.subr.bf16.mxu0 0
    %1910 = vmatpush1.bf16.xpose.msra.mxu0 0
    %1911 = vmatprep.subr.bf16.mxu0 0
    %1912 = vmatpush1.bf16.xpose.msra.mxu0 0
    %1913 = vmatprep.subr.bf16.mxu0 0
    %1914 = vmatpush1.bf16.xpose.msra.mxu0 0
    %1915 = vmatprep.subr.bf16.mxu0 0
    %1916 = vmatpush1.bf16.xpose.msra.mxu0 0
    %1917 = vmatprep.subr.bf16.mxu0 0
    %1918 = vmatpush1.bf16.xpose.msra.mxu0 0
    %1919 = vmatprep.mubr.bf16.mxu0 0
    %1920 = vmatmul.mubr.bf16.gmra.mrb[0].mxu0 %v1882
    %v1921 = vpop.f32.mrb[0].mxu0
    %v1922 = vadd.f32 %v453, %v1921
    %v1923 = vpop.f32.mrb[0].mxu0
    %v1924 = vpop.f32.mrb[0].mxu0
    %v1925 = vpop.f32.mrb[0].mxu0
    %1926 = vdwg.mxu0
    %1928 = vrot.lane.b32.xlu0 %v1823, 96
    %v1929 = vpop.permute.xlu0 %1928
    %v1931 = vsel %vm579, %v1823, 0
    %v1934 = vsel %vm579, %v1929, 0
    %1936 = vmatprep.subr.bf16.mxu0 0
    %1937 = vmatpush1.bf16.xpose.msra.mxu0 %v1934
    %1938 = vmatprep.subr.bf16.mxu0 0
    %1939 = vmatpush1.bf16.xpose.msra.mxu0 0
    %1940 = vmatprep.subr.bf16.mxu0 0
    %1941 = vmatpush1.bf16.xpose.msra.mxu0 0
    %1942 = vmatprep.subr.bf16.mxu0 0
    %1943 = vmatpush1.bf16.xpose.msra.mxu0 0
    %1944 = vmatprep.subr.bf16.mxu0 0
    %1945 = vmatpush1.bf16.xpose.msra.mxu0 0
    %1946 = vmatprep.subr.bf16.mxu0 0
    %1947 = vmatpush1.bf16.xpose.msra.mxu0 0
    %1948 = vmatprep.subr.bf16.mxu0 0
    %1949 = vmatpush1.bf16.xpose.msra.mxu0 0
    %1950 = vmatprep.subr.bf16.mxu0 0
    %1951 = vmatpush1.bf16.xpose.msra.mxu0 0
    %1952 = vmatprep.subr.bf16.mxu0 0
    %1953 = vmatpush1.bf16.xpose.msra.mxu0 0
    %1954 = vmatprep.subr.bf16.mxu0 0
    %1955 = vmatpush1.bf16.xpose.msra.mxu0 0
    %1956 = vmatprep.subr.bf16.mxu0 0
    %1957 = vmatpush1.bf16.xpose.msra.mxu0 0
    %1958 = vmatprep.subr.bf16.mxu0 0
    %1959 = vmatpush1.bf16.xpose.msra.mxu0 0
    %1960 = vmatprep.subr.bf16.mxu0 0
    %1961 = vmatpush1.bf16.xpose.msra.mxu0 0
    %1962 = vmatprep.subr.bf16.mxu0 0
    %1963 = vmatpush1.bf16.xpose.msra.mxu0 0
    %1964 = vmatprep.subr.bf16.mxu0 0
    %1965 = vmatpush1.bf16.xpose.msra.mxu0 0
    %1966 = vmatprep.subr.bf16.mxu0 0
    %1967 = vmatpush1.bf16.xpose.msra.mxu0 0
    %1968 = vmatprep.mubr.bf16.mxu0 0
    %1969 = vmatmul.mubr.bf16.gmra.mrb[0].mxu0 %v1931
    %v1970 = vpop.f32.mrb[0].mxu0
    %v1971 = vadd.f32 %v454, %v1970
    %v1972 = vpop.f32.mrb[0].mxu0
    %v1973 = vpop.f32.mrb[0].mxu0
    %v1974 = vpop.f32.mrb[0].mxu0
    %1975 = vdwg.mxu0
    %1977 = vrot.lane.b32.xlu0 %v1824, 96
    %v1978 = vpop.permute.xlu0 %1977
    %v1980 = vsel %vm579, %v1824, 0
    %v1983 = vsel %vm579, %v1978, 0
    %1985 = vmatprep.subr.bf16.mxu0 0
    %1986 = vmatpush1.bf16.xpose.msra.mxu0 %v1983
    %1987 = vmatprep.subr.bf16.mxu0 0
    %1988 = vmatpush1.bf16.xpose.msra.mxu0 0
    %1989 = vmatprep.subr.bf16.mxu0 0
    %1990 = vmatpush1.bf16.xpose.msra.mxu0 0
    %1991 = vmatprep.subr.bf16.mxu0 0
    %1992 = vmatpush1.bf16.xpose.msra.mxu0 0
    %1993 = vmatprep.subr.bf16.mxu0 0
    %1994 = vmatpush1.bf16.xpose.msra.mxu0 0
    %1995 = vmatprep.subr.bf16.mxu0 0
    %1996 = vmatpush1.bf16.xpose.msra.mxu0 0
    %1997 = vmatprep.subr.bf16.mxu0 0
    %1998 = vmatpush1.bf16.xpose.msra.mxu0 0
    %1999 = vmatprep.subr.bf16.mxu0 0
    %2000 = vmatpush1.bf16.xpose.msra.mxu0 0
    %2001 = vmatprep.subr.bf16.mxu0 0
    %2002 = vmatpush1.bf16.xpose.msra.mxu0 0
    %2003 = vmatprep.subr.bf16.mxu0 0
    %2004 = vmatpush1.bf16.xpose.msra.mxu0 0
    %2005 = vmatprep.subr.bf16.mxu0 0
    %2006 = vmatpush1.bf16.xpose.msra.mxu0 0
    %2007 = vmatprep.subr.bf16.mxu0 0
    %2008 = vmatpush1.bf16.xpose.msra.mxu0 0
    %2009 = vmatprep.subr.bf16.mxu0 0
    %2010 = vmatpush1.bf16.xpose.msra.mxu0 0
    %2011 = vmatprep.subr.bf16.mxu0 0
    %2012 = vmatpush1.bf16.xpose.msra.mxu0 0
    %2013 = vmatprep.subr.bf16.mxu0 0
    %2014 = vmatpush1.bf16.xpose.msra.mxu0 0
    %2015 = vmatprep.subr.bf16.mxu0 0
    %2016 = vmatpush1.bf16.xpose.msra.mxu0 0
    %2017 = vmatprep.mubr.bf16.mxu0 0
    %2018 = vmatmul.mubr.bf16.gmra.mrb[0].mxu0 %v1980
    %v2019 = vpop.f32.mrb[0].mxu0
    %v2020 = vadd.f32 %v455, %v2019
    %v2021 = vpop.f32.mrb[0].mxu0
    %v2022 = vpop.f32.mrb[0].mxu0
    %v2023 = vpop.f32.mrb[0].mxu0
    %2024 = vdwg.mxu0
    %2026 = vrot.lane.b32.xlu0 %v1825, 96
    %v2027 = vpop.permute.xlu0 %2026
    %v2029 = vsel %vm579, %v1825, 0
    %v2032 = vsel %vm579, %v2027, 0
    %2034 = vmatprep.subr.bf16.mxu0 0
    %2035 = vmatpush1.bf16.xpose.msra.mxu0 %v2032
    %2036 = vmatprep.subr.bf16.mxu0 0
    %2037 = vmatpush1.bf16.xpose.msra.mxu0 0
    %2038 = vmatprep.subr.bf16.mxu0 0
    %2039 = vmatpush1.bf16.xpose.msra.mxu0 0
    %2040 = vmatprep.subr.bf16.mxu0 0
    %2041 = vmatpush1.bf16.xpose.msra.mxu0 0
    %2042 = vmatprep.subr.bf16.mxu0 0
    %2043 = vmatpush1.bf16.xpose.msra.mxu0 0
    %2044 = vmatprep.subr.bf16.mxu0 0
    %2045 = vmatpush1.bf16.xpose.msra.mxu0 0
    %2046 = vmatprep.subr.bf16.mxu0 0
    %2047 = vmatpush1.bf16.xpose.msra.mxu0 0
    %2048 = vmatprep.subr.bf16.mxu0 0
    %2049 = vmatpush1.bf16.xpose.msra.mxu0 0
    %2050 = vmatprep.subr.bf16.mxu0 0
    %2051 = vmatpush1.bf16.xpose.msra.mxu0 0
    %2052 = vmatprep.subr.bf16.mxu0 0
    %2053 = vmatpush1.bf16.xpose.msra.mxu0 0
    %2054 = vmatprep.subr.bf16.mxu0 0
    %2055 = vmatpush1.bf16.xpose.msra.mxu0 0
    %2056 = vmatprep.subr.bf16.mxu0 0
    %2057 = vmatpush1.bf16.xpose.msra.mxu0 0
    %2058 = vmatprep.subr.bf16.mxu0 0
    %2059 = vmatpush1.bf16.xpose.msra.mxu0 0
    %2060 = vmatprep.subr.bf16.mxu0 0
    %2061 = vmatpush1.bf16.xpose.msra.mxu0 0
    %2062 = vmatprep.subr.bf16.mxu0 0
    %2063 = vmatpush1.bf16.xpose.msra.mxu0 0
    %2064 = vmatprep.subr.bf16.mxu0 0
    %2065 = vmatpush1.bf16.xpose.msra.mxu0 0
    %2066 = vmatprep.mubr.bf16.mxu0 0
    %2067 = vmatmul.mubr.bf16.gmra.mrb[0].mxu0 %v2029
    %v2068 = vpop.f32.mrb[0].mxu0
    %v2069 = vadd.f32 %v456, %v2068
    %v2070 = vpop.f32.mrb[0].mxu0
    %v2071 = vpop.f32.mrb[0].mxu0
    %v2072 = vpop.f32.mrb[0].mxu0
    %2073 = vdwg.mxu0
    %2075 = vrot.lane.b32.xlu0 %v1826, 96
    %v2076 = vpop.permute.xlu0 %2075
    %v2078 = vsel %vm579, %v1826, 0
    %v2081 = vsel %vm579, %v2076, 0
    %2083 = vmatprep.subr.bf16.mxu0 0
    %2084 = vmatpush1.bf16.xpose.msra.mxu0 %v2081
    %2085 = vmatprep.subr.bf16.mxu0 0
    %2086 = vmatpush1.bf16.xpose.msra.mxu0 0
    %2087 = vmatprep.subr.bf16.mxu0 0
    %2088 = vmatpush1.bf16.xpose.msra.mxu0 0
    %2089 = vmatprep.subr.bf16.mxu0 0
    %2090 = vmatpush1.bf16.xpose.msra.mxu0 0
    %2091 = vmatprep.subr.bf16.mxu0 0
    %2092 = vmatpush1.bf16.xpose.msra.mxu0 0
    %2093 = vmatprep.subr.bf16.mxu0 0
    %2094 = vmatpush1.bf16.xpose.msra.mxu0 0
    %2095 = vmatprep.subr.bf16.mxu0 0
    %2096 = vmatpush1.bf16.xpose.msra.mxu0 0
    %2097 = vmatprep.subr.bf16.mxu0 0
    %2098 = vmatpush1.bf16.xpose.msra.mxu0 0
    %2099 = vmatprep.subr.bf16.mxu0 0
    %2100 = vmatpush1.bf16.xpose.msra.mxu0 0
    %2101 = vmatprep.subr.bf16.mxu0 0
    %2102 = vmatpush1.bf16.xpose.msra.mxu0 0
    %2103 = vmatprep.subr.bf16.mxu0 0
    %2104 = vmatpush1.bf16.xpose.msra.mxu0 0
    %2105 = vmatprep.subr.bf16.mxu0 0
    %2106 = vmatpush1.bf16.xpose.msra.mxu0 0
    %2107 = vmatprep.subr.bf16.mxu0 0
    %2108 = vmatpush1.bf16.xpose.msra.mxu0 0
    %2109 = vmatprep.subr.bf16.mxu0 0
    %2110 = vmatpush1.bf16.xpose.msra.mxu0 0
    %2111 = vmatprep.subr.bf16.mxu0 0
    %2112 = vmatpush1.bf16.xpose.msra.mxu0 0
    %2113 = vmatprep.subr.bf16.mxu0 0
    %2114 = vmatpush1.bf16.xpose.msra.mxu0 0
    %2115 = vmatprep.mubr.bf16.mxu0 0
    %2116 = vmatmul.mubr.bf16.gmra.mrb[0].mxu0 %v2078
    %v2117 = vpop.f32.mrb[0].mxu0
    %v2118 = vadd.f32 %v457, %v2117
    %v2119 = vpop.f32.mrb[0].mxu0
    %v2120 = vpop.f32.mrb[0].mxu0
    %v2121 = vpop.f32.mrb[0].mxu0
    %2122 = vdwg.mxu0
    %2124 = vrot.lane.b32.xlu0 %v1827, 96
    %v2125 = vpop.permute.xlu0 %2124
    %v2127 = vsel %vm579, %v1827, 0
    %v2130 = vsel %vm579, %v2125, 0
    %2132 = vmatprep.subr.bf16.mxu0 0
    %2133 = vmatpush1.bf16.xpose.msra.mxu0 %v2130
    %2134 = vmatprep.subr.bf16.mxu0 0
    %2135 = vmatpush1.bf16.xpose.msra.mxu0 0
    %2136 = vmatprep.subr.bf16.mxu0 0
    %2137 = vmatpush1.bf16.xpose.msra.mxu0 0
    %2138 = vmatprep.subr.bf16.mxu0 0
    %2139 = vmatpush1.bf16.xpose.msra.mxu0 0
    %2140 = vmatprep.subr.bf16.mxu0 0
    %2141 = vmatpush1.bf16.xpose.msra.mxu0 0
    %2142 = vmatprep.subr.bf16.mxu0 0
    %2143 = vmatpush1.bf16.xpose.msra.mxu0 0
    %2144 = vmatprep.subr.bf16.mxu0 0
    %2145 = vmatpush1.bf16.xpose.msra.mxu0 0
    %2146 = vmatprep.subr.bf16.mxu0 0
    %2147 = vmatpush1.bf16.xpose.msra.mxu0 0
    %2148 = vmatprep.subr.bf16.mxu0 0
    %2149 = vmatpush1.bf16.xpose.msra.mxu0 0
    %2150 = vmatprep.subr.bf16.mxu0 0
    %2151 = vmatpush1.bf16.xpose.msra.mxu0 0
    %2152 = vmatprep.subr.bf16.mxu0 0
    %2153 = vmatpush1.bf16.xpose.msra.mxu0 0
    %2154 = vmatprep.subr.bf16.mxu0 0
    %2155 = vmatpush1.bf16.xpose.msra.mxu0 0
    %2156 = vmatprep.subr.bf16.mxu0 0
    %2157 = vmatpush1.bf16.xpose.msra.mxu0 0
    %2158 = vmatprep.subr.bf16.mxu0 0
    %2159 = vmatpush1.bf16.xpose.msra.mxu0 0
    %2160 = vmatprep.subr.bf16.mxu0 0
    %2161 = vmatpush1.bf16.xpose.msra.mxu0 0
    %2162 = vmatprep.subr.bf16.mxu0 0
    %2163 = vmatpush1.bf16.xpose.msra.mxu0 0
    %2164 = vmatprep.mubr.bf16.mxu0 0
    %2165 = vmatmul.mubr.bf16.gmra.mrb[0].mxu0 %v2127
    %v2166 = vpop.f32.mrb[0].mxu0
    %v2167 = vadd.f32 %v458, %v2166
    %v2168 = vpop.f32.mrb[0].mxu0
    %v2169 = vpop.f32.mrb[0].mxu0
    %v2170 = vpop.f32.mrb[0].mxu0
    %2171 = vdwg.mxu0
    %2173 = vrot.lane.b32.xlu0 %v1828, 96
    %v2174 = vpop.permute.xlu0 %2173
    %v2176 = vsel %vm579, %v1828, 0
    %v2179 = vsel %vm579, %v2174, 0
    %2181 = vmatprep.subr.bf16.mxu0 0
    %2182 = vmatpush1.bf16.xpose.msra.mxu0 %v2179
    %2183 = vmatprep.subr.bf16.mxu0 0
    %2184 = vmatpush1.bf16.xpose.msra.mxu0 0
    %2185 = vmatprep.subr.bf16.mxu0 0
    %2186 = vmatpush1.bf16.xpose.msra.mxu0 0
    %2187 = vmatprep.subr.bf16.mxu0 0
    %2188 = vmatpush1.bf16.xpose.msra.mxu0 0
    %2189 = vmatprep.subr.bf16.mxu0 0
    %2190 = vmatpush1.bf16.xpose.msra.mxu0 0
    %2191 = vmatprep.subr.bf16.mxu0 0
    %2192 = vmatpush1.bf16.xpose.msra.mxu0 0
    %2193 = vmatprep.subr.bf16.mxu0 0
    %2194 = vmatpush1.bf16.xpose.msra.mxu0 0
    %2195 = vmatprep.subr.bf16.mxu0 0
    %2196 = vmatpush1.bf16.xpose.msra.mxu0 0
    %2197 = vmatprep.subr.bf16.mxu0 0
    %2198 = vmatpush1.bf16.xpose.msra.mxu0 0
    %2199 = vmatprep.subr.bf16.mxu0 0
    %2200 = vmatpush1.bf16.xpose.msra.mxu0 0
    %2201 = vmatprep.subr.bf16.mxu0 0
    %2202 = vmatpush1.bf16.xpose.msra.mxu0 0
    %2203 = vmatprep.subr.bf16.mxu0 0
    %2204 = vmatpush1.bf16.xpose.msra.mxu0 0
    %2205 = vmatprep.subr.bf16.mxu0 0
    %2206 = vmatpush1.bf16.xpose.msra.mxu0 0
    %2207 = vmatprep.subr.bf16.mxu0 0
    %2208 = vmatpush1.bf16.xpose.msra.mxu0 0
    %2209 = vmatprep.subr.bf16.mxu0 0
    %2210 = vmatpush1.bf16.xpose.msra.mxu0 0
    %2211 = vmatprep.subr.bf16.mxu0 0
    %2212 = vmatpush1.bf16.xpose.msra.mxu0 0
    %2213 = vmatprep.mubr.bf16.mxu0 0
    %2214 = vmatmul.mubr.bf16.gmra.mrb[0].mxu0 %v2176
    %v2215 = vpop.f32.mrb[0].mxu0
    %v2216 = vadd.f32 %v459, %v2215
    %v2217 = vpop.f32.mrb[0].mxu0
    %v2218 = vpop.f32.mrb[0].mxu0
    %v2219 = vpop.f32.mrb[0].mxu0
    %2220 = vdwg.mxu0
    %v2221 = vsel %vm579, %v1873, -inf
    %2222 = vmax.xlane.f32.xlu0 %v2221
    %v2223 = vpop.xlane.xlu0 %2222
    %v2224 = vsel %vm579, %v1922, -inf
    %2225 = vmax.xlane.f32.xlu0 %v2224
    %v2226 = vpop.xlane.xlu0 %2225
    %v2227 = vsel %vm579, %v1971, -inf
    %2228 = vmax.xlane.f32.xlu0 %v2227
    %v2229 = vpop.xlane.xlu0 %2228
    %v2230 = vsel %vm579, %v2020, -inf
    %2231 = vmax.xlane.f32.xlu0 %v2230
    %v2232 = vpop.xlane.xlu0 %2231
    %v2233 = vsel %vm579, %v2069, -inf
    %2234 = vmax.xlane.f32.xlu0 %v2233
    %v2235 = vpop.xlane.xlu0 %2234
    %v2236 = vsel %vm579, %v2118, -inf
    %2237 = vmax.xlane.f32.xlu0 %v2236
    %v2238 = vpop.xlane.xlu0 %2237
    %v2239 = vsel %vm579, %v2167, -inf
    %2240 = vmax.xlane.f32.xlu0 %v2239
    %v2241 = vpop.xlane.xlu0 %2240
    %v2242 = vsel %vm579, %v2216, -inf
    %2243 = vmax.xlane.f32.xlu0 %v2242
    %v2244 = vpop.xlane.xlu0 %2243
    %v2245 = vsub.f32 %v1873, %v2223
    %v2246 = vsub.f32 %v1922, %v2226
    %v2247 = vsub.f32 %v1971, %v2229
    %v2248 = vsub.f32 %v2020, %v2232
    %v2249 = vsub.f32 %v2069, %v2235
    %v2250 = vsub.f32 %v2118, %v2238
    %v2251 = vsub.f32 %v2167, %v2241
    %v2252 = vsub.f32 %v2216, %v2244
    %v2253 = vmul.f32 %v2245, 1.442695
    %v2254 = vpow.pop %v2253
    %v2255 = vmul.f32 %v2246, 1.442695
    %v2256 = vpow.pop %v2255
    %v2257 = vmul.f32 %v2247, 1.442695
    %v2258 = vpow.pop %v2257
    %v2259 = vmul.f32 %v2248, 1.442695
    %v2260 = vpow.pop %v2259
    %v2261 = vmul.f32 %v2249, 1.442695
    %v2262 = vpow.pop %v2261
    %v2263 = vmul.f32 %v2250, 1.442695
    %v2264 = vpow.pop %v2263
    %v2265 = vmul.f32 %v2251, 1.442695
    %v2266 = vpow.pop %v2265
    %v2267 = vmul.f32 %v2252, 1.442695
    %v2268 = vpow.pop %v2267
    %v2269 = vsel %vm579, %v2254, 0.0
    %2270 = vadd.xlane.f32.xlu0 %v2269
    %v2271 = vpop.xlane.xlu0 %2270
    %v2272 = vsel %vm579, %v2256, 0.0
    %2273 = vadd.xlane.f32.xlu0 %v2272
    %v2274 = vpop.xlane.xlu0 %2273
    %v2275 = vsel %vm579, %v2258, 0.0
    %2276 = vadd.xlane.f32.xlu0 %v2275
    %v2277 = vpop.xlane.xlu0 %2276
    %v2278 = vsel %vm579, %v2260, 0.0
    %2279 = vadd.xlane.f32.xlu0 %v2278
    %v2280 = vpop.xlane.xlu0 %2279
    %v2281 = vsel %vm579, %v2262, 0.0
    %2282 = vadd.xlane.f32.xlu0 %v2281
    %v2283 = vpop.xlane.xlu0 %2282
    %v2284 = vsel %vm579, %v2264, 0.0
    %2285 = vadd.xlane.f32.xlu0 %v2284
    %v2286 = vpop.xlane.xlu0 %2285
    %v2287 = vsel %vm579, %v2266, 0.0
    %2288 = vadd.xlane.f32.xlu0 %v2287
    %v2289 = vpop.xlane.xlu0 %2288
    %v2290 = vsel %vm579, %v2268, 0.0
    %2291 = vadd.xlane.f32.xlu0 %v2290
    %v2292 = vpop.xlane.xlu0 %2291
    %v2293 = vrcp.pop %v2271
    %v2294 = vrcp.pop %v2274
    %v2295 = vrcp.pop %v2277
    %v2296 = vrcp.pop %v2280
    %v2297 = vrcp.pop %v2283
    %v2298 = vrcp.pop %v2286
    %v2299 = vrcp.pop %v2289
    %v2300 = vrcp.pop %v2292
    %v2301 = vmul.f32 %v2254, %v2293
    %v2302 = vmul.f32 %v2256, %v2294
    %v2303 = vmul.f32 %v2258, %v2295
    %v2304 = vmul.f32 %v2260, %v2296
    %v2305 = vmul.f32 %v2262, %v2297
    %v2306 = vmul.f32 %v2264, %v2298
    %v2307 = vmul.f32 %v2266, %v2299
    %v2308 = vmul.f32 %v2268, %v2300
    %v2309 = vpack.c.bf16 %v2301, %v2301
    %v2310 = vpack.c.bf16 %v2302, %v2302
    %v2311 = vpack.c.bf16 %v2303, %v2303
    %v2312 = vpack.c.bf16 %v2304, %v2304
    %v2313 = vpack.c.bf16 %v2305, %v2305
    %v2314 = vpack.c.bf16 %v2306, %v2306
    %v2315 = vpack.c.bf16 %v2307, %v2307
    %v2316 = vpack.c.bf16 %v2308, %v2308
    %2317 = vrot.lane.b32.xlu0 %v1821, 64
    %v2318 = vpop.permute.xlu0 %2317
    %v2320 = vsel %vm579, %v2309, 0
    %v2323 = vsel %vm1070, %v2318, 0
    %2325 = vmatprep.subr.bf16.mxu0 0
    %2326 = vmatpush1.bf16.msra.mxu0 %v2323
    %2327 = vmatprep.subr.bf16.mxu0 0
    %2328 = vmatpush1.bf16.msra.mxu0 0
    %2329 = vmatprep.subr.bf16.mxu0 0
    %2330 = vmatpush1.bf16.msra.mxu0 0
    %2331 = vmatprep.subr.bf16.mxu0 0
    %2332 = vmatpush1.bf16.msra.mxu0 0
    %2333 = vmatprep.subr.bf16.mxu0 0
    %2334 = vmatpush1.bf16.msra.mxu0 0
    %2335 = vmatprep.subr.bf16.mxu0 0
    %2336 = vmatpush1.bf16.msra.mxu0 0
    %2337 = vmatprep.subr.bf16.mxu0 0
    %2338 = vmatpush1.bf16.msra.mxu0 0
    %2339 = vmatprep.subr.bf16.mxu0 0
    %2340 = vmatpush1.bf16.msra.mxu0 0
    %2341 = vmatprep.subr.bf16.mxu0 0
    %2342 = vmatpush1.bf16.msra.mxu0 0
    %2343 = vmatprep.subr.bf16.mxu0 0
    %2344 = vmatpush1.bf16.msra.mxu0 0
    %2345 = vmatprep.subr.bf16.mxu0 0
    %2346 = vmatpush1.bf16.msra.mxu0 0
    %2347 = vmatprep.subr.bf16.mxu0 0
    %2348 = vmatpush1.bf16.msra.mxu0 0
    %2349 = vmatprep.subr.bf16.mxu0 0
    %2350 = vmatpush1.bf16.msra.mxu0 0
    %2351 = vmatprep.subr.bf16.mxu0 0
    %2352 = vmatpush1.bf16.msra.mxu0 0
    %2353 = vmatprep.subr.bf16.mxu0 0
    %2354 = vmatpush1.bf16.msra.mxu0 0
    %2355 = vmatprep.subr.bf16.mxu0 0
    %2356 = vmatpush1.bf16.msra.mxu0 0
    %2357 = vmatprep.mubr.bf16.mxu0 0
    %2358 = vmatmul.mubr.bf16.gmra.mrb[0].mxu0 %v2320
    %v2359 = vpop.f32.mrb[0].mxu0
    %v2360 = vadd.f32 0.0, %v2359
    %v2361 = vpop.f32.mrb[0].mxu0
    %v2362 = vpop.f32.mrb[0].mxu0
    %v2363 = vpop.f32.mrb[0].mxu0
    %2364 = vdwg.mxu0
    %2365 = vrot.lane.b32.xlu0 %v1822, 64
    %v2366 = vpop.permute.xlu0 %2365
    %v2368 = vsel %vm579, %v2310, 0
    %v2371 = vsel %vm1070, %v2366, 0
    %2373 = vmatprep.subr.bf16.mxu0 0
    %2374 = vmatpush1.bf16.msra.mxu0 %v2371
    %2375 = vmatprep.subr.bf16.mxu0 0
    %2376 = vmatpush1.bf16.msra.mxu0 0
    %2377 = vmatprep.subr.bf16.mxu0 0
    %2378 = vmatpush1.bf16.msra.mxu0 0
    %2379 = vmatprep.subr.bf16.mxu0 0
    %2380 = vmatpush1.bf16.msra.mxu0 0
    %2381 = vmatprep.subr.bf16.mxu0 0
    %2382 = vmatpush1.bf16.msra.mxu0 0
    %2383 = vmatprep.subr.bf16.mxu0 0
    %2384 = vmatpush1.bf16.msra.mxu0 0
    %2385 = vmatprep.subr.bf16.mxu0 0
    %2386 = vmatpush1.bf16.msra.mxu0 0
    %2387 = vmatprep.subr.bf16.mxu0 0
    %2388 = vmatpush1.bf16.msra.mxu0 0
    %2389 = vmatprep.subr.bf16.mxu0 0
    %2390 = vmatpush1.bf16.msra.mxu0 0
    %2391 = vmatprep.subr.bf16.mxu0 0
    %2392 = vmatpush1.bf16.msra.mxu0 0
    %2393 = vmatprep.subr.bf16.mxu0 0
    %2394 = vmatpush1.bf16.msra.mxu0 0
    %2395 = vmatprep.subr.bf16.mxu0 0
    %2396 = vmatpush1.bf16.msra.mxu0 0
    %2397 = vmatprep.subr.bf16.mxu0 0
    %2398 = vmatpush1.bf16.msra.mxu0 0
    %2399 = vmatprep.subr.bf16.mxu0 0
    %2400 = vmatpush1.bf16.msra.mxu0 0
    %2401 = vmatprep.subr.bf16.mxu0 0
    %2402 = vmatpush1.bf16.msra.mxu0 0
    %2403 = vmatprep.subr.bf16.mxu0 0
    %2404 = vmatpush1.bf16.msra.mxu0 0
    %2405 = vmatprep.mubr.bf16.mxu0 0
    %2406 = vmatmul.mubr.bf16.gmra.mrb[0].mxu0 %v2368
    %v2407 = vpop.f32.mrb[0].mxu0
    %v2408 = vadd.f32 0.0, %v2407
    %v2409 = vpop.f32.mrb[0].mxu0
    %v2410 = vpop.f32.mrb[0].mxu0
    %v2411 = vpop.f32.mrb[0].mxu0
    %2412 = vdwg.mxu0
    %2413 = vrot.lane.b32.xlu0 %v1823, 64
    %v2414 = vpop.permute.xlu0 %2413
    %v2416 = vsel %vm579, %v2311, 0
    %v2419 = vsel %vm1070, %v2414, 0
    %2421 = vmatprep.subr.bf16.mxu0 0
    %2422 = vmatpush1.bf16.msra.mxu0 %v2419
    %2423 = vmatprep.subr.bf16.mxu0 0
    %2424 = vmatpush1.bf16.msra.mxu0 0
    %2425 = vmatprep.subr.bf16.mxu0 0
    %2426 = vmatpush1.bf16.msra.mxu0 0
    %2427 = vmatprep.subr.bf16.mxu0 0
    %2428 = vmatpush1.bf16.msra.mxu0 0
    %2429 = vmatprep.subr.bf16.mxu0 0
    %2430 = vmatpush1.bf16.msra.mxu0 0
    %2431 = vmatprep.subr.bf16.mxu0 0
    %2432 = vmatpush1.bf16.msra.mxu0 0
    %2433 = vmatprep.subr.bf16.mxu0 0
    %2434 = vmatpush1.bf16.msra.mxu0 0
    %2435 = vmatprep.subr.bf16.mxu0 0
    %2436 = vmatpush1.bf16.msra.mxu0 0
    %2437 = vmatprep.subr.bf16.mxu0 0
    %2438 = vmatpush1.bf16.msra.mxu0 0
    %2439 = vmatprep.subr.bf16.mxu0 0
    %2440 = vmatpush1.bf16.msra.mxu0 0
    %2441 = vmatprep.subr.bf16.mxu0 0
    %2442 = vmatpush1.bf16.msra.mxu0 0
    %2443 = vmatprep.subr.bf16.mxu0 0
    %2444 = vmatpush1.bf16.msra.mxu0 0
    %2445 = vmatprep.subr.bf16.mxu0 0
    %2446 = vmatpush1.bf16.msra.mxu0 0
    %2447 = vmatprep.subr.bf16.mxu0 0
    %2448 = vmatpush1.bf16.msra.mxu0 0
    %2449 = vmatprep.subr.bf16.mxu0 0
    %2450 = vmatpush1.bf16.msra.mxu0 0
    %2451 = vmatprep.subr.bf16.mxu0 0
    %2452 = vmatpush1.bf16.msra.mxu0 0
    %2453 = vmatprep.mubr.bf16.mxu0 0
    %2454 = vmatmul.mubr.bf16.gmra.mrb[0].mxu0 %v2416
    %v2455 = vpop.f32.mrb[0].mxu0
    %v2456 = vadd.f32 0.0, %v2455
    %v2457 = vpop.f32.mrb[0].mxu0
    %v2458 = vpop.f32.mrb[0].mxu0
    %v2459 = vpop.f32.mrb[0].mxu0
    %2460 = vdwg.mxu0
    %2461 = vrot.lane.b32.xlu0 %v1824, 64
    %v2462 = vpop.permute.xlu0 %2461
    %v2464 = vsel %vm579, %v2312, 0
    %v2467 = vsel %vm1070, %v2462, 0
    %2469 = vmatprep.subr.bf16.mxu0 0
    %2470 = vmatpush1.bf16.msra.mxu0 %v2467
    %2471 = vmatprep.subr.bf16.mxu0 0
    %2472 = vmatpush1.bf16.msra.mxu0 0
    %2473 = vmatprep.subr.bf16.mxu0 0
    %2474 = vmatpush1.bf16.msra.mxu0 0
    %2475 = vmatprep.subr.bf16.mxu0 0
    %2476 = vmatpush1.bf16.msra.mxu0 0
    %2477 = vmatprep.subr.bf16.mxu0 0
    %2478 = vmatpush1.bf16.msra.mxu0 0
    %2479 = vmatprep.subr.bf16.mxu0 0
    %2480 = vmatpush1.bf16.msra.mxu0 0
    %2481 = vmatprep.subr.bf16.mxu0 0
    %2482 = vmatpush1.bf16.msra.mxu0 0
    %2483 = vmatprep.subr.bf16.mxu0 0
    %2484 = vmatpush1.bf16.msra.mxu0 0
    %2485 = vmatprep.subr.bf16.mxu0 0
    %2486 = vmatpush1.bf16.msra.mxu0 0
    %2487 = vmatprep.subr.bf16.mxu0 0
    %2488 = vmatpush1.bf16.msra.mxu0 0
    %2489 = vmatprep.subr.bf16.mxu0 0
    %2490 = vmatpush1.bf16.msra.mxu0 0
    %2491 = vmatprep.subr.bf16.mxu0 0
    %2492 = vmatpush1.bf16.msra.mxu0 0
    %2493 = vmatprep.subr.bf16.mxu0 0
    %2494 = vmatpush1.bf16.msra.mxu0 0
    %2495 = vmatprep.subr.bf16.mxu0 0
    %2496 = vmatpush1.bf16.msra.mxu0 0
    %2497 = vmatprep.subr.bf16.mxu0 0
    %2498 = vmatpush1.bf16.msra.mxu0 0
    %2499 = vmatprep.subr.bf16.mxu0 0
    %2500 = vmatpush1.bf16.msra.mxu0 0
    %2501 = vmatprep.mubr.bf16.mxu0 0
    %2502 = vmatmul.mubr.bf16.gmra.mrb[0].mxu0 %v2464
    %v2503 = vpop.f32.mrb[0].mxu0
    %v2504 = vadd.f32 0.0, %v2503
    %v2505 = vpop.f32.mrb[0].mxu0
    %v2506 = vpop.f32.mrb[0].mxu0
    %v2507 = vpop.f32.mrb[0].mxu0
    %2508 = vdwg.mxu0
    %2509 = vrot.lane.b32.xlu0 %v1825, 64
    %v2510 = vpop.permute.xlu0 %2509
    %v2512 = vsel %vm579, %v2313, 0
    %v2515 = vsel %vm1070, %v2510, 0
    %2517 = vmatprep.subr.bf16.mxu0 0
    %2518 = vmatpush1.bf16.msra.mxu0 %v2515
    %2519 = vmatprep.subr.bf16.mxu0 0
    %2520 = vmatpush1.bf16.msra.mxu0 0
    %2521 = vmatprep.subr.bf16.mxu0 0
    %2522 = vmatpush1.bf16.msra.mxu0 0
    %2523 = vmatprep.subr.bf16.mxu0 0
    %2524 = vmatpush1.bf16.msra.mxu0 0
    %2525 = vmatprep.subr.bf16.mxu0 0
    %2526 = vmatpush1.bf16.msra.mxu0 0
    %2527 = vmatprep.subr.bf16.mxu0 0
    %2528 = vmatpush1.bf16.msra.mxu0 0
    %2529 = vmatprep.subr.bf16.mxu0 0
    %2530 = vmatpush1.bf16.msra.mxu0 0
    %2531 = vmatprep.subr.bf16.mxu0 0
    %2532 = vmatpush1.bf16.msra.mxu0 0
    %2533 = vmatprep.subr.bf16.mxu0 0
    %2534 = vmatpush1.bf16.msra.mxu0 0
    %2535 = vmatprep.subr.bf16.mxu0 0
    %2536 = vmatpush1.bf16.msra.mxu0 0
    %2537 = vmatprep.subr.bf16.mxu0 0
    %2538 = vmatpush1.bf16.msra.mxu0 0
    %2539 = vmatprep.subr.bf16.mxu0 0
    %2540 = vmatpush1.bf16.msra.mxu0 0
    %2541 = vmatprep.subr.bf16.mxu0 0
    %2542 = vmatpush1.bf16.msra.mxu0 0
    %2543 = vmatprep.subr.bf16.mxu0 0
    %2544 = vmatpush1.bf16.msra.mxu0 0
    %2545 = vmatprep.subr.bf16.mxu0 0
    %2546 = vmatpush1.bf16.msra.mxu0 0
    %2547 = vmatprep.subr.bf16.mxu0 0
    %2548 = vmatpush1.bf16.msra.mxu0 0
    %2549 = vmatprep.mubr.bf16.mxu0 0
    %2550 = vmatmul.mubr.bf16.gmra.mrb[0].mxu0 %v2512
    %v2551 = vpop.f32.mrb[0].mxu0
    %v2552 = vadd.f32 0.0, %v2551
    %v2553 = vpop.f32.mrb[0].mxu0
    %v2554 = vpop.f32.mrb[0].mxu0
    %v2555 = vpop.f32.mrb[0].mxu0
    %2556 = vdwg.mxu0
    %2557 = vrot.lane.b32.xlu0 %v1826, 64
    %v2558 = vpop.permute.xlu0 %2557
    %v2560 = vsel %vm579, %v2314, 0
    %v2563 = vsel %vm1070, %v2558, 0
    %2565 = vmatprep.subr.bf16.mxu0 0
    %2566 = vmatpush1.bf16.msra.mxu0 %v2563
    %2567 = vmatprep.subr.bf16.mxu0 0
    %2568 = vmatpush1.bf16.msra.mxu0 0
    %2569 = vmatprep.subr.bf16.mxu0 0
    %2570 = vmatpush1.bf16.msra.mxu0 0
    %2571 = vmatprep.subr.bf16.mxu0 0
    %2572 = vmatpush1.bf16.msra.mxu0 0
    %2573 = vmatprep.subr.bf16.mxu0 0
    %2574 = vmatpush1.bf16.msra.mxu0 0
    %2575 = vmatprep.subr.bf16.mxu0 0
    %2576 = vmatpush1.bf16.msra.mxu0 0
    %2577 = vmatprep.subr.bf16.mxu0 0
    %2578 = vmatpush1.bf16.msra.mxu0 0
    %2579 = vmatprep.subr.bf16.mxu0 0
    %2580 = vmatpush1.bf16.msra.mxu0 0
    %2581 = vmatprep.subr.bf16.mxu0 0
    %2582 = vmatpush1.bf16.msra.mxu0 0
    %2583 = vmatprep.subr.bf16.mxu0 0
    %2584 = vmatpush1.bf16.msra.mxu0 0
    %2585 = vmatprep.subr.bf16.mxu0 0
    %2586 = vmatpush1.bf16.msra.mxu0 0
    %2587 = vmatprep.subr.bf16.mxu0 0
    %2588 = vmatpush1.bf16.msra.mxu0 0
    %2589 = vmatprep.subr.bf16.mxu0 0
    %2590 = vmatpush1.bf16.msra.mxu0 0
    %2591 = vmatprep.subr.bf16.mxu0 0
    %2592 = vmatpush1.bf16.msra.mxu0 0
    %2593 = vmatprep.subr.bf16.mxu0 0
    %2594 = vmatpush1.bf16.msra.mxu0 0
    %2595 = vmatprep.subr.bf16.mxu0 0
    %2596 = vmatpush1.bf16.msra.mxu0 0
    %2597 = vmatprep.mubr.bf16.mxu0 0
    %2598 = vmatmul.mubr.bf16.gmra.mrb[0].mxu0 %v2560
    %v2599 = vpop.f32.mrb[0].mxu0
    %v2600 = vadd.f32 0.0, %v2599
    %v2601 = vpop.f32.mrb[0].mxu0
    %v2602 = vpop.f32.mrb[0].mxu0
    %v2603 = vpop.f32.mrb[0].mxu0
    %2604 = vdwg.mxu0
    %2605 = vrot.lane.b32.xlu0 %v1827, 64
    %v2606 = vpop.permute.xlu0 %2605
    %v2608 = vsel %vm579, %v2315, 0
    %v2611 = vsel %vm1070, %v2606, 0
    %2613 = vmatprep.subr.bf16.mxu0 0
    %2614 = vmatpush1.bf16.msra.mxu0 %v2611
    %2615 = vmatprep.subr.bf16.mxu0 0
    %2616 = vmatpush1.bf16.msra.mxu0 0
    %2617 = vmatprep.subr.bf16.mxu0 0
    %2618 = vmatpush1.bf16.msra.mxu0 0
    %2619 = vmatprep.subr.bf16.mxu0 0
    %2620 = vmatpush1.bf16.msra.mxu0 0
    %2621 = vmatprep.subr.bf16.mxu0 0
    %2622 = vmatpush1.bf16.msra.mxu0 0
    %2623 = vmatprep.subr.bf16.mxu0 0
    %2624 = vmatpush1.bf16.msra.mxu0 0
    %2625 = vmatprep.subr.bf16.mxu0 0
    %2626 = vmatpush1.bf16.msra.mxu0 0
    %2627 = vmatprep.subr.bf16.mxu0 0
    %2628 = vmatpush1.bf16.msra.mxu0 0
    %2629 = vmatprep.subr.bf16.mxu0 0
    %2630 = vmatpush1.bf16.msra.mxu0 0
    %2631 = vmatprep.subr.bf16.mxu0 0
    %2632 = vmatpush1.bf16.msra.mxu0 0
    %2633 = vmatprep.subr.bf16.mxu0 0
    %2634 = vmatpush1.bf16.msra.mxu0 0
    %2635 = vmatprep.subr.bf16.mxu0 0
    %2636 = vmatpush1.bf16.msra.mxu0 0
    %2637 = vmatprep.subr.bf16.mxu0 0
    %2638 = vmatpush1.bf16.msra.mxu0 0
    %2639 = vmatprep.subr.bf16.mxu0 0
    %2640 = vmatpush1.bf16.msra.mxu0 0
    %2641 = vmatprep.subr.bf16.mxu0 0
    %2642 = vmatpush1.bf16.msra.mxu0 0
    %2643 = vmatprep.subr.bf16.mxu0 0
    %2644 = vmatpush1.bf16.msra.mxu0 0
    %2645 = vmatprep.mubr.bf16.mxu0 0
    %2646 = vmatmul.mubr.bf16.gmra.mrb[0].mxu0 %v2608
    %v2647 = vpop.f32.mrb[0].mxu0
    %v2648 = vadd.f32 0.0, %v2647
    %v2649 = vpop.f32.mrb[0].mxu0
    %v2650 = vpop.f32.mrb[0].mxu0
    %v2651 = vpop.f32.mrb[0].mxu0
    %2652 = vdwg.mxu0
    %2653 = vrot.lane.b32.xlu0 %v1828, 64
    %v2654 = vpop.permute.xlu0 %2653
    %v2656 = vsel %vm579, %v2316, 0
    %v2659 = vsel %vm1070, %v2654, 0
    %2661 = vmatprep.subr.bf16.mxu0 0
    %2662 = vmatpush1.bf16.msra.mxu0 %v2659
    %2663 = vmatprep.subr.bf16.mxu0 0
    %2664 = vmatpush1.bf16.msra.mxu0 0
    %2665 = vmatprep.subr.bf16.mxu0 0
    %2666 = vmatpush1.bf16.msra.mxu0 0
    %2667 = vmatprep.subr.bf16.mxu0 0
    %2668 = vmatpush1.bf16.msra.mxu0 0
    %2669 = vmatprep.subr.bf16.mxu0 0
    %2670 = vmatpush1.bf16.msra.mxu0 0
    %2671 = vmatprep.subr.bf16.mxu0 0
    %2672 = vmatpush1.bf16.msra.mxu0 0
    %2673 = vmatprep.subr.bf16.mxu0 0
    %2674 = vmatpush1.bf16.msra.mxu0 0
    %2675 = vmatprep.subr.bf16.mxu0 0
    %2676 = vmatpush1.bf16.msra.mxu0 0
    %2677 = vmatprep.subr.bf16.mxu0 0
    %2678 = vmatpush1.bf16.msra.mxu0 0
    %2679 = vmatprep.subr.bf16.mxu0 0
    %2680 = vmatpush1.bf16.msra.mxu0 0
    %2681 = vmatprep.subr.bf16.mxu0 0
    %2682 = vmatpush1.bf16.msra.mxu0 0
    %2683 = vmatprep.subr.bf16.mxu0 0
    %2684 = vmatpush1.bf16.msra.mxu0 0
    %2685 = vmatprep.subr.bf16.mxu0 0
    %2686 = vmatpush1.bf16.msra.mxu0 0
    %2687 = vmatprep.subr.bf16.mxu0 0
    %2688 = vmatpush1.bf16.msra.mxu0 0
    %2689 = vmatprep.subr.bf16.mxu0 0
    %2690 = vmatpush1.bf16.msra.mxu0 0
    %2691 = vmatprep.subr.bf16.mxu0 0
    %2692 = vmatpush1.bf16.msra.mxu0 0
    %2693 = vmatprep.mubr.bf16.mxu0 0
    %2694 = vmatmul.mubr.bf16.gmra.mrb[0].mxu0 %v2656
    %v2695 = vpop.f32.mrb[0].mxu0
    %v2696 = vadd.f32 0.0, %v2695
    %v2697 = vpop.f32.mrb[0].mxu0
    %v2698 = vpop.f32.mrb[0].mxu0
    %v2699 = vpop.f32.mrb[0].mxu0
    %2700 = vdwg.mxu0
    %2703 = vrot.lane.b32.xlu0 %v2456, 8
    %v2704 = vpop.permute.xlu0 %2703
    %2705 = vrot.lane.b32.xlu0 %v2504, 8
    %v2706 = vpop.permute.xlu0 %2705
    %2711 = vrot.lane.b32.xlu0 %v2552, 16
    %v2712 = vpop.permute.xlu0 %2711
    %2713 = vrot.lane.b32.xlu0 %v2600, 16
    %v2714 = vpop.permute.xlu0 %2713
    %2719 = vrot.lane.b32.xlu0 %v2648, 24
    %v2720 = vpop.permute.xlu0 %2719
    %2721 = vrot.lane.b32.xlu0 %v2696, 24
    %v2722 = vpop.permute.xlu0 %2721
    %v2725 = vsel %vm579, %v2360, %v2704
    %v2726 = vsel %vm579, %v2408, %v2706
    %v2727 = vsel %vm1476, %v2725, %v2712
    %v2728 = vsel %vm1476, %v2726, %v2714
    %v2729 = vsel %vm1479, %v2727, %v2720
    %v2730 = vsel %vm1479, %v2728, %v2722
    %s2731 = scalar_lea.vmem [#allocation10], 16
    %v2732 = vld [vmem:[%s2731] sm:$0xf]
    %v2733 = vld [vmem:[%s2731 + $0x4] sm:$0xf]
    %v2734 = vld [vmem:[%s2731 + $0x8] sm:$0xf]
    %v2735 = vld [vmem:[%s2731 + $0xc] sm:$0xf]
    %v2736 = vpack.c.bf16 %v2730, %v2729
    %v2741 = vunpack.c.l.b16 %v2732
    %v2742 = vunpack.c.l.b16 %v2733
    %v2743 = vunpack.c.l.b16 %v2734
    %v2744 = vunpack.c.l.b16 %v2735
    %v2745 = vpack.c.b16 %v2742, %v2741
    %v2746 = vpack.c.b16 %v2744, %v2743
    %v2750 = vsel %vm463, %v2736, 0
    %2752 = vmatprep.subr.bf16.mxu0 0
    %2753 = vmatpush1.bf16.msra.mxu0 %v2745
    %2754 = vmatprep.subr.bf16.mxu0 0
    %2755 = vmatpush1.bf16.msra.mxu0 %v2746
    %2756 = vmatprep.subr.bf16.mxu0 0
    %2757 = vmatpush1.bf16.msra.mxu0 0
    %2758 = vmatprep.subr.bf16.mxu0 0
    %2759 = vmatpush1.bf16.msra.mxu0 0
    %2760 = vmatprep.subr.bf16.mxu0 0
    %2761 = vmatpush1.bf16.msra.mxu0 0
    %2762 = vmatprep.subr.bf16.mxu0 0
    %2763 = vmatpush1.bf16.msra.mxu0 0
    %2764 = vmatprep.subr.bf16.mxu0 0
    %2765 = vmatpush1.bf16.msra.mxu0 0
    %2766 = vmatprep.subr.bf16.mxu0 0
    %2767 = vmatpush1.bf16.msra.mxu0 0
    %2768 = vmatprep.subr.bf16.mxu0 0
    %2769 = vmatpush1.bf16.msra.mxu0 0
    %2770 = vmatprep.subr.bf16.mxu0 0
    %2771 = vmatpush1.bf16.msra.mxu0 0
    %2772 = vmatprep.subr.bf16.mxu0 0
    %2773 = vmatpush1.bf16.msra.mxu0 0
    %2774 = vmatprep.subr.bf16.mxu0 0
    %2775 = vmatpush1.bf16.msra.mxu0 0
    %2776 = vmatprep.subr.bf16.mxu0 0
    %2777 = vmatpush1.bf16.msra.mxu0 0
    %2778 = vmatprep.subr.bf16.mxu0 0
    %2779 = vmatpush1.bf16.msra.mxu0 0
    %2780 = vmatprep.subr.bf16.mxu0 0
    %2781 = vmatpush1.bf16.msra.mxu0 0
    %2782 = vmatprep.subr.bf16.mxu0 0
    %2783 = vmatpush1.bf16.msra.mxu0 0
    %2784 = vmatprep.mubr.bf16.mxu0 0
    %2785 = vmatmul.mubr.bf16.gmra.mrb[0].mxu0 %v2750
    %v2786 = vpop.f32.mrb[0].mxu0
    %v2787 = vadd.f32 0.0, %v2786
    %v2788 = vpop.f32.mrb[0].mxu0
    %v2789 = vpop.f32.mrb[0].mxu0
    %v2790 = vadd.f32 0.0, %v2789
    %v2791 = vpop.f32.mrb[0].mxu0
    %2792 = vdwg.mxu0
    %v2793 = vadd.f32 %v1711, %v2787
    %v2794 = vadd.f32 %v1712, %v2790
    %s2795 = scalar_lea.vmem [#allocation11], 1
    %v2796 = vld [vmem:[%s2795] sm:$0x1]
    %v2797 = vmul.f32 %v2793, %v2793
    %v2798 = vmul.f32 %v2794, %v2794
    %v2799 = vsel %vm463, %v2797, 0.0
    %2800 = vadd.xlane.f32.xlu0 %v2799
    %v2801 = vpop.xlane.xlu0 %2800
    %v2802 = vsel %vm463, %v2798, 0.0
    %2803 = vadd.xlane.f32.xlu0 %v2802
    %v2804 = vpop.xlane.xlu0 %2803
    %v2805 = vmul.f32 %v2801, %v470
    %v2806 = vmul.f32 %v2804, %v470
    %v2808 = vlaneseq
    %v2809 = vshrl.u32 %v2808, 7
    %v2810 = vsub.s32 0, %v2809
    %v2811 = vrot.slane %v2796, %v2810
    %v2813 = vmul.f32 %v2811, %v2793
    %v2814 = vmul.f32 %v2811, %v2794
    %v2815 = vadd.f32 %v2805, 1e-06
    %v2816 = vadd.f32 %v2806, 1e-06
    %v2817 = vrsqrt.pop %v2815
    %v2818 = vrsqrt.pop %v2816
    %v2819 = vmul.f32 %v2813, %v2817
    %v2820 = vmul.f32 %v2814, %v2818
    %s2821 = scalar_lea.vmem [#allocation13], 16
    %v2822 = vld [vmem:[%s2821] sm:$0xf]
    %v2823 = vld [vmem:[%s2821 + $0x4] sm:$0xf]
    %v2824 = vld [vmem:[%s2821 + $0x8] sm:$0xf]
    %v2825 = vld [vmem:[%s2821 + $0xc] sm:$0xf]
    %v2826 = vpack.c.bf16 %v2820, %v2819
    %v2831 = vunpack.c.l.b16 %v2822
    %v2832 = vunpack.c.l.b16 %v2823
    %v2833 = vunpack.c.l.b16 %v2824
    %v2834 = vunpack.c.l.b16 %v2825
    %v2835 = vpack.c.b16 %v2832, %v2831
    %v2836 = vpack.c.b16 %v2834, %v2833
    %v2840 = vsel %vm463, %v2826, 0
    %2842 = vmatprep.subr.bf16.mxu0 0
    %2843 = vmatpush1.bf16.msra.mxu0 %v2835
    %2844 = vmatprep.subr.bf16.mxu0 0
    %2845 = vmatpush1.bf16.msra.mxu0 %v2836
    %2846 = vmatprep.subr.bf16.mxu0 0
    %2847 = vmatpush1.bf16.msra.mxu0 0
    %2848 = vmatprep.subr.bf16.mxu0 0
    %2849 = vmatpush1.bf16.msra.mxu0 0
    %2850 = vmatprep.subr.bf16.mxu0 0
    %2851 = vmatpush1.bf16.msra.mxu0 0
    %2852 = vmatprep.subr.bf16.mxu0 0
    %2853 = vmatpush1.bf16.msra.mxu0 0
    %2854 = vmatprep.subr.bf16.mxu0 0
    %2855 = vmatpush1.bf16.msra.mxu0 0
    %2856 = vmatprep.subr.bf16.mxu0 0
    %2857 = vmatpush1.bf16.msra.mxu0 0
    %2858 = vmatprep.subr.bf16.mxu0 0
    %2859 = vmatpush1.bf16.msra.mxu0 0
    %2860 = vmatprep.subr.bf16.mxu0 0
    %2861 = vmatpush1.bf16.msra.mxu0 0
    %2862 = vmatprep.subr.bf16.mxu0 0
    %2863 = vmatpush1.bf16.msra.mxu0 0
    %2864 = vmatprep.subr.bf16.mxu0 0
    %2865 = vmatpush1.bf16.msra.mxu0 0
    %2866 = vmatprep.subr.bf16.mxu0 0
    %2867 = vmatpush1.bf16.msra.mxu0 0
    %2868 = vmatprep.subr.bf16.mxu0 0
    %2869 = vmatpush1.bf16.msra.mxu0 0
    %2870 = vmatprep.subr.bf16.mxu0 0
    %2871 = vmatpush1.bf16.msra.mxu0 0
    %2872 = vmatprep.subr.bf16.mxu0 0
    %2873 = vmatpush1.bf16.msra.mxu0 0
    %2874 = vmatprep.mubr.bf16.mxu0 0
    %2875 = vmatmul.mubr.bf16.gmra.mrb[0].mxu0 %v2840
    %v2876 = vpop.f32.mrb[0].mxu0
    %v2877 = vadd.f32 0.0, %v2876
    %v2878 = vpop.f32.mrb[0].mxu0
    %v2879 = vpop.f32.mrb[0].mxu0
    %v2880 = vadd.f32 0.0, %v2879
    %v2881 = vpop.f32.mrb[0].mxu0
    %2882 = vdwg.mxu0
    %v2883 = vmax.f32 %v2877, 0.0
    %v2884 = vmax.f32 %v2880, 0.0
    %s2885 = scalar_lea.vmem [#allocation14], 32
    %v2886 = vld [vmem:[%s2885] sm:$0xf]
    %v2887 = vld [vmem:[%s2885 + $0x4] sm:$0xf]
    %v2888 = vld [vmem:[%s2885 + $0x8] sm:$0xf]
    %v2889 = vld [vmem:[%s2885 + $0xc] sm:$0xf]
    %v2890 = vld [vmem:[%s2885 + $0x10] sm:$0xf]
    %v2891 = vld [vmem:[%s2885 + $0x14] sm:$0xf]
    %v2892 = vld [vmem:[%s2885 + $0x18] sm:$0xf]
    %v2893 = vld [vmem:[%s2885 + $0x1c] sm:$0xf]
    %v2894 = vpack.c.bf16 %v2884, %v2883
    %v2903 = vunpack.c.l.b16 %v2886
    %v2904 = vunpack.c.l.b16 %v2887
    %v2905 = vunpack.c.l.b16 %v2888
    %v2906 = vunpack.c.l.b16 %v2889
    %v2907 = vunpack.c.l.b16 %v2890
    %v2908 = vunpack.c.l.b16 %v2891
    %v2909 = vunpack.c.l.b16 %v2892
    %v2910 = vunpack.c.l.b16 %v2893
    %v2911 = vpack.c.b16 %v2904, %v2903
    %v2912 = vpack.c.b16 %v2906, %v2905
    %v2913 = vpack.c.b16 %v2908, %v2907
    %v2914 = vpack.c.b16 %v2910, %v2909
    %v2920 = vsel %vm1666, %v2894, 0
    %2922 = vmatprep.subr.bf16.mxu0 0
    %2923 = vmatpush1.bf16.msra.mxu0 %v2911
    %2924 = vmatprep.subr.bf16.mxu0 0
    %2925 = vmatpush1.bf16.msra.mxu0 %v2912
    %2926 = vmatprep.subr.bf16.mxu0 0
    %2927 = vmatpush1.bf16.msra.mxu0 %v2913
    %2928 = vmatprep.subr.bf16.mxu0 0
    %2929 = vmatpush1.bf16.msra.mxu0 %v2914
    %2930 = vmatprep.subr.bf16.mxu0 0
    %2931 = vmatpush1.bf16.msra.mxu0 0
    %2932 = vmatprep.subr.bf16.mxu0 0
    %2933 = vmatpush1.bf16.msra.mxu0 0
    %2934 = vmatprep.subr.bf16.mxu0 0
    %2935 = vmatpush1.bf16.msra.mxu0 0
    %2936 = vmatprep.subr.bf16.mxu0 0
    %2937 = vmatpush1.bf16.msra.mxu0 0
    %2938 = vmatprep.subr.bf16.mxu0 0
    %2939 = vmatpush1.bf16.msra.mxu0 0
    %2940 = vmatprep.subr.bf16.mxu0 0
    %2941 = vmatpush1.bf16.msra.mxu0 0
    %2942 = vmatprep.subr.bf16.mxu0 0
    %2943 = vmatpush1.bf16.msra.mxu0 0
    %2944 = vmatprep.subr.bf16.mxu0 0
    %2945 = vmatpush1.bf16.msra.mxu0 0
    %2946 = vmatprep.subr.bf16.mxu0 0
    %2947 = vmatpush1.bf16.msra.mxu0 0
    %2948 = vmatprep.subr.bf16.mxu0 0
    %2949 = vmatpush1.bf16.msra.mxu0 0
    %2950 = vmatprep.subr.bf16.mxu0 0
    %2951 = vmatpush1.bf16.msra.mxu0 0
    %2952 = vmatprep.subr.bf16.mxu0 0
    %2953 = vmatpush1.bf16.msra.mxu0 0
    %2954 = vmatprep.mubr.bf16.mxu0 0
    %2955 = vmatmul.mubr.bf16.gmra.mrb[0].mxu0 %v2920
    %v2956 = vpop.f32.mrb[0].mxu0
    %v2957 = vadd.f32 0.0, %v2956
    %v2958 = vpop.f32.mrb[0].mxu0
    %v2959 = vpop.f32.mrb[0].mxu0
    %v2960 = vadd.f32 0.0, %v2959
    %v2961 = vpop.f32.mrb[0].mxu0
    %2962 = vdwg.mxu0
    %v2963 = vadd.f32 %v2793, %v2957
    %v2964 = vadd.f32 %v2794, %v2960
    %v2965 = vld [vmem:[#allocation16] sm:$0x1]
    %v2966 = vmul.f32 %v2963, %v2963
    %v2967 = vmul.f32 %v2964, %v2964
    %v2968 = vsel %vm463, %v2966, 0.0
    %2969 = vadd.xlane.f32.xlu0 %v2968
    %v2970 = vpop.xlane.xlu0 %2969
    %v2971 = vsel %vm463, %v2967, 0.0
    %2972 = vadd.xlane.f32.xlu0 %v2971
    %v2973 = vpop.xlane.xlu0 %2972
    %v2974 = vmul.f32 %v2970, %v470
    %v2975 = vmul.f32 %v2973, %v470
    %v2977 = vlaneseq
    %v2978 = vshrl.u32 %v2977, 7
    %v2979 = vsub.s32 0, %v2978
    %v2980 = vrot.slane %v2965, %v2979
    %v2982 = vmul.f32 %v2980, %v2963
    %v2983 = vmul.f32 %v2980, %v2964
    %v2984 = vadd.f32 %v2974, 1e-06
    %v2985 = vadd.f32 %v2975, 1e-06
    %v2986 = vrsqrt.pop %v2984
    %v2987 = vrsqrt.pop %v2985
    %v2988 = vmul.f32 %v2982, %v2986
    %v2989 = vmul.f32 %v2983, %v2987
    %v2990 = vld [vmem:[#allocation2] sm:$0x1]
    %v2991 = vunpack.c.l.bf16 %v2990
    %v2992 = vlaneseq
    %v2993 = vshrl.u32 %v2992, 7
    %v2994 = vsub.s32 0, %v2993
    %v2995 = vrot.slane %v2991, %v2994
    %v2996 = vld [vmem:[#allocation23] sm:$0xf]
    %v2997 = vld [vmem:[#allocation23 + $0x4] sm:$0xf]
    %v2998 = vld [vmem:[#allocation23 + $0x8] sm:$0xf]
    %v2999 = vld [vmem:[#allocation23 + $0xc] sm:$0xf]
    %v3000 = vpack.c.bf16 %v2989, %v2988
    %v3005 = vunpack.c.l.b16 %v2996
    %v3006 = vunpack.c.l.b16 %v2997
    %v3007 = vunpack.c.l.b16 %v2998
    %v3008 = vunpack.c.l.b16 %v2999
    %v3009 = vpack.c.b16 %v3006, %v3005
    %v3010 = vpack.c.b16 %v3008, %v3007
    %v3014 = vsel %vm463, %v3000, 0
    %3016 = vmatprep.subr.bf16.mxu0 0
    %3017 = vmatpush1.bf16.msra.mxu0 %v3009
    %3018 = vmatprep.subr.bf16.mxu0 0
    %3019 = vmatpush1.bf16.msra.mxu0 %v3010
    %3020 = vmatprep.subr.bf16.mxu0 0
    %3021 = vmatpush1.bf16.msra.mxu0 0
    %3022 = vmatprep.subr.bf16.mxu0 0
    %3023 = vmatpush1.bf16.msra.mxu0 0
    %3024 = vmatprep.subr.bf16.mxu0 0
    %3025 = vmatpush1.bf16.msra.mxu0 0
    %3026 = vmatprep.subr.bf16.mxu0 0
    %3027 = vmatpush1.bf16.msra.mxu0 0
    %3028 = vmatprep.subr.bf16.mxu0 0
    %3029 = vmatpush1.bf16.msra.mxu0 0
    %3030 = vmatprep.subr.bf16.mxu0 0
    %3031 = vmatpush1.bf16.msra.mxu0 0
    %3032 = vmatprep.subr.bf16.mxu0 0
    %3033 = vmatpush1.bf16.msra.mxu0 0
    %3034 = vmatprep.subr.bf16.mxu0 0
    %3035 = vmatpush1.bf16.msra.mxu0 0
    %3036 = vmatprep.subr.bf16.mxu0 0
    %3037 = vmatpush1.bf16.msra.mxu0 0
    %3038 = vmatprep.subr.bf16.mxu0 0
    %3039 = vmatpush1.bf16.msra.mxu0 0
    %3040 = vmatprep.subr.bf16.mxu0 0
    %3041 = vmatpush1.bf16.msra.mxu0 0
    %3042 = vmatprep.subr.bf16.mxu0 0
    %3043 = vmatpush1.bf16.msra.mxu0 0
    %3044 = vmatprep.subr.bf16.mxu0 0
    %3045 = vmatpush1.bf16.msra.mxu0 0
    %3046 = vmatprep.subr.bf16.mxu0 0
    %3047 = vmatpush1.bf16.msra.mxu0 0
    %3048 = vmatprep.mubr.bf16.mxu0 0
    %3049 = vmatmul.mubr.bf16.gmra.mrb[0].mxu0 %v3014
    %v3050 = vpop.f32.mrb[0].mxu0
    %v3051 = vadd.f32 0.0, %v3050
    %v3052 = vpop.f32.mrb[0].mxu0
    %v3053 = vpop.f32.mrb[0].mxu0
    %v3054 = vadd.f32 0.0, %v3053
    %v3055 = vpop.f32.mrb[0].mxu0
    %3056 = vdwg.mxu0
    %v3057 = vld [vmem:[#allocation17] sm:$0x1]
    %v3058 = vmul.f32 %v2995, %v2995
    %v3059 = vsel %vm463, %v3058, 0.0
    %3060 = vadd.xlane.f32.xlu0 %v3059
    %v3061 = vpop.xlane.xlu0 %3060
    %v3062 = vmul.f32 %v3061, %v470
    %v3064 = vlaneseq
    %v3065 = vshrl.u32 %v3064, 7
    %v3066 = vsub.s32 0, %v3065
    %v3067 = vrot.slane %v3057, %v3066
    %v3069 = vmul.f32 %v3067, %v2995
    %v3070 = vadd.f32 %v3062, 1e-06
    %v3071 = vrsqrt.pop %v3070
    %v3072 = vmul.f32 %v3069, %v3071
    %v3073 = vld [vmem:[#allocation19] sm:$0xf]
    %v3074 = vld [vmem:[#allocation19 + $0x4] sm:$0xf]
    %v3075 = vld [vmem:[#allocation19 + $0x8] sm:$0xf]
    %v3076 = vld [vmem:[#allocation19 + $0xc] sm:$0xf]
    %v3077 = vpack.c.bf16 %v3072, %v3072
    %v3082 = vunpack.c.l.b16 %v3073
    %v3083 = vunpack.c.l.b16 %v3074
    %v3084 = vunpack.c.l.b16 %v3075
    %v3085 = vunpack.c.l.b16 %v3076
    %v3086 = vpack.c.b16 %v3083, %v3082
    %v3087 = vpack.c.b16 %v3085, %v3084
    %v3091 = vsel %vm463, %v3077, 0
    %3093 = vmatprep.subr.bf16.mxu0 0
    %3094 = vmatpush1.bf16.msra.mxu0 %v3086
    %3095 = vmatprep.subr.bf16.mxu0 0
    %3096 = vmatpush1.bf16.msra.mxu0 %v3087
    %3097 = vmatprep.subr.bf16.mxu0 0
    %3098 = vmatpush1.bf16.msra.mxu0 0
    %3099 = vmatprep.subr.bf16.mxu0 0
    %3100 = vmatpush1.bf16.msra.mxu0 0
    %3101 = vmatprep.subr.bf16.mxu0 0
    %3102 = vmatpush1.bf16.msra.mxu0 0
    %3103 = vmatprep.subr.bf16.mxu0 0
    %3104 = vmatpush1.bf16.msra.mxu0 0
    %3105 = vmatprep.subr.bf16.mxu0 0
    %3106 = vmatpush1.bf16.msra.mxu0 0
    %3107 = vmatprep.subr.bf16.mxu0 0
    %3108 = vmatpush1.bf16.msra.mxu0 0
    %3109 = vmatprep.subr.bf16.mxu0 0
    %3110 = vmatpush1.bf16.msra.mxu0 0
    %3111 = vmatprep.subr.bf16.mxu0 0
    %3112 = vmatpush1.bf16.msra.mxu0 0
    %3113 = vmatprep.subr.bf16.mxu0 0
    %3114 = vmatpush1.bf16.msra.mxu0 0
    %3115 = vmatprep.subr.bf16.mxu0 0
    %3116 = vmatpush1.bf16.msra.mxu0 0
    %3117 = vmatprep.subr.bf16.mxu0 0
    %3118 = vmatpush1.bf16.msra.mxu0 0
    %3119 = vmatprep.subr.bf16.mxu0 0
    %3120 = vmatpush1.bf16.msra.mxu0 0
    %3121 = vmatprep.subr.bf16.mxu0 0
    %3122 = vmatpush1.bf16.msra.mxu0 0
    %3123 = vmatprep.subr.bf16.mxu0 0
    %3124 = vmatpush1.bf16.msra.mxu0 0
    %3125 = vmatprep.mubr.bf16.mxu0 0
    %3126 = vmatmul.mubr.bf16.gmra.mrb[0].mxu0 %v3091
    %v3127 = vpop.f32.mrb[0].mxu0
    %v3128 = vadd.f32 0.0, %v3127
    %v3129 = vpop.f32.mrb[0].mxu0
    %v3130 = vpop.f32.mrb[0].mxu0
    %v3131 = vpop.f32.mrb[0].mxu0
    %3132 = vdwg.mxu0
    %v3133 = vadd.f32 %v2995, %v3128
    %v3134 = vld [vmem:[#allocation20] sm:$0x1]
    %v3135 = vmul.f32 %v3133, %v3133
    %vm3136 = vcmask 254976
    %v3137 = vsel %vm3136, %v3135, 0.0
    %3138 = vadd.xlane.f32.xlu0 %v3137
    %v3139 = vpop.xlane.xlu0 %3138
    %v3140 = vmul.f32 %v3139, %v470
    %v3142 = vlaneseq
    %v3143 = vshrl.u32 %v3142, 7
    %v3144 = vsub.s32 0, %v3143
    %v3145 = vrot.slane %v3134, %v3144
    %v3147 = vmul.f32 %v3145, %v3133
    %v3148 = vadd.f32 %v3140, 1e-06
    %v3149 = vrsqrt.pop %v3148
    %v3150 = vmul.f32 %v3147, %v3149
    %v3151 = vld [vmem:[#allocation22] sm:$0xf]
    %v3152 = vld [vmem:[#allocation22 + $0x4] sm:$0xf]
    %v3153 = vld [vmem:[#allocation22 + $0x8] sm:$0xf]
    %v3154 = vld [vmem:[#allocation22 + $0xc] sm:$0xf]
    %v3155 = vpack.c.bf16 %v3150, %v3150
    %v3160 = vunpack.c.l.b16 %v3151
    %v3161 = vunpack.c.l.b16 %v3152
    %v3162 = vunpack.c.l.b16 %v3153
    %v3163 = vunpack.c.l.b16 %v3154
    %v3164 = vpack.c.b16 %v3161, %v3160
    %v3165 = vpack.c.b16 %v3163, %v3162
    %v3169 = vsel %vm463, %v3155, 0
    %3171 = vmatprep.subr.bf16.mxu0 0
    %3172 = vmatpush1.bf16.msra.mxu0 %v3164
    %3173 = vmatprep.subr.bf16.mxu0 0
    %3174 = vmatpush1.bf16.msra.mxu0 %v3165
    %3175 = vmatprep.subr.bf16.mxu0 0
    %3176 = vmatpush1.bf16.msra.mxu0 0
    %3177 = vmatprep.subr.bf16.mxu0 0
    %3178 = vmatpush1.bf16.msra.mxu0 0
    %3179 = vmatprep.subr.bf16.mxu0 0
    %3180 = vmatpush1.bf16.msra.mxu0 0
    %3181 = vmatprep.subr.bf16.mxu0 0
    %3182 = vmatpush1.bf16.msra.mxu0 0
    %3183 = vmatprep.subr.bf16.mxu0 0
    %3184 = vmatpush1.bf16.msra.mxu0 0
    %3185 = vmatprep.subr.bf16.mxu0 0
    %3186 = vmatpush1.bf16.msra.mxu0 0
    %3187 = vmatprep.subr.bf16.mxu0 0
    %3188 = vmatpush1.bf16.msra.mxu0 0
    %3189 = vmatprep.subr.bf16.mxu0 0
    %3190 = vmatpush1.bf16.msra.mxu0 0
    %3191 = vmatprep.subr.bf16.mxu0 0
    %3192 = vmatpush1.bf16.msra.mxu0 0
    %3193 = vmatprep.subr.bf16.mxu0 0
    %3194 = vmatpush1.bf16.msra.mxu0 0
    %3195 = vmatprep.subr.bf16.mxu0 0
    %3196 = vmatpush1.bf16.msra.mxu0 0
    %3197 = vmatprep.subr.bf16.mxu0 0
    %3198 = vmatpush1.bf16.msra.mxu0 0
    %3199 = vmatprep.subr.bf16.mxu0 0
    %3200 = vmatpush1.bf16.msra.mxu0 0
    %3201 = vmatprep.subr.bf16.mxu0 0
    %3202 = vmatpush1.bf16.msra.mxu0 0
    %3203 = vmatprep.mubr.bf16.mxu0 0
    %3204 = vmatmul.mubr.bf16.gmra.mrb[0].mxu0 %v3169
    %v3205 = vpop.f32.mrb[0].mxu0
    %v3206 = vadd.f32 0.0, %v3205
    %v3207 = vpop.f32.mrb[0].mxu0
    %v3208 = vpop.f32.mrb[0].mxu0
    %v3209 = vpop.f32.mrb[0].mxu0
    %3210 = vdwg.mxu0
    %v3213 = vunpack.c.l.s4 1966171168
    %v3214 = vunpack.c.0.s8 %v3213
    %v3215 = vlaneseq
    %v3216 = vshrl.u32 %v3215, 7
    %v3217 = vsub.s32 %v3214, %v3216
    %v3218 = vrot.slane %v3206, %v3217
    %v3219 = vcombine.high %v3218, %v3218
    %v3221 = vunpack.c.l.s4 1966171168
    %v3222 = vunpack.c.0.s8 %v3221
    %v3223 = vlaneseq
    %v3224 = vshrl.u32 %v3223, 7
    %v3225 = vsub.s32 %v3222, %v3224
    %v3226 = vrot.slane %v3218, %v3225
    %v3228 = vunpack.c.l.s4 1966171168
    %v3229 = vunpack.c.0.s8 %v3228
    %v3230 = vlaneseq
    %v3231 = vshrl.u32 %v3230, 7
    %v3232 = vsub.s32 %v3229, %v3231
    %v3233 = vrot.slane %v3219, %v3232
    %3236 = vrot.lane.b32.xlu0 %v3226, 120
    %v3237 = vpop.permute.xlu0 %3236
    %3238 = vrot.lane.b32.xlu0 %v3233, 120
    %v3239 = vpop.permute.xlu0 %3238
    %3242 = vrot.lane.b32.xlu0 %v3226, 112
    %v3243 = vpop.permute.xlu0 %3242
    %3244 = vrot.lane.b32.xlu0 %v3233, 112
    %v3245 = vpop.permute.xlu0 %3244
    %3248 = vrot.lane.b32.xlu0 %v3226, 104
    %v3249 = vpop.permute.xlu0 %3248
    %3250 = vrot.lane.b32.xlu0 %v3233, 104
    %v3251 = vpop.permute.xlu0 %3250
    %v3254 = vpack.c.bf16 %v3226, %v3226
    %v3255 = vpack.c.bf16 %v3233, %v3233
    %v3256 = vpack.c.bf16 %v3237, %v3237
    %v3257 = vpack.c.bf16 %v3239, %v3239
    %v3258 = vpack.c.bf16 %v3243, %v3243
    %v3259 = vpack.c.bf16 %v3245, %v3245
    %v3260 = vpack.c.bf16 %v3249, %v3249
    %v3261 = vpack.c.bf16 %v3251, %v3251
    %3264 = vrot.lane.b32.xlu0 %v3051, 120
    %v3265 = vpop.permute.xlu0 %3264
    %3266 = vrot.lane.b32.xlu0 %v3054, 120
    %v3267 = vpop.permute.xlu0 %3266
    %3270 = vrot.lane.b32.xlu0 %v3051, 112
    %v3271 = vpop.permute.xlu0 %3270
    %3272 = vrot.lane.b32.xlu0 %v3054, 112
    %v3273 = vpop.permute.xlu0 %3272
    %3276 = vrot.lane.b32.xlu0 %v3051, 104
    %v3277 = vpop.permute.xlu0 %3276
    %3278 = vrot.lane.b32.xlu0 %v3054, 104
    %v3279 = vpop.permute.xlu0 %3278
    %v3282 = vpack.c.bf16 %v3051, %v3051
    %v3283 = vpack.c.bf16 %v3054, %v3054
    %v3284 = vpack.c.bf16 %v3265, %v3265
    %v3285 = vpack.c.bf16 %v3267, %v3267
    %v3286 = vpack.c.bf16 %v3271, %v3271
    %v3287 = vpack.c.bf16 %v3273, %v3273
    %v3288 = vpack.c.bf16 %v3277, %v3277
    %v3289 = vpack.c.bf16 %v3279, %v3279
    %v3291 = vsel %vm579, %v3254, 0
    %v3294 = vsel %vm579, %v3282, 0
    %3296 = vmatprep.subr.bf16.mxu0 0
    %3297 = vmatpush1.bf16.xpose.msra.mxu0 %v3294
    %3298 = vmatprep.subr.bf16.mxu0 0
    %3299 = vmatpush1.bf16.xpose.msra.mxu0 0
    %3300 = vmatprep.subr.bf16.mxu0 0
    %3301 = vmatpush1.bf16.xpose.msra.mxu0 0
    %3302 = vmatprep.subr.bf16.mxu0 0
    %3303 = vmatpush1.bf16.xpose.msra.mxu0 0
    %3304 = vmatprep.subr.bf16.mxu0 0
    %3305 = vmatpush1.bf16.xpose.msra.mxu0 0
    %3306 = vmatprep.subr.bf16.mxu0 0
    %3307 = vmatpush1.bf16.xpose.msra.mxu0 0
    %3308 = vmatprep.subr.bf16.mxu0 0
    %3309 = vmatpush1.bf16.xpose.msra.mxu0 0
    %3310 = vmatprep.subr.bf16.mxu0 0
    %3311 = vmatpush1.bf16.xpose.msra.mxu0 0
    %3312 = vmatprep.subr.bf16.mxu0 0
    %3313 = vmatpush1.bf16.xpose.msra.mxu0 0
    %3314 = vmatprep.subr.bf16.mxu0 0
    %3315 = vmatpush1.bf16.xpose.msra.mxu0 0
    %3316 = vmatprep.subr.bf16.mxu0 0
    %3317 = vmatpush1.bf16.xpose.msra.mxu0 0
    %3318 = vmatprep.subr.bf16.mxu0 0
    %3319 = vmatpush1.bf16.xpose.msra.mxu0 0
    %3320 = vmatprep.subr.bf16.mxu0 0
    %3321 = vmatpush1.bf16.xpose.msra.mxu0 0
    %3322 = vmatprep.subr.bf16.mxu0 0
    %3323 = vmatpush1.bf16.xpose.msra.mxu0 0
    %3324 = vmatprep.subr.bf16.mxu0 0
    %3325 = vmatpush1.bf16.xpose.msra.mxu0 0
    %3326 = vmatprep.subr.bf16.mxu0 0
    %3327 = vmatpush1.bf16.xpose.msra.mxu0 0
    %3328 = vmatprep.mubr.bf16.mxu0 0
    %3329 = vmatmul.mubr.bf16.gmra.mrb[0].mxu0 %v3291
    %v3330 = vpop.f32.mrb[0].mxu0
    %v3331 = vadd.f32 %v432, %v3330
    %v3332 = vpop.f32.mrb[0].mxu0
    %v3333 = vpop.f32.mrb[0].mxu0
    %v3334 = vpop.f32.mrb[0].mxu0
    %3335 = vdwg.mxu0
    %v3337 = vsel %vm579, %v3255, 0
    %v3340 = vsel %vm579, %v3283, 0
    %3342 = vmatprep.subr.bf16.mxu0 0
    %3343 = vmatpush1.bf16.xpose.msra.mxu0 %v3340
    %3344 = vmatprep.subr.bf16.mxu0 0
    %3345 = vmatpush1.bf16.xpose.msra.mxu0 0
    %3346 = vmatprep.subr.bf16.mxu0 0
    %3347 = vmatpush1.bf16.xpose.msra.mxu0 0
    %3348 = vmatprep.subr.bf16.mxu0 0
    %3349 = vmatpush1.bf16.xpose.msra.mxu0 0
    %3350 = vmatprep.subr.bf16.mxu0 0
    %3351 = vmatpush1.bf16.xpose.msra.mxu0 0
    %3352 = vmatprep.subr.bf16.mxu0 0
    %3353 = vmatpush1.bf16.xpose.msra.mxu0 0
    %3354 = vmatprep.subr.bf16.mxu0 0
    %3355 = vmatpush1.bf16.xpose.msra.mxu0 0
    %3356 = vmatprep.subr.bf16.mxu0 0
    %3357 = vmatpush1.bf16.xpose.msra.mxu0 0
    %3358 = vmatprep.subr.bf16.mxu0 0
    %3359 = vmatpush1.bf16.xpose.msra.mxu0 0
    %3360 = vmatprep.subr.bf16.mxu0 0
    %3361 = vmatpush1.bf16.xpose.msra.mxu0 0
    %3362 = vmatprep.subr.bf16.mxu0 0
    %3363 = vmatpush1.bf16.xpose.msra.mxu0 0
    %3364 = vmatprep.subr.bf16.mxu0 0
    %3365 = vmatpush1.bf16.xpose.msra.mxu0 0
    %3366 = vmatprep.subr.bf16.mxu0 0
    %3367 = vmatpush1.bf16.xpose.msra.mxu0 0
    %3368 = vmatprep.subr.bf16.mxu0 0
    %3369 = vmatpush1.bf16.xpose.msra.mxu0 0
    %3370 = vmatprep.subr.bf16.mxu0 0
    %3371 = vmatpush1.bf16.xpose.msra.mxu0 0
    %3372 = vmatprep.subr.bf16.mxu0 0
    %3373 = vmatpush1.bf16.xpose.msra.mxu0 0
    %3374 = vmatprep.mubr.bf16.mxu0 0
    %3375 = vmatmul.mubr.bf16.gmra.mrb[0].mxu0 %v3337
    %v3376 = vpop.f32.mrb[0].mxu0
    %v3377 = vadd.f32 %v439, %v3376
    %v3378 = vpop.f32.mrb[0].mxu0
    %v3379 = vpop.f32.mrb[0].mxu0
    %v3380 = vpop.f32.mrb[0].mxu0
    %3381 = vdwg.mxu0
    %v3383 = vsel %vm579, %v3256, 0
    %v3386 = vsel %vm579, %v3284, 0
    %3388 = vmatprep.subr.bf16.mxu0 0
    %3389 = vmatpush1.bf16.xpose.msra.mxu0 %v3386
    %3390 = vmatprep.subr.bf16.mxu0 0
    %3391 = vmatpush1.bf16.xpose.msra.mxu0 0
    %3392 = vmatprep.subr.bf16.mxu0 0
    %3393 = vmatpush1.bf16.xpose.msra.mxu0 0
    %3394 = vmatprep.subr.bf16.mxu0 0
    %3395 = vmatpush1.bf16.xpose.msra.mxu0 0
    %3396 = vmatprep.subr.bf16.mxu0 0
    %3397 = vmatpush1.bf16.xpose.msra.mxu0 0
    %3398 = vmatprep.subr.bf16.mxu0 0
    %3399 = vmatpush1.bf16.xpose.msra.mxu0 0
    %3400 = vmatprep.subr.bf16.mxu0 0
    %3401 = vmatpush1.bf16.xpose.msra.mxu0 0
    %3402 = vmatprep.subr.bf16.mxu0 0
    %3403 = vmatpush1.bf16.xpose.msra.mxu0 0
    %3404 = vmatprep.subr.bf16.mxu0 0
    %3405 = vmatpush1.bf16.xpose.msra.mxu0 0
    %3406 = vmatprep.subr.bf16.mxu0 0
    %3407 = vmatpush1.bf16.xpose.msra.mxu0 0
    %3408 = vmatprep.subr.bf16.mxu0 0
    %3409 = vmatpush1.bf16.xpose.msra.mxu0 0
    %3410 = vmatprep.subr.bf16.mxu0 0
    %3411 = vmatpush1.bf16.xpose.msra.mxu0 0
    %3412 = vmatprep.subr.bf16.mxu0 0
    %3413 = vmatpush1.bf16.xpose.msra.mxu0 0
    %3414 = vmatprep.subr.bf16.mxu0 0
    %3415 = vmatpush1.bf16.xpose.msra.mxu0 0
    %3416 = vmatprep.subr.bf16.mxu0 0
    %3417 = vmatpush1.bf16.xpose.msra.mxu0 0
    %3418 = vmatprep.subr.bf16.mxu0 0
    %3419 = vmatpush1.bf16.xpose.msra.mxu0 0
    %3420 = vmatprep.mubr.bf16.mxu0 0
    %3421 = vmatmul.mubr.bf16.gmra.mrb[0].mxu0 %v3383
    %v3422 = vpop.f32.mrb[0].mxu0
    %v3423 = vadd.f32 %v432, %v3422
    %v3424 = vpop.f32.mrb[0].mxu0
    %v3425 = vpop.f32.mrb[0].mxu0
    %v3426 = vpop.f32.mrb[0].mxu0
    %3427 = vdwg.mxu0
    %v3429 = vsel %vm579, %v3257, 0
    %v3432 = vsel %vm579, %v3285, 0
    %3434 = vmatprep.subr.bf16.mxu0 0
    %3435 = vmatpush1.bf16.xpose.msra.mxu0 %v3432
    %3436 = vmatprep.subr.bf16.mxu0 0
    %3437 = vmatpush1.bf16.xpose.msra.mxu0 0
    %3438 = vmatprep.subr.bf16.mxu0 0
    %3439 = vmatpush1.bf16.xpose.msra.mxu0 0
    %3440 = vmatprep.subr.bf16.mxu0 0
    %3441 = vmatpush1.bf16.xpose.msra.mxu0 0
    %3442 = vmatprep.subr.bf16.mxu0 0
    %3443 = vmatpush1.bf16.xpose.msra.mxu0 0
    %3444 = vmatprep.subr.bf16.mxu0 0
    %3445 = vmatpush1.bf16.xpose.msra.mxu0 0
    %3446 = vmatprep.subr.bf16.mxu0 0
    %3447 = vmatpush1.bf16.xpose.msra.mxu0 0
    %3448 = vmatprep.subr.bf16.mxu0 0
    %3449 = vmatpush1.bf16.xpose.msra.mxu0 0
    %3450 = vmatprep.subr.bf16.mxu0 0
    %3451 = vmatpush1.bf16.xpose.msra.mxu0 0
    %3452 = vmatprep.subr.bf16.mxu0 0
    %3453 = vmatpush1.bf16.xpose.msra.mxu0 0
    %3454 = vmatprep.subr.bf16.mxu0 0
    %3455 = vmatpush1.bf16.xpose.msra.mxu0 0
    %3456 = vmatprep.subr.bf16.mxu0 0
    %3457 = vmatpush1.bf16.xpose.msra.mxu0 0
    %3458 = vmatprep.subr.bf16.mxu0 0
    %3459 = vmatpush1.bf16.xpose.msra.mxu0 0
    %3460 = vmatprep.subr.bf16.mxu0 0
    %3461 = vmatpush1.bf16.xpose.msra.mxu0 0
    %3462 = vmatprep.subr.bf16.mxu0 0
    %3463 = vmatpush1.bf16.xpose.msra.mxu0 0
    %3464 = vmatprep.subr.bf16.mxu0 0
    %3465 = vmatpush1.bf16.xpose.msra.mxu0 0
    %3466 = vmatprep.mubr.bf16.mxu0 0
    %3467 = vmatmul.mubr.bf16.gmra.mrb[0].mxu0 %v3429
    %v3468 = vpop.f32.mrb[0].mxu0
    %v3469 = vadd.f32 %v439, %v3468
    %v3470 = vpop.f32.mrb[0].mxu0
    %v3471 = vpop.f32.mrb[0].mxu0
    %v3472 = vpop.f32.mrb[0].mxu0
    %3473 = vdwg.mxu0
    %v3475 = vsel %vm579, %v3258, 0
    %v3478 = vsel %vm579, %v3286, 0
    %3480 = vmatprep.subr.bf16.mxu0 0
    %3481 = vmatpush1.bf16.xpose.msra.mxu0 %v3478
    %3482 = vmatprep.subr.bf16.mxu0 0
    %3483 = vmatpush1.bf16.xpose.msra.mxu0 0
    %3484 = vmatprep.subr.bf16.mxu0 0
    %3485 = vmatpush1.bf16.xpose.msra.mxu0 0
    %3486 = vmatprep.subr.bf16.mxu0 0
    %3487 = vmatpush1.bf16.xpose.msra.mxu0 0
    %3488 = vmatprep.subr.bf16.mxu0 0
    %3489 = vmatpush1.bf16.xpose.msra.mxu0 0
    %3490 = vmatprep.subr.bf16.mxu0 0
    %3491 = vmatpush1.bf16.xpose.msra.mxu0 0
    %3492 = vmatprep.subr.bf16.mxu0 0
    %3493 = vmatpush1.bf16.xpose.msra.mxu0 0
    %3494 = vmatprep.subr.bf16.mxu0 0
    %3495 = vmatpush1.bf16.xpose.msra.mxu0 0
    %3496 = vmatprep.subr.bf16.mxu0 0
    %3497 = vmatpush1.bf16.xpose.msra.mxu0 0
    %3498 = vmatprep.subr.bf16.mxu0 0
    %3499 = vmatpush1.bf16.xpose.msra.mxu0 0
    %3500 = vmatprep.subr.bf16.mxu0 0
    %3501 = vmatpush1.bf16.xpose.msra.mxu0 0
    %3502 = vmatprep.subr.bf16.mxu0 0
    %3503 = vmatpush1.bf16.xpose.msra.mxu0 0
    %3504 = vmatprep.subr.bf16.mxu0 0
    %3505 = vmatpush1.bf16.xpose.msra.mxu0 0
    %3506 = vmatprep.subr.bf16.mxu0 0
    %3507 = vmatpush1.bf16.xpose.msra.mxu0 0
    %3508 = vmatprep.subr.bf16.mxu0 0
    %3509 = vmatpush1.bf16.xpose.msra.mxu0 0
    %3510 = vmatprep.subr.bf16.mxu0 0
    %3511 = vmatpush1.bf16.xpose.msra.mxu0 0
    %3512 = vmatprep.mubr.bf16.mxu0 0
    %3513 = vmatmul.mubr.bf16.gmra.mrb[0].mxu0 %v3475
    %v3514 = vpop.f32.mrb[0].mxu0
    %v3515 = vadd.f32 %v432, %v3514
    %v3516 = vpop.f32.mrb[0].mxu0
    %v3517 = vpop.f32.mrb[0].mxu0
    %v3518 = vpop.f32.mrb[0].mxu0
    %3519 = vdwg.mxu0
    %v3521 = vsel %vm579, %v3259, 0
    %v3524 = vsel %vm579, %v3287, 0
    %3526 = vmatprep.subr.bf16.mxu0 0
    %3527 = vmatpush1.bf16.xpose.msra.mxu0 %v3524
    %3528 = vmatprep.subr.bf16.mxu0 0
    %3529 = vmatpush1.bf16.xpose.msra.mxu0 0
    %3530 = vmatprep.subr.bf16.mxu0 0
    %3531 = vmatpush1.bf16.xpose.msra.mxu0 0
    %3532 = vmatprep.subr.bf16.mxu0 0
    %3533 = vmatpush1.bf16.xpose.msra.mxu0 0
    %3534 = vmatprep.subr.bf16.mxu0 0
    %3535 = vmatpush1.bf16.xpose.msra.mxu0 0
    %3536 = vmatprep.subr.bf16.mxu0 0
    %3537 = vmatpush1.bf16.xpose.msra.mxu0 0
    %3538 = vmatprep.subr.bf16.mxu0 0
    %3539 = vmatpush1.bf16.xpose.msra.mxu0 0
    %3540 = vmatprep.subr.bf16.mxu0 0
    %3541 = vmatpush1.bf16.xpose.msra.mxu0 0
    %3542 = vmatprep.subr.bf16.mxu0 0
    %3543 = vmatpush1.bf16.xpose.msra.mxu0 0
    %3544 = vmatprep.subr.bf16.mxu0 0
    %3545 = vmatpush1.bf16.xpose.msra.mxu0 0
    %3546 = vmatprep.subr.bf16.mxu0 0
    %3547 = vmatpush1.bf16.xpose.msra.mxu0 0
    %3548 = vmatprep.subr.bf16.mxu0 0
    %3549 = vmatpush1.bf16.xpose.msra.mxu0 0
    %3550 = vmatprep.subr.bf16.mxu0 0
    %3551 = vmatpush1.bf16.xpose.msra.mxu0 0
    %3552 = vmatprep.subr.bf16.mxu0 0
    %3553 = vmatpush1.bf16.xpose.msra.mxu0 0
    %3554 = vmatprep.subr.bf16.mxu0 0
    %3555 = vmatpush1.bf16.xpose.msra.mxu0 0
    %3556 = vmatprep.subr.bf16.mxu0 0
    %3557 = vmatpush1.bf16.xpose.msra.mxu0 0
    %3558 = vmatprep.mubr.bf16.mxu0 0
    %3559 = vmatmul.mubr.bf16.gmra.mrb[0].mxu0 %v3521
    %v3560 = vpop.f32.mrb[0].mxu0
    %v3561 = vadd.f32 %v439, %v3560
    %v3562 = vpop.f32.mrb[0].mxu0
    %v3563 = vpop.f32.mrb[0].mxu0
    %v3564 = vpop.f32.mrb[0].mxu0
    %3565 = vdwg.mxu0
    %v3567 = vsel %vm579, %v3260, 0
    %v3570 = vsel %vm579, %v3288, 0
    %3572 = vmatprep.subr.bf16.mxu0 0
    %3573 = vmatpush1.bf16.xpose.msra.mxu0 %v3570
    %3574 = vmatprep.subr.bf16.mxu0 0
    %3575 = vmatpush1.bf16.xpose.msra.mxu0 0
    %3576 = vmatprep.subr.bf16.mxu0 0
    %3577 = vmatpush1.bf16.xpose.msra.mxu0 0
    %3578 = vmatprep.subr.bf16.mxu0 0
    %3579 = vmatpush1.bf16.xpose.msra.mxu0 0
    %3580 = vmatprep.subr.bf16.mxu0 0
    %3581 = vmatpush1.bf16.xpose.msra.mxu0 0
    %3582 = vmatprep.subr.bf16.mxu0 0
    %3583 = vmatpush1.bf16.xpose.msra.mxu0 0
    %3584 = vmatprep.subr.bf16.mxu0 0
    %3585 = vmatpush1.bf16.xpose.msra.mxu0 0
    %3586 = vmatprep.subr.bf16.mxu0 0
    %3587 = vmatpush1.bf16.xpose.msra.mxu0 0
    %3588 = vmatprep.subr.bf16.mxu0 0
    %3589 = vmatpush1.bf16.xpose.msra.mxu0 0
    %3590 = vmatprep.subr.bf16.mxu0 0
    %3591 = vmatpush1.bf16.xpose.msra.mxu0 0
    %3592 = vmatprep.subr.bf16.mxu0 0
    %3593 = vmatpush1.bf16.xpose.msra.mxu0 0
    %3594 = vmatprep.subr.bf16.mxu0 0
    %3595 = vmatpush1.bf16.xpose.msra.mxu0 0
    %3596 = vmatprep.subr.bf16.mxu0 0
    %3597 = vmatpush1.bf16.xpose.msra.mxu0 0
    %3598 = vmatprep.subr.bf16.mxu0 0
    %3599 = vmatpush1.bf16.xpose.msra.mxu0 0
    %3600 = vmatprep.subr.bf16.mxu0 0
    %3601 = vmatpush1.bf16.xpose.msra.mxu0 0
    %3602 = vmatprep.subr.bf16.mxu0 0
    %3603 = vmatpush1.bf16.xpose.msra.mxu0 0
    %3604 = vmatprep.mubr.bf16.mxu0 0
    %3605 = vmatmul.mubr.bf16.gmra.mrb[0].mxu0 %v3567
    %v3606 = vpop.f32.mrb[0].mxu0
    %v3607 = vadd.f32 %v432, %v3606
    %v3608 = vpop.f32.mrb[0].mxu0
    %v3609 = vpop.f32.mrb[0].mxu0
    %v3610 = vpop.f32.mrb[0].mxu0
    %3611 = vdwg.mxu0
    %v3613 = vsel %vm579, %v3261, 0
    %v3616 = vsel %vm579, %v3289, 0
    %3618 = vmatprep.subr.bf16.mxu0 0
    %3619 = vmatpush1.bf16.xpose.msra.mxu0 %v3616
    %3620 = vmatprep.subr.bf16.mxu0 0
    %3621 = vmatpush1.bf16.xpose.msra.mxu0 0
    %3622 = vmatprep.subr.bf16.mxu0 0
    %3623 = vmatpush1.bf16.xpose.msra.mxu0 0
    %3624 = vmatprep.subr.bf16.mxu0 0
    %3625 = vmatpush1.bf16.xpose.msra.mxu0 0
    %3626 = vmatprep.subr.bf16.mxu0 0
    %3627 = vmatpush1.bf16.xpose.msra.mxu0 0
    %3628 = vmatprep.subr.bf16.mxu0 0
    %3629 = vmatpush1.bf16.xpose.msra.mxu0 0
    %3630 = vmatprep.subr.bf16.mxu0 0
    %3631 = vmatpush1.bf16.xpose.msra.mxu0 0
    %3632 = vmatprep.subr.bf16.mxu0 0
    %3633 = vmatpush1.bf16.xpose.msra.mxu0 0
    %3634 = vmatprep.subr.bf16.mxu0 0
    %3635 = vmatpush1.bf16.xpose.msra.mxu0 0
    %3636 = vmatprep.subr.bf16.mxu0 0
    %3637 = vmatpush1.bf16.xpose.msra.mxu0 0
    %3638 = vmatprep.subr.bf16.mxu0 0
    %3639 = vmatpush1.bf16.xpose.msra.mxu0 0
    %3640 = vmatprep.subr.bf16.mxu0 0
    %3641 = vmatpush1.bf16.xpose.msra.mxu0 0
    %3642 = vmatprep.subr.bf16.mxu0 0
    %3643 = vmatpush1.bf16.xpose.msra.mxu0 0
    %3644 = vmatprep.subr.bf16.mxu0 0
    %3645 = vmatpush1.bf16.xpose.msra.mxu0 0
    %3646 = vmatprep.subr.bf16.mxu0 0
    %3647 = vmatpush1.bf16.xpose.msra.mxu0 0
    %3648 = vmatprep.subr.bf16.mxu0 0
    %3649 = vmatpush1.bf16.xpose.msra.mxu0 0
    %3650 = vmatprep.mubr.bf16.mxu0 0
    %3651 = vmatmul.mubr.bf16.gmra.mrb[0].mxu0 %v3613
    %v3652 = vpop.f32.mrb[0].mxu0
    %v3653 = vadd.f32 %v439, %v3652
    %v3654 = vpop.f32.mrb[0].mxu0
    %v3655 = vpop.f32.mrb[0].mxu0
    %v3656 = vpop.f32.mrb[0].mxu0
    %3657 = vdwg.mxu0
    %vm3658 = vcmask 57344
    %v3659 = vsel %vm3658, %v3331, -inf
    %3660 = vmax.xlane.f32.xlu0 %v3659
    %v3661 = vpop.xlane.xlu0 %3660
    %v3662 = vsel %vm3658, %v3377, -inf
    %3663 = vmax.xlane.f32.xlu0 %v3662
    %v3664 = vpop.xlane.xlu0 %3663
    %v3665 = vsel %vm3658, %v3423, -inf
    %3666 = vmax.xlane.f32.xlu0 %v3665
    %v3667 = vpop.xlane.xlu0 %3666
    %v3668 = vsel %vm3658, %v3469, -inf
    %3669 = vmax.xlane.f32.xlu0 %v3668
    %v3670 = vpop.xlane.xlu0 %3669
    %v3671 = vsel %vm3658, %v3515, -inf
    %3672 = vmax.xlane.f32.xlu0 %v3671
    %v3673 = vpop.xlane.xlu0 %3672
    %v3674 = vsel %vm3658, %v3561, -inf
    %3675 = vmax.xlane.f32.xlu0 %v3674
    %v3676 = vpop.xlane.xlu0 %3675
    %v3677 = vsel %vm3658, %v3607, -inf
    %3678 = vmax.xlane.f32.xlu0 %v3677
    %v3679 = vpop.xlane.xlu0 %3678
    %v3680 = vsel %vm3658, %v3653, -inf
    %3681 = vmax.xlane.f32.xlu0 %v3680
    %v3682 = vpop.xlane.xlu0 %3681
    %v3683 = vsub.f32 %v3331, %v3661
    %v3684 = vsub.f32 %v3377, %v3664
    %v3685 = vsub.f32 %v3423, %v3667
    %v3686 = vsub.f32 %v3469, %v3670
    %v3687 = vsub.f32 %v3515, %v3673
    %v3688 = vsub.f32 %v3561, %v3676
    %v3689 = vsub.f32 %v3607, %v3679
    %v3690 = vsub.f32 %v3653, %v3682
    %v3691 = vmul.f32 %v3683, 1.442695
    %v3692 = vpow.pop %v3691
    %v3693 = vmul.f32 %v3684, 1.442695
    %v3694 = vpow.pop %v3693
    %v3695 = vmul.f32 %v3685, 1.442695
    %v3696 = vpow.pop %v3695
    %v3697 = vmul.f32 %v3686, 1.442695
    %v3698 = vpow.pop %v3697
    %v3699 = vmul.f32 %v3687, 1.442695
    %v3700 = vpow.pop %v3699
    %v3701 = vmul.f32 %v3688, 1.442695
    %v3702 = vpow.pop %v3701
    %v3703 = vmul.f32 %v3689, 1.442695
    %v3704 = vpow.pop %v3703
    %v3705 = vmul.f32 %v3690, 1.442695
    %v3706 = vpow.pop %v3705
    %v3707 = vsel %vm3658, %v3692, 0.0
    %3708 = vadd.xlane.f32.xlu0 %v3707
    %v3709 = vpop.xlane.xlu0 %3708
    %v3710 = vsel %vm3658, %v3694, 0.0
    %3711 = vadd.xlane.f32.xlu0 %v3710
    %v3712 = vpop.xlane.xlu0 %3711
    %v3713 = vsel %vm3658, %v3696, 0.0
    %3714 = vadd.xlane.f32.xlu0 %v3713
    %v3715 = vpop.xlane.xlu0 %3714
    %v3716 = vsel %vm3658, %v3698, 0.0
    %3717 = vadd.xlane.f32.xlu0 %v3716
    %v3718 = vpop.xlane.xlu0 %3717
    %v3719 = vsel %vm3658, %v3700, 0.0
    %3720 = vadd.xlane.f32.xlu0 %v3719
    %v3721 = vpop.xlane.xlu0 %3720
    %v3722 = vsel %vm3658, %v3702, 0.0
    %3723 = vadd.xlane.f32.xlu0 %v3722
    %v3724 = vpop.xlane.xlu0 %3723
    %v3725 = vsel %vm3658, %v3704, 0.0
    %3726 = vadd.xlane.f32.xlu0 %v3725
    %v3727 = vpop.xlane.xlu0 %3726
    %v3728 = vsel %vm3658, %v3706, 0.0
    %3729 = vadd.xlane.f32.xlu0 %v3728
    %v3730 = vpop.xlane.xlu0 %3729
    %v3731 = vrcp.pop %v3709
    %v3732 = vrcp.pop %v3712
    %v3733 = vrcp.pop %v3715
    %v3734 = vrcp.pop %v3718
    %v3735 = vrcp.pop %v3721
    %v3736 = vrcp.pop %v3724
    %v3737 = vrcp.pop %v3727
    %v3738 = vrcp.pop %v3730
    %v3739 = vmul.f32 %v3692, %v3731
    %v3740 = vmul.f32 %v3694, %v3732
    %v3741 = vmul.f32 %v3696, %v3733
    %v3742 = vmul.f32 %v3698, %v3734
    %v3743 = vmul.f32 %v3700, %v3735
    %v3744 = vmul.f32 %v3702, %v3736
    %v3745 = vmul.f32 %v3704, %v3737
    %v3746 = vmul.f32 %v3706, %v3738
    %v3747 = vpack.c.bf16 %v3739, %v3739
    %v3748 = vpack.c.bf16 %v3740, %v3740
    %v3749 = vpack.c.bf16 %v3741, %v3741
    %v3750 = vpack.c.bf16 %v3742, %v3742
    %v3751 = vpack.c.bf16 %v3743, %v3743
    %v3752 = vpack.c.bf16 %v3744, %v3744
    %v3753 = vpack.c.bf16 %v3745, %v3745
    %v3754 = vpack.c.bf16 %v3746, %v3746
    %3756 = vrot.lane.b32.xlu0 %v3282, 96
    %v3757 = vpop.permute.xlu0 %3756
    %v3759 = vsel %vm579, %v3747, 0
    %v3762 = vsel %vm1070, %v3757, 0
    %3764 = vmatprep.subr.bf16.mxu0 0
    %3765 = vmatpush1.bf16.msra.mxu0 %v3762
    %3766 = vmatprep.subr.bf16.mxu0 0
    %3767 = vmatpush1.bf16.msra.mxu0 0
    %3768 = vmatprep.subr.bf16.mxu0 0
    %3769 = vmatpush1.bf16.msra.mxu0 0
    %3770 = vmatprep.subr.bf16.mxu0 0
    %3771 = vmatpush1.bf16.msra.mxu0 0
    %3772 = vmatprep.subr.bf16.mxu0 0
    %3773 = vmatpush1.bf16.msra.mxu0 0
    %3774 = vmatprep.subr.bf16.mxu0 0
    %3775 = vmatpush1.bf16.msra.mxu0 0
    %3776 = vmatprep.subr.bf16.mxu0 0
    %3777 = vmatpush1.bf16.msra.mxu0 0
    %3778 = vmatprep.subr.bf16.mxu0 0
    %3779 = vmatpush1.bf16.msra.mxu0 0
    %3780 = vmatprep.subr.bf16.mxu0 0
    %3781 = vmatpush1.bf16.msra.mxu0 0
    %3782 = vmatprep.subr.bf16.mxu0 0
    %3783 = vmatpush1.bf16.msra.mxu0 0
    %3784 = vmatprep.subr.bf16.mxu0 0
    %3785 = vmatpush1.bf16.msra.mxu0 0
    %3786 = vmatprep.subr.bf16.mxu0 0
    %3787 = vmatpush1.bf16.msra.mxu0 0
    %3788 = vmatprep.subr.bf16.mxu0 0
    %3789 = vmatpush1.bf16.msra.mxu0 0
    %3790 = vmatprep.subr.bf16.mxu0 0
    %3791 = vmatpush1.bf16.msra.mxu0 0
    %3792 = vmatprep.subr.bf16.mxu0 0
    %3793 = vmatpush1.bf16.msra.mxu0 0
    %3794 = vmatprep.subr.bf16.mxu0 0
    %3795 = vmatpush1.bf16.msra.mxu0 0
    %3796 = vmatprep.mubr.bf16.mxu0 0
    %3797 = vmatmul.mubr.bf16.gmra.mrb[0].mxu0 %v3759
    %v3798 = vpop.f32.mrb[0].mxu0
    %v3799 = vadd.f32 0.0, %v3798
    %v3800 = vpop.f32.mrb[0].mxu0
    %v3801 = vpop.f32.mrb[0].mxu0
    %v3802 = vpop.f32.mrb[0].mxu0
    %3803 = vdwg.mxu0
    %3805 = vrot.lane.b32.xlu0 %v3283, 96
    %v3806 = vpop.permute.xlu0 %3805
    %v3808 = vsel %vm579, %v3748, 0
    %v3811 = vsel %vm1070, %v3806, 0
    %3813 = vmatprep.subr.bf16.mxu0 0
    %3814 = vmatpush1.bf16.msra.mxu0 %v3811
    %3815 = vmatprep.subr.bf16.mxu0 0
    %3816 = vmatpush1.bf16.msra.mxu0 0
    %3817 = vmatprep.subr.bf16.mxu0 0
    %3818 = vmatpush1.bf16.msra.mxu0 0
    %3819 = vmatprep.subr.bf16.mxu0 0
    %3820 = vmatpush1.bf16.msra.mxu0 0
    %3821 = vmatprep.subr.bf16.mxu0 0
    %3822 = vmatpush1.bf16.msra.mxu0 0
    %3823 = vmatprep.subr.bf16.mxu0 0
    %3824 = vmatpush1.bf16.msra.mxu0 0
    %3825 = vmatprep.subr.bf16.mxu0 0
    %3826 = vmatpush1.bf16.msra.mxu0 0
    %3827 = vmatprep.subr.bf16.mxu0 0
    %3828 = vmatpush1.bf16.msra.mxu0 0
    %3829 = vmatprep.subr.bf16.mxu0 0
    %3830 = vmatpush1.bf16.msra.mxu0 0
    %3831 = vmatprep.subr.bf16.mxu0 0
    %3832 = vmatpush1.bf16.msra.mxu0 0
    %3833 = vmatprep.subr.bf16.mxu0 0
    %3834 = vmatpush1.bf16.msra.mxu0 0
    %3835 = vmatprep.subr.bf16.mxu0 0
    %3836 = vmatpush1.bf16.msra.mxu0 0
    %3837 = vmatprep.subr.bf16.mxu0 0
    %3838 = vmatpush1.bf16.msra.mxu0 0
    %3839 = vmatprep.subr.bf16.mxu0 0
    %3840 = vmatpush1.bf16.msra.mxu0 0
    %3841 = vmatprep.subr.bf16.mxu0 0
    %3842 = vmatpush1.bf16.msra.mxu0 0
    %3843 = vmatprep.subr.bf16.mxu0 0
    %3844 = vmatpush1.bf16.msra.mxu0 0
    %3845 = vmatprep.mubr.bf16.mxu0 0
    %3846 = vmatmul.mubr.bf16.gmra.mrb[0].mxu0 %v3808
    %v3847 = vpop.f32.mrb[0].mxu0
    %v3848 = vadd.f32 0.0, %v3847
    %v3849 = vpop.f32.mrb[0].mxu0
    %v3850 = vpop.f32.mrb[0].mxu0
    %v3851 = vpop.f32.mrb[0].mxu0
    %3852 = vdwg.mxu0
    %3854 = vrot.lane.b32.xlu0 %v3284, 96
    %v3855 = vpop.permute.xlu0 %3854
    %v3857 = vsel %vm579, %v3749, 0
    %v3860 = vsel %vm1070, %v3855, 0
    %3862 = vmatprep.subr.bf16.mxu0 0
    %3863 = vmatpush1.bf16.msra.mxu0 %v3860
    %3864 = vmatprep.subr.bf16.mxu0 0
    %3865 = vmatpush1.bf16.msra.mxu0 0
    %3866 = vmatprep.subr.bf16.mxu0 0
    %3867 = vmatpush1.bf16.msra.mxu0 0
    %3868 = vmatprep.subr.bf16.mxu0 0
    %3869 = vmatpush1.bf16.msra.mxu0 0
    %3870 = vmatprep.subr.bf16.mxu0 0
    %3871 = vmatpush1.bf16.msra.mxu0 0
    %3872 = vmatprep.subr.bf16.mxu0 0
    %3873 = vmatpush1.bf16.msra.mxu0 0
    %3874 = vmatprep.subr.bf16.mxu0 0
    %3875 = vmatpush1.bf16.msra.mxu0 0
    %3876 = vmatprep.subr.bf16.mxu0 0
    %3877 = vmatpush1.bf16.msra.mxu0 0
    %3878 = vmatprep.subr.bf16.mxu0 0
    %3879 = vmatpush1.bf16.msra.mxu0 0
    %3880 = vmatprep.subr.bf16.mxu0 0
    %3881 = vmatpush1.bf16.msra.mxu0 0
    %3882 = vmatprep.subr.bf16.mxu0 0
    %3883 = vmatpush1.bf16.msra.mxu0 0
    %3884 = vmatprep.subr.bf16.mxu0 0
    %3885 = vmatpush1.bf16.msra.mxu0 0
    %3886 = vmatprep.subr.bf16.mxu0 0
    %3887 = vmatpush1.bf16.msra.mxu0 0
    %3888 = vmatprep.subr.bf16.mxu0 0
    %3889 = vmatpush1.bf16.msra.mxu0 0
    %3890 = vmatprep.subr.bf16.mxu0 0
    %3891 = vmatpush1.bf16.msra.mxu0 0
    %3892 = vmatprep.subr.bf16.mxu0 0
    %3893 = vmatpush1.bf16.msra.mxu0 0
    %3894 = vmatprep.mubr.bf16.mxu0 0
    %3895 = vmatmul.mubr.bf16.gmra.mrb[0].mxu0 %v3857
    %v3896 = vpop.f32.mrb[0].mxu0
    %v3897 = vadd.f32 0.0, %v3896
    %v3898 = vpop.f32.mrb[0].mxu0
    %v3899 = vpop.f32.mrb[0].mxu0
    %v3900 = vpop.f32.mrb[0].mxu0
    %3901 = vdwg.mxu0
    %3903 = vrot.lane.b32.xlu0 %v3285, 96
    %v3904 = vpop.permute.xlu0 %3903
    %v3906 = vsel %vm579, %v3750, 0
    %v3909 = vsel %vm1070, %v3904, 0
    %3911 = vmatprep.subr.bf16.mxu0 0
    %3912 = vmatpush1.bf16.msra.mxu0 %v3909
    %3913 = vmatprep.subr.bf16.mxu0 0
    %3914 = vmatpush1.bf16.msra.mxu0 0
    %3915 = vmatprep.subr.bf16.mxu0 0
    %3916 = vmatpush1.bf16.msra.mxu0 0
    %3917 = vmatprep.subr.bf16.mxu0 0
    %3918 = vmatpush1.bf16.msra.mxu0 0
    %3919 = vmatprep.subr.bf16.mxu0 0
    %3920 = vmatpush1.bf16.msra.mxu0 0
    %3921 = vmatprep.subr.bf16.mxu0 0
    %3922 = vmatpush1.bf16.msra.mxu0 0
    %3923 = vmatprep.subr.bf16.mxu0 0
    %3924 = vmatpush1.bf16.msra.mxu0 0
    %3925 = vmatprep.subr.bf16.mxu0 0
    %3926 = vmatpush1.bf16.msra.mxu0 0
    %3927 = vmatprep.subr.bf16.mxu0 0
    %3928 = vmatpush1.bf16.msra.mxu0 0
    %3929 = vmatprep.subr.bf16.mxu0 0
    %3930 = vmatpush1.bf16.msra.mxu0 0
    %3931 = vmatprep.subr.bf16.mxu0 0
    %3932 = vmatpush1.bf16.msra.mxu0 0
    %3933 = vmatprep.subr.bf16.mxu0 0
    %3934 = vmatpush1.bf16.msra.mxu0 0
    %3935 = vmatprep.subr.bf16.mxu0 0
    %3936 = vmatpush1.bf16.msra.mxu0 0
    %3937 = vmatprep.subr.bf16.mxu0 0
    %3938 = vmatpush1.bf16.msra.mxu0 0
    %3939 = vmatprep.subr.bf16.mxu0 0
    %3940 = vmatpush1.bf16.msra.mxu0 0
    %3941 = vmatprep.subr.bf16.mxu0 0
    %3942 = vmatpush1.bf16.msra.mxu0 0
    %3943 = vmatprep.mubr.bf16.mxu0 0
    %3944 = vmatmul.mubr.bf16.gmra.mrb[0].mxu0 %v3906
    %v3945 = vpop.f32.mrb[0].mxu0
    %v3946 = vadd.f32 0.0, %v3945
    %v3947 = vpop.f32.mrb[0].mxu0
    %v3948 = vpop.f32.mrb[0].mxu0
    %v3949 = vpop.f32.mrb[0].mxu0
    %3950 = vdwg.mxu0
    %3952 = vrot.lane.b32.xlu0 %v3286, 96
    %v3953 = vpop.permute.xlu0 %3952
    %v3955 = vsel %vm579, %v3751, 0
    %v3958 = vsel %vm1070, %v3953, 0
    %3960 = vmatprep.subr.bf16.mxu0 0
    %3961 = vmatpush1.bf16.msra.mxu0 %v3958
    %3962 = vmatprep.subr.bf16.mxu0 0
    %3963 = vmatpush1.bf16.msra.mxu0 0
    %3964 = vmatprep.subr.bf16.mxu0 0
    %3965 = vmatpush1.bf16.msra.mxu0 0
    %3966 = vmatprep.subr.bf16.mxu0 0
    %3967 = vmatpush1.bf16.msra.mxu0 0
    %3968 = vmatprep.subr.bf16.mxu0 0
    %3969 = vmatpush1.bf16.msra.mxu0 0
    %3970 = vmatprep.subr.bf16.mxu0 0
    %3971 = vmatpush1.bf16.msra.mxu0 0
    %3972 = vmatprep.subr.bf16.mxu0 0
    %3973 = vmatpush1.bf16.msra.mxu0 0
    %3974 = vmatprep.subr.bf16.mxu0 0
    %3975 = vmatpush1.bf16.msra.mxu0 0
    %3976 = vmatprep.subr.bf16.mxu0 0
    %3977 = vmatpush1.bf16.msra.mxu0 0
    %3978 = vmatprep.subr.bf16.mxu0 0
    %3979 = vmatpush1.bf16.msra.mxu0 0
    %3980 = vmatprep.subr.bf16.mxu0 0
    %3981 = vmatpush1.bf16.msra.mxu0 0
    %3982 = vmatprep.subr.bf16.mxu0 0
    %3983 = vmatpush1.bf16.msra.mxu0 0
    %3984 = vmatprep.subr.bf16.mxu0 0
    %3985 = vmatpush1.bf16.msra.mxu0 0
    %3986 = vmatprep.subr.bf16.mxu0 0
    %3987 = vmatpush1.bf16.msra.mxu0 0
    %3988 = vmatprep.subr.bf16.mxu0 0
    %3989 = vmatpush1.bf16.msra.mxu0 0
    %3990 = vmatprep.subr.bf16.mxu0 0
    %3991 = vmatpush1.bf16.msra.mxu0 0
    %3992 = vmatprep.mubr.bf16.mxu0 0
    %3993 = vmatmul.mubr.bf16.gmra.mrb[0].mxu0 %v3955
    %v3994 = vpop.f32.mrb[0].mxu0
    %v3995 = vadd.f32 0.0, %v3994
    %v3996 = vpop.f32.mrb[0].mxu0
    %v3997 = vpop.f32.mrb[0].mxu0
    %v3998 = vpop.f32.mrb[0].mxu0
    %3999 = vdwg.mxu0
    %4001 = vrot.lane.b32.xlu0 %v3287, 96
    %v4002 = vpop.permute.xlu0 %4001
    %v4004 = vsel %vm579, %v3752, 0
    %v4007 = vsel %vm1070, %v4002, 0
    %4009 = vmatprep.subr.bf16.mxu0 0
    %4010 = vmatpush1.bf16.msra.mxu0 %v4007
    %4011 = vmatprep.subr.bf16.mxu0 0
    %4012 = vmatpush1.bf16.msra.mxu0 0
    %4013 = vmatprep.subr.bf16.mxu0 0
    %4014 = vmatpush1.bf16.msra.mxu0 0
    %4015 = vmatprep.subr.bf16.mxu0 0
    %4016 = vmatpush1.bf16.msra.mxu0 0
    %4017 = vmatprep.subr.bf16.mxu0 0
    %4018 = vmatpush1.bf16.msra.mxu0 0
    %4019 = vmatprep.subr.bf16.mxu0 0
    %4020 = vmatpush1.bf16.msra.mxu0 0
    %4021 = vmatprep.subr.bf16.mxu0 0
    %4022 = vmatpush1.bf16.msra.mxu0 0
    %4023 = vmatprep.subr.bf16.mxu0 0
    %4024 = vmatpush1.bf16.msra.mxu0 0
    %4025 = vmatprep.subr.bf16.mxu0 0
    %4026 = vmatpush1.bf16.msra.mxu0 0
    %4027 = vmatprep.subr.bf16.mxu0 0
    %4028 = vmatpush1.bf16.msra.mxu0 0
    %4029 = vmatprep.subr.bf16.mxu0 0
    %4030 = vmatpush1.bf16.msra.mxu0 0
    %4031 = vmatprep.subr.bf16.mxu0 0
    %4032 = vmatpush1.bf16.msra.mxu0 0
    %4033 = vmatprep.subr.bf16.mxu0 0
    %4034 = vmatpush1.bf16.msra.mxu0 0
    %4035 = vmatprep.subr.bf16.mxu0 0
    %4036 = vmatpush1.bf16.msra.mxu0 0
    %4037 = vmatprep.subr.bf16.mxu0 0
    %4038 = vmatpush1.bf16.msra.mxu0 0
    %4039 = vmatprep.subr.bf16.mxu0 0
    %4040 = vmatpush1.bf16.msra.mxu0 0
    %4041 = vmatprep.mubr.bf16.mxu0 0
    %4042 = vmatmul.mubr.bf16.gmra.mrb[0].mxu0 %v4004
    %v4043 = vpop.f32.mrb[0].mxu0
    %v4044 = vadd.f32 0.0, %v4043
    %v4045 = vpop.f32.mrb[0].mxu0
    %v4046 = vpop.f32.mrb[0].mxu0
    %v4047 = vpop.f32.mrb[0].mxu0
    %4048 = vdwg.mxu0
    %4050 = vrot.lane.b32.xlu0 %v3288, 96
    %v4051 = vpop.permute.xlu0 %4050
    %v4053 = vsel %vm579, %v3753, 0
    %v4056 = vsel %vm1070, %v4051, 0
    %4058 = vmatprep.subr.bf16.mxu0 0
    %4059 = vmatpush1.bf16.msra.mxu0 %v4056
    %4060 = vmatprep.subr.bf16.mxu0 0
    %4061 = vmatpush1.bf16.msra.mxu0 0
    %4062 = vmatprep.subr.bf16.mxu0 0
    %4063 = vmatpush1.bf16.msra.mxu0 0
    %4064 = vmatprep.subr.bf16.mxu0 0
    %4065 = vmatpush1.bf16.msra.mxu0 0
    %4066 = vmatprep.subr.bf16.mxu0 0
    %4067 = vmatpush1.bf16.msra.mxu0 0
    %4068 = vmatprep.subr.bf16.mxu0 0
    %4069 = vmatpush1.bf16.msra.mxu0 0
    %4070 = vmatprep.subr.bf16.mxu0 0
    %4071 = vmatpush1.bf16.msra.mxu0 0
    %4072 = vmatprep.subr.bf16.mxu0 0
    %4073 = vmatpush1.bf16.msra.mxu0 0
    %4074 = vmatprep.subr.bf16.mxu0 0
    %4075 = vmatpush1.bf16.msra.mxu0 0
    %4076 = vmatprep.subr.bf16.mxu0 0
    %4077 = vmatpush1.bf16.msra.mxu0 0
    %4078 = vmatprep.subr.bf16.mxu0 0
    %4079 = vmatpush1.bf16.msra.mxu0 0
    %4080 = vmatprep.subr.bf16.mxu0 0
    %4081 = vmatpush1.bf16.msra.mxu0 0
    %4082 = vmatprep.subr.bf16.mxu0 0
    %4083 = vmatpush1.bf16.msra.mxu0 0
    %4084 = vmatprep.subr.bf16.mxu0 0
    %4085 = vmatpush1.bf16.msra.mxu0 0
    %4086 = vmatprep.subr.bf16.mxu0 0
    %4087 = vmatpush1.bf16.msra.mxu0 0
    %4088 = vmatprep.subr.bf16.mxu0 0
    %4089 = vmatpush1.bf16.msra.mxu0 0
    %4090 = vmatprep.mubr.bf16.mxu0 0
    %4091 = vmatmul.mubr.bf16.gmra.mrb[0].mxu0 %v4053
    %v4092 = vpop.f32.mrb[0].mxu0
    %v4093 = vadd.f32 0.0, %v4092
    %v4094 = vpop.f32.mrb[0].mxu0
    %v4095 = vpop.f32.mrb[0].mxu0
    %v4096 = vpop.f32.mrb[0].mxu0
    %4097 = vdwg.mxu0
    %4099 = vrot.lane.b32.xlu0 %v3289, 96
    %v4100 = vpop.permute.xlu0 %4099
    %v4102 = vsel %vm579, %v3754, 0
    %v4105 = vsel %vm1070, %v4100, 0
    %4107 = vmatprep.subr.bf16.mxu0 0
    %4108 = vmatpush1.bf16.msra.mxu0 %v4105
    %4109 = vmatprep.subr.bf16.mxu0 0
    %4110 = vmatpush1.bf16.msra.mxu0 0
    %4111 = vmatprep.subr.bf16.mxu0 0
    %4112 = vmatpush1.bf16.msra.mxu0 0
    %4113 = vmatprep.subr.bf16.mxu0 0
    %4114 = vmatpush1.bf16.msra.mxu0 0
    %4115 = vmatprep.subr.bf16.mxu0 0
    %4116 = vmatpush1.bf16.msra.mxu0 0
    %4117 = vmatprep.subr.bf16.mxu0 0
    %4118 = vmatpush1.bf16.msra.mxu0 0
    %4119 = vmatprep.subr.bf16.mxu0 0
    %4120 = vmatpush1.bf16.msra.mxu0 0
    %4121 = vmatprep.subr.bf16.mxu0 0
    %4122 = vmatpush1.bf16.msra.mxu0 0
    %4123 = vmatprep.subr.bf16.mxu0 0
    %4124 = vmatpush1.bf16.msra.mxu0 0
    %4125 = vmatprep.subr.bf16.mxu0 0
    %4126 = vmatpush1.bf16.msra.mxu0 0
    %4127 = vmatprep.subr.bf16.mxu0 0
    %4128 = vmatpush1.bf16.msra.mxu0 0
    %4129 = vmatprep.subr.bf16.mxu0 0
    %4130 = vmatpush1.bf16.msra.mxu0 0
    %4131 = vmatprep.subr.bf16.mxu0 0
    %4132 = vmatpush1.bf16.msra.mxu0 0
    %4133 = vmatprep.subr.bf16.mxu0 0
    %4134 = vmatpush1.bf16.msra.mxu0 0
    %4135 = vmatprep.subr.bf16.mxu0 0
    %4136 = vmatpush1.bf16.msra.mxu0 0
    %4137 = vmatprep.subr.bf16.mxu0 0
    %4138 = vmatpush1.bf16.msra.mxu0 0
    %4139 = vmatprep.mubr.bf16.mxu0 0
    %4140 = vmatmul.mubr.bf16.gmra.mrb[0].mxu0 %v4102
    %v4141 = vpop.f32.mrb[0].mxu0
    %v4142 = vadd.f32 0.0, %v4141
    %v4143 = vpop.f32.mrb[0].mxu0
    %v4144 = vpop.f32.mrb[0].mxu0
    %v4145 = vpop.f32.mrb[0].mxu0
    %4146 = vdwg.mxu0
    %4149 = vrot.lane.b32.xlu0 %v3897, 8
    %v4150 = vpop.permute.xlu0 %4149
    %4151 = vrot.lane.b32.xlu0 %v3946, 8
    %v4152 = vpop.permute.xlu0 %4151
    %4157 = vrot.lane.b32.xlu0 %v3995, 16
    %v4158 = vpop.permute.xlu0 %4157
    %4159 = vrot.lane.b32.xlu0 %v4044, 16
    %v4160 = vpop.permute.xlu0 %4159
    %4165 = vrot.lane.b32.xlu0 %v4093, 24
    %v4166 = vpop.permute.xlu0 %4165
    %4167 = vrot.lane.b32.xlu0 %v4142, 24
    %v4168 = vpop.permute.xlu0 %4167
    %v4171 = vsel %vm579, %v3799, %v4150
    %v4172 = vsel %vm579, %v3848, %v4152
    %v4173 = vsel %vm1476, %v4171, %v4158
    %v4174 = vsel %vm1476, %v4172, %v4160
    %v4175 = vsel %vm1479, %v4173, %v4166
    %v4176 = vsel %vm1479, %v4174, %v4168
    %v4177 = vld [vmem:[%s16] sm:$0xf]
    %v4178 = vld [vmem:[%s16 + $0x4] sm:$0xf]
    %v4179 = vld [vmem:[%s16 + $0x8] sm:$0xf]
    %v4180 = vld [vmem:[%s16 + $0xc] sm:$0xf]
    %v4181 = vpack.c.bf16 %v4175, %v4175
    %v4182 = vpack.c.bf16 %v4176, %v4176
    %v4185 = vunpack.c.l.b16 %v4181
    %v4186 = vunpack.c.l.b16 %v4182
    %v4187 = vrot.slane %v4186, 7
    %vm4188 = vcmask 1041409
    %v4189 = vsel %vm4188, %v4187, %v4185
    %v4190 = vpack.c.b16 %v4189, %v4189
    %v4195 = vunpack.c.l.b16 %v4177
    %v4196 = vunpack.c.l.b16 %v4178
    %v4197 = vunpack.c.l.b16 %v4179
    %v4198 = vunpack.c.l.b16 %v4180
    %v4199 = vpack.c.b16 %v4196, %v4195
    %v4200 = vpack.c.b16 %v4198, %v4197
    %v4204 = vsel %vm463, %v4190, 0
    %4206 = vmatprep.subr.bf16.mxu0 0
    %4207 = vmatpush1.bf16.msra.mxu0 %v4199
    %4208 = vmatprep.subr.bf16.mxu0 0
    %4209 = vmatpush1.bf16.msra.mxu0 %v4200
    %4210 = vmatprep.subr.bf16.mxu0 0
    %4211 = vmatpush1.bf16.msra.mxu0 0
    %4212 = vmatprep.subr.bf16.mxu0 0
    %4213 = vmatpush1.bf16.msra.mxu0 0
    %4214 = vmatprep.subr.bf16.mxu0 0
    %4215 = vmatpush1.bf16.msra.mxu0 0
    %4216 = vmatprep.subr.bf16.mxu0 0
    %4217 = vmatpush1.bf16.msra.mxu0 0
    %4218 = vmatprep.subr.bf16.mxu0 0
    %4219 = vmatpush1.bf16.msra.mxu0 0
    %4220 = vmatprep.subr.bf16.mxu0 0
    %4221 = vmatpush1.bf16.msra.mxu0 0
    %4222 = vmatprep.subr.bf16.mxu0 0
    %4223 = vmatpush1.bf16.msra.mxu0 0
    %4224 = vmatprep.subr.bf16.mxu0 0
    %4225 = vmatpush1.bf16.msra.mxu0 0
    %4226 = vmatprep.subr.bf16.mxu0 0
    %4227 = vmatpush1.bf16.msra.mxu0 0
    %4228 = vmatprep.subr.bf16.mxu0 0
    %4229 = vmatpush1.bf16.msra.mxu0 0
    %4230 = vmatprep.subr.bf16.mxu0 0
    %4231 = vmatpush1.bf16.msra.mxu0 0
    %4232 = vmatprep.subr.bf16.mxu0 0
    %4233 = vmatpush1.bf16.msra.mxu0 0
    %4234 = vmatprep.subr.bf16.mxu0 0
    %4235 = vmatpush1.bf16.msra.mxu0 0
    %4236 = vmatprep.subr.bf16.mxu0 0
    %4237 = vmatpush1.bf16.msra.mxu0 0
    %4238 = vmatprep.mubr.bf16.mxu0 0
    %4239 = vmatmul.mubr.bf16.gmra.mrb[0].mxu0 %v4204
    %v4240 = vpop.f32.mrb[0].mxu0
    %v4241 = vadd.f32 0.0, %v4240
    %v4242 = vpop.f32.mrb[0].mxu0
    %v4243 = vpop.f32.mrb[0].mxu0
    %v4244 = vpop.f32.mrb[0].mxu0
    %4245 = vdwg.mxu0
    %v4246 = vadd.f32 %v3133, %v4241
    %v4247 = vld [vmem:[#allocation25] sm:$0x1]
    %v4248 = vmul.f32 %v4246, %v4246
    %v4249 = vsel %vm3136, %v4248, 0.0
    %4250 = vadd.xlane.f32.xlu0 %v4249
    %v4251 = vpop.xlane.xlu0 %4250
    %v4252 = vmul.f32 %v4251, %v470
    %v4254 = vlaneseq
    %v4255 = vshrl.u32 %v4254, 7
    %v4256 = vsub.s32 0, %v4255
    %v4257 = vrot.slane %v4247, %v4256
    %v4259 = vmul.f32 %v4257, %v4246
    %v4260 = vadd.f32 %v4252, 1e-06
    %v4261 = vrsqrt.pop %v4260
    %v4262 = vmul.f32 %v4259, %v4261
    %v4263 = vld [vmem:[%s18] sm:$0xf]
    %v4264 = vld [vmem:[%s18 + $0x4] sm:$0xf]
    %v4265 = vld [vmem:[%s18 + $0x8] sm:$0xf]
    %v4266 = vld [vmem:[%s18 + $0xc] sm:$0xf]
    %v4267 = vpack.c.bf16 %v4262, %v4262
    %v4272 = vunpack.c.l.b16 %v4263
    %v4273 = vunpack.c.l.b16 %v4264
    %v4274 = vunpack.c.l.b16 %v4265
    %v4275 = vunpack.c.l.b16 %v4266
    %v4276 = vpack.c.b16 %v4273, %v4272
    %v4277 = vpack.c.b16 %v4275, %v4274
    %v4281 = vsel %vm463, %v4267, 0
    %4283 = vmatprep.subr.bf16.mxu0 0
    %4284 = vmatpush1.bf16.msra.mxu0 %v4276
    %4285 = vmatprep.subr.bf16.mxu0 0
    %4286 = vmatpush1.bf16.msra.mxu0 %v4277
    %4287 = vmatprep.subr.bf16.mxu0 0
    %4288 = vmatpush1.bf16.msra.mxu0 0
    %4289 = vmatprep.subr.bf16.mxu0 0
    %4290 = vmatpush1.bf16.msra.mxu0 0
    %4291 = vmatprep.subr.bf16.mxu0 0
    %4292 = vmatpush1.bf16.msra.mxu0 0
    %4293 = vmatprep.subr.bf16.mxu0 0
    %4294 = vmatpush1.bf16.msra.mxu0 0
    %4295 = vmatprep.subr.bf16.mxu0 0
    %4296 = vmatpush1.bf16.msra.mxu0 0
    %4297 = vmatprep.subr.bf16.mxu0 0
    %4298 = vmatpush1.bf16.msra.mxu0 0
    %4299 = vmatprep.subr.bf16.mxu0 0
    %4300 = vmatpush1.bf16.msra.mxu0 0
    %4301 = vmatprep.subr.bf16.mxu0 0
    %4302 = vmatpush1.bf16.msra.mxu0 0
    %4303 = vmatprep.subr.bf16.mxu0 0
    %4304 = vmatpush1.bf16.msra.mxu0 0
    %4305 = vmatprep.subr.bf16.mxu0 0
    %4306 = vmatpush1.bf16.msra.mxu0 0
    %4307 = vmatprep.subr.bf16.mxu0 0
    %4308 = vmatpush1.bf16.msra.mxu0 0
    %4309 = vmatprep.subr.bf16.mxu0 0
    %4310 = vmatpush1.bf16.msra.mxu0 0
    %4311 = vmatprep.subr.bf16.mxu0 0
    %4312 = vmatpush1.bf16.msra.mxu0 0
    %4313 = vmatprep.subr.bf16.mxu0 0
    %4314 = vmatpush1.bf16.msra.mxu0 0
    %4315 = vmatprep.mubr.bf16.mxu0 0
    %4316 = vmatmul.mubr.bf16.gmra.mrb[0].mxu0 %v4281
    %v4317 = vpop.f32.mrb[0].mxu0
    %v4318 = vadd.f32 0.0, %v4317
    %v4319 = vpop.f32.mrb[0].mxu0
    %v4320 = vpop.f32.mrb[0].mxu0
    %v4321 = vpop.f32.mrb[0].mxu0
    %4322 = vdwg.mxu0
    %v4323 = vmax.f32 %v4318, 0.0
    %v4324 = vld [vmem:[%s19] sm:$0xf]
    %v4325 = vld [vmem:[%s19 + $0x4] sm:$0xf]
    %v4326 = vld [vmem:[%s19 + $0x8] sm:$0xf]
    %v4327 = vld [vmem:[%s19 + $0xc] sm:$0xf]
    %v4328 = vld [vmem:[%s19 + $0x10] sm:$0xf]
    %v4329 = vld [vmem:[%s19 + $0x14] sm:$0xf]
    %v4330 = vld [vmem:[%s19 + $0x18] sm:$0xf]
    %v4331 = vld [vmem:[%s19 + $0x1c] sm:$0xf]
    %v4332 = vpack.c.bf16 %v4323, %v4323
    %v4341 = vunpack.c.l.b16 %v4324
    %v4342 = vunpack.c.l.b16 %v4325
    %v4343 = vunpack.c.l.b16 %v4326
    %v4344 = vunpack.c.l.b16 %v4327
    %v4345 = vunpack.c.l.b16 %v4328
    %v4346 = vunpack.c.l.b16 %v4329
    %v4347 = vunpack.c.l.b16 %v4330
    %v4348 = vunpack.c.l.b16 %v4331
    %v4349 = vpack.c.b16 %v4342, %v4341
    %v4350 = vpack.c.b16 %v4344, %v4343
    %v4351 = vpack.c.b16 %v4346, %v4345
    %v4352 = vpack.c.b16 %v4348, %v4347
    %v4358 = vsel %vm1666, %v4332, 0
    %4360 = vmatprep.subr.bf16.mxu0 0
    %4361 = vmatpush1.bf16.msra.mxu0 %v4349
    %4362 = vmatprep.subr.bf16.mxu0 0
    %4363 = vmatpush1.bf16.msra.mxu0 %v4350
    %4364 = vmatprep.subr.bf16.mxu0 0
    %4365 = vmatpush1.bf16.msra.mxu0 %v4351
    %4366 = vmatprep.subr.bf16.mxu0 0
    %4367 = vmatpush1.bf16.msra.mxu0 %v4352
    %4368 = vmatprep.subr.bf16.mxu0 0
    %4369 = vmatpush1.bf16.msra.mxu0 0
    %4370 = vmatprep.subr.bf16.mxu0 0
    %4371 = vmatpush1.bf16.msra.mxu0 0
    %4372 = vmatprep.subr.bf16.mxu0 0
    %4373 = vmatpush1.bf16.msra.mxu0 0
    %4374 = vmatprep.subr.bf16.mxu0 0
    %4375 = vmatpush1.bf16.msra.mxu0 0
    %4376 = vmatprep.subr.bf16.mxu0 0
    %4377 = vmatpush1.bf16.msra.mxu0 0
    %4378 = vmatprep.subr.bf16.mxu0 0
    %4379 = vmatpush1.bf16.msra.mxu0 0
    %4380 = vmatprep.subr.bf16.mxu0 0
    %4381 = vmatpush1.bf16.msra.mxu0 0
    %4382 = vmatprep.subr.bf16.mxu0 0
    %4383 = vmatpush1.bf16.msra.mxu0 0
    %4384 = vmatprep.subr.bf16.mxu0 0
    %4385 = vmatpush1.bf16.msra.mxu0 0
    %4386 = vmatprep.subr.bf16.mxu0 0
    %4387 = vmatpush1.bf16.msra.mxu0 0
    %4388 = vmatprep.subr.bf16.mxu0 0
    %4389 = vmatpush1.bf16.msra.mxu0 0
    %4390 = vmatprep.subr.bf16.mxu0 0
    %4391 = vmatpush1.bf16.msra.mxu0 0
    %4392 = vmatprep.mubr.bf16.mxu0 0
    %4393 = vmatmul.mubr.bf16.gmra.mrb[0].mxu0 %v4358
    %v4394 = vpop.f32.mrb[0].mxu0
    %v4395 = vadd.f32 0.0, %v4394
    %v4396 = vpop.f32.mrb[0].mxu0
    %v4397 = vpop.f32.mrb[0].mxu0
    %v4398 = vpop.f32.mrb[0].mxu0
    %4399 = vdwg.mxu0
    %v4400 = vadd.f32 %v4246, %v4395
    %s4401 = scalar_lea.vmem [#allocation17], 1
    %v4402 = vld [vmem:[%s4401] sm:$0x1]
    %v4403 = vmul.f32 %v4400, %v4400
    %v4404 = vsel %vm3136, %v4403, 0.0
    %4405 = vadd.xlane.f32.xlu0 %v4404
    %v4406 = vpop.xlane.xlu0 %4405
    %v4407 = vmul.f32 %v4406, %v470
    %v4409 = vlaneseq
    %v4410 = vshrl.u32 %v4409, 7
    %v4411 = vsub.s32 0, %v4410
    %v4412 = vrot.slane %v4402, %v4411
    %v4414 = vmul.f32 %v4412, %v4400
    %v4415 = vadd.f32 %v4407, 1e-06
    %v4416 = vrsqrt.pop %v4415
    %v4417 = vmul.f32 %v4414, %v4416
    %s4418 = scalar_lea.vmem [#allocation19], 16
    %v4419 = vld [vmem:[%s4418] sm:$0xf]
    %v4420 = vld [vmem:[%s4418 + $0x4] sm:$0xf]
    %v4421 = vld [vmem:[%s4418 + $0x8] sm:$0xf]
    %v4422 = vld [vmem:[%s4418 + $0xc] sm:$0xf]
    %v4423 = vpack.c.bf16 %v4417, %v4417
    %v4428 = vunpack.c.l.b16 %v4419
    %v4429 = vunpack.c.l.b16 %v4420
    %v4430 = vunpack.c.l.b16 %v4421
    %v4431 = vunpack.c.l.b16 %v4422
    %v4432 = vpack.c.b16 %v4429, %v4428
    %v4433 = vpack.c.b16 %v4431, %v4430
    %v4437 = vsel %vm463, %v4423, 0
    %4439 = vmatprep.subr.bf16.mxu0 0
    %4440 = vmatpush1.bf16.msra.mxu0 %v4432
    %4441 = vmatprep.subr.bf16.mxu0 0
    %4442 = vmatpush1.bf16.msra.mxu0 %v4433
    %4443 = vmatprep.subr.bf16.mxu0 0
    %4444 = vmatpush1.bf16.msra.mxu0 0
    %4445 = vmatprep.subr.bf16.mxu0 0
    %4446 = vmatpush1.bf16.msra.mxu0 0
    %4447 = vmatprep.subr.bf16.mxu0 0
    %4448 = vmatpush1.bf16.msra.mxu0 0
    %4449 = vmatprep.subr.bf16.mxu0 0
    %4450 = vmatpush1.bf16.msra.mxu0 0
    %4451 = vmatprep.subr.bf16.mxu0 0
    %4452 = vmatpush1.bf16.msra.mxu0 0
    %4453 = vmatprep.subr.bf16.mxu0 0
    %4454 = vmatpush1.bf16.msra.mxu0 0
    %4455 = vmatprep.subr.bf16.mxu0 0
    %4456 = vmatpush1.bf16.msra.mxu0 0
    %4457 = vmatprep.subr.bf16.mxu0 0
    %4458 = vmatpush1.bf16.msra.mxu0 0
    %4459 = vmatprep.subr.bf16.mxu0 0
    %4460 = vmatpush1.bf16.msra.mxu0 0
    %4461 = vmatprep.subr.bf16.mxu0 0
    %4462 = vmatpush1.bf16.msra.mxu0 0
    %4463 = vmatprep.subr.bf16.mxu0 0
    %4464 = vmatpush1.bf16.msra.mxu0 0
    %4465 = vmatprep.subr.bf16.mxu0 0
    %4466 = vmatpush1.bf16.msra.mxu0 0
    %4467 = vmatprep.subr.bf16.mxu0 0
    %4468 = vmatpush1.bf16.msra.mxu0 0
    %4469 = vmatprep.subr.bf16.mxu0 0
    %4470 = vmatpush1.bf16.msra.mxu0 0
    %4471 = vmatprep.mubr.bf16.mxu0 0
    %4472 = vmatmul.mubr.bf16.gmra.mrb[0].mxu0 %v4437
    %v4473 = vpop.f32.mrb[0].mxu0
    %v4474 = vadd.f32 0.0, %v4473
    %v4475 = vpop.f32.mrb[0].mxu0
    %v4476 = vpop.f32.mrb[0].mxu0
    %v4477 = vpop.f32.mrb[0].mxu0
    %4478 = vdwg.mxu0
    %v4479 = vadd.f32 %v4400, %v4474
    %s4480 = scalar_lea.vmem [#allocation20], 1
    %v4481 = vld [vmem:[%s4480] sm:$0x1]
    %v4482 = vmul.f32 %v4479, %v4479
    %v4483 = vsel %vm3136, %v4482, 0.0
    %4484 = vadd.xlane.f32.xlu0 %v4483
    %v4485 = vpop.xlane.xlu0 %4484
    %v4486 = vmul.f32 %v4485, %v470
    %v4488 = vlaneseq
    %v4489 = vshrl.u32 %v4488, 7
    %v4490 = vsub.s32 0, %v4489
    %v4491 = vrot.slane %v4481, %v4490
    %v4493 = vmul.f32 %v4491, %v4479
    %v4494 = vadd.f32 %v4486, 1e-06
    %v4495 = vrsqrt.pop %v4494
    %v4496 = vmul.f32 %v4493, %v4495
    %s4497 = scalar_lea.vmem [#allocation22], 16
    %v4498 = vld [vmem:[%s4497] sm:$0xf]
    %v4499 = vld [vmem:[%s4497 + $0x4] sm:$0xf]
    %v4500 = vld [vmem:[%s4497 + $0x8] sm:$0xf]
    %v4501 = vld [vmem:[%s4497 + $0xc] sm:$0xf]
    %v4502 = vpack.c.bf16 %v4496, %v4496
    %v4507 = vunpack.c.l.b16 %v4498
    %v4508 = vunpack.c.l.b16 %v4499
    %v4509 = vunpack.c.l.b16 %v4500
    %v4510 = vunpack.c.l.b16 %v4501
    %v4511 = vpack.c.b16 %v4508, %v4507
    %v4512 = vpack.c.b16 %v4510, %v4509
    %v4516 = vsel %vm463, %v4502, 0
    %4518 = vmatprep.subr.bf16.mxu0 0
    %4519 = vmatpush1.bf16.msra.mxu0 %v4511
    %4520 = vmatprep.subr.bf16.mxu0 0
    %4521 = vmatpush1.bf16.msra.mxu0 %v4512
    %4522 = vmatprep.subr.bf16.mxu0 0
    %4523 = vmatpush1.bf16.msra.mxu0 0
    %4524 = vmatprep.subr.bf16.mxu0 0
    %4525 = vmatpush1.bf16.msra.mxu0 0
    %4526 = vmatprep.subr.bf16.mxu0 0
    %4527 = vmatpush1.bf16.msra.mxu0 0
    %4528 = vmatprep.subr.bf16.mxu0 0
    %4529 = vmatpush1.bf16.msra.mxu0 0
    %4530 = vmatprep.subr.bf16.mxu0 0
    %4531 = vmatpush1.bf16.msra.mxu0 0
    %4532 = vmatprep.subr.bf16.mxu0 0
    %4533 = vmatpush1.bf16.msra.mxu0 0
    %4534 = vmatprep.subr.bf16.mxu0 0
    %4535 = vmatpush1.bf16.msra.mxu0 0
    %4536 = vmatprep.subr.bf16.mxu0 0
    %4537 = vmatpush1.bf16.msra.mxu0 0
    %4538 = vmatprep.subr.bf16.mxu0 0
    %4539 = vmatpush1.bf16.msra.mxu0 0
    %4540 = vmatprep.subr.bf16.mxu0 0
    %4541 = vmatpush1.bf16.msra.mxu0 0
    %4542 = vmatprep.subr.bf16.mxu0 0
    %4543 = vmatpush1.bf16.msra.mxu0 0
    %4544 = vmatprep.subr.bf16.mxu0 0
    %4545 = vmatpush1.bf16.msra.mxu0 0
    %4546 = vmatprep.subr.bf16.mxu0 0
    %4547 = vmatpush1.bf16.msra.mxu0 0
    %4548 = vmatprep.subr.bf16.mxu0 0
    %4549 = vmatpush1.bf16.msra.mxu0 0
    %4550 = vmatprep.mubr.bf16.mxu0 0
    %4551 = vmatmul.mubr.bf16.gmra.mrb[0].mxu0 %v4516
    %v4552 = vpop.f32.mrb[0].mxu0
    %v4553 = vadd.f32 0.0, %v4552
    %v4554 = vpop.f32.mrb[0].mxu0
    %v4555 = vpop.f32.mrb[0].mxu0
    %v4556 = vpop.f32.mrb[0].mxu0
    %4557 = vdwg.mxu0
    %v4560 = vunpack.c.l.s4 1966171168
    %v4561 = vunpack.c.0.s8 %v4560
    %v4562 = vlaneseq
    %v4563 = vshrl.u32 %v4562, 7
    %v4564 = vsub.s32 %v4561, %v4563
    %v4565 = vrot.slane %v4553, %v4564
    %v4566 = vcombine.high %v4565, %v4565
    %v4568 = vunpack.c.l.s4 1966171168
    %v4569 = vunpack.c.0.s8 %v4568
    %v4570 = vlaneseq
    %v4571 = vshrl.u32 %v4570, 7
    %v4572 = vsub.s32 %v4569, %v4571
    %v4573 = vrot.slane %v4565, %v4572
    %v4575 = vunpack.c.l.s4 1966171168
    %v4576 = vunpack.c.0.s8 %v4575
    %v4577 = vlaneseq
    %v4578 = vshrl.u32 %v4577, 7
    %v4579 = vsub.s32 %v4576, %v4578
    %v4580 = vrot.slane %v4566, %v4579
    %4583 = vrot.lane.b32.xlu0 %v4573, 120
    %v4584 = vpop.permute.xlu0 %4583
    %4585 = vrot.lane.b32.xlu0 %v4580, 120
    %v4586 = vpop.permute.xlu0 %4585
    %4589 = vrot.lane.b32.xlu0 %v4573, 112
    %v4590 = vpop.permute.xlu0 %4589
    %4591 = vrot.lane.b32.xlu0 %v4580, 112
    %v4592 = vpop.permute.xlu0 %4591
    %4595 = vrot.lane.b32.xlu0 %v4573, 104
    %v4596 = vpop.permute.xlu0 %4595
    %4597 = vrot.lane.b32.xlu0 %v4580, 104
    %v4598 = vpop.permute.xlu0 %4597
    %v4601 = vpack.c.bf16 %v4573, %v4573
    %v4602 = vpack.c.bf16 %v4580, %v4580
    %v4603 = vpack.c.bf16 %v4584, %v4584
    %v4604 = vpack.c.bf16 %v4586, %v4586
    %v4605 = vpack.c.bf16 %v4590, %v4590
    %v4606 = vpack.c.bf16 %v4592, %v4592
    %v4607 = vpack.c.bf16 %v4596, %v4596
    %v4608 = vpack.c.bf16 %v4598, %v4598
    %4609 = vrot.lane.b32.xlu0 %v3282, 64
    %v4610 = vpop.permute.xlu0 %4609
    %v4612 = vsel %vm579, %v4601, 0
    %v4615 = vsel %vm579, %v4610, 0
    %4617 = vmatprep.subr.bf16.mxu0 0
    %4618 = vmatpush1.bf16.xpose.msra.mxu0 %v4615
    %4619 = vmatprep.subr.bf16.mxu0 0
    %4620 = vmatpush1.bf16.xpose.msra.mxu0 0
    %4621 = vmatprep.subr.bf16.mxu0 0
    %4622 = vmatpush1.bf16.xpose.msra.mxu0 0
    %4623 = vmatprep.subr.bf16.mxu0 0
    %4624 = vmatpush1.bf16.xpose.msra.mxu0 0
    %4625 = vmatprep.subr.bf16.mxu0 0
    %4626 = vmatpush1.bf16.xpose.msra.mxu0 0
    %4627 = vmatprep.subr.bf16.mxu0 0
    %4628 = vmatpush1.bf16.xpose.msra.mxu0 0
    %4629 = vmatprep.subr.bf16.mxu0 0
    %4630 = vmatpush1.bf16.xpose.msra.mxu0 0
    %4631 = vmatprep.subr.bf16.mxu0 0
    %4632 = vmatpush1.bf16.xpose.msra.mxu0 0
    %4633 = vmatprep.subr.bf16.mxu0 0
    %4634 = vmatpush1.bf16.xpose.msra.mxu0 0
    %4635 = vmatprep.subr.bf16.mxu0 0
    %4636 = vmatpush1.bf16.xpose.msra.mxu0 0
    %4637 = vmatprep.subr.bf16.mxu0 0
    %4638 = vmatpush1.bf16.xpose.msra.mxu0 0
    %4639 = vmatprep.subr.bf16.mxu0 0
    %4640 = vmatpush1.bf16.xpose.msra.mxu0 0
    %4641 = vmatprep.subr.bf16.mxu0 0
    %4642 = vmatpush1.bf16.xpose.msra.mxu0 0
    %4643 = vmatprep.subr.bf16.mxu0 0
    %4644 = vmatpush1.bf16.xpose.msra.mxu0 0
    %4645 = vmatprep.subr.bf16.mxu0 0
    %4646 = vmatpush1.bf16.xpose.msra.mxu0 0
    %4647 = vmatprep.subr.bf16.mxu0 0
    %4648 = vmatpush1.bf16.xpose.msra.mxu0 0
    %4649 = vmatprep.mubr.bf16.mxu0 0
    %4650 = vmatmul.mubr.bf16.gmra.mrb[0].mxu0 %v4612
    %v4651 = vpop.f32.mrb[0].mxu0
    %v4652 = vadd.f32 %v432, %v4651
    %v4653 = vpop.f32.mrb[0].mxu0
    %v4654 = vpop.f32.mrb[0].mxu0
    %v4655 = vpop.f32.mrb[0].mxu0
    %4656 = vdwg.mxu0
    %4657 = vrot.lane.b32.xlu0 %v3283, 64
    %v4658 = vpop.permute.xlu0 %4657
    %v4660 = vsel %vm579, %v4602, 0
    %v4663 = vsel %vm579, %v4658, 0
    %4665 = vmatprep.subr.bf16.mxu0 0
    %4666 = vmatpush1.bf16.xpose.msra.mxu0 %v4663
    %4667 = vmatprep.subr.bf16.mxu0 0
    %4668 = vmatpush1.bf16.xpose.msra.mxu0 0
    %4669 = vmatprep.subr.bf16.mxu0 0
    %4670 = vmatpush1.bf16.xpose.msra.mxu0 0
    %4671 = vmatprep.subr.bf16.mxu0 0
    %4672 = vmatpush1.bf16.xpose.msra.mxu0 0
    %4673 = vmatprep.subr.bf16.mxu0 0
    %4674 = vmatpush1.bf16.xpose.msra.mxu0 0
    %4675 = vmatprep.subr.bf16.mxu0 0
    %4676 = vmatpush1.bf16.xpose.msra.mxu0 0
    %4677 = vmatprep.subr.bf16.mxu0 0
    %4678 = vmatpush1.bf16.xpose.msra.mxu0 0
    %4679 = vmatprep.subr.bf16.mxu0 0
    %4680 = vmatpush1.bf16.xpose.msra.mxu0 0
    %4681 = vmatprep.subr.bf16.mxu0 0
    %4682 = vmatpush1.bf16.xpose.msra.mxu0 0
    %4683 = vmatprep.subr.bf16.mxu0 0
    %4684 = vmatpush1.bf16.xpose.msra.mxu0 0
    %4685 = vmatprep.subr.bf16.mxu0 0
    %4686 = vmatpush1.bf16.xpose.msra.mxu0 0
    %4687 = vmatprep.subr.bf16.mxu0 0
    %4688 = vmatpush1.bf16.xpose.msra.mxu0 0
    %4689 = vmatprep.subr.bf16.mxu0 0
    %4690 = vmatpush1.bf16.xpose.msra.mxu0 0
    %4691 = vmatprep.subr.bf16.mxu0 0
    %4692 = vmatpush1.bf16.xpose.msra.mxu0 0
    %4693 = vmatprep.subr.bf16.mxu0 0
    %4694 = vmatpush1.bf16.xpose.msra.mxu0 0
    %4695 = vmatprep.subr.bf16.mxu0 0
    %4696 = vmatpush1.bf16.xpose.msra.mxu0 0
    %4697 = vmatprep.mubr.bf16.mxu0 0
    %4698 = vmatmul.mubr.bf16.gmra.mrb[0].mxu0 %v4660
    %v4699 = vpop.f32.mrb[0].mxu0
    %v4700 = vadd.f32 %v439, %v4699
    %v4701 = vpop.f32.mrb[0].mxu0
    %v4702 = vpop.f32.mrb[0].mxu0
    %v4703 = vpop.f32.mrb[0].mxu0
    %4704 = vdwg.mxu0
    %4705 = vrot.lane.b32.xlu0 %v3284, 64
    %v4706 = vpop.permute.xlu0 %4705
    %v4708 = vsel %vm579, %v4603, 0
    %v4711 = vsel %vm579, %v4706, 0
    %4713 = vmatprep.subr.bf16.mxu0 0
    %4714 = vmatpush1.bf16.xpose.msra.mxu0 %v4711
    %4715 = vmatprep.subr.bf16.mxu0 0
    %4716 = vmatpush1.bf16.xpose.msra.mxu0 0
    %4717 = vmatprep.subr.bf16.mxu0 0
    %4718 = vmatpush1.bf16.xpose.msra.mxu0 0
    %4719 = vmatprep.subr.bf16.mxu0 0
    %4720 = vmatpush1.bf16.xpose.msra.mxu0 0
    %4721 = vmatprep.subr.bf16.mxu0 0
    %4722 = vmatpush1.bf16.xpose.msra.mxu0 0
    %4723 = vmatprep.subr.bf16.mxu0 0
    %4724 = vmatpush1.bf16.xpose.msra.mxu0 0
    %4725 = vmatprep.subr.bf16.mxu0 0
    %4726 = vmatpush1.bf16.xpose.msra.mxu0 0
    %4727 = vmatprep.subr.bf16.mxu0 0
    %4728 = vmatpush1.bf16.xpose.msra.mxu0 0
    %4729 = vmatprep.subr.bf16.mxu0 0
    %4730 = vmatpush1.bf16.xpose.msra.mxu0 0
    %4731 = vmatprep.subr.bf16.mxu0 0
    %4732 = vmatpush1.bf16.xpose.msra.mxu0 0
    %4733 = vmatprep.subr.bf16.mxu0 0
    %4734 = vmatpush1.bf16.xpose.msra.mxu0 0
    %4735 = vmatprep.subr.bf16.mxu0 0
    %4736 = vmatpush1.bf16.xpose.msra.mxu0 0
    %4737 = vmatprep.subr.bf16.mxu0 0
    %4738 = vmatpush1.bf16.xpose.msra.mxu0 0
    %4739 = vmatprep.subr.bf16.mxu0 0
    %4740 = vmatpush1.bf16.xpose.msra.mxu0 0
    %4741 = vmatprep.subr.bf16.mxu0 0
    %4742 = vmatpush1.bf16.xpose.msra.mxu0 0
    %4743 = vmatprep.subr.bf16.mxu0 0
    %4744 = vmatpush1.bf16.xpose.msra.mxu0 0
    %4745 = vmatprep.mubr.bf16.mxu0 0
    %4746 = vmatmul.mubr.bf16.gmra.mrb[0].mxu0 %v4708
    %v4747 = vpop.f32.mrb[0].mxu0
    %v4748 = vadd.f32 %v432, %v4747
    %v4749 = vpop.f32.mrb[0].mxu0
    %v4750 = vpop.f32.mrb[0].mxu0
    %v4751 = vpop.f32.mrb[0].mxu0
    %4752 = vdwg.mxu0
    %4753 = vrot.lane.b32.xlu0 %v3285, 64
    %v4754 = vpop.permute.xlu0 %4753
    %v4756 = vsel %vm579, %v4604, 0
    %v4759 = vsel %vm579, %v4754, 0
    %4761 = vmatprep.subr.bf16.mxu0 0
    %4762 = vmatpush1.bf16.xpose.msra.mxu0 %v4759
    %4763 = vmatprep.subr.bf16.mxu0 0
    %4764 = vmatpush1.bf16.xpose.msra.mxu0 0
    %4765 = vmatprep.subr.bf16.mxu0 0
    %4766 = vmatpush1.bf16.xpose.msra.mxu0 0
    %4767 = vmatprep.subr.bf16.mxu0 0
    %4768 = vmatpush1.bf16.xpose.msra.mxu0 0
    %4769 = vmatprep.subr.bf16.mxu0 0
    %4770 = vmatpush1.bf16.xpose.msra.mxu0 0
    %4771 = vmatprep.subr.bf16.mxu0 0
    %4772 = vmatpush1.bf16.xpose.msra.mxu0 0
    %4773 = vmatprep.subr.bf16.mxu0 0
    %4774 = vmatpush1.bf16.xpose.msra.mxu0 0
    %4775 = vmatprep.subr.bf16.mxu0 0
    %4776 = vmatpush1.bf16.xpose.msra.mxu0 0
    %4777 = vmatprep.subr.bf16.mxu0 0
    %4778 = vmatpush1.bf16.xpose.msra.mxu0 0
    %4779 = vmatprep.subr.bf16.mxu0 0
    %4780 = vmatpush1.bf16.xpose.msra.mxu0 0
    %4781 = vmatprep.subr.bf16.mxu0 0
    %4782 = vmatpush1.bf16.xpose.msra.mxu0 0
    %4783 = vmatprep.subr.bf16.mxu0 0
    %4784 = vmatpush1.bf16.xpose.msra.mxu0 0
    %4785 = vmatprep.subr.bf16.mxu0 0
    %4786 = vmatpush1.bf16.xpose.msra.mxu0 0
    %4787 = vmatprep.subr.bf16.mxu0 0
    %4788 = vmatpush1.bf16.xpose.msra.mxu0 0
    %4789 = vmatprep.subr.bf16.mxu0 0
    %4790 = vmatpush1.bf16.xpose.msra.mxu0 0
    %4791 = vmatprep.subr.bf16.mxu0 0
    %4792 = vmatpush1.bf16.xpose.msra.mxu0 0
    %4793 = vmatprep.mubr.bf16.mxu0 0
    %4794 = vmatmul.mubr.bf16.gmra.mrb[0].mxu0 %v4756
    %v4795 = vpop.f32.mrb[0].mxu0
    %v4796 = vadd.f32 %v439, %v4795
    %v4797 = vpop.f32.mrb[0].mxu0
    %v4798 = vpop.f32.mrb[0].mxu0
    %v4799 = vpop.f32.mrb[0].mxu0
    %4800 = vdwg.mxu0
    %4801 = vrot.lane.b32.xlu0 %v3286, 64
    %v4802 = vpop.permute.xlu0 %4801
    %v4804 = vsel %vm579, %v4605, 0
    %v4807 = vsel %vm579, %v4802, 0
    %4809 = vmatprep.subr.bf16.mxu0 0
    %4810 = vmatpush1.bf16.xpose.msra.mxu0 %v4807
    %4811 = vmatprep.subr.bf16.mxu0 0
    %4812 = vmatpush1.bf16.xpose.msra.mxu0 0
    %4813 = vmatprep.subr.bf16.mxu0 0
    %4814 = vmatpush1.bf16.xpose.msra.mxu0 0
    %4815 = vmatprep.subr.bf16.mxu0 0
    %4816 = vmatpush1.bf16.xpose.msra.mxu0 0
    %4817 = vmatprep.subr.bf16.mxu0 0
    %4818 = vmatpush1.bf16.xpose.msra.mxu0 0
    %4819 = vmatprep.subr.bf16.mxu0 0
    %4820 = vmatpush1.bf16.xpose.msra.mxu0 0
    %4821 = vmatprep.subr.bf16.mxu0 0
    %4822 = vmatpush1.bf16.xpose.msra.mxu0 0
    %4823 = vmatprep.subr.bf16.mxu0 0
    %4824 = vmatpush1.bf16.xpose.msra.mxu0 0
    %4825 = vmatprep.subr.bf16.mxu0 0
    %4826 = vmatpush1.bf16.xpose.msra.mxu0 0
    %4827 = vmatprep.subr.bf16.mxu0 0
    %4828 = vmatpush1.bf16.xpose.msra.mxu0 0
    %4829 = vmatprep.subr.bf16.mxu0 0
    %4830 = vmatpush1.bf16.xpose.msra.mxu0 0
    %4831 = vmatprep.subr.bf16.mxu0 0
    %4832 = vmatpush1.bf16.xpose.msra.mxu0 0
    %4833 = vmatprep.subr.bf16.mxu0 0
    %4834 = vmatpush1.bf16.xpose.msra.mxu0 0
    %4835 = vmatprep.subr.bf16.mxu0 0
    %4836 = vmatpush1.bf16.xpose.msra.mxu0 0
    %4837 = vmatprep.subr.bf16.mxu0 0
    %4838 = vmatpush1.bf16.xpose.msra.mxu0 0
    %4839 = vmatprep.subr.bf16.mxu0 0
    %4840 = vmatpush1.bf16.xpose.msra.mxu0 0
    %4841 = vmatprep.mubr.bf16.mxu0 0
    %4842 = vmatmul.mubr.bf16.gmra.mrb[0].mxu0 %v4804
    %v4843 = vpop.f32.mrb[0].mxu0
    %v4844 = vadd.f32 %v432, %v4843
    %v4845 = vpop.f32.mrb[0].mxu0
    %v4846 = vpop.f32.mrb[0].mxu0
    %v4847 = vpop.f32.mrb[0].mxu0
    %4848 = vdwg.mxu0
    %4849 = vrot.lane.b32.xlu0 %v3287, 64
    %v4850 = vpop.permute.xlu0 %4849
    %v4852 = vsel %vm579, %v4606, 0
    %v4855 = vsel %vm579, %v4850, 0
    %4857 = vmatprep.subr.bf16.mxu0 0
    %4858 = vmatpush1.bf16.xpose.msra.mxu0 %v4855
    %4859 = vmatprep.subr.bf16.mxu0 0
    %4860 = vmatpush1.bf16.xpose.msra.mxu0 0
    %4861 = vmatprep.subr.bf16.mxu0 0
    %4862 = vmatpush1.bf16.xpose.msra.mxu0 0
    %4863 = vmatprep.subr.bf16.mxu0 0
    %4864 = vmatpush1.bf16.xpose.msra.mxu0 0
    %4865 = vmatprep.subr.bf16.mxu0 0
    %4866 = vmatpush1.bf16.xpose.msra.mxu0 0
    %4867 = vmatprep.subr.bf16.mxu0 0
    %4868 = vmatpush1.bf16.xpose.msra.mxu0 0
    %4869 = vmatprep.subr.bf16.mxu0 0
    %4870 = vmatpush1.bf16.xpose.msra.mxu0 0
    %4871 = vmatprep.subr.bf16.mxu0 0
    %4872 = vmatpush1.bf16.xpose.msra.mxu0 0
    %4873 = vmatprep.subr.bf16.mxu0 0
    %4874 = vmatpush1.bf16.xpose.msra.mxu0 0
    %4875 = vmatprep.subr.bf16.mxu0 0
    %4876 = vmatpush1.bf16.xpose.msra.mxu0 0
    %4877 = vmatprep.subr.bf16.mxu0 0
    %4878 = vmatpush1.bf16.xpose.msra.mxu0 0
    %4879 = vmatprep.subr.bf16.mxu0 0
    %4880 = vmatpush1.bf16.xpose.msra.mxu0 0
    %4881 = vmatprep.subr.bf16.mxu0 0
    %4882 = vmatpush1.bf16.xpose.msra.mxu0 0
    %4883 = vmatprep.subr.bf16.mxu0 0
    %4884 = vmatpush1.bf16.xpose.msra.mxu0 0
    %4885 = vmatprep.subr.bf16.mxu0 0
    %4886 = vmatpush1.bf16.xpose.msra.mxu0 0
    %4887 = vmatprep.subr.bf16.mxu0 0
    %4888 = vmatpush1.bf16.xpose.msra.mxu0 0
    %4889 = vmatprep.mubr.bf16.mxu0 0
    %4890 = vmatmul.mubr.bf16.gmra.mrb[0].mxu0 %v4852
    %v4891 = vpop.f32.mrb[0].mxu0
    %v4892 = vadd.f32 %v439, %v4891
    %v4893 = vpop.f32.mrb[0].mxu0
    %v4894 = vpop.f32.mrb[0].mxu0
    %v4895 = vpop.f32.mrb[0].mxu0
    %4896 = vdwg.mxu0
    %4897 = vrot.lane.b32.xlu0 %v3288, 64
    %v4898 = vpop.permute.xlu0 %4897
    %v4900 = vsel %vm579, %v4607, 0
    %v4903 = vsel %vm579, %v4898, 0
    %4905 = vmatprep.subr.bf16.mxu0 0
    %4906 = vmatpush1.bf16.xpose.msra.mxu0 %v4903
    %4907 = vmatprep.subr.bf16.mxu0 0
    %4908 = vmatpush1.bf16.xpose.msra.mxu0 0
    %4909 = vmatprep.subr.bf16.mxu0 0
    %4910 = vmatpush1.bf16.xpose.msra.mxu0 0
    %4911 = vmatprep.subr.bf16.mxu0 0
    %4912 = vmatpush1.bf16.xpose.msra.mxu0 0
    %4913 = vmatprep.subr.bf16.mxu0 0
    %4914 = vmatpush1.bf16.xpose.msra.mxu0 0
    %4915 = vmatprep.subr.bf16.mxu0 0
    %4916 = vmatpush1.bf16.xpose.msra.mxu0 0
    %4917 = vmatprep.subr.bf16.mxu0 0
    %4918 = vmatpush1.bf16.xpose.msra.mxu0 0
    %4919 = vmatprep.subr.bf16.mxu0 0
    %4920 = vmatpush1.bf16.xpose.msra.mxu0 0
    %4921 = vmatprep.subr.bf16.mxu0 0
    %4922 = vmatpush1.bf16.xpose.msra.mxu0 0
    %4923 = vmatprep.subr.bf16.mxu0 0
    %4924 = vmatpush1.bf16.xpose.msra.mxu0 0
    %4925 = vmatprep.subr.bf16.mxu0 0
    %4926 = vmatpush1.bf16.xpose.msra.mxu0 0
    %4927 = vmatprep.subr.bf16.mxu0 0
    %4928 = vmatpush1.bf16.xpose.msra.mxu0 0
    %4929 = vmatprep.subr.bf16.mxu0 0
    %4930 = vmatpush1.bf16.xpose.msra.mxu0 0
    %4931 = vmatprep.subr.bf16.mxu0 0
    %4932 = vmatpush1.bf16.xpose.msra.mxu0 0
    %4933 = vmatprep.subr.bf16.mxu0 0
    %4934 = vmatpush1.bf16.xpose.msra.mxu0 0
    %4935 = vmatprep.subr.bf16.mxu0 0
    %4936 = vmatpush1.bf16.xpose.msra.mxu0 0
    %4937 = vmatprep.mubr.bf16.mxu0 0
    %4938 = vmatmul.mubr.bf16.gmra.mrb[0].mxu0 %v4900
    %v4939 = vpop.f32.mrb[0].mxu0
    %v4940 = vadd.f32 %v432, %v4939
    %v4941 = vpop.f32.mrb[0].mxu0
    %v4942 = vpop.f32.mrb[0].mxu0
    %v4943 = vpop.f32.mrb[0].mxu0
    %4944 = vdwg.mxu0
    %4945 = vrot.lane.b32.xlu0 %v3289, 64
    %v4946 = vpop.permute.xlu0 %4945
    %v4948 = vsel %vm579, %v4608, 0
    %v4951 = vsel %vm579, %v4946, 0
    %4953 = vmatprep.subr.bf16.mxu0 0
    %4954 = vmatpush1.bf16.xpose.msra.mxu0 %v4951
    %4955 = vmatprep.subr.bf16.mxu0 0
    %4956 = vmatpush1.bf16.xpose.msra.mxu0 0
    %4957 = vmatprep.subr.bf16.mxu0 0
    %4958 = vmatpush1.bf16.xpose.msra.mxu0 0
    %4959 = vmatprep.subr.bf16.mxu0 0
    %4960 = vmatpush1.bf16.xpose.msra.mxu0 0
    %4961 = vmatprep.subr.bf16.mxu0 0
    %4962 = vmatpush1.bf16.xpose.msra.mxu0 0
    %4963 = vmatprep.subr.bf16.mxu0 0
    %4964 = vmatpush1.bf16.xpose.msra.mxu0 0
    %4965 = vmatprep.subr.bf16.mxu0 0
    %4966 = vmatpush1.bf16.xpose.msra.mxu0 0
    %4967 = vmatprep.subr.bf16.mxu0 0
    %4968 = vmatpush1.bf16.xpose.msra.mxu0 0
    %4969 = vmatprep.subr.bf16.mxu0 0
    %4970 = vmatpush1.bf16.xpose.msra.mxu0 0
    %4971 = vmatprep.subr.bf16.mxu0 0
    %4972 = vmatpush1.bf16.xpose.msra.mxu0 0
    %4973 = vmatprep.subr.bf16.mxu0 0
    %4974 = vmatpush1.bf16.xpose.msra.mxu0 0
    %4975 = vmatprep.subr.bf16.mxu0 0
    %4976 = vmatpush1.bf16.xpose.msra.mxu0 0
    %4977 = vmatprep.subr.bf16.mxu0 0
    %4978 = vmatpush1.bf16.xpose.msra.mxu0 0
    %4979 = vmatprep.subr.bf16.mxu0 0
    %4980 = vmatpush1.bf16.xpose.msra.mxu0 0
    %4981 = vmatprep.subr.bf16.mxu0 0
    %4982 = vmatpush1.bf16.xpose.msra.mxu0 0
    %4983 = vmatprep.subr.bf16.mxu0 0
    %4984 = vmatpush1.bf16.xpose.msra.mxu0 0
    %4985 = vmatprep.mubr.bf16.mxu0 0
    %4986 = vmatmul.mubr.bf16.gmra.mrb[0].mxu0 %v4948
    %v4987 = vpop.f32.mrb[0].mxu0
    %v4988 = vadd.f32 %v439, %v4987
    %v4989 = vpop.f32.mrb[0].mxu0
    %v4990 = vpop.f32.mrb[0].mxu0
    %v4991 = vpop.f32.mrb[0].mxu0
    %4992 = vdwg.mxu0
    %v4993 = vsel %vm3658, %v4652, -inf
    %4994 = vmax.xlane.f32.xlu0 %v4993
    %v4995 = vpop.xlane.xlu0 %4994
    %v4996 = vsel %vm3658, %v4700, -inf
    %4997 = vmax.xlane.f32.xlu0 %v4996
    %v4998 = vpop.xlane.xlu0 %4997
    %v4999 = vsel %vm3658, %v4748, -inf
    %5000 = vmax.xlane.f32.xlu0 %v4999
    %v5001 = vpop.xlane.xlu0 %5000
    %v5002 = vsel %vm3658, %v4796, -inf
    %5003 = vmax.xlane.f32.xlu0 %v5002
    %v5004 = vpop.xlane.xlu0 %5003
    %v5005 = vsel %vm3658, %v4844, -inf
    %5006 = vmax.xlane.f32.xlu0 %v5005
    %v5007 = vpop.xlane.xlu0 %5006
    %v5008 = vsel %vm3658, %v4892, -inf
    %5009 = vmax.xlane.f32.xlu0 %v5008
    %v5010 = vpop.xlane.xlu0 %5009
    %v5011 = vsel %vm3658, %v4940, -inf
    %5012 = vmax.xlane.f32.xlu0 %v5011
    %v5013 = vpop.xlane.xlu0 %5012
    %v5014 = vsel %vm3658, %v4988, -inf
    %5015 = vmax.xlane.f32.xlu0 %v5014
    %v5016 = vpop.xlane.xlu0 %5015
    %v5017 = vsub.f32 %v4652, %v4995
    %v5018 = vsub.f32 %v4700, %v4998
    %v5019 = vsub.f32 %v4748, %v5001
    %v5020 = vsub.f32 %v4796, %v5004
    %v5021 = vsub.f32 %v4844, %v5007
    %v5022 = vsub.f32 %v4892, %v5010
    %v5023 = vsub.f32 %v4940, %v5013
    %v5024 = vsub.f32 %v4988, %v5016
    %v5025 = vmul.f32 %v5017, 1.442695
    %v5026 = vpow.pop %v5025
    %v5027 = vmul.f32 %v5018, 1.442695
    %v5028 = vpow.pop %v5027
    %v5029 = vmul.f32 %v5019, 1.442695
    %v5030 = vpow.pop %v5029
    %v5031 = vmul.f32 %v5020, 1.442695
    %v5032 = vpow.pop %v5031
    %v5033 = vmul.f32 %v5021, 1.442695
    %v5034 = vpow.pop %v5033
    %v5035 = vmul.f32 %v5022, 1.442695
    %v5036 = vpow.pop %v5035
    %v5037 = vmul.f32 %v5023, 1.442695
    %v5038 = vpow.pop %v5037
    %v5039 = vmul.f32 %v5024, 1.442695
    %v5040 = vpow.pop %v5039
    %v5041 = vsel %vm3658, %v5026, 0.0
    %5042 = vadd.xlane.f32.xlu0 %v5041
    %v5043 = vpop.xlane.xlu0 %5042
    %v5044 = vsel %vm3658, %v5028, 0.0
    %5045 = vadd.xlane.f32.xlu0 %v5044
    %v5046 = vpop.xlane.xlu0 %5045
    %v5047 = vsel %vm3658, %v5030, 0.0
    %5048 = vadd.xlane.f32.xlu0 %v5047
    %v5049 = vpop.xlane.xlu0 %5048
    %v5050 = vsel %vm3658, %v5032, 0.0
    %5051 = vadd.xlane.f32.xlu0 %v5050
    %v5052 = vpop.xlane.xlu0 %5051
    %v5053 = vsel %vm3658, %v5034, 0.0
    %5054 = vadd.xlane.f32.xlu0 %v5053
    %v5055 = vpop.xlane.xlu0 %5054
    %v5056 = vsel %vm3658, %v5036, 0.0
    %5057 = vadd.xlane.f32.xlu0 %v5056
    %v5058 = vpop.xlane.xlu0 %5057
    %v5059 = vsel %vm3658, %v5038, 0.0
    %5060 = vadd.xlane.f32.xlu0 %v5059
    %v5061 = vpop.xlane.xlu0 %5060
    %v5062 = vsel %vm3658, %v5040, 0.0
    %5063 = vadd.xlane.f32.xlu0 %v5062
    %v5064 = vpop.xlane.xlu0 %5063
    %v5065 = vrcp.pop %v5043
    %v5066 = vrcp.pop %v5046
    %v5067 = vrcp.pop %v5049
    %v5068 = vrcp.pop %v5052
    %v5069 = vrcp.pop %v5055
    %v5070 = vrcp.pop %v5058
    %v5071 = vrcp.pop %v5061
    %v5072 = vrcp.pop %v5064
    %v5073 = vmul.f32 %v5026, %v5065
    %v5074 = vmul.f32 %v5028, %v5066
    %v5075 = vmul.f32 %v5030, %v5067
    %v5076 = vmul.f32 %v5032, %v5068
    %v5077 = vmul.f32 %v5034, %v5069
    %v5078 = vmul.f32 %v5036, %v5070
    %v5079 = vmul.f32 %v5038, %v5071
    %v5080 = vmul.f32 %v5040, %v5072
    %v5081 = vpack.c.bf16 %v5073, %v5073
    %v5082 = vpack.c.bf16 %v5074, %v5074
    %v5083 = vpack.c.bf16 %v5075, %v5075
    %v5084 = vpack.c.bf16 %v5076, %v5076
    %v5085 = vpack.c.bf16 %v5077, %v5077
    %v5086 = vpack.c.bf16 %v5078, %v5078
    %v5087 = vpack.c.bf16 %v5079, %v5079
    %v5088 = vpack.c.bf16 %v5080, %v5080
    %5089 = vrot.lane.b32.xlu0 %v3282, 32
    %v5090 = vpop.permute.xlu0 %5089
    %v5092 = vsel %vm579, %v5081, 0
    %v5095 = vsel %vm1070, %v5090, 0
    %5097 = vmatprep.subr.bf16.mxu0 0
    %5098 = vmatpush1.bf16.msra.mxu0 %v5095
    %5099 = vmatprep.subr.bf16.mxu0 0
    %5100 = vmatpush1.bf16.msra.mxu0 0
    %5101 = vmatprep.subr.bf16.mxu0 0
    %5102 = vmatpush1.bf16.msra.mxu0 0
    %5103 = vmatprep.subr.bf16.mxu0 0
    %5104 = vmatpush1.bf16.msra.mxu0 0
    %5105 = vmatprep.subr.bf16.mxu0 0
    %5106 = vmatpush1.bf16.msra.mxu0 0
    %5107 = vmatprep.subr.bf16.mxu0 0
    %5108 = vmatpush1.bf16.msra.mxu0 0
    %5109 = vmatprep.subr.bf16.mxu0 0
    %5110 = vmatpush1.bf16.msra.mxu0 0
    %5111 = vmatprep.subr.bf16.mxu0 0
    %5112 = vmatpush1.bf16.msra.mxu0 0
    %5113 = vmatprep.subr.bf16.mxu0 0
    %5114 = vmatpush1.bf16.msra.mxu0 0
    %5115 = vmatprep.subr.bf16.mxu0 0
    %5116 = vmatpush1.bf16.msra.mxu0 0
    %5117 = vmatprep.subr.bf16.mxu0 0
    %5118 = vmatpush1.bf16.msra.mxu0 0
    %5119 = vmatprep.subr.bf16.mxu0 0
    %5120 = vmatpush1.bf16.msra.mxu0 0
    %5121 = vmatprep.subr.bf16.mxu0 0
    %5122 = vmatpush1.bf16.msra.mxu0 0
    %5123 = vmatprep.subr.bf16.mxu0 0
    %5124 = vmatpush1.bf16.msra.mxu0 0
    %5125 = vmatprep.subr.bf16.mxu0 0
    %5126 = vmatpush1.bf16.msra.mxu0 0
    %5127 = vmatprep.subr.bf16.mxu0 0
    %5128 = vmatpush1.bf16.msra.mxu0 0
    %5129 = vmatprep.mubr.bf16.mxu0 0
    %5130 = vmatmul.mubr.bf16.gmra.mrb[0].mxu0 %v5092
    %v5131 = vpop.f32.mrb[0].mxu0
    %v5132 = vadd.f32 0.0, %v5131
    %v5133 = vpop.f32.mrb[0].mxu0
    %v5134 = vpop.f32.mrb[0].mxu0
    %v5135 = vpop.f32.mrb[0].mxu0
    %5136 = vdwg.mxu0
    %5137 = vrot.lane.b32.xlu0 %v3283, 32
    %v5138 = vpop.permute.xlu0 %5137
    %v5140 = vsel %vm579, %v5082, 0
    %v5143 = vsel %vm1070, %v5138, 0
    %5145 = vmatprep.subr.bf16.mxu0 0
    %5146 = vmatpush1.bf16.msra.mxu0 %v5143
    %5147 = vmatprep.subr.bf16.mxu0 0
    %5148 = vmatpush1.bf16.msra.mxu0 0
    %5149 = vmatprep.subr.bf16.mxu0 0
    %5150 = vmatpush1.bf16.msra.mxu0 0
    %5151 = vmatprep.subr.bf16.mxu0 0
    %5152 = vmatpush1.bf16.msra.mxu0 0
    %5153 = vmatprep.subr.bf16.mxu0 0
    %5154 = vmatpush1.bf16.msra.mxu0 0
    %5155 = vmatprep.subr.bf16.mxu0 0
    %5156 = vmatpush1.bf16.msra.mxu0 0
    %5157 = vmatprep.subr.bf16.mxu0 0
    %5158 = vmatpush1.bf16.msra.mxu0 0
    %5159 = vmatprep.subr.bf16.mxu0 0
    %5160 = vmatpush1.bf16.msra.mxu0 0
    %5161 = vmatprep.subr.bf16.mxu0 0
    %5162 = vmatpush1.bf16.msra.mxu0 0
    %5163 = vmatprep.subr.bf16.mxu0 0
    %5164 = vmatpush1.bf16.msra.mxu0 0
    %5165 = vmatprep.subr.bf16.mxu0 0
    %5166 = vmatpush1.bf16.msra.mxu0 0
    %5167 = vmatprep.subr.bf16.mxu0 0
    %5168 = vmatpush1.bf16.msra.mxu0 0
    %5169 = vmatprep.subr.bf16.mxu0 0
    %5170 = vmatpush1.bf16.msra.mxu0 0
    %5171 = vmatprep.subr.bf16.mxu0 0
    %5172 = vmatpush1.bf16.msra.mxu0 0
    %5173 = vmatprep.subr.bf16.mxu0 0
    %5174 = vmatpush1.bf16.msra.mxu0 0
    %5175 = vmatprep.subr.bf16.mxu0 0
    %5176 = vmatpush1.bf16.msra.mxu0 0
    %5177 = vmatprep.mubr.bf16.mxu0 0
    %5178 = vmatmul.mubr.bf16.gmra.mrb[0].mxu0 %v5140
    %v5179 = vpop.f32.mrb[0].mxu0
    %v5180 = vadd.f32 0.0, %v5179
    %v5181 = vpop.f32.mrb[0].mxu0
    %v5182 = vpop.f32.mrb[0].mxu0
    %v5183 = vpop.f32.mrb[0].mxu0
    %5184 = vdwg.mxu0
    %5185 = vrot.lane.b32.xlu0 %v3284, 32
    %v5186 = vpop.permute.xlu0 %5185
    %v5188 = vsel %vm579, %v5083, 0
    %v5191 = vsel %vm1070, %v5186, 0
    %5193 = vmatprep.subr.bf16.mxu0 0
    %5194 = vmatpush1.bf16.msra.mxu0 %v5191
    %5195 = vmatprep.subr.bf16.mxu0 0
    %5196 = vmatpush1.bf16.msra.mxu0 0
    %5197 = vmatprep.subr.bf16.mxu0 0
    %5198 = vmatpush1.bf16.msra.mxu0 0
    %5199 = vmatprep.subr.bf16.mxu0 0
    %5200 = vmatpush1.bf16.msra.mxu0 0
    %5201 = vmatprep.subr.bf16.mxu0 0
    %5202 = vmatpush1.bf16.msra.mxu0 0
    %5203 = vmatprep.subr.bf16.mxu0 0
    %5204 = vmatpush1.bf16.msra.mxu0 0
    %5205 = vmatprep.subr.bf16.mxu0 0
    %5206 = vmatpush1.bf16.msra.mxu0 0
    %5207 = vmatprep.subr.bf16.mxu0 0
    %5208 = vmatpush1.bf16.msra.mxu0 0
    %5209 = vmatprep.subr.bf16.mxu0 0
    %5210 = vmatpush1.bf16.msra.mxu0 0
    %5211 = vmatprep.subr.bf16.mxu0 0
    %5212 = vmatpush1.bf16.msra.mxu0 0
    %5213 = vmatprep.subr.bf16.mxu0 0
    %5214 = vmatpush1.bf16.msra.mxu0 0
    %5215 = vmatprep.subr.bf16.mxu0 0
    %5216 = vmatpush1.bf16.msra.mxu0 0
    %5217 = vmatprep.subr.bf16.mxu0 0
    %5218 = vmatpush1.bf16.msra.mxu0 0
    %5219 = vmatprep.subr.bf16.mxu0 0
    %5220 = vmatpush1.bf16.msra.mxu0 0
    %5221 = vmatprep.subr.bf16.mxu0 0
    %5222 = vmatpush1.bf16.msra.mxu0 0
    %5223 = vmatprep.subr.bf16.mxu0 0
    %5224 = vmatpush1.bf16.msra.mxu0 0
    %5225 = vmatprep.mubr.bf16.mxu0 0
    %5226 = vmatmul.mubr.bf16.gmra.mrb[0].mxu0 %v5188
    %v5227 = vpop.f32.mrb[0].mxu0
    %v5228 = vadd.f32 0.0, %v5227
    %v5229 = vpop.f32.mrb[0].mxu0
    %v5230 = vpop.f32.mrb[0].mxu0
    %v5231 = vpop.f32.mrb[0].mxu0
    %5232 = vdwg.mxu0
    %5233 = vrot.lane.b32.xlu0 %v3285, 32
    %v5234 = vpop.permute.xlu0 %5233
    %v5236 = vsel %vm579, %v5084, 0
    %v5239 = vsel %vm1070, %v5234, 0
    %5241 = vmatprep.subr.bf16.mxu0 0
    %5242 = vmatpush1.bf16.msra.mxu0 %v5239
    %5243 = vmatprep.subr.bf16.mxu0 0
    %5244 = vmatpush1.bf16.msra.mxu0 0
    %5245 = vmatprep.subr.bf16.mxu0 0
    %5246 = vmatpush1.bf16.msra.mxu0 0
    %5247 = vmatprep.subr.bf16.mxu0 0
    %5248 = vmatpush1.bf16.msra.mxu0 0
    %5249 = vmatprep.subr.bf16.mxu0 0
    %5250 = vmatpush1.bf16.msra.mxu0 0
    %5251 = vmatprep.subr.bf16.mxu0 0
    %5252 = vmatpush1.bf16.msra.mxu0 0
    %5253 = vmatprep.subr.bf16.mxu0 0
    %5254 = vmatpush1.bf16.msra.mxu0 0
    %5255 = vmatprep.subr.bf16.mxu0 0
    %5256 = vmatpush1.bf16.msra.mxu0 0
    %5257 = vmatprep.subr.bf16.mxu0 0
    %5258 = vmatpush1.bf16.msra.mxu0 0
    %5259 = vmatprep.subr.bf16.mxu0 0
    %5260 = vmatpush1.bf16.msra.mxu0 0
    %5261 = vmatprep.subr.bf16.mxu0 0
    %5262 = vmatpush1.bf16.msra.mxu0 0
    %5263 = vmatprep.subr.bf16.mxu0 0
    %5264 = vmatpush1.bf16.msra.mxu0 0
    %5265 = vmatprep.subr.bf16.mxu0 0
    %5266 = vmatpush1.bf16.msra.mxu0 0
    %5267 = vmatprep.subr.bf16.mxu0 0
    %5268 = vmatpush1.bf16.msra.mxu0 0
    %5269 = vmatprep.subr.bf16.mxu0 0
    %5270 = vmatpush1.bf16.msra.mxu0 0
    %5271 = vmatprep.subr.bf16.mxu0 0
    %5272 = vmatpush1.bf16.msra.mxu0 0
    %5273 = vmatprep.mubr.bf16.mxu0 0
    %5274 = vmatmul.mubr.bf16.gmra.mrb[0].mxu0 %v5236
    %v5275 = vpop.f32.mrb[0].mxu0
    %v5276 = vadd.f32 0.0, %v5275
    %v5277 = vpop.f32.mrb[0].mxu0
    %v5278 = vpop.f32.mrb[0].mxu0
    %v5279 = vpop.f32.mrb[0].mxu0
    %5280 = vdwg.mxu0
    %5281 = vrot.lane.b32.xlu0 %v3286, 32
    %v5282 = vpop.permute.xlu0 %5281
    %v5284 = vsel %vm579, %v5085, 0
    %v5287 = vsel %vm1070, %v5282, 0
    %5289 = vmatprep.subr.bf16.mxu0 0
    %5290 = vmatpush1.bf16.msra.mxu0 %v5287
    %5291 = vmatprep.subr.bf16.mxu0 0
    %5292 = vmatpush1.bf16.msra.mxu0 0
    %5293 = vmatprep.subr.bf16.mxu0 0
    %5294 = vmatpush1.bf16.msra.mxu0 0
    %5295 = vmatprep.subr.bf16.mxu0 0
    %5296 = vmatpush1.bf16.msra.mxu0 0
    %5297 = vmatprep.subr.bf16.mxu0 0
    %5298 = vmatpush1.bf16.msra.mxu0 0
    %5299 = vmatprep.subr.bf16.mxu0 0
    %5300 = vmatpush1.bf16.msra.mxu0 0
    %5301 = vmatprep.subr.bf16.mxu0 0
    %5302 = vmatpush1.bf16.msra.mxu0 0
    %5303 = vmatprep.subr.bf16.mxu0 0
    %5304 = vmatpush1.bf16.msra.mxu0 0
    %5305 = vmatprep.subr.bf16.mxu0 0
    %5306 = vmatpush1.bf16.msra.mxu0 0
    %5307 = vmatprep.subr.bf16.mxu0 0
    %5308 = vmatpush1.bf16.msra.mxu0 0
    %5309 = vmatprep.subr.bf16.mxu0 0
    %5310 = vmatpush1.bf16.msra.mxu0 0
    %5311 = vmatprep.subr.bf16.mxu0 0
    %5312 = vmatpush1.bf16.msra.mxu0 0
    %5313 = vmatprep.subr.bf16.mxu0 0
    %5314 = vmatpush1.bf16.msra.mxu0 0
    %5315 = vmatprep.subr.bf16.mxu0 0
    %5316 = vmatpush1.bf16.msra.mxu0 0
    %5317 = vmatprep.subr.bf16.mxu0 0
    %5318 = vmatpush1.bf16.msra.mxu0 0
    %5319 = vmatprep.subr.bf16.mxu0 0
    %5320 = vmatpush1.bf16.msra.mxu0 0
    %5321 = vmatprep.mubr.bf16.mxu0 0
    %5322 = vmatmul.mubr.bf16.gmra.mrb[0].mxu0 %v5284
    %v5323 = vpop.f32.mrb[0].mxu0
    %v5324 = vadd.f32 0.0, %v5323
    %v5325 = vpop.f32.mrb[0].mxu0
    %v5326 = vpop.f32.mrb[0].mxu0
    %v5327 = vpop.f32.mrb[0].mxu0
    %5328 = vdwg.mxu0
    %5329 = vrot.lane.b32.xlu0 %v3287, 32
    %v5330 = vpop.permute.xlu0 %5329
    %v5332 = vsel %vm579, %v5086, 0
    %v5335 = vsel %vm1070, %v5330, 0
    %5337 = vmatprep.subr.bf16.mxu0 0
    %5338 = vmatpush1.bf16.msra.mxu0 %v5335
    %5339 = vmatprep.subr.bf16.mxu0 0
    %5340 = vmatpush1.bf16.msra.mxu0 0
    %5341 = vmatprep.subr.bf16.mxu0 0
    %5342 = vmatpush1.bf16.msra.mxu0 0
    %5343 = vmatprep.subr.bf16.mxu0 0
    %5344 = vmatpush1.bf16.msra.mxu0 0
    %5345 = vmatprep.subr.bf16.mxu0 0
    %5346 = vmatpush1.bf16.msra.mxu0 0
    %5347 = vmatprep.subr.bf16.mxu0 0
    %5348 = vmatpush1.bf16.msra.mxu0 0
    %5349 = vmatprep.subr.bf16.mxu0 0
    %5350 = vmatpush1.bf16.msra.mxu0 0
    %5351 = vmatprep.subr.bf16.mxu0 0
    %5352 = vmatpush1.bf16.msra.mxu0 0
    %5353 = vmatprep.subr.bf16.mxu0 0
    %5354 = vmatpush1.bf16.msra.mxu0 0
    %5355 = vmatprep.subr.bf16.mxu0 0
    %5356 = vmatpush1.bf16.msra.mxu0 0
    %5357 = vmatprep.subr.bf16.mxu0 0
    %5358 = vmatpush1.bf16.msra.mxu0 0
    %5359 = vmatprep.subr.bf16.mxu0 0
    %5360 = vmatpush1.bf16.msra.mxu0 0
    %5361 = vmatprep.subr.bf16.mxu0 0
    %5362 = vmatpush1.bf16.msra.mxu0 0
    %5363 = vmatprep.subr.bf16.mxu0 0
    %5364 = vmatpush1.bf16.msra.mxu0 0
    %5365 = vmatprep.subr.bf16.mxu0 0
    %5366 = vmatpush1.bf16.msra.mxu0 0
    %5367 = vmatprep.subr.bf16.mxu0 0
    %5368 = vmatpush1.bf16.msra.mxu0 0
    %5369 = vmatprep.mubr.bf16.mxu0 0
    %5370 = vmatmul.mubr.bf16.gmra.mrb[0].mxu0 %v5332
    %v5371 = vpop.f32.mrb[0].mxu0
    %v5372 = vadd.f32 0.0, %v5371
    %v5373 = vpop.f32.mrb[0].mxu0
    %v5374 = vpop.f32.mrb[0].mxu0
    %v5375 = vpop.f32.mrb[0].mxu0
    %5376 = vdwg.mxu0
    %5377 = vrot.lane.b32.xlu0 %v3288, 32
    %v5378 = vpop.permute.xlu0 %5377
    %v5380 = vsel %vm579, %v5087, 0
    %v5383 = vsel %vm1070, %v5378, 0
    %5385 = vmatprep.subr.bf16.mxu0 0
    %5386 = vmatpush1.bf16.msra.mxu0 %v5383
    %5387 = vmatprep.subr.bf16.mxu0 0
    %5388 = vmatpush1.bf16.msra.mxu0 0
    %5389 = vmatprep.subr.bf16.mxu0 0
    %5390 = vmatpush1.bf16.msra.mxu0 0
    %5391 = vmatprep.subr.bf16.mxu0 0
    %5392 = vmatpush1.bf16.msra.mxu0 0
    %5393 = vmatprep.subr.bf16.mxu0 0
    %5394 = vmatpush1.bf16.msra.mxu0 0
    %5395 = vmatprep.subr.bf16.mxu0 0
    %5396 = vmatpush1.bf16.msra.mxu0 0
    %5397 = vmatprep.subr.bf16.mxu0 0
    %5398 = vmatpush1.bf16.msra.mxu0 0
    %5399 = vmatprep.subr.bf16.mxu0 0
    %5400 = vmatpush1.bf16.msra.mxu0 0
    %5401 = vmatprep.subr.bf16.mxu0 0
    %5402 = vmatpush1.bf16.msra.mxu0 0
    %5403 = vmatprep.subr.bf16.mxu0 0
    %5404 = vmatpush1.bf16.msra.mxu0 0
    %5405 = vmatprep.subr.bf16.mxu0 0
    %5406 = vmatpush1.bf16.msra.mxu0 0
    %5407 = vmatprep.subr.bf16.mxu0 0
    %5408 = vmatpush1.bf16.msra.mxu0 0
    %5409 = vmatprep.subr.bf16.mxu0 0
    %5410 = vmatpush1.bf16.msra.mxu0 0
    %5411 = vmatprep.subr.bf16.mxu0 0
    %5412 = vmatpush1.bf16.msra.mxu0 0
    %5413 = vmatprep.subr.bf16.mxu0 0
    %5414 = vmatpush1.bf16.msra.mxu0 0
    %5415 = vmatprep.subr.bf16.mxu0 0
    %5416 = vmatpush1.bf16.msra.mxu0 0
    %5417 = vmatprep.mubr.bf16.mxu0 0
    %5418 = vmatmul.mubr.bf16.gmra.mrb[0].mxu0 %v5380
    %v5419 = vpop.f32.mrb[0].mxu0
    %v5420 = vadd.f32 0.0, %v5419
    %v5421 = vpop.f32.mrb[0].mxu0
    %v5422 = vpop.f32.mrb[0].mxu0
    %v5423 = vpop.f32.mrb[0].mxu0
    %5424 = vdwg.mxu0
    %5425 = vrot.lane.b32.xlu0 %v3289, 32
    %v5426 = vpop.permute.xlu0 %5425
    %v5428 = vsel %vm579, %v5088, 0
    %v5431 = vsel %vm1070, %v5426, 0
    %5433 = vmatprep.subr.bf16.mxu0 0
    %5434 = vmatpush1.bf16.msra.mxu0 %v5431
    %5435 = vmatprep.subr.bf16.mxu0 0
    %5436 = vmatpush1.bf16.msra.mxu0 0
    %5437 = vmatprep.subr.bf16.mxu0 0
    %5438 = vmatpush1.bf16.msra.mxu0 0
    %5439 = vmatprep.subr.bf16.mxu0 0
    %5440 = vmatpush1.bf16.msra.mxu0 0
    %5441 = vmatprep.subr.bf16.mxu0 0
    %5442 = vmatpush1.bf16.msra.mxu0 0
    %5443 = vmatprep.subr.bf16.mxu0 0
    %5444 = vmatpush1.bf16.msra.mxu0 0
    %5445 = vmatprep.subr.bf16.mxu0 0
    %5446 = vmatpush1.bf16.msra.mxu0 0
    %5447 = vmatprep.subr.bf16.mxu0 0
    %5448 = vmatpush1.bf16.msra.mxu0 0
    %5449 = vmatprep.subr.bf16.mxu0 0
    %5450 = vmatpush1.bf16.msra.mxu0 0
    %5451 = vmatprep.subr.bf16.mxu0 0
    %5452 = vmatpush1.bf16.msra.mxu0 0
    %5453 = vmatprep.subr.bf16.mxu0 0
    %5454 = vmatpush1.bf16.msra.mxu0 0
    %5455 = vmatprep.subr.bf16.mxu0 0
    %5456 = vmatpush1.bf16.msra.mxu0 0
    %5457 = vmatprep.subr.bf16.mxu0 0
    %5458 = vmatpush1.bf16.msra.mxu0 0
    %5459 = vmatprep.subr.bf16.mxu0 0
    %5460 = vmatpush1.bf16.msra.mxu0 0
    %5461 = vmatprep.subr.bf16.mxu0 0
    %5462 = vmatpush1.bf16.msra.mxu0 0
    %5463 = vmatprep.subr.bf16.mxu0 0
    %5464 = vmatpush1.bf16.msra.mxu0 0
    %5465 = vmatprep.mubr.bf16.mxu0 0
    %5466 = vmatmul.mubr.bf16.gmra.mrb[0].mxu0 %v5428
    %v5467 = vpop.f32.mrb[0].mxu0
    %v5468 = vadd.f32 0.0, %v5467
    %v5469 = vpop.f32.mrb[0].mxu0
    %v5470 = vpop.f32.mrb[0].mxu0
    %v5471 = vpop.f32.mrb[0].mxu0
    %5472 = vdwg.mxu0
    %5475 = vrot.lane.b32.xlu0 %v5228, 8
    %v5476 = vpop.permute.xlu0 %5475
    %5477 = vrot.lane.b32.xlu0 %v5276, 8
    %v5478 = vpop.permute.xlu0 %5477
    %5483 = vrot.lane.b32.xlu0 %v5324, 16
    %v5484 = vpop.permute.xlu0 %5483
    %5485 = vrot.lane.b32.xlu0 %v5372, 16
    %v5486 = vpop.permute.xlu0 %5485
    %5491 = vrot.lane.b32.xlu0 %v5420, 24
    %v5492 = vpop.permute.xlu0 %5491
    %5493 = vrot.lane.b32.xlu0 %v5468, 24
    %v5494 = vpop.permute.xlu0 %5493
    %v5497 = vsel %vm579, %v5132, %v5476
    %v5498 = vsel %vm579, %v5180, %v5478
    %v5499 = vsel %vm1476, %v5497, %v5484
    %v5500 = vsel %vm1476, %v5498, %v5486
    %v5501 = vsel %vm1479, %v5499, %v5492
    %v5502 = vsel %vm1479, %v5500, %v5494
    %s5503 = scalar_lea.vmem %s16, 16
    %v5504 = vld [vmem:[%s5503] sm:$0xf]
    %v5505 = vld [vmem:[%s5503 + $0x4] sm:$0xf]
    %v5506 = vld [vmem:[%s5503 + $0x8] sm:$0xf]
    %v5507 = vld [vmem:[%s5503 + $0xc] sm:$0xf]
    %v5508 = vpack.c.bf16 %v5501, %v5501
    %v5509 = vpack.c.bf16 %v5502, %v5502
    %v5512 = vunpack.c.l.b16 %v5508
    %v5513 = vunpack.c.l.b16 %v5509
    %v5514 = vrot.slane %v5513, 7
    %v5515 = vsel %vm4188, %v5514, %v5512
    %v5516 = vpack.c.b16 %v5515, %v5515
    %v5521 = vunpack.c.l.b16 %v5504
    %v5522 = vunpack.c.l.b16 %v5505
    %v5523 = vunpack.c.l.b16 %v5506
    %v5524 = vunpack.c.l.b16 %v5507
    %v5525 = vpack.c.b16 %v5522, %v5521
    %v5526 = vpack.c.b16 %v5524, %v5523
    %v5530 = vsel %vm463, %v5516, 0
    %5532 = vmatprep.subr.bf16.mxu0 0
    %5533 = vmatpush1.bf16.msra.mxu0 %v5525
    %5534 = vmatprep.subr.bf16.mxu0 0
    %5535 = vmatpush1.bf16.msra.mxu0 %v5526
    %5536 = vmatprep.subr.bf16.mxu0 0
    %5537 = vmatpush1.bf16.msra.mxu0 0
    %5538 = vmatprep.subr.bf16.mxu0 0
    %5539 = vmatpush1.bf16.msra.mxu0 0
    %5540 = vmatprep.subr.bf16.mxu0 0
    %5541 = vmatpush1.bf16.msra.mxu0 0
    %5542 = vmatprep.subr.bf16.mxu0 0
    %5543 = vmatpush1.bf16.msra.mxu0 0
    %5544 = vmatprep.subr.bf16.mxu0 0
    %5545 = vmatpush1.bf16.msra.mxu0 0
    %5546 = vmatprep.subr.bf16.mxu0 0
    %5547 = vmatpush1.bf16.msra.mxu0 0
    %5548 = vmatprep.subr.bf16.mxu0 0
    %5549 = vmatpush1.bf16.msra.mxu0 0
    %5550 = vmatprep.subr.bf16.mxu0 0
    %5551 = vmatpush1.bf16.msra.mxu0 0
    %5552 = vmatprep.subr.bf16.mxu0 0
    %5553 = vmatpush1.bf16.msra.mxu0 0
    %5554 = vmatprep.subr.bf16.mxu0 0
    %5555 = vmatpush1.bf16.msra.mxu0 0
    %5556 = vmatprep.subr.bf16.mxu0 0
    %5557 = vmatpush1.bf16.msra.mxu0 0
    %5558 = vmatprep.subr.bf16.mxu0 0
    %5559 = vmatpush1.bf16.msra.mxu0 0
    %5560 = vmatprep.subr.bf16.mxu0 0
    %5561 = vmatpush1.bf16.msra.mxu0 0
    %5562 = vmatprep.subr.bf16.mxu0 0
    %5563 = vmatpush1.bf16.msra.mxu0 0
    %5564 = vmatprep.mubr.bf16.mxu0 0
    %5565 = vmatmul.mubr.bf16.gmra.mrb[0].mxu0 %v5530
    %v5566 = vpop.f32.mrb[0].mxu0
    %v5567 = vadd.f32 0.0, %v5566
    %v5568 = vpop.f32.mrb[0].mxu0
    %v5569 = vpop.f32.mrb[0].mxu0
    %v5570 = vpop.f32.mrb[0].mxu0
    %5571 = vdwg.mxu0
    %v5572 = vadd.f32 %v4479, %v5567
    %s5573 = scalar_lea.vmem [#allocation25], 1
    %v5574 = vld [vmem:[%s5573] sm:$0x1]
    %v5575 = vmul.f32 %v5572, %v5572
    %v5576 = vsel %vm3136, %v5575, 0.0
    %5577 = vadd.xlane.f32.xlu0 %v5576
    %v5578 = vpop.xlane.xlu0 %5577
    %v5579 = vmul.f32 %v5578, %v470
    %v5581 = vlaneseq
    %v5582 = vshrl.u32 %v5581, 7
    %v5583 = vsub.s32 0, %v5582
    %v5584 = vrot.slane %v5574, %v5583
    %v5586 = vmul.f32 %v5584, %v5572
    %v5587 = vadd.f32 %v5579, 1e-06
    %v5588 = vrsqrt.pop %v5587
    %v5589 = vmul.f32 %v5586, %v5588
    %s5590 = scalar_lea.vmem %s18, 16
    %v5591 = vld [vmem:[%s5590] sm:$0xf]
    %v5592 = vld [vmem:[%s5590 + $0x4] sm:$0xf]
    %v5593 = vld [vmem:[%s5590 + $0x8] sm:$0xf]
    %v5594 = vld [vmem:[%s5590 + $0xc] sm:$0xf]
    %v5595 = vpack.c.bf16 %v5589, %v5589
    %v5600 = vunpack.c.l.b16 %v5591
    %v5601 = vunpack.c.l.b16 %v5592
    %v5602 = vunpack.c.l.b16 %v5593
    %v5603 = vunpack.c.l.b16 %v5594
    %v5604 = vpack.c.b16 %v5601, %v5600
    %v5605 = vpack.c.b16 %v5603, %v5602
    %v5609 = vsel %vm463, %v5595, 0
    %5611 = vmatprep.subr.bf16.mxu0 0
    %5612 = vmatpush1.bf16.msra.mxu0 %v5604
    %5613 = vmatprep.subr.bf16.mxu0 0
    %5614 = vmatpush1.bf16.msra.mxu0 %v5605
    %5615 = vmatprep.subr.bf16.mxu0 0
    %5616 = vmatpush1.bf16.msra.mxu0 0
    %5617 = vmatprep.subr.bf16.mxu0 0
    %5618 = vmatpush1.bf16.msra.mxu0 0
    %5619 = vmatprep.subr.bf16.mxu0 0
    %5620 = vmatpush1.bf16.msra.mxu0 0
    %5621 = vmatprep.subr.bf16.mxu0 0
    %5622 = vmatpush1.bf16.msra.mxu0 0
    %5623 = vmatprep.subr.bf16.mxu0 0
    %5624 = vmatpush1.bf16.msra.mxu0 0
    %5625 = vmatprep.subr.bf16.mxu0 0
    %5626 = vmatpush1.bf16.msra.mxu0 0
    %5627 = vmatprep.subr.bf16.mxu0 0
    %5628 = vmatpush1.bf16.msra.mxu0 0
    %5629 = vmatprep.subr.bf16.mxu0 0
    %5630 = vmatpush1.bf16.msra.mxu0 0
    %5631 = vmatprep.subr.bf16.mxu0 0
    %5632 = vmatpush1.bf16.msra.mxu0 0
    %5633 = vmatprep.subr.bf16.mxu0 0
    %5634 = vmatpush1.bf16.msra.mxu0 0
    %5635 = vmatprep.subr.bf16.mxu0 0
    %5636 = vmatpush1.bf16.msra.mxu0 0
    %5637 = vmatprep.subr.bf16.mxu0 0
    %5638 = vmatpush1.bf16.msra.mxu0 0
    %5639 = vmatprep.subr.bf16.mxu0 0
    %5640 = vmatpush1.bf16.msra.mxu0 0
    %5641 = vmatprep.subr.bf16.mxu0 0
    %5642 = vmatpush1.bf16.msra.mxu0 0
    %5643 = vmatprep.mubr.bf16.mxu0 0
    %5644 = vmatmul.mubr.bf16.gmra.mrb[0].mxu0 %v5609
    %v5645 = vpop.f32.mrb[0].mxu0
    %v5646 = vadd.f32 0.0, %v5645
    %v5647 = vpop.f32.mrb[0].mxu0
    %v5648 = vpop.f32.mrb[0].mxu0
    %v5649 = vpop.f32.mrb[0].mxu0
    %5650 = vdwg.mxu0
    %v5651 = vmax.f32 %v5646, 0.0
    %s5652 = scalar_lea.vmem %s19, 32
    %v5653 = vld [vmem:[%s5652] sm:$0xf]
    %v5654 = vld [vmem:[%s5652 + $0x4] sm:$0xf]
    %v5655 = vld [vmem:[%s5652 + $0x8] sm:$0xf]
    %v5656 = vld [vmem:[%s5652 + $0xc] sm:$0xf]
    %v5657 = vld [vmem:[%s5652 + $0x10] sm:$0xf]
    %v5658 = vld [vmem:[%s5652 + $0x14] sm:$0xf]
    %v5659 = vld [vmem:[%s5652 + $0x18] sm:$0xf]
    %v5660 = vld [vmem:[%s5652 + $0x1c] sm:$0xf]
    %v5661 = vpack.c.bf16 %v5651, %v5651
    %v5670 = vunpack.c.l.b16 %v5653
    %v5671 = vunpack.c.l.b16 %v5654
    %v5672 = vunpack.c.l.b16 %v5655
    %v5673 = vunpack.c.l.b16 %v5656
    %v5674 = vunpack.c.l.b16 %v5657
    %v5675 = vunpack.c.l.b16 %v5658
    %v5676 = vunpack.c.l.b16 %v5659
    %v5677 = vunpack.c.l.b16 %v5660
    %v5678 = vpack.c.b16 %v5671, %v5670
    %v5679 = vpack.c.b16 %v5673, %v5672
    %v5680 = vpack.c.b16 %v5675, %v5674
    %v5681 = vpack.c.b16 %v5677, %v5676
    %v5687 = vsel %vm1666, %v5661, 0
    %5689 = vmatprep.subr.bf16.mxu0 0
    %5690 = vmatpush1.bf16.msra.mxu0 %v5678
    %5691 = vmatprep.subr.bf16.mxu0 0
    %5692 = vmatpush1.bf16.msra.mxu0 %v5679
    %5693 = vmatprep.subr.bf16.mxu0 0
    %5694 = vmatpush1.bf16.msra.mxu0 %v5680
    %5695 = vmatprep.subr.bf16.mxu0 0
    %5696 = vmatpush1.bf16.msra.mxu0 %v5681
    %5697 = vmatprep.subr.bf16.mxu0 0
    %5698 = vmatpush1.bf16.msra.mxu0 0
    %5699 = vmatprep.subr.bf16.mxu0 0
    %5700 = vmatpush1.bf16.msra.mxu0 0
    %5701 = vmatprep.subr.bf16.mxu0 0
    %5702 = vmatpush1.bf16.msra.mxu0 0
    %5703 = vmatprep.subr.bf16.mxu0 0
    %5704 = vmatpush1.bf16.msra.mxu0 0
    %5705 = vmatprep.subr.bf16.mxu0 0
    %5706 = vmatpush1.bf16.msra.mxu0 0
    %5707 = vmatprep.subr.bf16.mxu0 0
    %5708 = vmatpush1.bf16.msra.mxu0 0
    %5709 = vmatprep.subr.bf16.mxu0 0
    %5710 = vmatpush1.bf16.msra.mxu0 0
    %5711 = vmatprep.subr.bf16.mxu0 0
    %5712 = vmatpush1.bf16.msra.mxu0 0
    %5713 = vmatprep.subr.bf16.mxu0 0
    %5714 = vmatpush1.bf16.msra.mxu0 0
    %5715 = vmatprep.subr.bf16.mxu0 0
    %5716 = vmatpush1.bf16.msra.mxu0 0
    %5717 = vmatprep.subr.bf16.mxu0 0
    %5718 = vmatpush1.bf16.msra.mxu0 0
    %5719 = vmatprep.subr.bf16.mxu0 0
    %5720 = vmatpush1.bf16.msra.mxu0 0
    %5721 = vmatprep.mubr.bf16.mxu0 0
    %5722 = vmatmul.mubr.bf16.gmra.mrb[0].mxu0 %v5687
    %v5723 = vpop.f32.mrb[0].mxu0
    %v5724 = vadd.f32 0.0, %v5723
    %v5725 = vpop.f32.mrb[0].mxu0
    %v5726 = vpop.f32.mrb[0].mxu0
    %v5727 = vpop.f32.mrb[0].mxu0
    %5728 = vdwg.mxu0
    %v5729 = vadd.f32 %v5572, %v5724
    %v5730 = vld [vmem:[%s20] sm:$0x1]
    %v5731 = vmul.f32 %v5729, %v5729
    %v5732 = vsel %vm3136, %v5731, 0.0
    %5733 = vadd.xlane.f32.xlu0 %v5732
    %v5734 = vpop.xlane.xlu0 %5733
    %v5735 = vmul.f32 %v5734, %v470
    %v5737 = vlaneseq
    %v5738 = vshrl.u32 %v5737, 7
    %v5739 = vsub.s32 0, %v5738
    %v5740 = vrot.slane %v5730, %v5739
    %v5742 = vmul.f32 %v5740, %v5729
    %v5743 = vadd.f32 %v5735, 1e-06
    %v5744 = vrsqrt.pop %v5743
    %v5745 = vmul.f32 %v5742, %v5744
    %v5746 = vld [vmem:[#allocation26] sm:$0xf]
    %v5747 = vld [vmem:[#allocation26 + $0x4] sm:$0xf]
    %v5748 = vld [vmem:[#allocation26 + $0x8] sm:$0xf]
    %v5749 = vld [vmem:[#allocation26 + $0xc] sm:$0xf]
    %v5750 = vpack.c.bf16 %v5745, %v5745
    %v5755 = vunpack.c.l.b16 %v5746
    %v5756 = vunpack.c.l.b16 %v5747
    %v5757 = vunpack.c.l.b16 %v5748
    %v5758 = vunpack.c.l.b16 %v5749
    %v5759 = vpack.c.b16 %v5756, %v5755
    %v5760 = vpack.c.b16 %v5758, %v5757
    %v5764 = vsel %vm463, %v5750, 0
    %5766 = vmatprep.subr.bf16.mxu0 0
    %5767 = vmatpush1.bf16.msra.mxu0 %v5759
    %5768 = vmatprep.subr.bf16.mxu0 0
    %5769 = vmatpush1.bf16.msra.mxu0 %v5760
    %5770 = vmatprep.subr.bf16.mxu0 0
    %5771 = vmatpush1.bf16.msra.mxu0 0
    %5772 = vmatprep.subr.bf16.mxu0 0
    %5773 = vmatpush1.bf16.msra.mxu0 0
    %5774 = vmatprep.subr.bf16.mxu0 0
    %5775 = vmatpush1.bf16.msra.mxu0 0
    %5776 = vmatprep.subr.bf16.mxu0 0
    %5777 = vmatpush1.bf16.msra.mxu0 0
    %5778 = vmatprep.subr.bf16.mxu0 0
    %5779 = vmatpush1.bf16.msra.mxu0 0
    %5780 = vmatprep.subr.bf16.mxu0 0
    %5781 = vmatpush1.bf16.msra.mxu0 0
    %5782 = vmatprep.subr.bf16.mxu0 0
    %5783 = vmatpush1.bf16.msra.mxu0 0
    %5784 = vmatprep.subr.bf16.mxu0 0
    %5785 = vmatpush1.bf16.msra.mxu0 0
    %5786 = vmatprep.subr.bf16.mxu0 0
    %5787 = vmatpush1.bf16.msra.mxu0 0
    %5788 = vmatprep.subr.bf16.mxu0 0
    %5789 = vmatpush1.bf16.msra.mxu0 0
    %5790 = vmatprep.subr.bf16.mxu0 0
    %5791 = vmatpush1.bf16.msra.mxu0 0
    %5792 = vmatprep.subr.bf16.mxu0 0
    %5793 = vmatpush1.bf16.msra.mxu0 0
    %5794 = vmatprep.subr.bf16.mxu0 0
    %5795 = vmatpush1.bf16.msra.mxu0 0
    %5796 = vmatprep.subr.bf16.mxu0 0
    %5797 = vmatpush1.bf16.msra.mxu0 0
    %5798 = vmatprep.mubr.bf16.mxu0 0
    %5799 = vmatmul.mubr.bf16.gmra.mrb[0].mxu0 %v5764
    %v5800 = vpop.f32.mrb[0].mxu0
    %v5801 = vadd.f32 0.0, %v5800
    %v5802 = vpop.f32.mrb[0].mxu0
    %v5803 = vpop.f32.mrb[0].mxu0
    %v5804 = vpop.f32.mrb[0].mxu0
    %5805 = vdwg.mxu0
    %5806 = vst [vmem:[#allocation28] sm:$0x3] %v5801
    // Predicated region
    $region154: #{forward.1} parent=1 // pred_check
      _
    $region155: #{forward.1} parent=1 // pred_check_branch
      %5808 = sbr.rel (0) target = $region157
    $region156: #{forward.1} parent=1 // pred_region
      %s5810 = ssub.s32 32, 32
      %5811 = vsyncadd [#allocation4], %s5810
      %s5813 = sshll.u32 [#allocation28], 4
      %s5814 = int_to_ptr.vmem [resolvable:$true] %s5813
      %5816 = dma.vmem_to_hbm [thread:$0]  %s5814, 32, %s22, [#allocation4]
    $region157: #{forward.1} parent=1 // pred_fallthru
      _
    // Predicated region
    $region158: #{forward.1} parent=1 // pred_check
      _
    $region159: #{forward.1} parent=1 // pred_check_branch
      %5818 = sbr.rel (0) target = $region161
    $region160: #{forward.1} parent=1 // pred_region
      %5819 = dma.done [#allocation4], 32
    $region161: #{forward.1} parent=1 // pred_fallthru
      _
    %5820 = vsyncpa [#allocation3], 1
    %5821 = vsyncpa [#allocation6], 1
    %5822 = vsyncpa [#allocation9], 1
    %5823 = vsyncpa [#allocation12], 1
    %5824 = vsyncpa [#allocation15], 1
    %5825 = vsyncpa [#allocation18], 1
    %5826 = vsyncpa [#allocation21], 1
    %5827 = vsyncpa [#allocation24], 1
    %5828 = vsyncpa [#allocation27], 1
    %5829 = vsyncpa [#allocation4], 1

</llo_original>
